<compile_context>
chip_gen: v7x
topology: tpu7x:2x2x1
jax: 0.10.0
libtpu: 0.0.40
codegen_flags: <defaults>
</compile_context>

<pallas_src>
import jax
import jax.numpy as jnp
from jax.experimental import pallas as pl
from jax.experimental.pallas import tpu as pltpu

# ---------------- scaled-down hyperparameters (real XLSR53: 512/1024/16/4096) ----
C_FEAT = 16                      # feature-extractor channels (real: 512)
D_MODEL = 32                     # encoder dim                 (real: 1024)
N_HEADS = 4                      # attention heads             (real: 16)
HEAD_DIM = D_MODEL // N_HEADS
D_FFN = 64                       # feed-forward dim            (real: 4096)
# (out_channels, kernel, stride) — real XLSR53 kernel/stride pattern kept
CONV_LAYERS = [(C_FEAT, 10, 5)] + [(C_FEAT, 3, 2)] * 5 + [(C_FEAT, 2, 2)]
POS_CONV_K = 3                   # positional conv kernel (real: 128, even -> trim)
POS_CONV_GROUPS = 4              # (real: 16)
NUM_ENCODER_LAYERS = 2           # extract_features(..., num_layers=2)
LN_EPS = 1e-5
OUT_LANES = 128                  # output last dim padded to one full lane tile

# heads declared in __init__ but unused by forward (shapes only)
N_TIMEPOINTS = 2 * D_MODEL
HIDDEN_SIZE = 32
N_LSTM_LAYERS = 1
N_CLASSES = 2


# ============================= in-kernel math helpers ============================
def _gelu(x):
    # TODO(synk): PyTorch nn.GELU defaults to exact erf-GELU; tanh approximation used.
    return 0.5 * x * (1.0 + jnp.tanh(0.7978845608028654 * (x + 0.044715 * x * x * x)))


def _ln(x, g, b):
    mu = jnp.mean(x, axis=-1, keepdims=True)
    xc = x - mu
    var = jnp.mean(xc * xc, axis=-1, keepdims=True)
    return xc * jax.lax.rsqrt(var + LN_EPS) * g + b


def _mm(a, b):
    """a @ b on the MXU: bf16 operands, f32 accumulation (astype is a no-op if
    the operand is already bf16 — weights are pre-cast in the wrapper)."""
    return jnp.dot(a.astype(jnp.bfloat16), b.astype(jnp.bfloat16),
                   preferred_element_type=jnp.float32)


def _mm_nt(a, b):
    """a @ b.T (contract last dims of both): bf16 operands, f32 accumulation."""
    return jax.lax.dot_general(
        a.astype(jnp.bfloat16), b.astype(jnp.bfloat16),
        dimension_numbers=(((1,), (1,)), ((), ())),
        preferred_element_type=jnp.float32)


# ================================ the fused kernel ===============================
def _forward_kernel(
    frames_ref,      # (1, T1, K0) f32   layer-1 im2col frames for this batch element
    conv_w_ref,      # (7, KMAX, C) bf16 per-layer conv weights, tap-major rows, 0-padded
    conv_b_ref,      # (7, C)
    conv_g_ref,      # (7, C)   LayerNorm gamma per conv layer
    conv_beta_ref,   # (7, C)   LayerNorm beta  per conv layer
    proj_ln_ref,     # (2, C)   [gamma; beta]
    proj_w_ref,      # (C, D) bf16
    proj_b_ref,      # (1, D)
    pos_w_ref,       # (K_pos*D, D) bf16  block-diagonal (grouped) positional conv weight
    pos_b_ref,       # (1, D)
    enc_ln_ref,      # (2, D)
    head_mask_ref,   # (H*T, D)  block-diagonal head mask for packed attention
    ln4_ref,         # (L, 4, D) per layer [attn_g, attn_b, ffn_g, ffn_b]
    wqkvo_ref,       # (L, 4*D, D) bf16  per layer [Wq; Wk; Wv; Wo]
    bqkvo_ref,       # (L, 4, D)         per layer [bq; bk; bv; bo]
    w1_ref,          # (L, D, F) bf16
    b1_ref,          # (L, 1, F)
    w2_ref,          # (L, F, D) bf16
    b2_ref,          # (L, 1, D)
    out_ref,         # (1, T, OUT_LANES)
    h_scratch,       # VMEM (T1, C) f32 — staging buffer for strided (decimating) reads
):
    T = out_ref.shape[1]
    D = D_MODEL
    C = C_FEAT

    conv_b = conv_b_ref[...]
    conv_g = conv_g_ref[...]
    conv_bt = conv_beta_ref[...]

    # ------------- conv feature extractor (decimated between layers) -------------
    # Layer 1 (stride 5) is a single im2col matmul on the wrapper-framed input.
    # For layers 2..7 the current activation is written to VMEM scratch and each
    # tap j is read back with a stride-2 sublane read, so only the t_out valid
    # rows of every layer are ever computed and all k taps are merged into one
    # K = k*C matmul (one MXU push + one bf16 cast per layer).
    _, k0, _ = CONV_LAYERS[0]
    y = _mm(frames_ref[0], conv_w_ref[0][0:k0, :]) + conv_b[0:1, :]
    y = _ln(y, conv_g[0:1, :], conv_bt[0:1, :])
    h = _gelu(y)                                               # (T1, C) f32
    m = frames_ref.shape[1]

    for li in range(1, len(CONV_LAYERS)):
        _c_out, k, s = CONV_LAYERS[li]
        t_out = (m - k) // s + 1
        h_scratch[0:m, :] = h
        taps = [h_scratch[pl.ds(j, t_out, s), :] for j in range(k)]
        xin = jnp.concatenate(taps, axis=1)                    # (t_out, k*C)
        y = _mm(xin, conv_w_ref[li][0:k * C, :]) + conv_b[li:li + 1, :]
        y = _ln(y, conv_g[li:li + 1, :], conv_bt[li:li + 1, :])
        h = _gelu(y)
        m = t_out
    # after the last layer h holds exactly the T output frames
    feat = h                                                   # (T, C)

    # ------------------------------ feature projection ---------------------------
    pln = proj_ln_ref[...]
    feat = _ln(feat, pln[0:1, :], pln[1:2, :])
    z = _mm(feat, proj_w_ref[...]) + proj_b_ref[...]           # (T, D)  (dropout=eval)

    # ---------------- positional conv (grouped conv as block-diag dense) ---------
    # taps merged into one (T, 3*D) x (3*D, D) matmul; activation cast once
    zb = z.astype(jnp.bfloat16)
    zpad = jnp.zeros((POS_CONV_K // 2, D), jnp.bfloat16)
    zp = jnp.concatenate([zpad, zb, zpad], axis=0)             # (T+2, D)
    xin_p = jnp.concatenate([zp[j:j + T, :] for j in range(POS_CONV_K)], axis=1)
    pc = _mm(xin_p, pos_w_ref[...])                            # (T, D)
    z = z + _gelu(pc + pos_b_ref[...])

    # ------------------------------ encoder layer-norm ---------------------------
    eln = enc_ln_ref[...]
    z = _ln(z, eln[0:1, :], eln[1:2, :])

    # ---------------- transformer encoder layers (pre-norm, fused) ---------------
    mask = head_mask_ref[...]                                  # (H*T, D)
    scale = HEAD_DIM ** -0.5
    outs = []
    for li in range(NUM_ENCODER_LAYERS):
        ln4 = ln4_ref[li]                                      # (4, D)
        wqkvo = wqkvo_ref[li]                                  # (4*D, D)
        bqkvo = bqkvo_ref[li]                                  # (4, D)

        xn = _ln(z, ln4[0:1, :], ln4[1:2, :])
        q = _mm(xn, wqkvo[0 * D:1 * D, :]) + bqkvo[0:1, :]
        k_ = _mm(xn, wqkvo[1 * D:2 * D, :]) + bqkvo[1:2, :]
        v = _mm(xn, wqkvo[2 * D:3 * D, :]) + bqkvo[2:3, :]

        # all heads packed into ONE (H*T, D) x (D, T) matmul via the block mask
        qt = jnp.concatenate([q] * N_HEADS, axis=0) * mask     # (H*T, D)
        s_ = _mm_nt(qt, k_) * scale                            # (H*T, T)
        s_ = s_ - jnp.max(s_, axis=-1, keepdims=True)
        p = jnp.exp(s_)
        p = p * pl.reciprocal(jnp.sum(p, axis=-1, keepdims=True), approx=True)
        c = _mm(p, v) * mask                                   # (H*T, D)
        ctx = c[0:T, :]
        for hh in range(1, N_HEADS):                           # merge heads
            ctx = ctx + c[hh * T:(hh + 1) * T, :]

        z = z + _mm(ctx, wqkvo[3 * D:4 * D, :]) + bqkvo[3:4, :]

        yn = _ln(z, ln4[2:3, :], ln4[3:4, :])
        ff = _gelu(_mm(yn, w1_ref[li]) + b1_ref[li])
        z = z + _mm(ff, w2_ref[li]) + b2_ref[li]
        outs.append(z)

    # torch.cat(layer_outputs, axis=2) — lane-pad the store to a full 128-lane tile
    res = jnp.concatenate(outs, axis=-1)                       # (T, 2*D)
    pad = jnp.zeros((T, OUT_LANES - 2 * D), jnp.float32)
    out_ref[0] = jnp.concatenate([res, pad], axis=-1).astype(out_ref.dtype)


# ================================ wrapper / glue =================================
def _conv_frame_count(L):
    t = L
    for (_c, k, s) in CONV_LAYERS:
        t = (t - k) // s + 1
    return t


def _frame_layer1(x):
    """im2col for conv layer 1 using only reshape/slice/concat (no gather HLO)."""
    B, L = x.shape
    _, k0, s0 = CONV_LAYERS[0]
    assert k0 % s0 == 0, (k0, s0)
    t1 = (L - k0) // s0 + 1
    rows = L // s0
    r = x[:, :rows * s0].reshape(B, rows, s0)
    nchunk = k0 // s0
    frames = jnp.concatenate([r[:, i:i + t1, :] for i in range(nchunk)], axis=2)
    return frames, t1                                          # (B, t1, k0)


def _pack_params(params):
    conv = params["conv"]
    layers = params["layers"]
    kmax = max(w.shape[0] for (w, _b, _g, _bt) in conv)

    def pad_rows(w):
        return jnp.pad(w, ((0, kmax - w.shape[0]), (0, 0)))

    return dict(
        conv_w=jnp.stack([pad_rows(w) for (w, _b, _g, _bt) in conv], axis=0
                         ).astype(jnp.bfloat16),
        conv_b=jnp.stack([b for (_w, b, _g, _bt) in conv], axis=0),
        conv_g=jnp.stack([g for (_w, _b, g, _bt) in conv], axis=0),
        conv_beta=jnp.stack([bt for (_w, _b, _g, bt) in conv], axis=0),
        proj_ln=jnp.stack([params["proj"]["ln_g"], params["proj"]["ln_b"]], axis=0),
        proj_w=params["proj"]["w"].astype(jnp.bfloat16),
        proj_b=params["proj"]["b"].reshape(1, -1),
        pos_w=params["pos_conv"]["w_dense"].astype(jnp.bfloat16),
        pos_b=params["pos_conv"]["b"].reshape(1, -1),
        enc_ln=jnp.stack([params["enc_ln_g"], params["enc_ln_b"]], axis=0),
        ln4=jnp.stack([jnp.stack([l["attn_ln_g"], l["attn_ln_b"],
                                  l["ffn_ln_g"], l["ffn_ln_b"]], axis=0)
                       for l in layers], axis=0),
        wqkvo=jnp.stack([jnp.concatenate([l["wq"], l["wk"], l["wv"], l["wo"]], axis=0)
                         for l in layers], axis=0).astype(jnp.bfloat16),
        bqkvo=jnp.stack([jnp.stack([l["bq"], l["bk"], l["bv"], l["bo"]], axis=0)
                         for l in layers], axis=0),
        w1=jnp.stack([l["w1"] for l in layers], axis=0).astype(jnp.bfloat16),
        b1=jnp.stack([l["b1"].reshape(1, -1) for l in layers], axis=0),
        w2=jnp.stack([l["w2"] for l in layers], axis=0).astype(jnp.bfloat16),
        b2=jnp.stack([l["b2"].reshape(1, -1) for l in layers], axis=0),
    )


@jax.jit
def classifier_forward(x, params):
    B, L = x.shape
    T = _conv_frame_count(L)
    frames, t1 = _frame_layer1(x)
    k0 = CONV_LAYERS[0][1]

    # trace-time sanity: the decimated cascade lands exactly on T output frames
    m = t1
    for (_c, k, s) in CONV_LAYERS[1:]:
        m = (m - k) // s + 1
    assert m == T, (m, T)

    head_mask = (jnp.arange(N_HEADS * T)[:, None] // T
                 == jnp.arange(D_MODEL)[None, :] // HEAD_DIM).astype(jnp.float32)

    p = _pack_params(params)
    weights = (p["conv_w"], p["conv_b"], p["conv_g"], p["conv_beta"],
               p["proj_ln"], p["proj_w"], p["proj_b"],
               p["pos_w"], p["pos_b"], p["enc_ln"], head_mask,
               p["ln4"], p["wqkvo"], p["bqkvo"],
               p["w1"], p["b1"], p["w2"], p["b2"])

    def whole(a):
        return pl.BlockSpec(a.shape, lambda b, _n=a.ndim: (0,) * _n)

    in_specs = ([pl.BlockSpec((1, t1, k0), lambda b: (b, 0, 0))]
                + [whole(w) for w in weights])
    out_spec = pl.BlockSpec((1, T, OUT_LANES), lambda b: (b, 0, 0))

    out = pl.pallas_call(
        _forward_kernel,
        out_shape=jax.ShapeDtypeStruct((B, T, OUT_LANES), jnp.float32),
        grid=(B,),
        in_specs=in_specs,
        out_specs=out_spec,
        scratch_shapes=[pltpu.VMEM((t1, C_FEAT), jnp.float32)],
        compiler_params=pltpu.CompilerParams(
            dimension_semantics=("parallel",)),   # v7x: shard batch (even B) over both TCs
    )(frames, *weights)
    # NOTE: the PyTorch forward discards this value and returns None (`pass`);
    # we return the concatenated layer-1/layer-2 features so callers can
    # materialize the kernel output (trimming the 128-lane store padding).
    return out[:, :, :2 * D_MODEL]


# ================================ parameter init =================================
def init_params(key):
    keys = iter(jax.random.split(key, 256))

    def nrm(shape, scale=0.05):
        return scale * jax.random.normal(next(keys), shape, jnp.float32)

    conv = []
    c_in = 1
    for (c_out, k, _s) in CONV_LAYERS:
        conv.append(
            (nrm((k * c_in, c_out)), jnp.zeros((c_out,)), jnp.ones((c_out,)), jnp.zeros((c_out,)))
        )
        c_in = c_out

    proj = dict(
        ln_g=jnp.ones((C_FEAT,)), ln_b=jnp.zeros((C_FEAT,)),
        w=nrm((C_FEAT, D_MODEL)), b=jnp.zeros((D_MODEL,)),
    )

    gsz = D_MODEL // POS_CONV_GROUPS
    w_g = nrm((POS_CONV_K, POS_CONV_GROUPS, gsz, gsz))
    w_dense = jnp.zeros((POS_CONV_K, D_MODEL, D_MODEL))
    for g in range(POS_CONV_GROUPS):
        w_dense = w_dense.at[:, g * gsz:(g + 1) * gsz, g * gsz:(g + 1) * gsz].set(w_g[:, g])
    pos_conv = dict(w_dense=w_dense.reshape(POS_CONV_K * D_MODEL, D_MODEL),
                    b=jnp.zeros((D_MODEL,)))

    layers = []
    for _ in range(NUM_ENCODER_LAYERS):
        layers.append(dict(
            attn_ln_g=jnp.ones((D_MODEL,)), attn_ln_b=jnp.zeros((D_MODEL,)),
            wq=nrm((D_MODEL, D_MODEL)), bq=jnp.zeros((D_MODEL,)),
            wk=nrm((D_MODEL, D_MODEL)), bk=jnp.zeros((D_MODEL,)),
            wv=nrm((D_MODEL, D_MODEL)), bv=jnp.zeros((D_MODEL,)),
            wo=nrm((D_MODEL, D_MODEL)), bo=jnp.zeros((D_MODEL,)),
            ffn_ln_g=jnp.ones((D_MODEL,)), ffn_ln_b=jnp.zeros((D_MODEL,)),
            w1=nrm((D_MODEL, D_FFN)), b1=jnp.zeros((D_FFN,)),
            w2=nrm((D_FFN, D_MODEL)), b2=jnp.zeros((D_MODEL,)),
        ))

    # Params from __init__ that forward never uses (nn.LSTM / nn.Linear / Softmax).
    unused_heads = dict(
        lstm_w_ih=nrm((4 * HIDDEN_SIZE, N_TIMEPOINTS)),
        lstm_w_hh=nrm((4 * HIDDEN_SIZE, HIDDEN_SIZE)),
        lstm_b_ih=jnp.zeros((4 * HIDDEN_SIZE,)),
        lstm_b_hh=jnp.zeros((4 * HIDDEN_SIZE,)),
        fc_w=nrm((HIDDEN_SIZE, N_CLASSES)), fc_b=jnp.zeros((N_CLASSES,)),
    )

    return dict(conv=conv, proj=proj, pos_conv=pos_conv,
                enc_ln_g=jnp.ones((D_MODEL,)), enc_ln_b=jnp.zeros((D_MODEL,)),
                layers=layers, unused=unused_heads)


# ===================================== main ======================================
if __name__ == "__main__":
    key = jax.random.PRNGKey(0)
    pkey, xkey = jax.random.split(key)
    params = init_params(pkey)

    B, L = 2, 2048                       # raw waveform input (B, L)
    x = jax.random.normal(xkey, (B, L), jnp.float32)

    t = _conv_frame_count(L)             # expected frames after the conv extractor

    out = classifier_forward(x, params)
    jax.block_until_ready(out)

    assert out.shape == (B, t, 2 * D_MODEL), out.shape
    assert bool(jnp.all(jnp.isfinite(out)))
    print("KERNEL_OK")
</pallas_src>

<mosaic_0001>
module attributes {stable_mosaic.version = 11 : i64} {
  func.func @_forward_kernel(%arg0: i32, %arg1: memref<1x408x10xf32, #tpu.memory_space<vmem>>, %arg2: memref<7x48x16xbf16, #tpu.memory_space<vmem>>, %arg3: memref<7x16xf32, #tpu.memory_space<vmem>>, %arg4: memref<7x16xf32, #tpu.memory_space<vmem>>, %arg5: memref<7x16xf32, #tpu.memory_space<vmem>>, %arg6: memref<2x16xf32, #tpu.memory_space<vmem>>, %arg7: memref<16x32xbf16, #tpu.memory_space<vmem>>, %arg8: memref<1x32xf32, #tpu.memory_space<vmem>>, %arg9: memref<96x32xbf16, #tpu.memory_space<vmem>>, %arg10: memref<1x32xf32, #tpu.memory_space<vmem>>, %arg11: memref<2x32xf32, #tpu.memory_space<vmem>>, %arg12: memref<20x32xf32, #tpu.memory_space<vmem>>, %arg13: memref<2x4x32xf32, #tpu.memory_space<vmem>>, %arg14: memref<2x128x32xbf16, #tpu.memory_space<vmem>>, %arg15: memref<2x4x32xf32, #tpu.memory_space<vmem>>, %arg16: memref<2x32x64xbf16, #tpu.memory_space<vmem>>, %arg17: memref<2x1x64xf32, #tpu.memory_space<vmem>>, %arg18: memref<2x64x32xbf16, #tpu.memory_space<vmem>>, %arg19: memref<2x1x32xf32, #tpu.memory_space<vmem>>, %arg20: memref<1x5x128xf32, #tpu.memory_space<vmem>>, %arg21: memref<408x16xf32, #tpu.memory_space<vmem>>) attributes {dimension_semantics = [#tpu.dimension_semantics<parallel>], iteration_bounds = array<i64: 2>, scalar_prefetch = 0 : i64, scratch_operands = 1 : i64, tpu.core_type = #tpu.core_type<tc>, window_params = [{transform_indices = @transform_0, window_bounds = array<i64: 1, 408, 10>}, {pipeline_mode = #tpu.pipeline_mode<synchronous>, transform_indices = @transform_1, window_bounds = array<i64: 7, 48, 16>}, {pipeline_mode = #tpu.pipeline_mode<synchronous>, transform_indices = @transform_2, window_bounds = array<i64: 7, 16>}, {pipeline_mode = #tpu.pipeline_mode<synchronous>, transform_indices = @transform_3, window_bounds = array<i64: 7, 16>}, {pipeline_mode = #tpu.pipeline_mode<synchronous>, transform_indices = @transform_4, window_bounds = array<i64: 7, 16>}, {pipeline_mode = #tpu.pipeline_mode<synchronous>, transform_indices = @transform_5, window_bounds = array<i64: 2, 16>}, {pipeline_mode = #tpu.pipeline_mode<synchronous>, transform_indices = @transform_6, window_bounds = array<i64: 16, 32>}, {pipeline_mode = #tpu.pipeline_mode<synchronous>, transform_indices = @transform_7, window_bounds = array<i64: 1, 32>}, {pipeline_mode = #tpu.pipeline_mode<synchronous>, transform_indices = @transform_8, window_bounds = array<i64: 96, 32>}, {pipeline_mode = #tpu.pipeline_mode<synchronous>, transform_indices = @transform_9, window_bounds = array<i64: 1, 32>}, {pipeline_mode = #tpu.pipeline_mode<synchronous>, transform_indices = @transform_10, window_bounds = array<i64: 2, 32>}, {pipeline_mode = #tpu.pipeline_mode<synchronous>, transform_indices = @transform_11, window_bounds = array<i64: 20, 32>}, {pipeline_mode = #tpu.pipeline_mode<synchronous>, transform_indices = @transform_12, window_bounds = array<i64: 2, 4, 32>}, {pipeline_mode = #tpu.pipeline_mode<synchronous>, transform_indices = @transform_13, window_bounds = array<i64: 2, 128, 32>}, {pipeline_mode = #tpu.pipeline_mode<synchronous>, transform_indices = @transform_14, window_bounds = array<i64: 2, 4, 32>}, {pipeline_mode = #tpu.pipeline_mode<synchronous>, transform_indices = @transform_15, window_bounds = array<i64: 2, 32, 64>}, {pipeline_mode = #tpu.pipeline_mode<synchronous>, transform_indices = @transform_16, window_bounds = array<i64: 2, 1, 64>}, {pipeline_mode = #tpu.pipeline_mode<synchronous>, transform_indices = @transform_17, window_bounds = array<i64: 2, 64, 32>}, {pipeline_mode = #tpu.pipeline_mode<synchronous>, transform_indices = @transform_18, window_bounds = array<i64: 2, 1, 32>}, {transform_indices = @transform_19, window_bounds = array<i64: 1, 5, 128>}]} {
    %c0 = arith.constant 0 : index
    %c0_0 = arith.constant 0 : index
    %0 = vector.load %arg3[%c0, %c0_0] : memref<7x16xf32, #tpu.memory_space<vmem>>, vector<7x16xf32>
    %c0_1 = arith.constant 0 : index
    %c0_2 = arith.constant 0 : index
    %1 = vector.load %arg4[%c0_1, %c0_2] : memref<7x16xf32, #tpu.memory_space<vmem>>, vector<7x16xf32>
    %c0_3 = arith.constant 0 : index
    %c0_4 = arith.constant 0 : index
    %2 = vector.load %arg5[%c0_3, %c0_4] : memref<7x16xf32, #tpu.memory_space<vmem>>, vector<7x16xf32>
    %c0_5 = arith.constant 0 : index
    %c0_6 = arith.constant 0 : index
    %c0_7 = arith.constant 0 : index
    %3 = vector.load %arg1[%c0_5, %c0_6, %c0_7] : memref<1x408x10xf32, #tpu.memory_space<vmem>>, vector<1x408x10xf32>
    %4 = vector.shape_cast %3 : vector<1x408x10xf32> to vector<408x10xf32>
    %c0_8 = arith.constant 0 : index
    %c0_9 = arith.constant 0 : index
    %c0_10 = arith.constant 0 : index
    %5 = vector.load %arg2[%c0_8, %c0_9, %c0_10] : memref<7x48x16xbf16, #tpu.memory_space<vmem>>, vector<1x48x16xbf16>
    %6 = vector.shape_cast %5 : vector<1x48x16xbf16> to vector<48x16xbf16>
    %7 = vector.extract_strided_slice %6 {offsets = [0, 0], sizes = [10, 16], strides = [1, 1]} : vector<48x16xbf16> to vector<10x16xbf16>
    %8 = arith.truncf %4 : vector<408x10xf32> to vector<408x10xbf16>
    %cst = arith.constant dense<0.000000e+00> : vector<408x16xf32>
    %9 = tpu.matmul %8, %7, %cst {dimension_numbers = #tpu.dot_dimension_numbers<[1], [0], [0], [1], [0, 0, 1, 1], [], []>} : vector<408x10xbf16>, vector<10x16xbf16>, vector<408x16xf32> -> vector<408x16xf32>
    %10 = vector.extract_strided_slice %0 {offsets = [0, 0], sizes = [1, 16], strides = [1, 1]} : vector<7x16xf32> to vector<1x16xf32>
    %11 = vector.broadcast %10 : vector<1x16xf32> to vector<408x16xf32>
    %12 = arith.addf %9, %11 : vector<408x16xf32>
    %13 = vector.extract_strided_slice %1 {offsets = [0, 0], sizes = [1, 16], strides = [1, 1]} : vector<7x16xf32> to vector<1x16xf32>
    %14 = vector.extract_strided_slice %2 {offsets = [0, 0], sizes = [1, 16], strides = [1, 1]} : vector<7x16xf32> to vector<1x16xf32>
    %cst_11 = arith.constant dense<0.000000e+00> : vector<408xf32>
    %15 = vector.multi_reduction <add>, %12, %cst_11 [1] : vector<408x16xf32> to vector<408xf32>
    %16 = vector.shape_cast %15 : vector<408xf32> to vector<408x1xf32>
    %cst_12 = arith.constant 1.600000e+01 : f32
    %17 = vector.broadcast %cst_12 : f32 to vector<408x1xf32>
    %18 = arith.divf %16, %17 : vector<408x1xf32>
    %19 = vector.broadcast %18 : vector<408x1xf32> to vector<408x16xf32>
    %20 = arith.subf %12, %19 : vector<408x16xf32>
    %21 = arith.mulf %20, %20 : vector<408x16xf32>
    %cst_13 = arith.constant dense<0.000000e+00> : vector<408xf32>
    %22 = vector.multi_reduction <add>, %21, %cst_13 [1] : vector<408x16xf32> to vector<408xf32>
    %23 = vector.shape_cast %22 : vector<408xf32> to vector<408x1xf32>
    %cst_14 = arith.constant 1.600000e+01 : f32
    %24 = vector.broadcast %cst_14 : f32 to vector<408x1xf32>
    %25 = arith.divf %23, %24 : vector<408x1xf32>
    %cst_15 = arith.constant 9.99999974E-6 : f32
    %26 = vector.broadcast %cst_15 : f32 to vector<408x1xf32>
    %27 = arith.addf %25, %26 : vector<408x1xf32>
    %28 = math.rsqrt %27 : vector<408x1xf32>
    %29 = vector.broadcast %28 : vector<408x1xf32> to vector<408x16xf32>
    %30 = arith.mulf %20, %29 : vector<408x16xf32>
    %31 = vector.broadcast %13 : vector<1x16xf32> to vector<408x16xf32>
    %32 = arith.mulf %30, %31 : vector<408x16xf32>
    %33 = vector.broadcast %14 : vector<1x16xf32> to vector<408x16xf32>
    %34 = arith.addf %32, %33 : vector<408x16xf32>
    %cst_16 = arith.constant 5.000000e-01 : f32
    %35 = vector.broadcast %cst_16 : f32 to vector<408x16xf32>
    %36 = arith.mulf %35, %34 : vector<408x16xf32>
    %cst_17 = arith.constant 4.471500e-02 : f32
    %37 = vector.broadcast %cst_17 : f32 to vector<408x16xf32>
    %38 = arith.mulf %37, %34 : vector<408x16xf32>
    %39 = arith.mulf %38, %34 : vector<408x16xf32>
    %40 = arith.mulf %39, %34 : vector<408x16xf32>
    %41 = arith.addf %34, %40 : vector<408x16xf32>
    %cst_18 = arith.constant 0.797884583 : f32
    %42 = vector.broadcast %cst_18 : f32 to vector<408x16xf32>
    %43 = arith.mulf %42, %41 : vector<408x16xf32>
    %44 = math.tanh %43 : vector<408x16xf32>
    %cst_19 = arith.constant 1.000000e+00 : f32
    %45 = vector.broadcast %cst_19 : f32 to vector<408x16xf32>
    %46 = arith.addf %45, %44 : vector<408x16xf32>
    %47 = arith.mulf %36, %46 : vector<408x16xf32>
    %c0_20 = arith.constant 0 : index
    %c0_21 = arith.constant 0 : index
    %48 = vector.load %arg21[%c0_20, %c0_21] : memref<408x16xf32, #tpu.memory_space<vmem>>, vector<408x16xf32>
    tpu.vector_store %arg21[%c0_20, %c0_21], %47 {strides = array<i32>} : memref<408x16xf32, #tpu.memory_space<vmem>>, vector<408x16xf32>,
    %c0_22 = arith.constant 0 : index
    %c0_23 = arith.constant 0 : index
    %49 = tpu.strided_load %arg21[%c0_22, %c0_23] {strides = array<i32: 2, 1>} : memref<408x16xf32, #tpu.memory_space<vmem>>, vector<203x16xf32>
    %c1 = arith.constant 1 : index
    %c0_24 = arith.constant 0 : index
    %50 = tpu.strided_load %arg21[%c1, %c0_24] {strides = array<i32: 2, 1>} : memref<408x16xf32, #tpu.memory_space<vmem>>, vector<203x16xf32>
    %c2 = arith.constant 2 : index
    %c0_25 = arith.constant 0 : index
    %51 = tpu.strided_load %arg21[%c2, %c0_25] {strides = array<i32: 2, 1>} : memref<408x16xf32, #tpu.memory_space<vmem>>, vector<203x16xf32>
    %52 = tpu.concatenate %49, %50, %51 in 1 : vector<203x16xf32>, vector<203x16xf32>, vector<203x16xf32> -> vector<203x48xf32>
    %c1_26 = arith.constant 1 : index
    %c0_27 = arith.constant 0 : index
    %c0_28 = arith.constant 0 : index
    %53 = vector.load %arg2[%c1_26, %c0_27, %c0_28] : memref<7x48x16xbf16, #tpu.memory_space<vmem>>, vector<1x48x16xbf16>
    %54 = vector.shape_cast %53 : vector<1x48x16xbf16> to vector<48x16xbf16>
    %55 = arith.truncf %52 : vector<203x48xf32> to vector<203x48xbf16>
    %cst_29 = arith.constant dense<0.000000e+00> : vector<203x16xf32>
    %56 = tpu.matmul %55, %54, %cst_29 {dimension_numbers = #tpu.dot_dimension_numbers<[1], [0], [0], [1], [0, 0, 1, 1], [], []>} : vector<203x48xbf16>, vector<48x16xbf16>, vector<203x16xf32> -> vector<203x16xf32>
    %57 = vector.extract_strided_slice %0 {offsets = [1, 0], sizes = [1, 16], strides = [1, 1]} : vector<7x16xf32> to vector<1x16xf32>
    %58 = vector.broadcast %57 : vector<1x16xf32> to vector<203x16xf32>
    %59 = arith.addf %56, %58 : vector<203x16xf32>
    %60 = vector.extract_strided_slice %1 {offsets = [1, 0], sizes = [1, 16], strides = [1, 1]} : vector<7x16xf32> to vector<1x16xf32>
    %61 = vector.extract_strided_slice %2 {offsets = [1, 0], sizes = [1, 16], strides = [1, 1]} : vector<7x16xf32> to vector<1x16xf32>
    %cst_30 = arith.constant dense<0.000000e+00> : vector<203xf32>
    %62 = vector.multi_reduction <add>, %59, %cst_30 [1] : vector<203x16xf32> to vector<203xf32>
    %63 = vector.shape_cast %62 : vector<203xf32> to vector<203x1xf32>
    %cst_31 = arith.constant 1.600000e+01 : f32
    %64 = vector.broadcast %cst_31 : f32 to vector<203x1xf32>
    %65 = arith.divf %63, %64 : vector<203x1xf32>
    %66 = vector.broadcast %65 : vector<203x1xf32> to vector<203x16xf32>
    %67 = arith.subf %59, %66 : vector<203x16xf32>
    %68 = arith.mulf %67, %67 : vector<203x16xf32>
    %cst_32 = arith.constant dense<0.000000e+00> : vector<203xf32>
    %69 = vector.multi_reduction <add>, %68, %cst_32 [1] : vector<203x16xf32> to vector<203xf32>
    %70 = vector.shape_cast %69 : vector<203xf32> to vector<203x1xf32>
    %cst_33 = arith.constant 1.600000e+01 : f32
    %71 = vector.broadcast %cst_33 : f32 to vector<203x1xf32>
    %72 = arith.divf %70, %71 : vector<203x1xf32>
    %cst_34 = arith.constant 9.99999974E-6 : f32
    %73 = vector.broadcast %cst_34 : f32 to vector<203x1xf32>
    %74 = arith.addf %72, %73 : vector<203x1xf32>
    %75 = math.rsqrt %74 : vector<203x1xf32>
    %76 = vector.broadcast %75 : vector<203x1xf32> to vector<203x16xf32>
    %77 = arith.mulf %67, %76 : vector<203x16xf32>
    %78 = vector.broadcast %60 : vector<1x16xf32> to vector<203x16xf32>
    %79 = arith.mulf %77, %78 : vector<203x16xf32>
    %80 = vector.broadcast %61 : vector<1x16xf32> to vector<203x16xf32>
    %81 = arith.addf %79, %80 : vector<203x16xf32>
    %cst_35 = arith.constant 5.000000e-01 : f32
    %82 = vector.broadcast %cst_35 : f32 to vector<203x16xf32>
    %83 = arith.mulf %82, %81 : vector<203x16xf32>
    %cst_36 = arith.constant 4.471500e-02 : f32
    %84 = vector.broadcast %cst_36 : f32 to vector<203x16xf32>
    %85 = arith.mulf %84, %81 : vector<203x16xf32>
    %86 = arith.mulf %85, %81 : vector<203x16xf32>
    %87 = arith.mulf %86, %81 : vector<203x16xf32>
    %88 = arith.addf %81, %87 : vector<203x16xf32>
    %cst_37 = arith.constant 0.797884583 : f32
    %89 = vector.broadcast %cst_37 : f32 to vector<203x16xf32>
    %90 = arith.mulf %89, %88 : vector<203x16xf32>
    %91 = math.tanh %90 : vector<203x16xf32>
    %cst_38 = arith.constant 1.000000e+00 : f32
    %92 = vector.broadcast %cst_38 : f32 to vector<203x16xf32>
    %93 = arith.addf %92, %91 : vector<203x16xf32>
    %94 = arith.mulf %83, %93 : vector<203x16xf32>
    %c0_39 = arith.constant 0 : index
    %c0_40 = arith.constant 0 : index
    %95 = vector.load %arg21[%c0_39, %c0_40] : memref<408x16xf32, #tpu.memory_space<vmem>>, vector<203x16xf32>
    tpu.vector_store %arg21[%c0_39, %c0_40], %94 {strides = array<i32>} : memref<408x16xf32, #tpu.memory_space<vmem>>, vector<203x16xf32>,
    %c0_41 = arith.constant 0 : index
    %c0_42 = arith.constant 0 : index
    %96 = tpu.strided_load %arg21[%c0_41, %c0_42] {strides = array<i32: 2, 1>} : memref<408x16xf32, #tpu.memory_space<vmem>>, vector<101x16xf32>
    %c1_43 = arith.constant 1 : index
    %c0_44 = arith.constant 0 : index
    %97 = tpu.strided_load %arg21[%c1_43, %c0_44] {strides = array<i32: 2, 1>} : memref<408x16xf32, #tpu.memory_space<vmem>>, vector<101x16xf32>
    %c2_45 = arith.constant 2 : index
    %c0_46 = arith.constant 0 : index
    %98 = tpu.strided_load %arg21[%c2_45, %c0_46] {strides = array<i32: 2, 1>} : memref<408x16xf32, #tpu.memory_space<vmem>>, vector<101x16xf32>
    %99 = tpu.concatenate %96, %97, %98 in 1 : vector<101x16xf32>, vector<101x16xf32>, vector<101x16xf32> -> vector<101x48xf32>
    %c2_47 = arith.constant 2 : index
    %c0_48 = arith.constant 0 : index
    %c0_49 = arith.constant 0 : index
    %100 = vector.load %arg2[%c2_47, %c0_48, %c0_49] : memref<7x48x16xbf16, #tpu.memory_space<vmem>>, vector<1x48x16xbf16>
    %101 = vector.shape_cast %100 : vector<1x48x16xbf16> to vector<48x16xbf16>
    %102 = arith.truncf %99 : vector<101x48xf32> to vector<101x48xbf16>
    %cst_50 = arith.constant dense<0.000000e+00> : vector<101x16xf32>
    %103 = tpu.matmul %102, %101, %cst_50 {dimension_numbers = #tpu.dot_dimension_numbers<[1], [0], [0], [1], [0, 0, 1, 1], [], []>} : vector<101x48xbf16>, vector<48x16xbf16>, vector<101x16xf32> -> vector<101x16xf32>
    %104 = vector.extract_strided_slice %0 {offsets = [2, 0], sizes = [1, 16], strides = [1, 1]} : vector<7x16xf32> to vector<1x16xf32>
    %105 = vector.broadcast %104 : vector<1x16xf32> to vector<101x16xf32>
    %106 = arith.addf %103, %105 : vector<101x16xf32>
    %107 = vector.extract_strided_slice %1 {offsets = [2, 0], sizes = [1, 16], strides = [1, 1]} : vector<7x16xf32> to vector<1x16xf32>
    %108 = vector.extract_strided_slice %2 {offsets = [2, 0], sizes = [1, 16], strides = [1, 1]} : vector<7x16xf32> to vector<1x16xf32>
    %cst_51 = arith.constant dense<0.000000e+00> : vector<101xf32>
    %109 = vector.multi_reduction <add>, %106, %cst_51 [1] : vector<101x16xf32> to vector<101xf32>
    %110 = vector.shape_cast %109 : vector<101xf32> to vector<101x1xf32>
    %cst_52 = arith.constant 1.600000e+01 : f32
    %111 = vector.broadcast %cst_52 : f32 to vector<101x1xf32>
    %112 = arith.divf %110, %111 : vector<101x1xf32>
    %113 = vector.broadcast %112 : vector<101x1xf32> to vector<101x16xf32>
    %114 = arith.subf %106, %113 : vector<101x16xf32>
    %115 = arith.mulf %114, %114 : vector<101x16xf32>
    %cst_53 = arith.constant dense<0.000000e+00> : vector<101xf32>
    %116 = vector.multi_reduction <add>, %115, %cst_53 [1] : vector<101x16xf32> to vector<101xf32>
    %117 = vector.shape_cast %116 : vector<101xf32> to vector<101x1xf32>
    %cst_54 = arith.constant 1.600000e+01 : f32
    %118 = vector.broadcast %cst_54 : f32 to vector<101x1xf32>
    %119 = arith.divf %117, %118 : vector<101x1xf32>
    %cst_55 = arith.constant 9.99999974E-6 : f32
    %120 = vector.broadcast %cst_55 : f32 to vector<101x1xf32>
    %121 = arith.addf %119, %120 : vector<101x1xf32>
    %122 = math.rsqrt %121 : vector<101x1xf32>
    %123 = vector.broadcast %122 : vector<101x1xf32> to vector<101x16xf32>
    %124 = arith.mulf %114, %123 : vector<101x16xf32>
    %125 = vector.broadcast %107 : vector<1x16xf32> to vector<101x16xf32>
    %126 = arith.mulf %124, %125 : vector<101x16xf32>
    %127 = vector.broadcast %108 : vector<1x16xf32> to vector<101x16xf32>
    %128 = arith.addf %126, %127 : vector<101x16xf32>
    %cst_56 = arith.constant 5.000000e-01 : f32
    %129 = vector.broadcast %cst_56 : f32 to vector<101x16xf32>
    %130 = arith.mulf %129, %128 : vector<101x16xf32>
    %cst_57 = arith.constant 4.471500e-02 : f32
    %131 = vector.broadcast %cst_57 : f32 to vector<101x16xf32>
    %132 = arith.mulf %131, %128 : vector<101x16xf32>
    %133 = arith.mulf %132, %128 : vector<101x16xf32>
    %134 = arith.mulf %133, %128 : vector<101x16xf32>
    %135 = arith.addf %128, %134 : vector<101x16xf32>
    %cst_58 = arith.constant 0.797884583 : f32
    %136 = vector.broadcast %cst_58 : f32 to vector<101x16xf32>
    %137 = arith.mulf %136, %135 : vector<101x16xf32>
    %138 = math.tanh %137 : vector<101x16xf32>
    %cst_59 = arith.constant 1.000000e+00 : f32
    %139 = vector.broadcast %cst_59 : f32 to vector<101x16xf32>
    %140 = arith.addf %139, %138 : vector<101x16xf32>
    %141 = arith.mulf %130, %140 : vector<101x16xf32>
    %c0_60 = arith.constant 0 : index
    %c0_61 = arith.constant 0 : index
    %142 = vector.load %arg21[%c0_60, %c0_61] : memref<408x16xf32, #tpu.memory_space<vmem>>, vector<101x16xf32>
    tpu.vector_store %arg21[%c0_60, %c0_61], %141 {strides = array<i32>} : memref<408x16xf32, #tpu.memory_space<vmem>>, vector<101x16xf32>,
    %c0_62 = arith.constant 0 : index
    %c0_63 = arith.constant 0 : index
    %143 = tpu.strided_load %arg21[%c0_62, %c0_63] {strides = array<i32: 2, 1>} : memref<408x16xf32, #tpu.memory_space<vmem>>, vector<50x16xf32>
    %c1_64 = arith.constant 1 : index
    %c0_65 = arith.constant 0 : index
    %144 = tpu.strided_load %arg21[%c1_64, %c0_65] {strides = array<i32: 2, 1>} : memref<408x16xf32, #tpu.memory_space<vmem>>, vector<50x16xf32>
    %c2_66 = arith.constant 2 : index
    %c0_67 = arith.constant 0 : index
    %145 = tpu.strided_load %arg21[%c2_66, %c0_67] {strides = array<i32: 2, 1>} : memref<408x16xf32, #tpu.memory_space<vmem>>, vector<50x16xf32>
    %146 = tpu.concatenate %143, %144, %145 in 1 : vector<50x16xf32>, vector<50x16xf32>, vector<50x16xf32> -> vector<50x48xf32>
    %c3 = arith.constant 3 : index
    %c0_68 = arith.constant 0 : index
    %c0_69 = arith.constant 0 : index
    %147 = vector.load %arg2[%c3, %c0_68, %c0_69] : memref<7x48x16xbf16, #tpu.memory_space<vmem>>, vector<1x48x16xbf16>
    %148 = vector.shape_cast %147 : vector<1x48x16xbf16> to vector<48x16xbf16>
    %149 = arith.truncf %146 : vector<50x48xf32> to vector<50x48xbf16>
    %cst_70 = arith.constant dense<0.000000e+00> : vector<50x16xf32>
    %150 = tpu.matmul %149, %148, %cst_70 {dimension_numbers = #tpu.dot_dimension_numbers<[1], [0], [0], [1], [0, 0, 1, 1], [], []>} : vector<50x48xbf16>, vector<48x16xbf16>, vector<50x16xf32> -> vector<50x16xf32>
    %151 = vector.extract_strided_slice %0 {offsets = [3, 0], sizes = [1, 16], strides = [1, 1]} : vector<7x16xf32> to vector<1x16xf32>
    %152 = vector.broadcast %151 : vector<1x16xf32> to vector<50x16xf32>
    %153 = arith.addf %150, %152 : vector<50x16xf32>
    %154 = vector.extract_strided_slice %1 {offsets = [3, 0], sizes = [1, 16], strides = [1, 1]} : vector<7x16xf32> to vector<1x16xf32>
    %155 = vector.extract_strided_slice %2 {offsets = [3, 0], sizes = [1, 16], strides = [1, 1]} : vector<7x16xf32> to vector<1x16xf32>
    %cst_71 = arith.constant dense<0.000000e+00> : vector<50xf32>
    %156 = vector.multi_reduction <add>, %153, %cst_71 [1] : vector<50x16xf32> to vector<50xf32>
    %157 = vector.shape_cast %156 : vector<50xf32> to vector<50x1xf32>
    %cst_72 = arith.constant 1.600000e+01 : f32
    %158 = vector.broadcast %cst_72 : f32 to vector<50x1xf32>
    %159 = arith.divf %157, %158 : vector<50x1xf32>
    %160 = vector.broadcast %159 : vector<50x1xf32> to vector<50x16xf32>
    %161 = arith.subf %153, %160 : vector<50x16xf32>
    %162 = arith.mulf %161, %161 : vector<50x16xf32>
    %cst_73 = arith.constant dense<0.000000e+00> : vector<50xf32>
    %163 = vector.multi_reduction <add>, %162, %cst_73 [1] : vector<50x16xf32> to vector<50xf32>
    %164 = vector.shape_cast %163 : vector<50xf32> to vector<50x1xf32>
    %cst_74 = arith.constant 1.600000e+01 : f32
    %165 = vector.broadcast %cst_74 : f32 to vector<50x1xf32>
    %166 = arith.divf %164, %165 : vector<50x1xf32>
    %cst_75 = arith.constant 9.99999974E-6 : f32
    %167 = vector.broadcast %cst_75 : f32 to vector<50x1xf32>
    %168 = arith.addf %166, %167 : vector<50x1xf32>
    %169 = math.rsqrt %168 : vector<50x1xf32>
    %170 = vector.broadcast %169 : vector<50x1xf32> to vector<50x16xf32>
    %171 = arith.mulf %161, %170 : vector<50x16xf32>
    %172 = vector.broadcast %154 : vector<1x16xf32> to vector<50x16xf32>
    %173 = arith.mulf %171, %172 : vector<50x16xf32>
    %174 = vector.broadcast %155 : vector<1x16xf32> to vector<50x16xf32>
    %175 = arith.addf %173, %174 : vector<50x16xf32>
    %cst_76 = arith.constant 5.000000e-01 : f32
    %176 = vector.broadcast %cst_76 : f32 to vector<50x16xf32>
    %177 = arith.mulf %176, %175 : vector<50x16xf32>
    %cst_77 = arith.constant 4.471500e-02 : f32
    %178 = vector.broadcast %cst_77 : f32 to vector<50x16xf32>
    %179 = arith.mulf %178, %175 : vector<50x16xf32>
    %180 = arith.mulf %179, %175 : vector<50x16xf32>
    %181 = arith.mulf %180, %175 : vector<50x16xf32>
    %182 = arith.addf %175, %181 : vector<50x16xf32>
    %cst_78 = arith.constant 0.797884583 : f32
    %183 = vector.broadcast %cst_78 : f32 to vector<50x16xf32>
    %184 = arith.mulf %183, %182 : vector<50x16xf32>
    %185 = math.tanh %184 : vector<50x16xf32>
    %cst_79 = arith.constant 1.000000e+00 : f32
    %186 = vector.broadcast %cst_79 : f32 to vector<50x16xf32>
    %187 = arith.addf %186, %185 : vector<50x16xf32>
    %188 = arith.mulf %177, %187 : vector<50x16xf32>
    %c0_80 = arith.constant 0 : index
    %c0_81 = arith.constant 0 : index
    %189 = vector.load %arg21[%c0_80, %c0_81] : memref<408x16xf32, #tpu.memory_space<vmem>>, vector<50x16xf32>
    tpu.vector_store %arg21[%c0_80, %c0_81], %188 {strides = array<i32>} : memref<408x16xf32, #tpu.memory_space<vmem>>, vector<50x16xf32>,
    %c0_82 = arith.constant 0 : index
    %c0_83 = arith.constant 0 : index
    %190 = tpu.strided_load %arg21[%c0_82, %c0_83] {strides = array<i32: 2, 1>} : memref<408x16xf32, #tpu.memory_space<vmem>>, vector<24x16xf32>
    %c1_84 = arith.constant 1 : index
    %c0_85 = arith.constant 0 : index
    %191 = tpu.strided_load %arg21[%c1_84, %c0_85] {strides = array<i32: 2, 1>} : memref<408x16xf32, #tpu.memory_space<vmem>>, vector<24x16xf32>
    %c2_86 = arith.constant 2 : index
    %c0_87 = arith.constant 0 : index
    %192 = tpu.strided_load %arg21[%c2_86, %c0_87] {strides = array<i32: 2, 1>} : memref<408x16xf32, #tpu.memory_space<vmem>>, vector<24x16xf32>
    %193 = tpu.concatenate %190, %191, %192 in 1 : vector<24x16xf32>, vector<24x16xf32>, vector<24x16xf32> -> vector<24x48xf32>
    %c4 = arith.constant 4 : index
    %c0_88 = arith.constant 0 : index
    %c0_89 = arith.constant 0 : index
    %194 = vector.load %arg2[%c4, %c0_88, %c0_89] : memref<7x48x16xbf16, #tpu.memory_space<vmem>>, vector<1x48x16xbf16>
    %195 = vector.shape_cast %194 : vector<1x48x16xbf16> to vector<48x16xbf16>
    %196 = arith.truncf %193 : vector<24x48xf32> to vector<24x48xbf16>
    %cst_90 = arith.constant dense<0.000000e+00> : vector<24x16xf32>
    %197 = tpu.matmul %196, %195, %cst_90 {dimension_numbers = #tpu.dot_dimension_numbers<[1], [0], [0], [1], [0, 0, 1, 1], [], []>} : vector<24x48xbf16>, vector<48x16xbf16>, vector<24x16xf32> -> vector<24x16xf32>
    %198 = vector.extract_strided_slice %0 {offsets = [4, 0], sizes = [1, 16], strides = [1, 1]} : vector<7x16xf32> to vector<1x16xf32>
    %199 = vector.broadcast %198 : vector<1x16xf32> to vector<24x16xf32>
    %200 = arith.addf %197, %199 : vector<24x16xf32>
    %201 = vector.extract_strided_slice %1 {offsets = [4, 0], sizes = [1, 16], strides = [1, 1]} : vector<7x16xf32> to vector<1x16xf32>
    %202 = vector.extract_strided_slice %2 {offsets = [4, 0], sizes = [1, 16], strides = [1, 1]} : vector<7x16xf32> to vector<1x16xf32>
    %cst_91 = arith.constant dense<0.000000e+00> : vector<24xf32>
    %203 = vector.multi_reduction <add>, %200, %cst_91 [1] : vector<24x16xf32> to vector<24xf32>
    %204 = vector.shape_cast %203 : vector<24xf32> to vector<24x1xf32>
    %cst_92 = arith.constant 1.600000e+01 : f32
    %205 = vector.broadcast %cst_92 : f32 to vector<24x1xf32>
    %206 = arith.divf %204, %205 : vector<24x1xf32>
    %207 = vector.broadcast %206 : vector<24x1xf32> to vector<24x16xf32>
    %208 = arith.subf %200, %207 : vector<24x16xf32>
    %209 = arith.mulf %208, %208 : vector<24x16xf32>
    %cst_93 = arith.constant dense<0.000000e+00> : vector<24xf32>
    %210 = vector.multi_reduction <add>, %209, %cst_93 [1] : vector<24x16xf32> to vector<24xf32>
    %211 = vector.shape_cast %210 : vector<24xf32> to vector<24x1xf32>
    %cst_94 = arith.constant 1.600000e+01 : f32
    %212 = vector.broadcast %cst_94 : f32 to vector<24x1xf32>
    %213 = arith.divf %211, %212 : vector<24x1xf32>
    %cst_95 = arith.constant 9.99999974E-6 : f32
    %214 = vector.broadcast %cst_95 : f32 to vector<24x1xf32>
    %215 = arith.addf %213, %214 : vector<24x1xf32>
    %216 = math.rsqrt %215 : vector<24x1xf32>
    %217 = vector.broadcast %216 : vector<24x1xf32> to vector<24x16xf32>
    %218 = arith.mulf %208, %217 : vector<24x16xf32>
    %219 = vector.broadcast %201 : vector<1x16xf32> to vector<24x16xf32>
    %220 = arith.mulf %218, %219 : vector<24x16xf32>
    %221 = vector.broadcast %202 : vector<1x16xf32> to vector<24x16xf32>
    %222 = arith.addf %220, %221 : vector<24x16xf32>
    %cst_96 = arith.constant 5.000000e-01 : f32
    %223 = vector.broadcast %cst_96 : f32 to vector<24x16xf32>
    %224 = arith.mulf %223, %222 : vector<24x16xf32>
    %cst_97 = arith.constant 4.471500e-02 : f32
    %225 = vector.broadcast %cst_97 : f32 to vector<24x16xf32>
    %226 = arith.mulf %225, %222 : vector<24x16xf32>
    %227 = arith.mulf %226, %222 : vector<24x16xf32>
    %228 = arith.mulf %227, %222 : vector<24x16xf32>
    %229 = arith.addf %222, %228 : vector<24x16xf32>
    %cst_98 = arith.constant 0.797884583 : f32
    %230 = vector.broadcast %cst_98 : f32 to vector<24x16xf32>
    %231 = arith.mulf %230, %229 : vector<24x16xf32>
    %232 = math.tanh %231 : vector<24x16xf32>
    %cst_99 = arith.constant 1.000000e+00 : f32
    %233 = vector.broadcast %cst_99 : f32 to vector<24x16xf32>
    %234 = arith.addf %233, %232 : vector<24x16xf32>
    %235 = arith.mulf %224, %234 : vector<24x16xf32>
    %c0_100 = arith.constant 0 : index
    %c0_101 = arith.constant 0 : index
    %236 = vector.load %arg21[%c0_100, %c0_101] : memref<408x16xf32, #tpu.memory_space<vmem>>, vector<24x16xf32>
    tpu.vector_store %arg21[%c0_100, %c0_101], %235 {strides = array<i32>} : memref<408x16xf32, #tpu.memory_space<vmem>>, vector<24x16xf32>,
    %c0_102 = arith.constant 0 : index
    %c0_103 = arith.constant 0 : index
    %237 = tpu.strided_load %arg21[%c0_102, %c0_103] {strides = array<i32: 2, 1>} : memref<408x16xf32, #tpu.memory_space<vmem>>, vector<11x16xf32>
    %c1_104 = arith.constant 1 : index
    %c0_105 = arith.constant 0 : index
    %238 = tpu.strided_load %arg21[%c1_104, %c0_105] {strides = array<i32: 2, 1>} : memref<408x16xf32, #tpu.memory_space<vmem>>, vector<11x16xf32>
    %c2_106 = arith.constant 2 : index
    %c0_107 = arith.constant 0 : index
    %239 = tpu.strided_load %arg21[%c2_106, %c0_107] {strides = array<i32: 2, 1>} : memref<408x16xf32, #tpu.memory_space<vmem>>, vector<11x16xf32>
    %240 = tpu.concatenate %237, %238, %239 in 1 : vector<11x16xf32>, vector<11x16xf32>, vector<11x16xf32> -> vector<11x48xf32>
    %c5 = arith.constant 5 : index
    %c0_108 = arith.constant 0 : index
    %c0_109 = arith.constant 0 : index
    %241 = vector.load %arg2[%c5, %c0_108, %c0_109] : memref<7x48x16xbf16, #tpu.memory_space<vmem>>, vector<1x48x16xbf16>
    %242 = vector.shape_cast %241 : vector<1x48x16xbf16> to vector<48x16xbf16>
    %243 = arith.truncf %240 : vector<11x48xf32> to vector<11x48xbf16>
    %cst_110 = arith.constant dense<0.000000e+00> : vector<11x16xf32>
    %244 = tpu.matmul %243, %242, %cst_110 {dimension_numbers = #tpu.dot_dimension_numbers<[1], [0], [0], [1], [0, 0, 1, 1], [], []>} : vector<11x48xbf16>, vector<48x16xbf16>, vector<11x16xf32> -> vector<11x16xf32>
    %245 = vector.extract_strided_slice %0 {offsets = [5, 0], sizes = [1, 16], strides = [1, 1]} : vector<7x16xf32> to vector<1x16xf32>
    %246 = vector.broadcast %245 : vector<1x16xf32> to vector<11x16xf32>
    %247 = arith.addf %244, %246 : vector<11x16xf32>
    %248 = vector.extract_strided_slice %1 {offsets = [5, 0], sizes = [1, 16], strides = [1, 1]} : vector<7x16xf32> to vector<1x16xf32>
    %249 = vector.extract_strided_slice %2 {offsets = [5, 0], sizes = [1, 16], strides = [1, 1]} : vector<7x16xf32> to vector<1x16xf32>
    %cst_111 = arith.constant dense<0.000000e+00> : vector<11xf32>
    %250 = vector.multi_reduction <add>, %247, %cst_111 [1] : vector<11x16xf32> to vector<11xf32>
    %251 = vector.shape_cast %250 : vector<11xf32> to vector<11x1xf32>
    %cst_112 = arith.constant 1.600000e+01 : f32
    %252 = vector.broadcast %cst_112 : f32 to vector<11x1xf32>
    %253 = arith.divf %251, %252 : vector<11x1xf32>
    %254 = vector.broadcast %253 : vector<11x1xf32> to vector<11x16xf32>
    %255 = arith.subf %247, %254 : vector<11x16xf32>
    %256 = arith.mulf %255, %255 : vector<11x16xf32>
    %cst_113 = arith.constant dense<0.000000e+00> : vector<11xf32>
    %257 = vector.multi_reduction <add>, %256, %cst_113 [1] : vector<11x16xf32> to vector<11xf32>
    %258 = vector.shape_cast %257 : vector<11xf32> to vector<11x1xf32>
    %cst_114 = arith.constant 1.600000e+01 : f32
    %259 = vector.broadcast %cst_114 : f32 to vector<11x1xf32>
    %260 = arith.divf %258, %259 : vector<11x1xf32>
    %cst_115 = arith.constant 9.99999974E-6 : f32
    %261 = vector.broadcast %cst_115 : f32 to vector<11x1xf32>
    %262 = arith.addf %260, %261 : vector<11x1xf32>
    %263 = math.rsqrt %262 : vector<11x1xf32>
    %264 = vector.broadcast %263 : vector<11x1xf32> to vector<11x16xf32>
    %265 = arith.mulf %255, %264 : vector<11x16xf32>
    %266 = vector.broadcast %248 : vector<1x16xf32> to vector<11x16xf32>
    %267 = arith.mulf %265, %266 : vector<11x16xf32>
    %268 = vector.broadcast %249 : vector<1x16xf32> to vector<11x16xf32>
    %269 = arith.addf %267, %268 : vector<11x16xf32>
    %cst_116 = arith.constant 5.000000e-01 : f32
    %270 = vector.broadcast %cst_116 : f32 to vector<11x16xf32>
    %271 = arith.mulf %270, %269 : vector<11x16xf32>
    %cst_117 = arith.constant 4.471500e-02 : f32
    %272 = vector.broadcast %cst_117 : f32 to vector<11x16xf32>
    %273 = arith.mulf %272, %269 : vector<11x16xf32>
    %274 = arith.mulf %273, %269 : vector<11x16xf32>
    %275 = arith.mulf %274, %269 : vector<11x16xf32>
    %276 = arith.addf %269, %275 : vector<11x16xf32>
    %cst_118 = arith.constant 0.797884583 : f32
    %277 = vector.broadcast %cst_118 : f32 to vector<11x16xf32>
    %278 = arith.mulf %277, %276 : vector<11x16xf32>
    %279 = math.tanh %278 : vector<11x16xf32>
    %cst_119 = arith.constant 1.000000e+00 : f32
    %280 = vector.broadcast %cst_119 : f32 to vector<11x16xf32>
    %281 = arith.addf %280, %279 : vector<11x16xf32>
    %282 = arith.mulf %271, %281 : vector<11x16xf32>
    %c0_120 = arith.constant 0 : index
    %c0_121 = arith.constant 0 : index
    %283 = vector.load %arg21[%c0_120, %c0_121] : memref<408x16xf32, #tpu.memory_space<vmem>>, vector<11x16xf32>
    tpu.vector_store %arg21[%c0_120, %c0_121], %282 {strides = array<i32>} : memref<408x16xf32, #tpu.memory_space<vmem>>, vector<11x16xf32>,
    %c0_122 = arith.constant 0 : index
    %c0_123 = arith.constant 0 : index
    %284 = tpu.strided_load %arg21[%c0_122, %c0_123] {strides = array<i32: 2, 1>} : memref<408x16xf32, #tpu.memory_space<vmem>>, vector<5x16xf32>
    %c1_124 = arith.constant 1 : index
    %c0_125 = arith.constant 0 : index
    %285 = tpu.strided_load %arg21[%c1_124, %c0_125] {strides = array<i32: 2, 1>} : memref<408x16xf32, #tpu.memory_space<vmem>>, vector<5x16xf32>
    %286 = tpu.concatenate %284, %285 in 1 : vector<5x16xf32>, vector<5x16xf32> -> vector<5x32xf32>
    %c6 = arith.constant 6 : index
    %c0_126 = arith.constant 0 : index
    %c0_127 = arith.constant 0 : index
    %287 = vector.load %arg2[%c6, %c0_126, %c0_127] : memref<7x48x16xbf16, #tpu.memory_space<vmem>>, vector<1x48x16xbf16>
    %288 = vector.shape_cast %287 : vector<1x48x16xbf16> to vector<48x16xbf16>
    %289 = vector.extract_strided_slice %288 {offsets = [0, 0], sizes = [32, 16], strides = [1, 1]} : vector<48x16xbf16> to vector<32x16xbf16>
    %290 = arith.truncf %286 : vector<5x32xf32> to vector<5x32xbf16>
    %cst_128 = arith.constant dense<0.000000e+00> : vector<5x16xf32>
    %291 = tpu.matmul %290, %289, %cst_128 {dimension_numbers = #tpu.dot_dimension_numbers<[1], [0], [0], [1], [0, 0, 1, 1], [], []>} : vector<5x32xbf16>, vector<32x16xbf16>, vector<5x16xf32> -> vector<5x16xf32>
    %292 = vector.extract_strided_slice %0 {offsets = [6, 0], sizes = [1, 16], strides = [1, 1]} : vector<7x16xf32> to vector<1x16xf32>
    %293 = vector.broadcast %292 : vector<1x16xf32> to vector<5x16xf32>
    %294 = arith.addf %291, %293 : vector<5x16xf32>
    %295 = vector.extract_strided_slice %1 {offsets = [6, 0], sizes = [1, 16], strides = [1, 1]} : vector<7x16xf32> to vector<1x16xf32>
    %296 = vector.extract_strided_slice %2 {offsets = [6, 0], sizes = [1, 16], strides = [1, 1]} : vector<7x16xf32> to vector<1x16xf32>
    %cst_129 = arith.constant dense<0.000000e+00> : vector<5xf32>
    %297 = vector.multi_reduction <add>, %294, %cst_129 [1] : vector<5x16xf32> to vector<5xf32>
    %298 = vector.shape_cast %297 : vector<5xf32> to vector<5x1xf32>
    %cst_130 = arith.constant 1.600000e+01 : f32
    %299 = vector.broadcast %cst_130 : f32 to vector<5x1xf32>
    %300 = arith.divf %298, %299 : vector<5x1xf32>
    %301 = vector.broadcast %300 : vector<5x1xf32> to vector<5x16xf32>
    %302 = arith.subf %294, %301 : vector<5x16xf32>
    %303 = arith.mulf %302, %302 : vector<5x16xf32>
    %cst_131 = arith.constant dense<0.000000e+00> : vector<5xf32>
    %304 = vector.multi_reduction <add>, %303, %cst_131 [1] : vector<5x16xf32> to vector<5xf32>
    %305 = vector.shape_cast %304 : vector<5xf32> to vector<5x1xf32>
    %cst_132 = arith.constant 1.600000e+01 : f32
    %306 = vector.broadcast %cst_132 : f32 to vector<5x1xf32>
    %307 = arith.divf %305, %306 : vector<5x1xf32>
    %cst_133 = arith.constant 9.99999974E-6 : f32
    %308 = vector.broadcast %cst_133 : f32 to vector<5x1xf32>
    %309 = arith.addf %307, %308 : vector<5x1xf32>
    %310 = math.rsqrt %309 : vector<5x1xf32>
    %311 = vector.broadcast %310 : vector<5x1xf32> to vector<5x16xf32>
    %312 = arith.mulf %302, %311 : vector<5x16xf32>
    %313 = vector.broadcast %295 : vector<1x16xf32> to vector<5x16xf32>
    %314 = arith.mulf %312, %313 : vector<5x16xf32>
    %315 = vector.broadcast %296 : vector<1x16xf32> to vector<5x16xf32>
    %316 = arith.addf %314, %315 : vector<5x16xf32>
    %cst_134 = arith.constant 5.000000e-01 : f32
    %317 = vector.broadcast %cst_134 : f32 to vector<5x16xf32>
    %318 = arith.mulf %317, %316 : vector<5x16xf32>
    %cst_135 = arith.constant 4.471500e-02 : f32
    %319 = vector.broadcast %cst_135 : f32 to vector<5x16xf32>
    %320 = arith.mulf %319, %316 : vector<5x16xf32>
    %321 = arith.mulf %320, %316 : vector<5x16xf32>
    %322 = arith.mulf %321, %316 : vector<5x16xf32>
    %323 = arith.addf %316, %322 : vector<5x16xf32>
    %cst_136 = arith.constant 0.797884583 : f32
    %324 = vector.broadcast %cst_136 : f32 to vector<5x16xf32>
    %325 = arith.mulf %324, %323 : vector<5x16xf32>
    %326 = math.tanh %325 : vector<5x16xf32>
    %cst_137 = arith.constant 1.000000e+00 : f32
    %327 = vector.broadcast %cst_137 : f32 to vector<5x16xf32>
    %328 = arith.addf %327, %326 : vector<5x16xf32>
    %329 = arith.mulf %318, %328 : vector<5x16xf32>
    %c0_138 = arith.constant 0 : index
    %c0_139 = arith.constant 0 : index
    %330 = vector.load %arg6[%c0_138, %c0_139] : memref<2x16xf32, #tpu.memory_space<vmem>>, vector<2x16xf32>
    %331 = vector.extract_strided_slice %330 {offsets = [0, 0], sizes = [1, 16], strides = [1, 1]} : vector<2x16xf32> to vector<1x16xf32>
    %332 = vector.extract_strided_slice %330 {offsets = [1, 0], sizes = [1, 16], strides = [1, 1]} : vector<2x16xf32> to vector<1x16xf32>
    %cst_140 = arith.constant dense<0.000000e+00> : vector<5xf32>
    %333 = vector.multi_reduction <add>, %329, %cst_140 [1] : vector<5x16xf32> to vector<5xf32>
    %334 = vector.shape_cast %333 : vector<5xf32> to vector<5x1xf32>
    %cst_141 = arith.constant 1.600000e+01 : f32
    %335 = vector.broadcast %cst_141 : f32 to vector<5x1xf32>
    %336 = arith.divf %334, %335 : vector<5x1xf32>
    %337 = vector.broadcast %336 : vector<5x1xf32> to vector<5x16xf32>
    %338 = arith.subf %329, %337 : vector<5x16xf32>
    %339 = arith.mulf %338, %338 : vector<5x16xf32>
    %cst_142 = arith.constant dense<0.000000e+00> : vector<5xf32>
    %340 = vector.multi_reduction <add>, %339, %cst_142 [1] : vector<5x16xf32> to vector<5xf32>
    %341 = vector.shape_cast %340 : vector<5xf32> to vector<5x1xf32>
    %cst_143 = arith.constant 1.600000e+01 : f32
    %342 = vector.broadcast %cst_143 : f32 to vector<5x1xf32>
    %343 = arith.divf %341, %342 : vector<5x1xf32>
    %cst_144 = arith.constant 9.99999974E-6 : f32
    %344 = vector.broadcast %cst_144 : f32 to vector<5x1xf32>
    %345 = arith.addf %343, %344 : vector<5x1xf32>
    %346 = math.rsqrt %345 : vector<5x1xf32>
    %347 = vector.broadcast %346 : vector<5x1xf32> to vector<5x16xf32>
    %348 = arith.mulf %338, %347 : vector<5x16xf32>
    %349 = vector.broadcast %331 : vector<1x16xf32> to vector<5x16xf32>
    %350 = arith.mulf %348, %349 : vector<5x16xf32>
    %351 = vector.broadcast %332 : vector<1x16xf32> to vector<5x16xf32>
    %352 = arith.addf %350, %351 : vector<5x16xf32>
    %c0_145 = arith.constant 0 : index
    %c0_146 = arith.constant 0 : index
    %353 = vector.load %arg7[%c0_145, %c0_146] : memref<16x32xbf16, #tpu.memory_space<vmem>>, vector<16x32xbf16>
    %354 = arith.truncf %352 : vector<5x16xf32> to vector<5x16xbf16>
    %cst_147 = arith.constant dense<0.000000e+00> : vector<5x32xf32>
    %355 = tpu.matmul %354, %353, %cst_147 {dimension_numbers = #tpu.dot_dimension_numbers<[1], [0], [0], [1], [0, 0, 1, 1], [], []>} : vector<5x16xbf16>, vector<16x32xbf16>, vector<5x32xf32> -> vector<5x32xf32>
    %c0_148 = arith.constant 0 : index
    %c0_149 = arith.constant 0 : index
    %356 = vector.load %arg8[%c0_148, %c0_149] : memref<1x32xf32, #tpu.memory_space<vmem>>, vector<1x32xf32>
    %357 = vector.broadcast %356 : vector<1x32xf32> to vector<5x32xf32>
    %358 = arith.addf %355, %357 : vector<5x32xf32>
    %359 = arith.truncf %358 : vector<5x32xf32> to vector<5x32xbf16>
    %cst_150 = arith.constant 0.000000e+00 : bf16
    %360 = vector.broadcast %cst_150 : bf16 to vector<1x32xbf16>
    %361 = tpu.concatenate %360, %359, %360 in 0 : vector<1x32xbf16>, vector<5x32xbf16>, vector<1x32xbf16> -> vector<7x32xbf16>
    %362 = vector.extract_strided_slice %361 {offsets = [0, 0], sizes = [5, 32], strides = [1, 1]} : vector<7x32xbf16> to vector<5x32xbf16>
    %363 = vector.extract_strided_slice %361 {offsets = [1, 0], sizes = [5, 32], strides = [1, 1]} : vector<7x32xbf16> to vector<5x32xbf16>
    %364 = vector.extract_strided_slice %361 {offsets = [2, 0], sizes = [5, 32], strides = [1, 1]} : vector<7x32xbf16> to vector<5x32xbf16>
    %365 = tpu.concatenate %362, %363, %364 in 1 : vector<5x32xbf16>, vector<5x32xbf16>, vector<5x32xbf16> -> vector<5x96xbf16>
    %c0_151 = arith.constant 0 : index
    %c0_152 = arith.constant 0 : index
    %366 = vector.load %arg9[%c0_151, %c0_152] : memref<96x32xbf16, #tpu.memory_space<vmem>>, vector<96x32xbf16>
    %cst_153 = arith.constant dense<0.000000e+00> : vector<5x32xf32>
    %367 = tpu.matmul %365, %366, %cst_153 {dimension_numbers = #tpu.dot_dimension_numbers<[1], [0], [0], [1], [0, 0, 1, 1], [], []>} : vector<5x96xbf16>, vector<96x32xbf16>, vector<5x32xf32> -> vector<5x32xf32>
    %c0_154 = arith.constant 0 : index
    %c0_155 = arith.constant 0 : index
    %368 = vector.load %arg10[%c0_154, %c0_155] : memref<1x32xf32, #tpu.memory_space<vmem>>, vector<1x32xf32>
    %369 = vector.broadcast %368 : vector<1x32xf32> to vector<5x32xf32>
    %370 = arith.addf %367, %369 : vector<5x32xf32>
    %cst_156 = arith.constant 5.000000e-01 : f32
    %371 = vector.broadcast %cst_156 : f32 to vector<5x32xf32>
    %372 = arith.mulf %371, %370 : vector<5x32xf32>
    %cst_157 = arith.constant 4.471500e-02 : f32
    %373 = vector.broadcast %cst_157 : f32 to vector<5x32xf32>
    %374 = arith.mulf %373, %370 : vector<5x32xf32>
    %375 = arith.mulf %374, %370 : vector<5x32xf32>
    %376 = arith.mulf %375, %370 : vector<5x32xf32>
    %377 = arith.addf %370, %376 : vector<5x32xf32>
    %cst_158 = arith.constant 0.797884583 : f32
    %378 = vector.broadcast %cst_158 : f32 to vector<5x32xf32>
    %379 = arith.mulf %378, %377 : vector<5x32xf32>
    %380 = math.tanh %379 : vector<5x32xf32>
    %cst_159 = arith.constant 1.000000e+00 : f32
    %381 = vector.broadcast %cst_159 : f32 to vector<5x32xf32>
    %382 = arith.addf %381, %380 : vector<5x32xf32>
    %383 = arith.mulf %372, %382 : vector<5x32xf32>
    %384 = arith.addf %358, %383 : vector<5x32xf32>
    %c0_160 = arith.constant 0 : index
    %c0_161 = arith.constant 0 : index
    %385 = vector.load %arg11[%c0_160, %c0_161] : memref<2x32xf32, #tpu.memory_space<vmem>>, vector<2x32xf32>
    %386 = vector.extract_strided_slice %385 {offsets = [0, 0], sizes = [1, 32], strides = [1, 1]} : vector<2x32xf32> to vector<1x32xf32>
    %387 = vector.extract_strided_slice %385 {offsets = [1, 0], sizes = [1, 32], strides = [1, 1]} : vector<2x32xf32> to vector<1x32xf32>
    %cst_162 = arith.constant dense<0.000000e+00> : vector<5xf32>
    %388 = vector.multi_reduction <add>, %384, %cst_162 [1] : vector<5x32xf32> to vector<5xf32>
    %389 = vector.shape_cast %388 : vector<5xf32> to vector<5x1xf32>
    %cst_163 = arith.constant 3.200000e+01 : f32
    %390 = vector.broadcast %cst_163 : f32 to vector<5x1xf32>
    %391 = arith.divf %389, %390 : vector<5x1xf32>
    %392 = vector.broadcast %391 : vector<5x1xf32> to vector<5x32xf32>
    %393 = arith.subf %384, %392 : vector<5x32xf32>
    %394 = arith.mulf %393, %393 : vector<5x32xf32>
    %cst_164 = arith.constant dense<0.000000e+00> : vector<5xf32>
    %395 = vector.multi_reduction <add>, %394, %cst_164 [1] : vector<5x32xf32> to vector<5xf32>
    %396 = vector.shape_cast %395 : vector<5xf32> to vector<5x1xf32>
    %cst_165 = arith.constant 3.200000e+01 : f32
    %397 = vector.broadcast %cst_165 : f32 to vector<5x1xf32>
    %398 = arith.divf %396, %397 : vector<5x1xf32>
    %cst_166 = arith.constant 9.99999974E-6 : f32
    %399 = vector.broadcast %cst_166 : f32 to vector<5x1xf32>
    %400 = arith.addf %398, %399 : vector<5x1xf32>
    %401 = math.rsqrt %400 : vector<5x1xf32>
    %402 = vector.broadcast %401 : vector<5x1xf32> to vector<5x32xf32>
    %403 = arith.mulf %393, %402 : vector<5x32xf32>
    %404 = vector.broadcast %386 : vector<1x32xf32> to vector<5x32xf32>
    %405 = arith.mulf %403, %404 : vector<5x32xf32>
    %406 = vector.broadcast %387 : vector<1x32xf32> to vector<5x32xf32>
    %407 = arith.addf %405, %406 : vector<5x32xf32>
    %c0_167 = arith.constant 0 : index
    %c0_168 = arith.constant 0 : index
    %408 = vector.load %arg12[%c0_167, %c0_168] : memref<20x32xf32, #tpu.memory_space<vmem>>, vector<20x32xf32>
    %c0_169 = arith.constant 0 : index
    %c0_170 = arith.constant 0 : index
    %c0_171 = arith.constant 0 : index
    %409 = vector.load %arg13[%c0_169, %c0_170, %c0_171] : memref<2x4x32xf32, #tpu.memory_space<vmem>>, vector<1x4x32xf32>
    %410 = vector.shape_cast %409 : vector<1x4x32xf32> to vector<4x32xf32>
    %c0_172 = arith.constant 0 : index
    %c0_173 = arith.constant 0 : index
    %c0_174 = arith.constant 0 : index
    %411 = vector.load %arg14[%c0_172, %c0_173, %c0_174] : memref<2x128x32xbf16, #tpu.memory_space<vmem>>, vector<1x128x32xbf16>
    %412 = vector.shape_cast %411 : vector<1x128x32xbf16> to vector<128x32xbf16>
    %c0_175 = arith.constant 0 : index
    %c0_176 = arith.constant 0 : index
    %c0_177 = arith.constant 0 : index
    %413 = vector.load %arg15[%c0_175, %c0_176, %c0_177] : memref<2x4x32xf32, #tpu.memory_space<vmem>>, vector<1x4x32xf32>
    %414 = vector.shape_cast %413 : vector<1x4x32xf32> to vector<4x32xf32>
    %415 = vector.extract_strided_slice %410 {offsets = [0, 0], sizes = [1, 32], strides = [1, 1]} : vector<4x32xf32> to vector<1x32xf32>
    %416 = vector.extract_strided_slice %410 {offsets = [1, 0], sizes = [1, 32], strides = [1, 1]} : vector<4x32xf32> to vector<1x32xf32>
    %cst_178 = arith.constant dense<0.000000e+00> : vector<5xf32>
    %417 = vector.multi_reduction <add>, %407, %cst_178 [1] : vector<5x32xf32> to vector<5xf32>
    %418 = vector.shape_cast %417 : vector<5xf32> to vector<5x1xf32>
    %cst_179 = arith.constant 3.200000e+01 : f32
    %419 = vector.broadcast %cst_179 : f32 to vector<5x1xf32>
    %420 = arith.divf %418, %419 : vector<5x1xf32>
    %421 = vector.broadcast %420 : vector<5x1xf32> to vector<5x32xf32>
    %422 = arith.subf %407, %421 : vector<5x32xf32>
    %423 = arith.mulf %422, %422 : vector<5x32xf32>
    %cst_180 = arith.constant dense<0.000000e+00> : vector<5xf32>
    %424 = vector.multi_reduction <add>, %423, %cst_180 [1] : vector<5x32xf32> to vector<5xf32>
    %425 = vector.shape_cast %424 : vector<5xf32> to vector<5x1xf32>
    %cst_181 = arith.constant 3.200000e+01 : f32
    %426 = vector.broadcast %cst_181 : f32 to vector<5x1xf32>
    %427 = arith.divf %425, %426 : vector<5x1xf32>
    %cst_182 = arith.constant 9.99999974E-6 : f32
    %428 = vector.broadcast %cst_182 : f32 to vector<5x1xf32>
    %429 = arith.addf %427, %428 : vector<5x1xf32>
    %430 = math.rsqrt %429 : vector<5x1xf32>
    %431 = vector.broadcast %430 : vector<5x1xf32> to vector<5x32xf32>
    %432 = arith.mulf %422, %431 : vector<5x32xf32>
    %433 = vector.broadcast %415 : vector<1x32xf32> to vector<5x32xf32>
    %434 = arith.mulf %432, %433 : vector<5x32xf32>
    %435 = vector.broadcast %416 : vector<1x32xf32> to vector<5x32xf32>
    %436 = arith.addf %434, %435 : vector<5x32xf32>
    %437 = vector.extract_strided_slice %412 {offsets = [0, 0], sizes = [32, 32], strides = [1, 1]} : vector<128x32xbf16> to vector<32x32xbf16>
    %438 = arith.truncf %436 : vector<5x32xf32> to vector<5x32xbf16>
    %cst_183 = arith.constant dense<0.000000e+00> : vector<5x32xf32>
    %439 = tpu.matmul %438, %437, %cst_183 {dimension_numbers = #tpu.dot_dimension_numbers<[1], [0], [0], [1], [0, 0, 1, 1], [], []>} : vector<5x32xbf16>, vector<32x32xbf16>, vector<5x32xf32> -> vector<5x32xf32>
    %440 = vector.extract_strided_slice %414 {offsets = [0, 0], sizes = [1, 32], strides = [1, 1]} : vector<4x32xf32> to vector<1x32xf32>
    %441 = vector.broadcast %440 : vector<1x32xf32> to vector<5x32xf32>
    %442 = arith.addf %439, %441 : vector<5x32xf32>
    %443 = vector.extract_strided_slice %412 {offsets = [32, 0], sizes = [32, 32], strides = [1, 1]} : vector<128x32xbf16> to vector<32x32xbf16>
    %444 = arith.truncf %436 : vector<5x32xf32> to vector<5x32xbf16>
    %cst_184 = arith.constant dense<0.000000e+00> : vector<5x32xf32>
    %445 = tpu.matmul %444, %443, %cst_184 {dimension_numbers = #tpu.dot_dimension_numbers<[1], [0], [0], [1], [0, 0, 1, 1], [], []>} : vector<5x32xbf16>, vector<32x32xbf16>, vector<5x32xf32> -> vector<5x32xf32>
    %446 = vector.extract_strided_slice %414 {offsets = [1, 0], sizes = [1, 32], strides = [1, 1]} : vector<4x32xf32> to vector<1x32xf32>
    %447 = vector.broadcast %446 : vector<1x32xf32> to vector<5x32xf32>
    %448 = arith.addf %445, %447 : vector<5x32xf32>
    %449 = vector.extract_strided_slice %412 {offsets = [64, 0], sizes = [32, 32], strides = [1, 1]} : vector<128x32xbf16> to vector<32x32xbf16>
    %450 = arith.truncf %436 : vector<5x32xf32> to vector<5x32xbf16>
    %cst_185 = arith.constant dense<0.000000e+00> : vector<5x32xf32>
    %451 = tpu.matmul %450, %449, %cst_185 {dimension_numbers = #tpu.dot_dimension_numbers<[1], [0], [0], [1], [0, 0, 1, 1], [], []>} : vector<5x32xbf16>, vector<32x32xbf16>, vector<5x32xf32> -> vector<5x32xf32>
    %452 = vector.extract_strided_slice %414 {offsets = [2, 0], sizes = [1, 32], strides = [1, 1]} : vector<4x32xf32> to vector<1x32xf32>
    %453 = vector.broadcast %452 : vector<1x32xf32> to vector<5x32xf32>
    %454 = arith.addf %451, %453 : vector<5x32xf32>
    %455 = tpu.concatenate %442, %442, %442, %442 in 0 : vector<5x32xf32>, vector<5x32xf32>, vector<5x32xf32>, vector<5x32xf32> -> vector<20x32xf32>
    %456 = arith.mulf %455, %408 : vector<20x32xf32>
    %457 = arith.truncf %456 : vector<20x32xf32> to vector<20x32xbf16>
    %458 = arith.truncf %448 : vector<5x32xf32> to vector<5x32xbf16>
    %cst_186 = arith.constant dense<0.000000e+00> : vector<20x5xf32>
    %459 = tpu.matmul %457, %458, %cst_186 {dimension_numbers = #tpu.dot_dimension_numbers<[1], [1], [0], [0], [0, 0, 1, 0], [], []>} : vector<20x32xbf16>, vector<5x32xbf16>, vector<20x5xf32> -> vector<20x5xf32>
    %cst_187 = arith.constant 0.353553385 : f32
    %460 = vector.broadcast %cst_187 : f32 to vector<20x5xf32>
    %461 = arith.mulf %459, %460 : vector<20x5xf32>
    %cst_188 = arith.constant dense<0xFF800000> : vector<20xf32>
    %462 = vector.multi_reduction <maximumf>, %461, %cst_188 [1] : vector<20x5xf32> to vector<20xf32>
    %463 = vector.shape_cast %462 : vector<20xf32> to vector<20x1xf32>
    %464 = vector.broadcast %463 : vector<20x1xf32> to vector<20x5xf32>
    %465 = arith.subf %461, %464 : vector<20x5xf32>
    %466 = math.exp %465 : vector<20x5xf32>
    %cst_189 = arith.constant dense<0.000000e+00> : vector<20xf32>
    %467 = vector.multi_reduction <add>, %466, %cst_189 [1] : vector<20x5xf32> to vector<20xf32>
    %468 = vector.shape_cast %467 : vector<20xf32> to vector<20x1xf32>
    %469 = tpu.reciprocal %468 {approx = true} : vector<20x1xf32> -> vector<20x1xf32>
    %470 = vector.broadcast %469 : vector<20x1xf32> to vector<20x5xf32>
    %471 = arith.mulf %466, %470 : vector<20x5xf32>
    %472 = arith.truncf %471 : vector<20x5xf32> to vector<20x5xbf16>
    %473 = arith.truncf %454 : vector<5x32xf32> to vector<5x32xbf16>
    %cst_190 = arith.constant dense<0.000000e+00> : vector<20x32xf32>
    %474 = tpu.matmul %472, %473, %cst_190 {dimension_numbers = #tpu.dot_dimension_numbers<[1], [0], [0], [1], [0, 0, 1, 1], [], []>} : vector<20x5xbf16>, vector<5x32xbf16>, vector<20x32xf32> -> vector<20x32xf32>
    %475 = arith.mulf %474, %408 : vector<20x32xf32>
    %476 = vector.extract_strided_slice %475 {offsets = [0, 0], sizes = [5, 32], strides = [1, 1]} : vector<20x32xf32> to vector<5x32xf32>
    %477 = vector.extract_strided_slice %475 {offsets = [5, 0], sizes = [5, 32], strides = [1, 1]} : vector<20x32xf32> to vector<5x32xf32>
    %478 = arith.addf %476, %477 : vector<5x32xf32>
    %479 = vector.extract_strided_slice %475 {offsets = [10, 0], sizes = [5, 32], strides = [1, 1]} : vector<20x32xf32> to vector<5x32xf32>
    %480 = arith.addf %478, %479 : vector<5x32xf32>
    %481 = vector.extract_strided_slice %475 {offsets = [15, 0], sizes = [5, 32], strides = [1, 1]} : vector<20x32xf32> to vector<5x32xf32>
    %482 = arith.addf %480, %481 : vector<5x32xf32>
    %483 = vector.extract_strided_slice %412 {offsets = [96, 0], sizes = [32, 32], strides = [1, 1]} : vector<128x32xbf16> to vector<32x32xbf16>
    %484 = arith.truncf %482 : vector<5x32xf32> to vector<5x32xbf16>
    %cst_191 = arith.constant dense<0.000000e+00> : vector<5x32xf32>
    %485 = tpu.matmul %484, %483, %cst_191 {dimension_numbers = #tpu.dot_dimension_numbers<[1], [0], [0], [1], [0, 0, 1, 1], [], []>} : vector<5x32xbf16>, vector<32x32xbf16>, vector<5x32xf32> -> vector<5x32xf32>
    %486 = arith.addf %407, %485 : vector<5x32xf32>
    %487 = vector.extract_strided_slice %414 {offsets = [3, 0], sizes = [1, 32], strides = [1, 1]} : vector<4x32xf32> to vector<1x32xf32>
    %488 = vector.broadcast %487 : vector<1x32xf32> to vector<5x32xf32>
    %489 = arith.addf %486, %488 : vector<5x32xf32>
    %490 = vector.extract_strided_slice %410 {offsets = [2, 0], sizes = [1, 32], strides = [1, 1]} : vector<4x32xf32> to vector<1x32xf32>
    %491 = vector.extract_strided_slice %410 {offsets = [3, 0], sizes = [1, 32], strides = [1, 1]} : vector<4x32xf32> to vector<1x32xf32>
    %cst_192 = arith.constant dense<0.000000e+00> : vector<5xf32>
    %492 = vector.multi_reduction <add>, %489, %cst_192 [1] : vector<5x32xf32> to vector<5xf32>
    %493 = vector.shape_cast %492 : vector<5xf32> to vector<5x1xf32>
    %cst_193 = arith.constant 3.200000e+01 : f32
    %494 = vector.broadcast %cst_193 : f32 to vector<5x1xf32>
    %495 = arith.divf %493, %494 : vector<5x1xf32>
    %496 = vector.broadcast %495 : vector<5x1xf32> to vector<5x32xf32>
    %497 = arith.subf %489, %496 : vector<5x32xf32>
    %498 = arith.mulf %497, %497 : vector<5x32xf32>
    %cst_194 = arith.constant dense<0.000000e+00> : vector<5xf32>
    %499 = vector.multi_reduction <add>, %498, %cst_194 [1] : vector<5x32xf32> to vector<5xf32>
    %500 = vector.shape_cast %499 : vector<5xf32> to vector<5x1xf32>
    %cst_195 = arith.constant 3.200000e+01 : f32
    %501 = vector.broadcast %cst_195 : f32 to vector<5x1xf32>
    %502 = arith.divf %500, %501 : vector<5x1xf32>
    %cst_196 = arith.constant 9.99999974E-6 : f32
    %503 = vector.broadcast %cst_196 : f32 to vector<5x1xf32>
    %504 = arith.addf %502, %503 : vector<5x1xf32>
    %505 = math.rsqrt %504 : vector<5x1xf32>
    %506 = vector.broadcast %505 : vector<5x1xf32> to vector<5x32xf32>
    %507 = arith.mulf %497, %506 : vector<5x32xf32>
    %508 = vector.broadcast %490 : vector<1x32xf32> to vector<5x32xf32>
    %509 = arith.mulf %507, %508 : vector<5x32xf32>
    %510 = vector.broadcast %491 : vector<1x32xf32> to vector<5x32xf32>
    %511 = arith.addf %509, %510 : vector<5x32xf32>
    %c0_197 = arith.constant 0 : index
    %c0_198 = arith.constant 0 : index
    %c0_199 = arith.constant 0 : index
    %512 = vector.load %arg16[%c0_197, %c0_198, %c0_199] : memref<2x32x64xbf16, #tpu.memory_space<vmem>>, vector<1x32x64xbf16>
    %513 = vector.shape_cast %512 : vector<1x32x64xbf16> to vector<32x64xbf16>
    %514 = arith.truncf %511 : vector<5x32xf32> to vector<5x32xbf16>
    %cst_200 = arith.constant dense<0.000000e+00> : vector<5x64xf32>
    %515 = tpu.matmul %514, %513, %cst_200 {dimension_numbers = #tpu.dot_dimension_numbers<[1], [0], [0], [1], [0, 0, 1, 1], [], []>} : vector<5x32xbf16>, vector<32x64xbf16>, vector<5x64xf32> -> vector<5x64xf32>
    %c0_201 = arith.constant 0 : index
    %c0_202 = arith.constant 0 : index
    %c0_203 = arith.constant 0 : index
    %516 = vector.load %arg17[%c0_201, %c0_202, %c0_203] : memref<2x1x64xf32, #tpu.memory_space<vmem>>, vector<1x1x64xf32>
    %517 = vector.shape_cast %516 : vector<1x1x64xf32> to vector<1x64xf32>
    %518 = vector.broadcast %517 : vector<1x64xf32> to vector<5x64xf32>
    %519 = arith.addf %515, %518 : vector<5x64xf32>
    %cst_204 = arith.constant 5.000000e-01 : f32
    %520 = vector.broadcast %cst_204 : f32 to vector<5x64xf32>
    %521 = arith.mulf %520, %519 : vector<5x64xf32>
    %cst_205 = arith.constant 4.471500e-02 : f32
    %522 = vector.broadcast %cst_205 : f32 to vector<5x64xf32>
    %523 = arith.mulf %522, %519 : vector<5x64xf32>
    %524 = arith.mulf %523, %519 : vector<5x64xf32>
    %525 = arith.mulf %524, %519 : vector<5x64xf32>
    %526 = arith.addf %519, %525 : vector<5x64xf32>
    %cst_206 = arith.constant 0.797884583 : f32
    %527 = vector.broadcast %cst_206 : f32 to vector<5x64xf32>
    %528 = arith.mulf %527, %526 : vector<5x64xf32>
    %529 = math.tanh %528 : vector<5x64xf32>
    %cst_207 = arith.constant 1.000000e+00 : f32
    %530 = vector.broadcast %cst_207 : f32 to vector<5x64xf32>
    %531 = arith.addf %530, %529 : vector<5x64xf32>
    %532 = arith.mulf %521, %531 : vector<5x64xf32>
    %c0_208 = arith.constant 0 : index
    %c0_209 = arith.constant 0 : index
    %c0_210 = arith.constant 0 : index
    %533 = vector.load %arg18[%c0_208, %c0_209, %c0_210] : memref<2x64x32xbf16, #tpu.memory_space<vmem>>, vector<1x64x32xbf16>
    %534 = vector.shape_cast %533 : vector<1x64x32xbf16> to vector<64x32xbf16>
    %535 = arith.truncf %532 : vector<5x64xf32> to vector<5x64xbf16>
    %cst_211 = arith.constant dense<0.000000e+00> : vector<5x32xf32>
    %536 = tpu.matmul %535, %534, %cst_211 {dimension_numbers = #tpu.dot_dimension_numbers<[1], [0], [0], [1], [0, 0, 1, 1], [], []>} : vector<5x64xbf16>, vector<64x32xbf16>, vector<5x32xf32> -> vector<5x32xf32>
    %537 = arith.addf %489, %536 : vector<5x32xf32>
    %c0_212 = arith.constant 0 : index
    %c0_213 = arith.constant 0 : index
    %c0_214 = arith.constant 0 : index
    %538 = vector.load %arg19[%c0_212, %c0_213, %c0_214] : memref<2x1x32xf32, #tpu.memory_space<vmem>>, vector<1x1x32xf32>
    %539 = vector.shape_cast %538 : vector<1x1x32xf32> to vector<1x32xf32>
    %540 = vector.broadcast %539 : vector<1x32xf32> to vector<5x32xf32>
    %541 = arith.addf %537, %540 : vector<5x32xf32>
    %c1_215 = arith.constant 1 : index
    %c0_216 = arith.constant 0 : index
    %c0_217 = arith.constant 0 : index
    %542 = vector.load %arg13[%c1_215, %c0_216, %c0_217] : memref<2x4x32xf32, #tpu.memory_space<vmem>>, vector<1x4x32xf32>
    %543 = vector.shape_cast %542 : vector<1x4x32xf32> to vector<4x32xf32>
    %c1_218 = arith.constant 1 : index
    %c0_219 = arith.constant 0 : index
    %c0_220 = arith.constant 0 : index
    %544 = vector.load %arg14[%c1_218, %c0_219, %c0_220] : memref<2x128x32xbf16, #tpu.memory_space<vmem>>, vector<1x128x32xbf16>
    %545 = vector.shape_cast %544 : vector<1x128x32xbf16> to vector<128x32xbf16>
    %c1_221 = arith.constant 1 : index
    %c0_222 = arith.constant 0 : index
    %c0_223 = arith.constant 0 : index
    %546 = vector.load %arg15[%c1_221, %c0_222, %c0_223] : memref<2x4x32xf32, #tpu.memory_space<vmem>>, vector<1x4x32xf32>
    %547 = vector.shape_cast %546 : vector<1x4x32xf32> to vector<4x32xf32>
    %548 = vector.extract_strided_slice %543 {offsets = [0, 0], sizes = [1, 32], strides = [1, 1]} : vector<4x32xf32> to vector<1x32xf32>
    %549 = vector.extract_strided_slice %543 {offsets = [1, 0], sizes = [1, 32], strides = [1, 1]} : vector<4x32xf32> to vector<1x32xf32>
    %cst_224 = arith.constant dense<0.000000e+00> : vector<5xf32>
    %550 = vector.multi_reduction <add>, %541, %cst_224 [1] : vector<5x32xf32> to vector<5xf32>
    %551 = vector.shape_cast %550 : vector<5xf32> to vector<5x1xf32>
    %cst_225 = arith.constant 3.200000e+01 : f32
    %552 = vector.broadcast %cst_225 : f32 to vector<5x1xf32>
    %553 = arith.divf %551, %552 : vector<5x1xf32>
    %554 = vector.broadcast %553 : vector<5x1xf32> to vector<5x32xf32>
    %555 = arith.subf %541, %554 : vector<5x32xf32>
    %556 = arith.mulf %555, %555 : vector<5x32xf32>
    %cst_226 = arith.constant dense<0.000000e+00> : vector<5xf32>
    %557 = vector.multi_reduction <add>, %556, %cst_226 [1] : vector<5x32xf32> to vector<5xf32>
    %558 = vector.shape_cast %557 : vector<5xf32> to vector<5x1xf32>
    %cst_227 = arith.constant 3.200000e+01 : f32
    %559 = vector.broadcast %cst_227 : f32 to vector<5x1xf32>
    %560 = arith.divf %558, %559 : vector<5x1xf32>
    %cst_228 = arith.constant 9.99999974E-6 : f32
    %561 = vector.broadcast %cst_228 : f32 to vector<5x1xf32>
    %562 = arith.addf %560, %561 : vector<5x1xf32>
    %563 = math.rsqrt %562 : vector<5x1xf32>
    %564 = vector.broadcast %563 : vector<5x1xf32> to vector<5x32xf32>
    %565 = arith.mulf %555, %564 : vector<5x32xf32>
    %566 = vector.broadcast %548 : vector<1x32xf32> to vector<5x32xf32>
    %567 = arith.mulf %565, %566 : vector<5x32xf32>
    %568 = vector.broadcast %549 : vector<1x32xf32> to vector<5x32xf32>
    %569 = arith.addf %567, %568 : vector<5x32xf32>
    %570 = vector.extract_strided_slice %545 {offsets = [0, 0], sizes = [32, 32], strides = [1, 1]} : vector<128x32xbf16> to vector<32x32xbf16>
    %571 = arith.truncf %569 : vector<5x32xf32> to vector<5x32xbf16>
    %cst_229 = arith.constant dense<0.000000e+00> : vector<5x32xf32>
    %572 = tpu.matmul %571, %570, %cst_229 {dimension_numbers = #tpu.dot_dimension_numbers<[1], [0], [0], [1], [0, 0, 1, 1], [], []>} : vector<5x32xbf16>, vector<32x32xbf16>, vector<5x32xf32> -> vector<5x32xf32>
    %573 = vector.extract_strided_slice %547 {offsets = [0, 0], sizes = [1, 32], strides = [1, 1]} : vector<4x32xf32> to vector<1x32xf32>
    %574 = vector.broadcast %573 : vector<1x32xf32> to vector<5x32xf32>
    %575 = arith.addf %572, %574 : vector<5x32xf32>
    %576 = vector.extract_strided_slice %545 {offsets = [32, 0], sizes = [32, 32], strides = [1, 1]} : vector<128x32xbf16> to vector<32x32xbf16>
    %577 = arith.truncf %569 : vector<5x32xf32> to vector<5x32xbf16>
    %cst_230 = arith.constant dense<0.000000e+00> : vector<5x32xf32>
    %578 = tpu.matmul %577, %576, %cst_230 {dimension_numbers = #tpu.dot_dimension_numbers<[1], [0], [0], [1], [0, 0, 1, 1], [], []>} : vector<5x32xbf16>, vector<32x32xbf16>, vector<5x32xf32> -> vector<5x32xf32>
    %579 = vector.extract_strided_slice %547 {offsets = [1, 0], sizes = [1, 32], strides = [1, 1]} : vector<4x32xf32> to vector<1x32xf32>
    %580 = vector.broadcast %579 : vector<1x32xf32> to vector<5x32xf32>
    %581 = arith.addf %578, %580 : vector<5x32xf32>
    %582 = vector.extract_strided_slice %545 {offsets = [64, 0], sizes = [32, 32], strides = [1, 1]} : vector<128x32xbf16> to vector<32x32xbf16>
    %583 = arith.truncf %569 : vector<5x32xf32> to vector<5x32xbf16>
    %cst_231 = arith.constant dense<0.000000e+00> : vector<5x32xf32>
    %584 = tpu.matmul %583, %582, %cst_231 {dimension_numbers = #tpu.dot_dimension_numbers<[1], [0], [0], [1], [0, 0, 1, 1], [], []>} : vector<5x32xbf16>, vector<32x32xbf16>, vector<5x32xf32> -> vector<5x32xf32>
    %585 = vector.extract_strided_slice %547 {offsets = [2, 0], sizes = [1, 32], strides = [1, 1]} : vector<4x32xf32> to vector<1x32xf32>
    %586 = vector.broadcast %585 : vector<1x32xf32> to vector<5x32xf32>
    %587 = arith.addf %584, %586 : vector<5x32xf32>
    %588 = tpu.concatenate %575, %575, %575, %575 in 0 : vector<5x32xf32>, vector<5x32xf32>, vector<5x32xf32>, vector<5x32xf32> -> vector<20x32xf32>
    %589 = arith.mulf %588, %408 : vector<20x32xf32>
    %590 = arith.truncf %589 : vector<20x32xf32> to vector<20x32xbf16>
    %591 = arith.truncf %581 : vector<5x32xf32> to vector<5x32xbf16>
    %cst_232 = arith.constant dense<0.000000e+00> : vector<20x5xf32>
    %592 = tpu.matmul %590, %591, %cst_232 {dimension_numbers = #tpu.dot_dimension_numbers<[1], [1], [0], [0], [0, 0, 1, 0], [], []>} : vector<20x32xbf16>, vector<5x32xbf16>, vector<20x5xf32> -> vector<20x5xf32>
    %cst_233 = arith.constant 0.353553385 : f32
    %593 = vector.broadcast %cst_233 : f32 to vector<20x5xf32>
    %594 = arith.mulf %592, %593 : vector<20x5xf32>
    %cst_234 = arith.constant dense<0xFF800000> : vector<20xf32>
    %595 = vector.multi_reduction <maximumf>, %594, %cst_234 [1] : vector<20x5xf32> to vector<20xf32>
    %596 = vector.shape_cast %595 : vector<20xf32> to vector<20x1xf32>
    %597 = vector.broadcast %596 : vector<20x1xf32> to vector<20x5xf32>
    %598 = arith.subf %594, %597 : vector<20x5xf32>
    %599 = math.exp %598 : vector<20x5xf32>
    %cst_235 = arith.constant dense<0.000000e+00> : vector<20xf32>
    %600 = vector.multi_reduction <add>, %599, %cst_235 [1] : vector<20x5xf32> to vector<20xf32>
    %601 = vector.shape_cast %600 : vector<20xf32> to vector<20x1xf32>
    %602 = tpu.reciprocal %601 {approx = true} : vector<20x1xf32> -> vector<20x1xf32>
    %603 = vector.broadcast %602 : vector<20x1xf32> to vector<20x5xf32>
    %604 = arith.mulf %599, %603 : vector<20x5xf32>
    %605 = arith.truncf %604 : vector<20x5xf32> to vector<20x5xbf16>
    %606 = arith.truncf %587 : vector<5x32xf32> to vector<5x32xbf16>
    %cst_236 = arith.constant dense<0.000000e+00> : vector<20x32xf32>
    %607 = tpu.matmul %605, %606, %cst_236 {dimension_numbers = #tpu.dot_dimension_numbers<[1], [0], [0], [1], [0, 0, 1, 1], [], []>} : vector<20x5xbf16>, vector<5x32xbf16>, vector<20x32xf32> -> vector<20x32xf32>
    %608 = arith.mulf %607, %408 : vector<20x32xf32>
    %609 = vector.extract_strided_slice %608 {offsets = [0, 0], sizes = [5, 32], strides = [1, 1]} : vector<20x32xf32> to vector<5x32xf32>
    %610 = vector.extract_strided_slice %608 {offsets = [5, 0], sizes = [5, 32], strides = [1, 1]} : vector<20x32xf32> to vector<5x32xf32>
    %611 = arith.addf %609, %610 : vector<5x32xf32>
    %612 = vector.extract_strided_slice %608 {offsets = [10, 0], sizes = [5, 32], strides = [1, 1]} : vector<20x32xf32> to vector<5x32xf32>
    %613 = arith.addf %611, %612 : vector<5x32xf32>
    %614 = vector.extract_strided_slice %608 {offsets = [15, 0], sizes = [5, 32], strides = [1, 1]} : vector<20x32xf32> to vector<5x32xf32>
    %615 = arith.addf %613, %614 : vector<5x32xf32>
    %616 = vector.extract_strided_slice %545 {offsets = [96, 0], sizes = [32, 32], strides = [1, 1]} : vector<128x32xbf16> to vector<32x32xbf16>
    %617 = arith.truncf %615 : vector<5x32xf32> to vector<5x32xbf16>
    %cst_237 = arith.constant dense<0.000000e+00> : vector<5x32xf32>
    %618 = tpu.matmul %617, %616, %cst_237 {dimension_numbers = #tpu.dot_dimension_numbers<[1], [0], [0], [1], [0, 0, 1, 1], [], []>} : vector<5x32xbf16>, vector<32x32xbf16>, vector<5x32xf32> -> vector<5x32xf32>
    %619 = arith.addf %541, %618 : vector<5x32xf32>
    %620 = vector.extract_strided_slice %547 {offsets = [3, 0], sizes = [1, 32], strides = [1, 1]} : vector<4x32xf32> to vector<1x32xf32>
    %621 = vector.broadcast %620 : vector<1x32xf32> to vector<5x32xf32>
    %622 = arith.addf %619, %621 : vector<5x32xf32>
    %623 = vector.extract_strided_slice %543 {offsets = [2, 0], sizes = [1, 32], strides = [1, 1]} : vector<4x32xf32> to vector<1x32xf32>
    %624 = vector.extract_strided_slice %543 {offsets = [3, 0], sizes = [1, 32], strides = [1, 1]} : vector<4x32xf32> to vector<1x32xf32>
    %cst_238 = arith.constant dense<0.000000e+00> : vector<5xf32>
    %625 = vector.multi_reduction <add>, %622, %cst_238 [1] : vector<5x32xf32> to vector<5xf32>
    %626 = vector.shape_cast %625 : vector<5xf32> to vector<5x1xf32>
    %cst_239 = arith.constant 3.200000e+01 : f32
    %627 = vector.broadcast %cst_239 : f32 to vector<5x1xf32>
    %628 = arith.divf %626, %627 : vector<5x1xf32>
    %629 = vector.broadcast %628 : vector<5x1xf32> to vector<5x32xf32>
    %630 = arith.subf %622, %629 : vector<5x32xf32>
    %631 = arith.mulf %630, %630 : vector<5x32xf32>
    %cst_240 = arith.constant dense<0.000000e+00> : vector<5xf32>
    %632 = vector.multi_reduction <add>, %631, %cst_240 [1] : vector<5x32xf32> to vector<5xf32>
    %633 = vector.shape_cast %632 : vector<5xf32> to vector<5x1xf32>
    %cst_241 = arith.constant 3.200000e+01 : f32
    %634 = vector.broadcast %cst_241 : f32 to vector<5x1xf32>
    %635 = arith.divf %633, %634 : vector<5x1xf32>
    %cst_242 = arith.constant 9.99999974E-6 : f32
    %636 = vector.broadcast %cst_242 : f32 to vector<5x1xf32>
    %637 = arith.addf %635, %636 : vector<5x1xf32>
    %638 = math.rsqrt %637 : vector<5x1xf32>
    %639 = vector.broadcast %638 : vector<5x1xf32> to vector<5x32xf32>
    %640 = arith.mulf %630, %639 : vector<5x32xf32>
    %641 = vector.broadcast %623 : vector<1x32xf32> to vector<5x32xf32>
    %642 = arith.mulf %640, %641 : vector<5x32xf32>
    %643 = vector.broadcast %624 : vector<1x32xf32> to vector<5x32xf32>
    %644 = arith.addf %642, %643 : vector<5x32xf32>
    %c1_243 = arith.constant 1 : index
    %c0_244 = arith.constant 0 : index
    %c0_245 = arith.constant 0 : index
    %645 = vector.load %arg16[%c1_243, %c0_244, %c0_245] : memref<2x32x64xbf16, #tpu.memory_space<vmem>>, vector<1x32x64xbf16>
    %646 = vector.shape_cast %645 : vector<1x32x64xbf16> to vector<32x64xbf16>
    %647 = arith.truncf %644 : vector<5x32xf32> to vector<5x32xbf16>
    %cst_246 = arith.constant dense<0.000000e+00> : vector<5x64xf32>
    %648 = tpu.matmul %647, %646, %cst_246 {dimension_numbers = #tpu.dot_dimension_numbers<[1], [0], [0], [1], [0, 0, 1, 1], [], []>} : vector<5x32xbf16>, vector<32x64xbf16>, vector<5x64xf32> -> vector<5x64xf32>
    %c1_247 = arith.constant 1 : index
    %c0_248 = arith.constant 0 : index
    %c0_249 = arith.constant 0 : index
    %649 = vector.load %arg17[%c1_247, %c0_248, %c0_249] : memref<2x1x64xf32, #tpu.memory_space<vmem>>, vector<1x1x64xf32>
    %650 = vector.shape_cast %649 : vector<1x1x64xf32> to vector<1x64xf32>
    %651 = vector.broadcast %650 : vector<1x64xf32> to vector<5x64xf32>
    %652 = arith.addf %648, %651 : vector<5x64xf32>
    %cst_250 = arith.constant 5.000000e-01 : f32
    %653 = vector.broadcast %cst_250 : f32 to vector<5x64xf32>
    %654 = arith.mulf %653, %652 : vector<5x64xf32>
    %cst_251 = arith.constant 4.471500e-02 : f32
    %655 = vector.broadcast %cst_251 : f32 to vector<5x64xf32>
    %656 = arith.mulf %655, %652 : vector<5x64xf32>
    %657 = arith.mulf %656, %652 : vector<5x64xf32>
    %658 = arith.mulf %657, %652 : vector<5x64xf32>
    %659 = arith.addf %652, %658 : vector<5x64xf32>
    %cst_252 = arith.constant 0.797884583 : f32
    %660 = vector.broadcast %cst_252 : f32 to vector<5x64xf32>
    %661 = arith.mulf %660, %659 : vector<5x64xf32>
    %662 = math.tanh %661 : vector<5x64xf32>
    %cst_253 = arith.constant 1.000000e+00 : f32
    %663 = vector.broadcast %cst_253 : f32 to vector<5x64xf32>
    %664 = arith.addf %663, %662 : vector<5x64xf32>
    %665 = arith.mulf %654, %664 : vector<5x64xf32>
    %c1_254 = arith.constant 1 : index
    %c0_255 = arith.constant 0 : index
    %c0_256 = arith.constant 0 : index
    %666 = vector.load %arg18[%c1_254, %c0_255, %c0_256] : memref<2x64x32xbf16, #tpu.memory_space<vmem>>, vector<1x64x32xbf16>
    %667 = vector.shape_cast %666 : vector<1x64x32xbf16> to vector<64x32xbf16>
    %668 = arith.truncf %665 : vector<5x64xf32> to vector<5x64xbf16>
    %cst_257 = arith.constant dense<0.000000e+00> : vector<5x32xf32>
    %669 = tpu.matmul %668, %667, %cst_257 {dimension_numbers = #tpu.dot_dimension_numbers<[1], [0], [0], [1], [0, 0, 1, 1], [], []>} : vector<5x64xbf16>, vector<64x32xbf16>, vector<5x32xf32> -> vector<5x32xf32>
    %670 = arith.addf %622, %669 : vector<5x32xf32>
    %c1_258 = arith.constant 1 : index
    %c0_259 = arith.constant 0 : index
    %c0_260 = arith.constant 0 : index
    %671 = vector.load %arg19[%c1_258, %c0_259, %c0_260] : memref<2x1x32xf32, #tpu.memory_space<vmem>>, vector<1x1x32xf32>
    %672 = vector.shape_cast %671 : vector<1x1x32xf32> to vector<1x32xf32>
    %673 = vector.broadcast %672 : vector<1x32xf32> to vector<5x32xf32>
    %674 = arith.addf %670, %673 : vector<5x32xf32>
    %675 = tpu.concatenate %541, %674 in 1 : vector<5x32xf32>, vector<5x32xf32> -> vector<5x64xf32>
    %cst_261 = arith.constant 0.000000e+00 : f32
    %676 = vector.broadcast %cst_261 : f32 to vector<5x64xf32>
    %677 = tpu.concatenate %675, %676 in 1 : vector<5x64xf32>, vector<5x64xf32> -> vector<5x128xf32>
    %c0_262 = arith.constant 0 : index
    %c0_263 = arith.constant 0 : index
    %c0_264 = arith.constant 0 : index
    %678 = vector.load %arg20[%c0_262, %c0_263, %c0_264] : memref<1x5x128xf32, #tpu.memory_space<vmem>>, vector<1x5x128xf32>
    %679 = vector.shape_cast %678 : vector<1x5x128xf32> to vector<5x128xf32>
    %680 = vector.shape_cast %677 : vector<5x128xf32> to vector<1x5x128xf32>
    tpu.vector_store %arg20[%c0_262, %c0_263, %c0_264], %680 {strides = array<i32>} : memref<1x5x128xf32, #tpu.memory_space<vmem>>, vector<1x5x128xf32>,
    return
  }
  func.func @transform_0(%arg0: i32) -> (i32, i32, i32) {
    %c0_i32 = arith.constant 0 : i32
    %c0_i32_0 = arith.constant 0 : i32
    %c0_i32_1 = arith.constant 0 : i32
    return %arg0, %c0_i32, %c0_i32_0 : i32, i32, i32
  }
  func.func @transform_1(%arg0: i32) -> (i32, i32, i32) {
    %c0_i32 = arith.constant 0 : i32
    %c0_i32_0 = arith.constant 0 : i32
    %c0_i32_1 = arith.constant 0 : i32
    %c0_i32_2 = arith.constant 0 : i32
    return %c0_i32, %c0_i32_0, %c0_i32_1 : i32, i32, i32
  }
  func.func @transform_2(%arg0: i32) -> (i32, i32) {
    %c0_i32 = arith.constant 0 : i32
    %c0_i32_0 = arith.constant 0 : i32
    %c0_i32_1 = arith.constant 0 : i32
    return %c0_i32, %c0_i32_0 : i32, i32
  }
  func.func @transform_3(%arg0: i32) -> (i32, i32) {
    %c0_i32 = arith.constant 0 : i32
    %c0_i32_0 = arith.constant 0 : i32
    %c0_i32_1 = arith.constant 0 : i32
    return %c0_i32, %c0_i32_0 : i32, i32
  }
  func.func @transform_4(%arg0: i32) -> (i32, i32) {
    %c0_i32 = arith.constant 0 : i32
    %c0_i32_0 = arith.constant 0 : i32
    %c0_i32_1 = arith.constant 0 : i32
    return %c0_i32, %c0_i32_0 : i32, i32
  }
  func.func @transform_5(%arg0: i32) -> (i32, i32) {
    %c0_i32 = arith.constant 0 : i32
    %c0_i32_0 = arith.constant 0 : i32
    %c0_i32_1 = arith.constant 0 : i32
    return %c0_i32, %c0_i32_0 : i32, i32
  }
  func.func @transform_6(%arg0: i32) -> (i32, i32) {
    %c0_i32 = arith.constant 0 : i32
    %c0_i32_0 = arith.constant 0 : i32
    %c0_i32_1 = arith.constant 0 : i32
    return %c0_i32, %c0_i32_0 : i32, i32
  }
  func.func @transform_7(%arg0: i32) -> (i32, i32) {
    %c0_i32 = arith.constant 0 : i32
    %c0_i32_0 = arith.constant 0 : i32
    %c0_i32_1 = arith.constant 0 : i32
    return %c0_i32, %c0_i32_0 : i32, i32
  }
  func.func @transform_8(%arg0: i32) -> (i32, i32) {
    %c0_i32 = arith.constant 0 : i32
    %c0_i32_0 = arith.constant 0 : i32
    %c0_i32_1 = arith.constant 0 : i32
    return %c0_i32, %c0_i32_0 : i32, i32
  }
  func.func @transform_9(%arg0: i32) -> (i32, i32) {
    %c0_i32 = arith.constant 0 : i32
    %c0_i32_0 = arith.constant 0 : i32
    %c0_i32_1 = arith.constant 0 : i32
    return %c0_i32, %c0_i32_0 : i32, i32
  }
  func.func @transform_10(%arg0: i32) -> (i32, i32) {
    %c0_i32 = arith.constant 0 : i32
    %c0_i32_0 = arith.constant 0 : i32
    %c0_i32_1 = arith.constant 0 : i32
    return %c0_i32, %c0_i32_0 : i32, i32
  }
  func.func @transform_11(%arg0: i32) -> (i32, i32) {
    %c0_i32 = arith.constant 0 : i32
    %c0_i32_0 = arith.constant 0 : i32
    %c0_i32_1 = arith.constant 0 : i32
    return %c0_i32, %c0_i32_0 : i32, i32
  }
  func.func @transform_12(%arg0: i32) -> (i32, i32, i32) {
    %c0_i32 = arith.constant 0 : i32
    %c0_i32_0 = arith.constant 0 : i32
    %c0_i32_1 = arith.constant 0 : i32
    %c0_i32_2 = arith.constant 0 : i32
    return %c0_i32, %c0_i32_0, %c0_i32_1 : i32, i32, i32
  }
  func.func @transform_13(%arg0: i32) -> (i32, i32, i32) {
    %c0_i32 = arith.constant 0 : i32
    %c0_i32_0 = arith.constant 0 : i32
    %c0_i32_1 = arith.constant 0 : i32
    %c0_i32_2 = arith.constant 0 : i32
    return %c0_i32, %c0_i32_0, %c0_i32_1 : i32, i32, i32
  }
  func.func @transform_14(%arg0: i32) -> (i32, i32, i32) {
    %c0_i32 = arith.constant 0 : i32
    %c0_i32_0 = arith.constant 0 : i32
    %c0_i32_1 = arith.constant 0 : i32
    %c0_i32_2 = arith.constant 0 : i32
    return %c0_i32, %c0_i32_0, %c0_i32_1 : i32, i32, i32
  }
  func.func @transform_15(%arg0: i32) -> (i32, i32, i32) {
    %c0_i32 = arith.constant 0 : i32
    %c0_i32_0 = arith.constant 0 : i32
    %c0_i32_1 = arith.constant 0 : i32
    %c0_i32_2 = arith.constant 0 : i32
    return %c0_i32, %c0_i32_0, %c0_i32_1 : i32, i32, i32
  }
  func.func @transform_16(%arg0: i32) -> (i32, i32, i32) {
    %c0_i32 = arith.constant 0 : i32
    %c0_i32_0 = arith.constant 0 : i32
    %c0_i32_1 = arith.constant 0 : i32
    %c0_i32_2 = arith.constant 0 : i32
    return %c0_i32, %c0_i32_0, %c0_i32_1 : i32, i32, i32
  }
  func.func @transform_17(%arg0: i32) -> (i32, i32, i32) {
    %c0_i32 = arith.constant 0 : i32
    %c0_i32_0 = arith.constant 0 : i32
    %c0_i32_1 = arith.constant 0 : i32
    %c0_i32_2 = arith.constant 0 : i32
    return %c0_i32, %c0_i32_0, %c0_i32_1 : i32, i32, i32
  }
  func.func @transform_18(%arg0: i32) -> (i32, i32, i32) {
    %c0_i32 = arith.constant 0 : i32
    %c0_i32_0 = arith.constant 0 : i32
    %c0_i32_1 = arith.constant 0 : i32
    %c0_i32_2 = arith.constant 0 : i32
    return %c0_i32, %c0_i32_0, %c0_i32_1 : i32, i32, i32
  }
  func.func @transform_19(%arg0: i32) -> (i32, i32, i32) {
    %c0_i32 = arith.constant 0 : i32
    %c0_i32_0 = arith.constant 0 : i32
    %c0_i32_1 = arith.constant 0 : i32
    return %arg0, %c0_i32, %c0_i32_0 : i32, i32, i32
  }
}

</mosaic_0001>

<llo_original>
// kernel: classifier_forward.1
$region0: #{classifier_forward.1}
  #allocation0 [shape = 'u32[]', space=smem, size = 0x4, offset = 0x4, fixed_abs, tag = 'smem constant byte address 0x4 - core index']
  #allocation1 [shape = 'u32[144,128]{1,0:T(1,128)}', space=vmem, size = 0x12000, scoped, tag = 'internal scratch']
  #allocation2 [shape = 'f32[408,16]{1,0:T(8,128)}', space=vmem, size = 0x33000, scoped, tag = 'scratch operand']
  %s0 = inlined_call_operand.vmem [shape: f32[2,408,10], index: 0, kind: input, shape index: {}]
  %s1 = inlined_call_operand.vmem [shape: bf16[7,48,16], index: 1, kind: input, shape index: {}]
  %s2 = inlined_call_operand.vmem [shape: f32[7,16], index: 2, kind: input, shape index: {}]
  %s3 = inlined_call_operand.vmem [shape: f32[7,16], index: 3, kind: input, shape index: {}]
  %s4 = inlined_call_operand.vmem [shape: f32[7,16], index: 4, kind: input, shape index: {}]
  %s5 = inlined_call_operand.vmem [shape: f32[2,16], index: 5, kind: input, shape index: {}]
  %s6 = inlined_call_operand.vmem [shape: bf16[16,32], index: 6, kind: input, shape index: {}]
  %s7 = inlined_call_operand.vmem [shape: f32[1,32], index: 7, kind: input, shape index: {}]
  %s8 = inlined_call_operand.vmem [shape: bf16[96,32], index: 8, kind: input, shape index: {}]
  %s9 = inlined_call_operand.vmem [shape: f32[1,32], index: 9, kind: input, shape index: {}]
  %s10 = inlined_call_operand.vmem [shape: f32[2,32], index: 10, kind: input, shape index: {}]
  %s11 = inlined_call_operand.vmem [shape: f32[20,32], index: 11, kind: input, shape index: {}]
  %s12 = inlined_call_operand.vmem [shape: f32[2,4,32], index: 12, kind: input, shape index: {}]
  %s13 = inlined_call_operand.vmem [shape: bf16[2,128,32], index: 13, kind: input, shape index: {}]
  %s14 = inlined_call_operand.vmem [shape: f32[2,4,32], index: 14, kind: input, shape index: {}]
  %s15 = inlined_call_operand.vmem [shape: bf16[2,32,64], index: 15, kind: input, shape index: {}]
  %s16 = inlined_call_operand.vmem [shape: f32[2,1,64], index: 16, kind: input, shape index: {}]
  %s17 = inlined_call_operand.vmem [shape: bf16[2,64,32], index: 17, kind: input, shape index: {}]
  %s18 = inlined_call_operand.vmem [shape: f32[2,1,32], index: 18, kind: input, shape index: {}]
  %s19 = inlined_call_operand.vmem [shape: f32[2,5,128], index: 19, kind: output, shape index: {}]
  %s20 = sld [smem:[#allocation0]]
  $region109: #{classifier_forward.1} parent=0
    _
  %s22 = ssub.s32 1, %s20
  %s23 = scalar_select 0, %s22, %s20
  loop: start=0, step=1, limit=4
  $region2: #{classifier_forward.1} parent=0 // loop_pre_header
    _
  $region3: #{classifier_forward.1} parent=0 // loop_header
    %s25 = sphi 0, %s29
    %p26 = scmp.ge.s32.totalorder %s25, 4
    %s35 = sphi 0, %s37
    %s38 = sphi 0, %s35
    %s39 = sphi 0, %s38
    %s55 = sphi 0, %s39
    %s59 = sphi 0, %s59
    %s61 = sphi 0, %s59
    %s62 = sphi 0, %s61
    %s76 = sphi 0, %s62
    %s80 = sphi 0, %s80
    %s82 = sphi 0, %s80
    %s83 = sphi 0, %s82
    %s97 = sphi 0, %s83
    %s101 = sphi 0, %s101
    %s103 = sphi 0, %s101
    %s104 = sphi 0, %s103
    %s118 = sphi 0, %s104
    %s122 = sphi 0, %s122
    %s124 = sphi 0, %s122
    %s125 = sphi 0, %s124
    %s139 = sphi 0, %s125
    %s143 = sphi 0, %s143
    %s145 = sphi 0, %s143
    %s146 = sphi 0, %s145
    %s160 = sphi 0, %s146
    %s164 = sphi 0, %s164
    %s166 = sphi 0, %s164
    %s167 = sphi 0, %s166
    %s181 = sphi 0, %s167
    %s185 = sphi 0, %s185
    %s187 = sphi 0, %s185
    %s188 = sphi 0, %s187
    %s202 = sphi 0, %s188
    %s206 = sphi 0, %s206
    %s208 = sphi 0, %s206
    %s209 = sphi 0, %s208
    %s223 = sphi 0, %s209
    %s227 = sphi 0, %s227
    %s229 = sphi 0, %s227
    %s230 = sphi 0, %s229
    %s244 = sphi 0, %s230
    %s248 = sphi 0, %s248
    %s250 = sphi 0, %s248
    %s251 = sphi 0, %s250
    %s265 = sphi 0, %s251
    %s269 = sphi 0, %s269
    %s271 = sphi 0, %s269
    %s272 = sphi 0, %s271
    %s286 = sphi 0, %s272
    %s290 = sphi 0, %s290
    %s292 = sphi 0, %s290
    %s293 = sphi 0, %s292
    %s307 = sphi 0, %s293
    %s311 = sphi 0, %s311
    %s313 = sphi 0, %s311
    %s314 = sphi 0, %s313
    %s328 = sphi 0, %s314
    %s332 = sphi 0, %s332
    %s334 = sphi 0, %s332
    %s335 = sphi 0, %s334
    %s349 = sphi 0, %s335
    %s353 = sphi 0, %s353
    %s355 = sphi 0, %s353
    %s356 = sphi 0, %s355
    %s370 = sphi 0, %s356
    %s374 = sphi 0, %s374
    %s376 = sphi 0, %s374
    %s377 = sphi 0, %s376
    %s391 = sphi 0, %s377
    %s395 = sphi 0, %s395
    %s397 = sphi 0, %s395
    %s398 = sphi 0, %s397
    %s412 = sphi 0, %s398
    %s416 = sphi 0, %s416
    %s418 = sphi 0, %s416
    %s419 = sphi 0, %s418
    %s433 = sphi 0, %s419
    %s439 = sphi 0, %s441
    %s442 = sphi 0, %s439
    %s443 = sphi 0, %s442
    %s459 = sphi 0, %s443
  $region4: #{classifier_forward.1} parent=0 // loop_header_branch
    %28 = sbr.rel (%p26) target = $region8
  $region5: #{classifier_forward.1} parent=0 // loop_body
    %s30 = ssub.s32 %s25, 1
    %s31 = ssub.s32 %s25, 2
    %s32 = sadd.s32 %s25, 1
    %s33 = ssub.s32 %s25, %s32
    %p34 = scmp.eq.s32.totalorder %s33, 0
    %s36 = sadd.s32 %s35, 1
    %s37 = scalar_select %p34, %s35, %s36
    %p40 = pneg %p34
    %p41 = scmp.eq.s32.totalorder %s25, 1
    %p42 = por %p40, %p41
    %p43 = scmp.ne.s32.totalorder %s35, %s38
    %p44 = scmp.eq.s32.totalorder %s25, 0
    %p45 = por %p43, %p44
    %p46 = scmp.ne.s32.totalorder %s35, %s38
    %p47 = scmp.eq.s32.totalorder %s30, 1
    %p48 = por %p46, %p47
    %p49 = scmp.ne.s32.totalorder %s38, %s39
    %p50 = scmp.eq.s32.totalorder %s30, 0
    %p51 = por %p49, %p50
    %p52 = scmp.ne.s32.totalorder %s38, %s39
    %p53 = scmp.eq.s32.totalorder %s31, 1
    %p54 = por %p52, %p53
    %p56 = scmp.ne.s32.totalorder %s39, %s55
    %p57 = scmp.eq.s32.totalorder %s31, 0
    %p58 = por %p56, %p57
    %s60 = sadd.s32 %s59, 1
    %p63 = scmp.eq.s32.totalorder %s25, 1
    %p64 = scmp.ne.s32.totalorder %s59, %s61
    %p65 = scmp.eq.s32.totalorder %s25, 0
    %p66 = por %p64, %p65
    %p67 = scmp.ne.s32.totalorder %s59, %s61
    %p68 = scmp.eq.s32.totalorder %s30, 1
    %p69 = por %p67, %p68
    %p70 = scmp.ne.s32.totalorder %s61, %s62
    %p71 = scmp.eq.s32.totalorder %s30, 0
    %p72 = por %p70, %p71
    %p73 = scmp.ne.s32.totalorder %s61, %s62
    %p74 = scmp.eq.s32.totalorder %s31, 1
    %p75 = por %p73, %p74
    %p77 = scmp.ne.s32.totalorder %s62, %s76
    %p78 = scmp.eq.s32.totalorder %s31, 0
    %p79 = por %p77, %p78
    %s81 = sadd.s32 %s80, 1
    %p84 = scmp.eq.s32.totalorder %s25, 1
    %p85 = scmp.ne.s32.totalorder %s80, %s82
    %p86 = scmp.eq.s32.totalorder %s25, 0
    %p87 = por %p85, %p86
    %p88 = scmp.ne.s32.totalorder %s80, %s82
    %p89 = scmp.eq.s32.totalorder %s30, 1
    %p90 = por %p88, %p89
    %p91 = scmp.ne.s32.totalorder %s82, %s83
    %p92 = scmp.eq.s32.totalorder %s30, 0
    %p93 = por %p91, %p92
    %p94 = scmp.ne.s32.totalorder %s82, %s83
    %p95 = scmp.eq.s32.totalorder %s31, 1
    %p96 = por %p94, %p95
    %p98 = scmp.ne.s32.totalorder %s83, %s97
    %p99 = scmp.eq.s32.totalorder %s31, 0
    %p100 = por %p98, %p99
    %s102 = sadd.s32 %s101, 1
    %p105 = scmp.eq.s32.totalorder %s25, 1
    %p106 = scmp.ne.s32.totalorder %s101, %s103
    %p107 = scmp.eq.s32.totalorder %s25, 0
    %p108 = por %p106, %p107
    %p109 = scmp.ne.s32.totalorder %s101, %s103
    %p110 = scmp.eq.s32.totalorder %s30, 1
    %p111 = por %p109, %p110
    %p112 = scmp.ne.s32.totalorder %s103, %s104
    %p113 = scmp.eq.s32.totalorder %s30, 0
    %p114 = por %p112, %p113
    %p115 = scmp.ne.s32.totalorder %s103, %s104
    %p116 = scmp.eq.s32.totalorder %s31, 1
    %p117 = por %p115, %p116
    %p119 = scmp.ne.s32.totalorder %s104, %s118
    %p120 = scmp.eq.s32.totalorder %s31, 0
    %p121 = por %p119, %p120
    %s123 = sadd.s32 %s122, 1
    %p126 = scmp.eq.s32.totalorder %s25, 1
    %p127 = scmp.ne.s32.totalorder %s122, %s124
    %p128 = scmp.eq.s32.totalorder %s25, 0
    %p129 = por %p127, %p128
    %p130 = scmp.ne.s32.totalorder %s122, %s124
    %p131 = scmp.eq.s32.totalorder %s30, 1
    %p132 = por %p130, %p131
    %p133 = scmp.ne.s32.totalorder %s124, %s125
    %p134 = scmp.eq.s32.totalorder %s30, 0
    %p135 = por %p133, %p134
    %p136 = scmp.ne.s32.totalorder %s124, %s125
    %p137 = scmp.eq.s32.totalorder %s31, 1
    %p138 = por %p136, %p137
    %p140 = scmp.ne.s32.totalorder %s125, %s139
    %p141 = scmp.eq.s32.totalorder %s31, 0
    %p142 = por %p140, %p141
    %s144 = sadd.s32 %s143, 1
    %p147 = scmp.eq.s32.totalorder %s25, 1
    %p148 = scmp.ne.s32.totalorder %s143, %s145
    %p149 = scmp.eq.s32.totalorder %s25, 0
    %p150 = por %p148, %p149
    %p151 = scmp.ne.s32.totalorder %s143, %s145
    %p152 = scmp.eq.s32.totalorder %s30, 1
    %p153 = por %p151, %p152
    %p154 = scmp.ne.s32.totalorder %s145, %s146
    %p155 = scmp.eq.s32.totalorder %s30, 0
    %p156 = por %p154, %p155
    %p157 = scmp.ne.s32.totalorder %s145, %s146
    %p158 = scmp.eq.s32.totalorder %s31, 1
    %p159 = por %p157, %p158
    %p161 = scmp.ne.s32.totalorder %s146, %s160
    %p162 = scmp.eq.s32.totalorder %s31, 0
    %p163 = por %p161, %p162
    %s165 = sadd.s32 %s164, 1
    %p168 = scmp.eq.s32.totalorder %s25, 1
    %p169 = scmp.ne.s32.totalorder %s164, %s166
    %p170 = scmp.eq.s32.totalorder %s25, 0
    %p171 = por %p169, %p170
    %p172 = scmp.ne.s32.totalorder %s164, %s166
    %p173 = scmp.eq.s32.totalorder %s30, 1
    %p174 = por %p172, %p173
    %p175 = scmp.ne.s32.totalorder %s166, %s167
    %p176 = scmp.eq.s32.totalorder %s30, 0
    %p177 = por %p175, %p176
    %p178 = scmp.ne.s32.totalorder %s166, %s167
    %p179 = scmp.eq.s32.totalorder %s31, 1
    %p180 = por %p178, %p179
    %p182 = scmp.ne.s32.totalorder %s167, %s181
    %p183 = scmp.eq.s32.totalorder %s31, 0
    %p184 = por %p182, %p183
    %s186 = sadd.s32 %s185, 1
    %p189 = scmp.eq.s32.totalorder %s25, 1
    %p190 = scmp.ne.s32.totalorder %s185, %s187
    %p191 = scmp.eq.s32.totalorder %s25, 0
    %p192 = por %p190, %p191
    %p193 = scmp.ne.s32.totalorder %s185, %s187
    %p194 = scmp.eq.s32.totalorder %s30, 1
    %p195 = por %p193, %p194
    %p196 = scmp.ne.s32.totalorder %s187, %s188
    %p197 = scmp.eq.s32.totalorder %s30, 0
    %p198 = por %p196, %p197
    %p199 = scmp.ne.s32.totalorder %s187, %s188
    %p200 = scmp.eq.s32.totalorder %s31, 1
    %p201 = por %p199, %p200
    %p203 = scmp.ne.s32.totalorder %s188, %s202
    %p204 = scmp.eq.s32.totalorder %s31, 0
    %p205 = por %p203, %p204
    %s207 = sadd.s32 %s206, 1
    %p210 = scmp.eq.s32.totalorder %s25, 1
    %p211 = scmp.ne.s32.totalorder %s206, %s208
    %p212 = scmp.eq.s32.totalorder %s25, 0
    %p213 = por %p211, %p212
    %p214 = scmp.ne.s32.totalorder %s206, %s208
    %p215 = scmp.eq.s32.totalorder %s30, 1
    %p216 = por %p214, %p215
    %p217 = scmp.ne.s32.totalorder %s208, %s209
    %p218 = scmp.eq.s32.totalorder %s30, 0
    %p219 = por %p217, %p218
    %p220 = scmp.ne.s32.totalorder %s208, %s209
    %p221 = scmp.eq.s32.totalorder %s31, 1
    %p222 = por %p220, %p221
    %p224 = scmp.ne.s32.totalorder %s209, %s223
    %p225 = scmp.eq.s32.totalorder %s31, 0
    %p226 = por %p224, %p225
    %s228 = sadd.s32 %s227, 1
    %p231 = scmp.eq.s32.totalorder %s25, 1
    %p232 = scmp.ne.s32.totalorder %s227, %s229
    %p233 = scmp.eq.s32.totalorder %s25, 0
    %p234 = por %p232, %p233
    %p235 = scmp.ne.s32.totalorder %s227, %s229
    %p236 = scmp.eq.s32.totalorder %s30, 1
    %p237 = por %p235, %p236
    %p238 = scmp.ne.s32.totalorder %s229, %s230
    %p239 = scmp.eq.s32.totalorder %s30, 0
    %p240 = por %p238, %p239
    %p241 = scmp.ne.s32.totalorder %s229, %s230
    %p242 = scmp.eq.s32.totalorder %s31, 1
    %p243 = por %p241, %p242
    %p245 = scmp.ne.s32.totalorder %s230, %s244
    %p246 = scmp.eq.s32.totalorder %s31, 0
    %p247 = por %p245, %p246
    %s249 = sadd.s32 %s248, 1
    %p252 = scmp.eq.s32.totalorder %s25, 1
    %p253 = scmp.ne.s32.totalorder %s248, %s250
    %p254 = scmp.eq.s32.totalorder %s25, 0
    %p255 = por %p253, %p254
    %p256 = scmp.ne.s32.totalorder %s248, %s250
    %p257 = scmp.eq.s32.totalorder %s30, 1
    %p258 = por %p256, %p257
    %p259 = scmp.ne.s32.totalorder %s250, %s251
    %p260 = scmp.eq.s32.totalorder %s30, 0
    %p261 = por %p259, %p260
    %p262 = scmp.ne.s32.totalorder %s250, %s251
    %p263 = scmp.eq.s32.totalorder %s31, 1
    %p264 = por %p262, %p263
    %p266 = scmp.ne.s32.totalorder %s251, %s265
    %p267 = scmp.eq.s32.totalorder %s31, 0
    %p268 = por %p266, %p267
    %s270 = sadd.s32 %s269, 1
    %p273 = scmp.eq.s32.totalorder %s25, 1
    %p274 = scmp.ne.s32.totalorder %s269, %s271
    %p275 = scmp.eq.s32.totalorder %s25, 0
    %p276 = por %p274, %p275
    %p277 = scmp.ne.s32.totalorder %s269, %s271
    %p278 = scmp.eq.s32.totalorder %s30, 1
    %p279 = por %p277, %p278
    %p280 = scmp.ne.s32.totalorder %s271, %s272
    %p281 = scmp.eq.s32.totalorder %s30, 0
    %p282 = por %p280, %p281
    %p283 = scmp.ne.s32.totalorder %s271, %s272
    %p284 = scmp.eq.s32.totalorder %s31, 1
    %p285 = por %p283, %p284
    %p287 = scmp.ne.s32.totalorder %s272, %s286
    %p288 = scmp.eq.s32.totalorder %s31, 0
    %p289 = por %p287, %p288
    %s291 = sadd.s32 %s290, 1
    %p294 = scmp.eq.s32.totalorder %s25, 1
    %p295 = scmp.ne.s32.totalorder %s290, %s292
    %p296 = scmp.eq.s32.totalorder %s25, 0
    %p297 = por %p295, %p296
    %p298 = scmp.ne.s32.totalorder %s290, %s292
    %p299 = scmp.eq.s32.totalorder %s30, 1
    %p300 = por %p298, %p299
    %p301 = scmp.ne.s32.totalorder %s292, %s293
    %p302 = scmp.eq.s32.totalorder %s30, 0
    %p303 = por %p301, %p302
    %p304 = scmp.ne.s32.totalorder %s292, %s293
    %p305 = scmp.eq.s32.totalorder %s31, 1
    %p306 = por %p304, %p305
    %p308 = scmp.ne.s32.totalorder %s293, %s307
    %p309 = scmp.eq.s32.totalorder %s31, 0
    %p310 = por %p308, %p309
    %s312 = sadd.s32 %s311, 1
    %p315 = scmp.eq.s32.totalorder %s25, 1
    %p316 = scmp.ne.s32.totalorder %s311, %s313
    %p317 = scmp.eq.s32.totalorder %s25, 0
    %p318 = por %p316, %p317
    %p319 = scmp.ne.s32.totalorder %s311, %s313
    %p320 = scmp.eq.s32.totalorder %s30, 1
    %p321 = por %p319, %p320
    %p322 = scmp.ne.s32.totalorder %s313, %s314
    %p323 = scmp.eq.s32.totalorder %s30, 0
    %p324 = por %p322, %p323
    %p325 = scmp.ne.s32.totalorder %s313, %s314
    %p326 = scmp.eq.s32.totalorder %s31, 1
    %p327 = por %p325, %p326
    %p329 = scmp.ne.s32.totalorder %s314, %s328
    %p330 = scmp.eq.s32.totalorder %s31, 0
    %p331 = por %p329, %p330
    %s333 = sadd.s32 %s332, 1
    %p336 = scmp.eq.s32.totalorder %s25, 1
    %p337 = scmp.ne.s32.totalorder %s332, %s334
    %p338 = scmp.eq.s32.totalorder %s25, 0
    %p339 = por %p337, %p338
    %p340 = scmp.ne.s32.totalorder %s332, %s334
    %p341 = scmp.eq.s32.totalorder %s30, 1
    %p342 = por %p340, %p341
    %p343 = scmp.ne.s32.totalorder %s334, %s335
    %p344 = scmp.eq.s32.totalorder %s30, 0
    %p345 = por %p343, %p344
    %p346 = scmp.ne.s32.totalorder %s334, %s335
    %p347 = scmp.eq.s32.totalorder %s31, 1
    %p348 = por %p346, %p347
    %p350 = scmp.ne.s32.totalorder %s335, %s349
    %p351 = scmp.eq.s32.totalorder %s31, 0
    %p352 = por %p350, %p351
    %s354 = sadd.s32 %s353, 1
    %p357 = scmp.eq.s32.totalorder %s25, 1
    %p358 = scmp.ne.s32.totalorder %s353, %s355
    %p359 = scmp.eq.s32.totalorder %s25, 0
    %p360 = por %p358, %p359
    %p361 = scmp.ne.s32.totalorder %s353, %s355
    %p362 = scmp.eq.s32.totalorder %s30, 1
    %p363 = por %p361, %p362
    %p364 = scmp.ne.s32.totalorder %s355, %s356
    %p365 = scmp.eq.s32.totalorder %s30, 0
    %p366 = por %p364, %p365
    %p367 = scmp.ne.s32.totalorder %s355, %s356
    %p368 = scmp.eq.s32.totalorder %s31, 1
    %p369 = por %p367, %p368
    %p371 = scmp.ne.s32.totalorder %s356, %s370
    %p372 = scmp.eq.s32.totalorder %s31, 0
    %p373 = por %p371, %p372
    %s375 = sadd.s32 %s374, 1
    %p378 = scmp.eq.s32.totalorder %s25, 1
    %p379 = scmp.ne.s32.totalorder %s374, %s376
    %p380 = scmp.eq.s32.totalorder %s25, 0
    %p381 = por %p379, %p380
    %p382 = scmp.ne.s32.totalorder %s374, %s376
    %p383 = scmp.eq.s32.totalorder %s30, 1
    %p384 = por %p382, %p383
    %p385 = scmp.ne.s32.totalorder %s376, %s377
    %p386 = scmp.eq.s32.totalorder %s30, 0
    %p387 = por %p385, %p386
    %p388 = scmp.ne.s32.totalorder %s376, %s377
    %p389 = scmp.eq.s32.totalorder %s31, 1
    %p390 = por %p388, %p389
    %p392 = scmp.ne.s32.totalorder %s377, %s391
    %p393 = scmp.eq.s32.totalorder %s31, 0
    %p394 = por %p392, %p393
    %s396 = sadd.s32 %s395, 1
    %p399 = scmp.eq.s32.totalorder %s25, 1
    %p400 = scmp.ne.s32.totalorder %s395, %s397
    %p401 = scmp.eq.s32.totalorder %s25, 0
    %p402 = por %p400, %p401
    %p403 = scmp.ne.s32.totalorder %s395, %s397
    %p404 = scmp.eq.s32.totalorder %s30, 1
    %p405 = por %p403, %p404
    %p406 = scmp.ne.s32.totalorder %s397, %s398
    %p407 = scmp.eq.s32.totalorder %s30, 0
    %p408 = por %p406, %p407
    %p409 = scmp.ne.s32.totalorder %s397, %s398
    %p410 = scmp.eq.s32.totalorder %s31, 1
    %p411 = por %p409, %p410
    %p413 = scmp.ne.s32.totalorder %s398, %s412
    %p414 = scmp.eq.s32.totalorder %s31, 0
    %p415 = por %p413, %p414
    %s417 = sadd.s32 %s416, 1
    %p420 = scmp.eq.s32.totalorder %s25, 1
    %p421 = scmp.ne.s32.totalorder %s416, %s418
    %p422 = scmp.eq.s32.totalorder %s25, 0
    %p423 = por %p421, %p422
    %p424 = scmp.ne.s32.totalorder %s416, %s418
    %p425 = scmp.eq.s32.totalorder %s30, 1
    %p426 = por %p424, %p425
    %p427 = scmp.ne.s32.totalorder %s418, %s419
    %p428 = scmp.eq.s32.totalorder %s30, 0
    %p429 = por %p427, %p428
    %p430 = scmp.ne.s32.totalorder %s418, %s419
    %p431 = scmp.eq.s32.totalorder %s31, 1
    %p432 = por %p430, %p431
    %p434 = scmp.ne.s32.totalorder %s419, %s433
    %p435 = scmp.eq.s32.totalorder %s31, 0
    %p436 = por %p434, %p435
    %s437 = ssub.s32 %s25, %s32
    %p438 = scmp.eq.s32.totalorder %s437, 0
    %s440 = sadd.s32 %s439, 1
    %s441 = scalar_select %p438, %s439, %s440
    %p444 = pneg %p438
    %p445 = scmp.eq.s32.totalorder %s25, 1
    %p446 = por %p444, %p445
    %p447 = scmp.ne.s32.totalorder %s439, %s442
    %p448 = scmp.eq.s32.totalorder %s25, 0
    %p449 = por %p447, %p448
    %p450 = scmp.ne.s32.totalorder %s439, %s442
    %p451 = scmp.eq.s32.totalorder %s30, 1
    %p452 = por %p450, %p451
    %p453 = scmp.ne.s32.totalorder %s442, %s443
    %p454 = scmp.eq.s32.totalorder %s30, 0
    %p455 = por %p453, %p454
    %p456 = scmp.ne.s32.totalorder %s442, %s443
    %p457 = scmp.eq.s32.totalorder %s31, 1
    %p458 = por %p456, %p457
    %p460 = scmp.ne.s32.totalorder %s443, %s459
    %p461 = scmp.eq.s32.totalorder %s31, 0
    %p462 = por %p460, %p461
    %p463 = scmp.le.s32.totalorder 1, %s25
    %p464 = scmp.lt.s32.totalorder %s25, 3
    %p465 = pnand %p463, %p464
    %p466 = pneg %p465
    // Predicated region
    $region9: #{classifier_forward.1} parent=5 // pred_check
      _
    $region10: #{classifier_forward.1} parent=5 // pred_check_branch
      %468 = sbr.rel (%p465) target = $region12
    $region11: #{classifier_forward.1} parent=5 // pred_region
      %s469 = ssub.s32 %s25, 1
      // Predicated region
      $region13: #{classifier_forward.1} parent=11 // pred_check
        %p470 = pneg %p72
      $region14: #{classifier_forward.1} parent=11 // pred_check_branch
        %472 = sbr.rel (%p470) target = $region16
      $region15: #{classifier_forward.1} parent=11 // pred_region
        _
      $region16: #{classifier_forward.1} parent=11 // pred_fallthru
        _
      // Predicated region
      $region17: #{classifier_forward.1} parent=11 // pred_check
        %p473 = pneg %p93
      $region18: #{classifier_forward.1} parent=11 // pred_check_branch
        %475 = sbr.rel (%p473) target = $region20
      $region19: #{classifier_forward.1} parent=11 // pred_region
        _
      $region20: #{classifier_forward.1} parent=11 // pred_fallthru
        _
      // Predicated region
      $region21: #{classifier_forward.1} parent=11 // pred_check
        %p476 = pneg %p114
      $region22: #{classifier_forward.1} parent=11 // pred_check_branch
        %478 = sbr.rel (%p476) target = $region24
      $region23: #{classifier_forward.1} parent=11 // pred_region
        _
      $region24: #{classifier_forward.1} parent=11 // pred_fallthru
        _
      // Predicated region
      $region25: #{classifier_forward.1} parent=11 // pred_check
        %p479 = pneg %p135
      $region26: #{classifier_forward.1} parent=11 // pred_check_branch
        %481 = sbr.rel (%p479) target = $region28
      $region27: #{classifier_forward.1} parent=11 // pred_region
        _
      $region28: #{classifier_forward.1} parent=11 // pred_fallthru
        _
      // Predicated region
      $region29: #{classifier_forward.1} parent=11 // pred_check
        %p482 = pneg %p156
      $region30: #{classifier_forward.1} parent=11 // pred_check_branch
        %484 = sbr.rel (%p482) target = $region32
      $region31: #{classifier_forward.1} parent=11 // pred_region
        _
      $region32: #{classifier_forward.1} parent=11 // pred_fallthru
        _
      // Predicated region
      $region33: #{classifier_forward.1} parent=11 // pred_check
        %p485 = pneg %p177
      $region34: #{classifier_forward.1} parent=11 // pred_check_branch
        %487 = sbr.rel (%p485) target = $region36
      $region35: #{classifier_forward.1} parent=11 // pred_region
        _
      $region36: #{classifier_forward.1} parent=11 // pred_fallthru
        _
      // Predicated region
      $region37: #{classifier_forward.1} parent=11 // pred_check
        %p488 = pneg %p198
      $region38: #{classifier_forward.1} parent=11 // pred_check_branch
        %490 = sbr.rel (%p488) target = $region40
      $region39: #{classifier_forward.1} parent=11 // pred_region
        _
      $region40: #{classifier_forward.1} parent=11 // pred_fallthru
        _
      // Predicated region
      $region41: #{classifier_forward.1} parent=11 // pred_check
        %p491 = pneg %p219
      $region42: #{classifier_forward.1} parent=11 // pred_check_branch
        %493 = sbr.rel (%p491) target = $region44
      $region43: #{classifier_forward.1} parent=11 // pred_region
        _
      $region44: #{classifier_forward.1} parent=11 // pred_fallthru
        _
      // Predicated region
      $region45: #{classifier_forward.1} parent=11 // pred_check
        %p494 = pneg %p240
      $region46: #{classifier_forward.1} parent=11 // pred_check_branch
        %496 = sbr.rel (%p494) target = $region48
      $region47: #{classifier_forward.1} parent=11 // pred_region
        _
      $region48: #{classifier_forward.1} parent=11 // pred_fallthru
        _
      // Predicated region
      $region49: #{classifier_forward.1} parent=11 // pred_check
        %p497 = pneg %p261
      $region50: #{classifier_forward.1} parent=11 // pred_check_branch
        %499 = sbr.rel (%p497) target = $region52
      $region51: #{classifier_forward.1} parent=11 // pred_region
        _
      $region52: #{classifier_forward.1} parent=11 // pred_fallthru
        _
      // Predicated region
      $region53: #{classifier_forward.1} parent=11 // pred_check
        %p500 = pneg %p282
      $region54: #{classifier_forward.1} parent=11 // pred_check_branch
        %502 = sbr.rel (%p500) target = $region56
      $region55: #{classifier_forward.1} parent=11 // pred_region
        _
      $region56: #{classifier_forward.1} parent=11 // pred_fallthru
        _
      // Predicated region
      $region57: #{classifier_forward.1} parent=11 // pred_check
        %p503 = pneg %p303
      $region58: #{classifier_forward.1} parent=11 // pred_check_branch
        %505 = sbr.rel (%p503) target = $region60
      $region59: #{classifier_forward.1} parent=11 // pred_region
        _
      $region60: #{classifier_forward.1} parent=11 // pred_fallthru
        _
      // Predicated region
      $region61: #{classifier_forward.1} parent=11 // pred_check
        %p506 = pneg %p324
      $region62: #{classifier_forward.1} parent=11 // pred_check_branch
        %508 = sbr.rel (%p506) target = $region64
      $region63: #{classifier_forward.1} parent=11 // pred_region
        _
      $region64: #{classifier_forward.1} parent=11 // pred_fallthru
        _
      // Predicated region
      $region65: #{classifier_forward.1} parent=11 // pred_check
        %p509 = pneg %p345
      $region66: #{classifier_forward.1} parent=11 // pred_check_branch
        %511 = sbr.rel (%p509) target = $region68
      $region67: #{classifier_forward.1} parent=11 // pred_region
        _
      $region68: #{classifier_forward.1} parent=11 // pred_fallthru
        _
      // Predicated region
      $region69: #{classifier_forward.1} parent=11 // pred_check
        %p512 = pneg %p366
      $region70: #{classifier_forward.1} parent=11 // pred_check_branch
        %514 = sbr.rel (%p512) target = $region72
      $region71: #{classifier_forward.1} parent=11 // pred_region
        _
      $region72: #{classifier_forward.1} parent=11 // pred_fallthru
        _
      // Predicated region
      $region73: #{classifier_forward.1} parent=11 // pred_check
        %p515 = pneg %p387
      $region74: #{classifier_forward.1} parent=11 // pred_check_branch
        %517 = sbr.rel (%p515) target = $region76
      $region75: #{classifier_forward.1} parent=11 // pred_region
        _
      $region76: #{classifier_forward.1} parent=11 // pred_fallthru
        _
      // Predicated region
      $region77: #{classifier_forward.1} parent=11 // pred_check
        %p518 = pneg %p408
      $region78: #{classifier_forward.1} parent=11 // pred_check_branch
        %520 = sbr.rel (%p518) target = $region80
      $region79: #{classifier_forward.1} parent=11 // pred_region
        _
      $region80: #{classifier_forward.1} parent=11 // pred_fallthru
        _
      // Predicated region
      $region81: #{classifier_forward.1} parent=11 // pred_check
        %p521 = pneg %p429
      $region82: #{classifier_forward.1} parent=11 // pred_check_branch
        %523 = sbr.rel (%p521) target = $region84
      $region83: #{classifier_forward.1} parent=11 // pred_region
        _
      $region84: #{classifier_forward.1} parent=11 // pred_fallthru
        _
    $region12: #{classifier_forward.1} parent=5 // pred_fallthru
      _
    %p524 = scmp.lt.s32.totalorder %s25, 2
    // Predicated region
    $region85: #{classifier_forward.1} parent=5 // pred_check
      %p525 = pneg %p524
    $region86: #{classifier_forward.1} parent=5 // pred_check_branch
      %527 = sbr.rel (%p525) target = $region88
    $region87: #{classifier_forward.1} parent=5 // pred_region
      // Predicated region
      $region89: #{classifier_forward.1} parent=87 // pred_check
        %p528 = pneg %p45
      $region90: #{classifier_forward.1} parent=87 // pred_check_branch
        %530 = sbr.rel (%p528) target = $region92
      $region91: #{classifier_forward.1} parent=87 // pred_region
        %p531 = scmp.lt.s32.totalorder %s25, 1
        %s532 = scalar_select %p531, %s25, 1
        %s533 = smul.addr %s532, 51
        %s534 = smul.addr %s533, 8
        %s535 = scalar_lea.vmem %s0, %s534
      $region92: #{classifier_forward.1} parent=87 // pred_fallthru
        _
    $region88: #{classifier_forward.1} parent=5 // pred_fallthru
      _
    %p536 = scmp.le.s32.totalorder 1, %s25
    %p537 = scmp.lt.s32.totalorder %s25, 3
    %p538 = pnand %p536, %p537
    %p539 = pneg %p538
    // Predicated region
    $region93: #{classifier_forward.1} parent=5 // pred_check
      _
    $region94: #{classifier_forward.1} parent=5 // pred_check_branch
      %541 = sbr.rel (%p538) target = $region96
    $region95: #{classifier_forward.1} parent=5 // pred_region
      %s542 = ssub.s32 %s25, 1
      %p543 = scmp.lt.s32.totalorder %s30, 1
      %s544 = scalar_select %p543, %s30, 1
      %s545 = smul.addr %s544, 51
      %s546 = smul.addr %s545, 8
      %s547 = scalar_lea.vmem %s0, %s546
      %p548 = pneg %p51
      %p549 = pneg %p48
      %p550 = pneg %p72
      %p551 = pneg %p69
      %p552 = pneg %p93
      %p553 = pneg %p90
      %p554 = pneg %p114
      %p555 = pneg %p111
      %p556 = pneg %p135
      %p557 = pneg %p132
      %p558 = pneg %p156
      %p559 = pneg %p153
      %p560 = pneg %p177
      %p561 = pneg %p174
      %p562 = pneg %p198
      %p563 = pneg %p195
      %p564 = pneg %p219
      %p565 = pneg %p216
      %p566 = pneg %p240
      %p567 = pneg %p237
      %p568 = pneg %p261
      %p569 = pneg %p258
      %p570 = pneg %p282
      %p571 = pneg %p279
      %p572 = pneg %p303
      %p573 = pneg %p300
      %p574 = pneg %p324
      %p575 = pneg %p321
      %p576 = pneg %p345
      %p577 = pneg %p342
      %p578 = pneg %p366
      %p579 = pneg %p363
      %p580 = pneg %p387
      %p581 = pneg %p384
      %p582 = pneg %p408
      %p583 = pneg %p405
      %p584 = pneg %p429
      %p585 = pneg %p426
      %p586 = pneg %p455
      %p587 = pneg %p452
      %p588 = scmp.lt.s32.totalorder %s30, 1
      %s589 = scalar_select %p588, %s30, 1
      %s590 = smul.addr %s589, 8
      %s591 = scalar_lea.vmem %s19, %s590
      %p592 = scmp.lt.s32.totalorder %s30, 1
      %s593 = scalar_select %p592, %s30, 1
      %s594 = smul.addr %s593, 51
      %s595 = smul.addr %s594, 8
      %s596 = scalar_lea.vmem %s0, %s595
      %p597 = scmp.lt.s32.totalorder %s30, 1
      %s598 = scalar_select %p597, %s30, 1
      %s599 = smul.addr %s598, 8
      %s600 = scalar_lea.vmem %s19, %s599
      %v602 = vld [vmem:[%s2] sm:$0x7f]
      %v603 = vld [vmem:[%s3] sm:$0x7f]
      %v604 = vld [vmem:[%s4] sm:$0x7f]
      %v605 = vld [vmem:[%s596] sm:$0xff]
      %v606 = vld [vmem:[%s596 + $0x8] sm:$0xff]
      %v607 = vld [vmem:[%s596 + $0x10] sm:$0xff]
      %v608 = vld [vmem:[%s596 + $0x18] sm:$0xff]
      %v609 = vld [vmem:[%s596 + $0x20] sm:$0xff]
      %v610 = vld [vmem:[%s596 + $0x28] sm:$0xff]
      %v611 = vld [vmem:[%s596 + $0x30] sm:$0xff]
      %v612 = vld [vmem:[%s596 + $0x38] sm:$0xff]
      %v613 = vld [vmem:[%s596 + $0x40] sm:$0xff]
      %v614 = vld [vmem:[%s596 + $0x48] sm:$0xff]
      %v615 = vld [vmem:[%s596 + $0x50] sm:$0xff]
      %v616 = vld [vmem:[%s596 + $0x58] sm:$0xff]
      %v617 = vld [vmem:[%s596 + $0x60] sm:$0xff]
      %v618 = vld [vmem:[%s596 + $0x68] sm:$0xff]
      %v619 = vld [vmem:[%s596 + $0x70] sm:$0xff]
      %v620 = vld [vmem:[%s596 + $0x78] sm:$0xff]
      %v621 = vld [vmem:[%s596 + $0x80] sm:$0xff]
      %v622 = vld [vmem:[%s596 + $0x88] sm:$0xff]
      %v623 = vld [vmem:[%s596 + $0x90] sm:$0xff]
      %v624 = vld [vmem:[%s596 + $0x98] sm:$0xff]
      %v625 = vld [vmem:[%s596 + $0xa0] sm:$0xff]
      %v626 = vld [vmem:[%s596 + $0xa8] sm:$0xff]
      %v627 = vld [vmem:[%s596 + $0xb0] sm:$0xff]
      %v628 = vld [vmem:[%s596 + $0xb8] sm:$0xff]
      %v629 = vld [vmem:[%s596 + $0xc0] sm:$0xff]
      %v630 = vld [vmem:[%s596 + $0xc8] sm:$0xff]
      %v631 = vld [vmem:[%s596 + $0xd0] sm:$0xff]
      %v632 = vld [vmem:[%s596 + $0xd8] sm:$0xff]
      %v633 = vld [vmem:[%s596 + $0xe0] sm:$0xff]
      %v634 = vld [vmem:[%s596 + $0xe8] sm:$0xff]
      %v635 = vld [vmem:[%s596 + $0xf0] sm:$0xff]
      %v636 = vld [vmem:[%s596 + $0xf8] sm:$0xff]
      %v637 = vld [vmem:[%s596 + $0x100] sm:$0xff]
      %v638 = vld [vmem:[%s596 + $0x108] sm:$0xff]
      %v639 = vld [vmem:[%s596 + $0x110] sm:$0xff]
      %v640 = vld [vmem:[%s596 + $0x118] sm:$0xff]
      %v641 = vld [vmem:[%s596 + $0x120] sm:$0xff]
      %v642 = vld [vmem:[%s596 + $0x128] sm:$0xff]
      %v643 = vld [vmem:[%s596 + $0x130] sm:$0xff]
      %v644 = vld [vmem:[%s596 + $0x138] sm:$0xff]
      %v645 = vld [vmem:[%s596 + $0x140] sm:$0xff]
      %v646 = vld [vmem:[%s596 + $0x148] sm:$0xff]
      %v647 = vld [vmem:[%s596 + $0x150] sm:$0xff]
      %v648 = vld [vmem:[%s596 + $0x158] sm:$0xff]
      %v649 = vld [vmem:[%s596 + $0x160] sm:$0xff]
      %v650 = vld [vmem:[%s596 + $0x168] sm:$0xff]
      %v651 = vld [vmem:[%s596 + $0x170] sm:$0xff]
      %v652 = vld [vmem:[%s596 + $0x178] sm:$0xff]
      %v653 = vld [vmem:[%s596 + $0x180] sm:$0xff]
      %v654 = vld [vmem:[%s596 + $0x188] sm:$0xff]
      %v655 = vld [vmem:[%s596 + $0x190] sm:$0xff]
      %v656 = vld [vmem:[%s1] sm:$0xf]
      %v657 = vld [vmem:[%s1 + $0x4] sm:$0xf]
      %v658 = vpack.c.bf16 %v606, %v605
      %v659 = vpack.c.bf16 %v608, %v607
      %v660 = vpack.c.bf16 %v610, %v609
      %v661 = vpack.c.bf16 %v612, %v611
      %v662 = vpack.c.bf16 %v614, %v613
      %v663 = vpack.c.bf16 %v616, %v615
      %v664 = vpack.c.bf16 %v618, %v617
      %v665 = vpack.c.bf16 %v620, %v619
      %v666 = vpack.c.bf16 %v622, %v621
      %v667 = vpack.c.bf16 %v624, %v623
      %v668 = vpack.c.bf16 %v626, %v625
      %v669 = vpack.c.bf16 %v628, %v627
      %v670 = vpack.c.bf16 %v630, %v629
      %v671 = vpack.c.bf16 %v632, %v631
      %v672 = vpack.c.bf16 %v634, %v633
      %v673 = vpack.c.bf16 %v636, %v635
      %v674 = vpack.c.bf16 %v638, %v637
      %v675 = vpack.c.bf16 %v640, %v639
      %v676 = vpack.c.bf16 %v642, %v641
      %v677 = vpack.c.bf16 %v644, %v643
      %v678 = vpack.c.bf16 %v646, %v645
      %v679 = vpack.c.bf16 %v648, %v647
      %v680 = vpack.c.bf16 %v650, %v649
      %v681 = vpack.c.bf16 %v652, %v651
      %v682 = vpack.c.bf16 %v654, %v653
      %v683 = vpack.c.bf16 %v655, %v655
      %v684 = vlaneseq
      %v685 = vshrl.u32 %v684, 7
      %v686 = vsub.s32 0, %v685
      %v687 = vrot.slane %v602, %v686
      %v690 = vunpack.c.l.b16 %v656
      %v691 = vunpack.c.l.b16 %v657
      %v692 = vpack.c.b16 %v691, %v690
      %vm693 = vcmask 80896
      %v695 = vsel %vm693, %v658, 0
      %v698 = vsel %vm693, %v659, 0
      %v701 = vsel %vm693, %v660, 0
      %v704 = vsel %vm693, %v661, 0
      %v707 = vsel %vm693, %v662, 0
      %v710 = vsel %vm693, %v663, 0
      %v713 = vsel %vm693, %v664, 0
      %v716 = vsel %vm693, %v665, 0
      %v719 = vsel %vm693, %v666, 0
      %v722 = vsel %vm693, %v667, 0
      %v725 = vsel %vm693, %v668, 0
      %v728 = vsel %vm693, %v669, 0
      %v731 = vsel %vm693, %v670, 0
      %v734 = vsel %vm693, %v671, 0
      %v737 = vsel %vm693, %v672, 0
      %v740 = vsel %vm693, %v673, 0
      %v743 = vsel %vm693, %v674, 0
      %v746 = vsel %vm693, %v675, 0
      %v749 = vsel %vm693, %v676, 0
      %v752 = vsel %vm693, %v677, 0
      %v755 = vsel %vm693, %v678, 0
      %v758 = vsel %vm693, %v679, 0
      %v761 = vsel %vm693, %v680, 0
      %v764 = vsel %vm693, %v681, 0
      %v767 = vsel %vm693, %v682, 0
      %v770 = vsel %vm693, %v683, 0
      %vm772 = vcmask 1044480
      %v774 = vsel %vm772, %v692, 0
      %776 = vmatprep.subr.bf16.mxu0 0
      %777 = vmatpush1.bf16.msra.mxu0 %v774
      %778 = vmatprep.subr.bf16.mxu0 0
      %779 = vmatpush1.bf16.msra.mxu0 0
      %780 = vmatprep.subr.bf16.mxu0 0
      %781 = vmatpush1.bf16.msra.mxu0 0
      %782 = vmatprep.subr.bf16.mxu0 0
      %783 = vmatpush1.bf16.msra.mxu0 0
      %784 = vmatprep.subr.bf16.mxu0 0
      %785 = vmatpush1.bf16.msra.mxu0 0
      %786 = vmatprep.subr.bf16.mxu0 0
      %787 = vmatpush1.bf16.msra.mxu0 0
      %788 = vmatprep.subr.bf16.mxu0 0
      %789 = vmatpush1.bf16.msra.mxu0 0
      %790 = vmatprep.subr.bf16.mxu0 0
      %791 = vmatpush1.bf16.msra.mxu0 0
      %792 = vmatprep.subr.bf16.mxu0 0
      %793 = vmatpush1.bf16.msra.mxu0 0
      %794 = vmatprep.subr.bf16.mxu0 0
      %795 = vmatpush1.bf16.msra.mxu0 0
      %796 = vmatprep.subr.bf16.mxu0 0
      %797 = vmatpush1.bf16.msra.mxu0 0
      %798 = vmatprep.subr.bf16.mxu0 0
      %799 = vmatpush1.bf16.msra.mxu0 0
      %800 = vmatprep.subr.bf16.mxu0 0
      %801 = vmatpush1.bf16.msra.mxu0 0
      %802 = vmatprep.subr.bf16.mxu0 0
      %803 = vmatpush1.bf16.msra.mxu0 0
      %804 = vmatprep.subr.bf16.mxu0 0
      %805 = vmatpush1.bf16.msra.mxu0 0
      %806 = vmatprep.subr.bf16.mxu0 0
      %807 = vmatpush1.bf16.msra.mxu0 0
      %808 = vmatprep.mubr.bf16.mxu0 0
      %809 = vmatmul.mubr.bf16.gmra.mrb[0].mxu0 %v695
      %v810 = vpop.f32.mrb[0].mxu0
      %v811 = vadd.f32 %v687, %v810
      %v812 = vpop.f32.mrb[0].mxu0
      %v813 = vpop.f32.mrb[0].mxu0
      %v814 = vadd.f32 %v687, %v813
      %v815 = vpop.f32.mrb[0].mxu0
      %816 = vmatprep.mubr.bf16.mxu0 0
      %817 = vmatmul.mubr.bf16.gmra.mrb[0].mxu0 %v698
      %v818 = vpop.f32.mrb[0].mxu0
      %v819 = vadd.f32 %v687, %v818
      %v820 = vpop.f32.mrb[0].mxu0
      %v821 = vpop.f32.mrb[0].mxu0
      %v822 = vadd.f32 %v687, %v821
      %v823 = vpop.f32.mrb[0].mxu0
      %824 = vmatprep.mubr.bf16.mxu0 0
      %825 = vmatmul.mubr.bf16.gmra.mrb[0].mxu0 %v701
      %v826 = vpop.f32.mrb[0].mxu0
      %v827 = vadd.f32 %v687, %v826
      %v828 = vpop.f32.mrb[0].mxu0
      %v829 = vpop.f32.mrb[0].mxu0
      %v830 = vadd.f32 %v687, %v829
      %v831 = vpop.f32.mrb[0].mxu0
      %832 = vmatprep.mubr.bf16.mxu0 0
      %833 = vmatmul.mubr.bf16.gmra.mrb[0].mxu0 %v704
      %v834 = vpop.f32.mrb[0].mxu0
      %v835 = vadd.f32 %v687, %v834
      %v836 = vpop.f32.mrb[0].mxu0
      %v837 = vpop.f32.mrb[0].mxu0
      %v838 = vadd.f32 %v687, %v837
      %v839 = vpop.f32.mrb[0].mxu0
      %840 = vmatprep.mubr.bf16.mxu0 0
      %841 = vmatmul.mubr.bf16.gmra.mrb[0].mxu0 %v707
      %v842 = vpop.f32.mrb[0].mxu0
      %v843 = vadd.f32 %v687, %v842
      %v844 = vpop.f32.mrb[0].mxu0
      %v845 = vpop.f32.mrb[0].mxu0
      %v846 = vadd.f32 %v687, %v845
      %v847 = vpop.f32.mrb[0].mxu0
      %848 = vmatprep.mubr.bf16.mxu0 0
      %849 = vmatmul.mubr.bf16.gmra.mrb[0].mxu0 %v710
      %v850 = vpop.f32.mrb[0].mxu0
      %v851 = vadd.f32 %v687, %v850
      %v852 = vpop.f32.mrb[0].mxu0
      %v853 = vpop.f32.mrb[0].mxu0
      %v854 = vadd.f32 %v687, %v853
      %v855 = vpop.f32.mrb[0].mxu0
      %856 = vmatprep.mubr.bf16.mxu0 0
      %857 = vmatmul.mubr.bf16.gmra.mrb[0].mxu0 %v713
      %v858 = vpop.f32.mrb[0].mxu0
      %v859 = vadd.f32 %v687, %v858
      %v860 = vpop.f32.mrb[0].mxu0
      %v861 = vpop.f32.mrb[0].mxu0
      %v862 = vadd.f32 %v687, %v861
      %v863 = vpop.f32.mrb[0].mxu0
      %864 = vmatprep.mubr.bf16.mxu0 0
      %865 = vmatmul.mubr.bf16.gmra.mrb[0].mxu0 %v716
      %v866 = vpop.f32.mrb[0].mxu0
      %v867 = vadd.f32 %v687, %v866
      %v868 = vpop.f32.mrb[0].mxu0
      %v869 = vpop.f32.mrb[0].mxu0
      %v870 = vadd.f32 %v687, %v869
      %v871 = vpop.f32.mrb[0].mxu0
      %872 = vmatprep.mubr.bf16.mxu0 0
      %873 = vmatmul.mubr.bf16.gmra.mrb[0].mxu0 %v719
      %v874 = vpop.f32.mrb[0].mxu0
      %v875 = vadd.f32 %v687, %v874
      %v876 = vpop.f32.mrb[0].mxu0
      %v877 = vpop.f32.mrb[0].mxu0
      %v878 = vadd.f32 %v687, %v877
      %v879 = vpop.f32.mrb[0].mxu0
      %880 = vmatprep.mubr.bf16.mxu0 0
      %881 = vmatmul.mubr.bf16.gmra.mrb[0].mxu0 %v722
      %v882 = vpop.f32.mrb[0].mxu0
      %v883 = vadd.f32 %v687, %v882
      %v884 = vpop.f32.mrb[0].mxu0
      %v885 = vpop.f32.mrb[0].mxu0
      %v886 = vadd.f32 %v687, %v885
      %v887 = vpop.f32.mrb[0].mxu0
      %888 = vmatprep.mubr.bf16.mxu0 0
      %889 = vmatmul.mubr.bf16.gmra.mrb[0].mxu0 %v725
      %v890 = vpop.f32.mrb[0].mxu0
      %v891 = vadd.f32 %v687, %v890
      %v892 = vpop.f32.mrb[0].mxu0
      %v893 = vpop.f32.mrb[0].mxu0
      %v894 = vadd.f32 %v687, %v893
      %v895 = vpop.f32.mrb[0].mxu0
      %896 = vmatprep.mubr.bf16.mxu0 0
      %897 = vmatmul.mubr.bf16.gmra.mrb[0].mxu0 %v728
      %v898 = vpop.f32.mrb[0].mxu0
      %v899 = vadd.f32 %v687, %v898
      %v900 = vpop.f32.mrb[0].mxu0
      %v901 = vpop.f32.mrb[0].mxu0
      %v902 = vadd.f32 %v687, %v901
      %v903 = vpop.f32.mrb[0].mxu0
      %904 = vmatprep.mubr.bf16.mxu0 0
      %905 = vmatmul.mubr.bf16.gmra.mrb[0].mxu0 %v731
      %v906 = vpop.f32.mrb[0].mxu0
      %v907 = vadd.f32 %v687, %v906
      %v908 = vpop.f32.mrb[0].mxu0
      %v909 = vpop.f32.mrb[0].mxu0
      %v910 = vadd.f32 %v687, %v909
      %v911 = vpop.f32.mrb[0].mxu0
      %912 = vmatprep.mubr.bf16.mxu0 0
      %913 = vmatmul.mubr.bf16.gmra.mrb[0].mxu0 %v734
      %v914 = vpop.f32.mrb[0].mxu0
      %v915 = vadd.f32 %v687, %v914
      %v916 = vpop.f32.mrb[0].mxu0
      %v917 = vpop.f32.mrb[0].mxu0
      %v918 = vadd.f32 %v687, %v917
      %v919 = vpop.f32.mrb[0].mxu0
      %920 = vmatprep.mubr.bf16.mxu0 0
      %921 = vmatmul.mubr.bf16.gmra.mrb[0].mxu0 %v737
      %v922 = vpop.f32.mrb[0].mxu0
      %v923 = vadd.f32 %v687, %v922
      %v924 = vpop.f32.mrb[0].mxu0
      %v925 = vpop.f32.mrb[0].mxu0
      %v926 = vadd.f32 %v687, %v925
      %v927 = vpop.f32.mrb[0].mxu0
      %928 = vmatprep.mubr.bf16.mxu0 0
      %929 = vmatmul.mubr.bf16.gmra.mrb[0].mxu0 %v740
      %v930 = vpop.f32.mrb[0].mxu0
      %v931 = vadd.f32 %v687, %v930
      %v932 = vpop.f32.mrb[0].mxu0
      %v933 = vpop.f32.mrb[0].mxu0
      %v934 = vadd.f32 %v687, %v933
      %v935 = vpop.f32.mrb[0].mxu0
      %936 = vmatprep.mubr.bf16.mxu0 0
      %937 = vmatmul.mubr.bf16.gmra.mrb[0].mxu0 %v743
      %v938 = vpop.f32.mrb[0].mxu0
      %v939 = vadd.f32 %v687, %v938
      %v940 = vpop.f32.mrb[0].mxu0
      %v941 = vpop.f32.mrb[0].mxu0
      %v942 = vadd.f32 %v687, %v941
      %v943 = vpop.f32.mrb[0].mxu0
      %944 = vmatprep.mubr.bf16.mxu0 0
      %945 = vmatmul.mubr.bf16.gmra.mrb[0].mxu0 %v746
      %v946 = vpop.f32.mrb[0].mxu0
      %v947 = vadd.f32 %v687, %v946
      %v948 = vpop.f32.mrb[0].mxu0
      %v949 = vpop.f32.mrb[0].mxu0
      %v950 = vadd.f32 %v687, %v949
      %v951 = vpop.f32.mrb[0].mxu0
      %952 = vmatprep.mubr.bf16.mxu0 0
      %953 = vmatmul.mubr.bf16.gmra.mrb[0].mxu0 %v749
      %v954 = vpop.f32.mrb[0].mxu0
      %v955 = vadd.f32 %v687, %v954
      %v956 = vpop.f32.mrb[0].mxu0
      %v957 = vpop.f32.mrb[0].mxu0
      %v958 = vadd.f32 %v687, %v957
      %v959 = vpop.f32.mrb[0].mxu0
      %960 = vmatprep.mubr.bf16.mxu0 0
      %961 = vmatmul.mubr.bf16.gmra.mrb[0].mxu0 %v752
      %v962 = vpop.f32.mrb[0].mxu0
      %v963 = vadd.f32 %v687, %v962
      %v964 = vpop.f32.mrb[0].mxu0
      %v965 = vpop.f32.mrb[0].mxu0
      %v966 = vadd.f32 %v687, %v965
      %v967 = vpop.f32.mrb[0].mxu0
      %968 = vmatprep.mubr.bf16.mxu0 0
      %969 = vmatmul.mubr.bf16.gmra.mrb[0].mxu0 %v755
      %v970 = vpop.f32.mrb[0].mxu0
      %v971 = vadd.f32 %v687, %v970
      %v972 = vpop.f32.mrb[0].mxu0
      %v973 = vpop.f32.mrb[0].mxu0
      %v974 = vadd.f32 %v687, %v973
      %v975 = vpop.f32.mrb[0].mxu0
      %976 = vmatprep.mubr.bf16.mxu0 0
      %977 = vmatmul.mubr.bf16.gmra.mrb[0].mxu0 %v758
      %v978 = vpop.f32.mrb[0].mxu0
      %v979 = vadd.f32 %v687, %v978
      %v980 = vpop.f32.mrb[0].mxu0
      %v981 = vpop.f32.mrb[0].mxu0
      %v982 = vadd.f32 %v687, %v981
      %v983 = vpop.f32.mrb[0].mxu0
      %984 = vmatprep.mubr.bf16.mxu0 0
      %985 = vmatmul.mubr.bf16.gmra.mrb[0].mxu0 %v761
      %v986 = vpop.f32.mrb[0].mxu0
      %v987 = vadd.f32 %v687, %v986
      %v988 = vpop.f32.mrb[0].mxu0
      %v989 = vpop.f32.mrb[0].mxu0
      %v990 = vadd.f32 %v687, %v989
      %v991 = vpop.f32.mrb[0].mxu0
      %992 = vmatprep.mubr.bf16.mxu0 0
      %993 = vmatmul.mubr.bf16.gmra.mrb[0].mxu0 %v764
      %v994 = vpop.f32.mrb[0].mxu0
      %v995 = vadd.f32 %v687, %v994
      %v996 = vpop.f32.mrb[0].mxu0
      %v997 = vpop.f32.mrb[0].mxu0
      %v998 = vadd.f32 %v687, %v997
      %v999 = vpop.f32.mrb[0].mxu0
      %1000 = vmatprep.mubr.bf16.mxu0 0
      %1001 = vmatmul.mubr.bf16.gmra.mrb[0].mxu0 %v767
      %v1002 = vpop.f32.mrb[0].mxu0
      %v1003 = vadd.f32 %v687, %v1002
      %v1004 = vpop.f32.mrb[0].mxu0
      %v1005 = vpop.f32.mrb[0].mxu0
      %v1006 = vadd.f32 %v687, %v1005
      %v1007 = vpop.f32.mrb[0].mxu0
      %1008 = vmatprep.mubr.bf16.mxu0 0
      %1009 = vmatmul.mubr.bf16.gmra.mrb[0].mxu0 %v770
      %v1010 = vpop.f32.mrb[0].mxu0
      %v1011 = vadd.f32 %v687, %v1010
      %v1012 = vpop.f32.mrb[0].mxu0
      %v1013 = vpop.f32.mrb[0].mxu0
      %v1014 = vpop.f32.mrb[0].mxu0
      %1015 = vdwg.mxu0
      %vm1016 = vcmask 130048
      %v1017 = vsel %vm1016, %v811, 0.0
      %1018 = vadd.xlane.f32.xlu0 %v1017
      %v1019 = vpop.xlane.xlu0 %1018
      %v1020 = vsel %vm1016, %v814, 0.0
      %1021 = vadd.xlane.f32.xlu0 %v1020
      %v1022 = vpop.xlane.xlu0 %1021
      %v1023 = vsel %vm1016, %v819, 0.0
      %1024 = vadd.xlane.f32.xlu0 %v1023
      %v1025 = vpop.xlane.xlu0 %1024
      %v1026 = vsel %vm1016, %v822, 0.0
      %1027 = vadd.xlane.f32.xlu0 %v1026
      %v1028 = vpop.xlane.xlu0 %1027
      %v1029 = vsel %vm1016, %v827, 0.0
      %1030 = vadd.xlane.f32.xlu0 %v1029
      %v1031 = vpop.xlane.xlu0 %1030
      %v1032 = vsel %vm1016, %v830, 0.0
      %1033 = vadd.xlane.f32.xlu0 %v1032
      %v1034 = vpop.xlane.xlu0 %1033
      %v1035 = vsel %vm1016, %v835, 0.0
      %1036 = vadd.xlane.f32.xlu0 %v1035
      %v1037 = vpop.xlane.xlu0 %1036
      %v1038 = vsel %vm1016, %v838, 0.0
      %1039 = vadd.xlane.f32.xlu0 %v1038
      %v1040 = vpop.xlane.xlu0 %1039
      %v1041 = vsel %vm1016, %v843, 0.0
      %1042 = vadd.xlane.f32.xlu0 %v1041
      %v1043 = vpop.xlane.xlu0 %1042
      %v1044 = vsel %vm1016, %v846, 0.0
      %1045 = vadd.xlane.f32.xlu0 %v1044
      %v1046 = vpop.xlane.xlu0 %1045
      %v1047 = vsel %vm1016, %v851, 0.0
      %1048 = vadd.xlane.f32.xlu0 %v1047
      %v1049 = vpop.xlane.xlu0 %1048
      %v1050 = vsel %vm1016, %v854, 0.0
      %1051 = vadd.xlane.f32.xlu0 %v1050
      %v1052 = vpop.xlane.xlu0 %1051
      %v1053 = vsel %vm1016, %v859, 0.0
      %1054 = vadd.xlane.f32.xlu0 %v1053
      %v1055 = vpop.xlane.xlu0 %1054
      %v1056 = vsel %vm1016, %v862, 0.0
      %1057 = vadd.xlane.f32.xlu0 %v1056
      %v1058 = vpop.xlane.xlu0 %1057
      %v1059 = vsel %vm1016, %v867, 0.0
      %1060 = vadd.xlane.f32.xlu0 %v1059
      %v1061 = vpop.xlane.xlu0 %1060
      %v1062 = vsel %vm1016, %v870, 0.0
      %1063 = vadd.xlane.f32.xlu0 %v1062
      %v1064 = vpop.xlane.xlu0 %1063
      %v1065 = vsel %vm1016, %v875, 0.0
      %1066 = vadd.xlane.f32.xlu0 %v1065
      %v1067 = vpop.xlane.xlu0 %1066
      %v1068 = vsel %vm1016, %v878, 0.0
      %1069 = vadd.xlane.f32.xlu0 %v1068
      %v1070 = vpop.xlane.xlu0 %1069
      %v1071 = vsel %vm1016, %v883, 0.0
      %1072 = vadd.xlane.f32.xlu0 %v1071
      %v1073 = vpop.xlane.xlu0 %1072
      %v1074 = vsel %vm1016, %v886, 0.0
      %1075 = vadd.xlane.f32.xlu0 %v1074
      %v1076 = vpop.xlane.xlu0 %1075
      %v1077 = vsel %vm1016, %v891, 0.0
      %1078 = vadd.xlane.f32.xlu0 %v1077
      %v1079 = vpop.xlane.xlu0 %1078
      %v1080 = vsel %vm1016, %v894, 0.0
      %1081 = vadd.xlane.f32.xlu0 %v1080
      %v1082 = vpop.xlane.xlu0 %1081
      %v1083 = vsel %vm1016, %v899, 0.0
      %1084 = vadd.xlane.f32.xlu0 %v1083
      %v1085 = vpop.xlane.xlu0 %1084
      %v1086 = vsel %vm1016, %v902, 0.0
      %1087 = vadd.xlane.f32.xlu0 %v1086
      %v1088 = vpop.xlane.xlu0 %1087
      %v1089 = vsel %vm1016, %v907, 0.0
      %1090 = vadd.xlane.f32.xlu0 %v1089
      %v1091 = vpop.xlane.xlu0 %1090
      %v1092 = vsel %vm1016, %v910, 0.0
      %1093 = vadd.xlane.f32.xlu0 %v1092
      %v1094 = vpop.xlane.xlu0 %1093
      %v1095 = vsel %vm1016, %v915, 0.0
      %1096 = vadd.xlane.f32.xlu0 %v1095
      %v1097 = vpop.xlane.xlu0 %1096
      %v1098 = vsel %vm1016, %v918, 0.0
      %1099 = vadd.xlane.f32.xlu0 %v1098
      %v1100 = vpop.xlane.xlu0 %1099
      %v1101 = vsel %vm1016, %v923, 0.0
      %1102 = vadd.xlane.f32.xlu0 %v1101
      %v1103 = vpop.xlane.xlu0 %1102
      %v1104 = vsel %vm1016, %v926, 0.0
      %1105 = vadd.xlane.f32.xlu0 %v1104
      %v1106 = vpop.xlane.xlu0 %1105
      %v1107 = vsel %vm1016, %v931, 0.0
      %1108 = vadd.xlane.f32.xlu0 %v1107
      %v1109 = vpop.xlane.xlu0 %1108
      %v1110 = vsel %vm1016, %v934, 0.0
      %1111 = vadd.xlane.f32.xlu0 %v1110
      %v1112 = vpop.xlane.xlu0 %1111
      %v1113 = vsel %vm1016, %v939, 0.0
      %1114 = vadd.xlane.f32.xlu0 %v1113
      %v1115 = vpop.xlane.xlu0 %1114
      %v1116 = vsel %vm1016, %v942, 0.0
      %1117 = vadd.xlane.f32.xlu0 %v1116
      %v1118 = vpop.xlane.xlu0 %1117
      %v1119 = vsel %vm1016, %v947, 0.0
      %1120 = vadd.xlane.f32.xlu0 %v1119
      %v1121 = vpop.xlane.xlu0 %1120
      %v1122 = vsel %vm1016, %v950, 0.0
      %1123 = vadd.xlane.f32.xlu0 %v1122
      %v1124 = vpop.xlane.xlu0 %1123
      %v1125 = vsel %vm1016, %v955, 0.0
      %1126 = vadd.xlane.f32.xlu0 %v1125
      %v1127 = vpop.xlane.xlu0 %1126
      %v1128 = vsel %vm1016, %v958, 0.0
      %1129 = vadd.xlane.f32.xlu0 %v1128
      %v1130 = vpop.xlane.xlu0 %1129
      %v1131 = vsel %vm1016, %v963, 0.0
      %1132 = vadd.xlane.f32.xlu0 %v1131
      %v1133 = vpop.xlane.xlu0 %1132
      %v1134 = vsel %vm1016, %v966, 0.0
      %1135 = vadd.xlane.f32.xlu0 %v1134
      %v1136 = vpop.xlane.xlu0 %1135
      %v1137 = vsel %vm1016, %v971, 0.0
      %1138 = vadd.xlane.f32.xlu0 %v1137
      %v1139 = vpop.xlane.xlu0 %1138
      %v1140 = vsel %vm1016, %v974, 0.0
      %1141 = vadd.xlane.f32.xlu0 %v1140
      %v1142 = vpop.xlane.xlu0 %1141
      %v1143 = vsel %vm1016, %v979, 0.0
      %1144 = vadd.xlane.f32.xlu0 %v1143
      %v1145 = vpop.xlane.xlu0 %1144
      %v1146 = vsel %vm1016, %v982, 0.0
      %1147 = vadd.xlane.f32.xlu0 %v1146
      %v1148 = vpop.xlane.xlu0 %1147
      %v1149 = vsel %vm1016, %v987, 0.0
      %1150 = vadd.xlane.f32.xlu0 %v1149
      %v1151 = vpop.xlane.xlu0 %1150
      %v1152 = vsel %vm1016, %v990, 0.0
      %1153 = vadd.xlane.f32.xlu0 %v1152
      %v1154 = vpop.xlane.xlu0 %1153
      %v1155 = vsel %vm1016, %v995, 0.0
      %1156 = vadd.xlane.f32.xlu0 %v1155
      %v1157 = vpop.xlane.xlu0 %1156
      %v1158 = vsel %vm1016, %v998, 0.0
      %1159 = vadd.xlane.f32.xlu0 %v1158
      %v1160 = vpop.xlane.xlu0 %1159
      %v1161 = vsel %vm1016, %v1003, 0.0
      %1162 = vadd.xlane.f32.xlu0 %v1161
      %v1163 = vpop.xlane.xlu0 %1162
      %v1164 = vsel %vm1016, %v1006, 0.0
      %1165 = vadd.xlane.f32.xlu0 %v1164
      %v1166 = vpop.xlane.xlu0 %1165
      %v1167 = vsel %vm1016, %v1011, 0.0
      %1168 = vadd.xlane.f32.xlu0 %v1167
      %v1169 = vpop.xlane.xlu0 %1168
      %v1170 = vrcp.pop 16.0
      %v1171 = vmul.f32 %v1019, %v1170
      %v1172 = vmul.f32 %v1022, %v1170
      %v1173 = vmul.f32 %v1025, %v1170
      %v1174 = vmul.f32 %v1028, %v1170
      %v1175 = vmul.f32 %v1031, %v1170
      %v1176 = vmul.f32 %v1034, %v1170
      %v1177 = vmul.f32 %v1037, %v1170
      %v1178 = vmul.f32 %v1040, %v1170
      %v1179 = vmul.f32 %v1043, %v1170
      %v1180 = vmul.f32 %v1046, %v1170
      %v1181 = vmul.f32 %v1049, %v1170
      %v1182 = vmul.f32 %v1052, %v1170
      %v1183 = vmul.f32 %v1055, %v1170
      %v1184 = vmul.f32 %v1058, %v1170
      %v1185 = vmul.f32 %v1061, %v1170
      %v1186 = vmul.f32 %v1064, %v1170
      %v1187 = vmul.f32 %v1067, %v1170
      %v1188 = vmul.f32 %v1070, %v1170
      %v1189 = vmul.f32 %v1073, %v1170
      %v1190 = vmul.f32 %v1076, %v1170
      %v1191 = vmul.f32 %v1079, %v1170
      %v1192 = vmul.f32 %v1082, %v1170
      %v1193 = vmul.f32 %v1085, %v1170
      %v1194 = vmul.f32 %v1088, %v1170
      %v1195 = vmul.f32 %v1091, %v1170
      %v1196 = vmul.f32 %v1094, %v1170
      %v1197 = vmul.f32 %v1097, %v1170
      %v1198 = vmul.f32 %v1100, %v1170
      %v1199 = vmul.f32 %v1103, %v1170
      %v1200 = vmul.f32 %v1106, %v1170
      %v1201 = vmul.f32 %v1109, %v1170
      %v1202 = vmul.f32 %v1112, %v1170
      %v1203 = vmul.f32 %v1115, %v1170
      %v1204 = vmul.f32 %v1118, %v1170
      %v1205 = vmul.f32 %v1121, %v1170
      %v1206 = vmul.f32 %v1124, %v1170
      %v1207 = vmul.f32 %v1127, %v1170
      %v1208 = vmul.f32 %v1130, %v1170
      %v1209 = vmul.f32 %v1133, %v1170
      %v1210 = vmul.f32 %v1136, %v1170
      %v1211 = vmul.f32 %v1139, %v1170
      %v1212 = vmul.f32 %v1142, %v1170
      %v1213 = vmul.f32 %v1145, %v1170
      %v1214 = vmul.f32 %v1148, %v1170
      %v1215 = vmul.f32 %v1151, %v1170
      %v1216 = vmul.f32 %v1154, %v1170
      %v1217 = vmul.f32 %v1157, %v1170
      %v1218 = vmul.f32 %v1160, %v1170
      %v1219 = vmul.f32 %v1163, %v1170
      %v1220 = vmul.f32 %v1166, %v1170
      %v1221 = vmul.f32 %v1169, %v1170
      %v1222 = vsub.f32 %v811, %v1171
      %v1223 = vsub.f32 %v814, %v1172
      %v1224 = vsub.f32 %v819, %v1173
      %v1225 = vsub.f32 %v822, %v1174
      %v1226 = vsub.f32 %v827, %v1175
      %v1227 = vsub.f32 %v830, %v1176
      %v1228 = vsub.f32 %v835, %v1177
      %v1229 = vsub.f32 %v838, %v1178
      %v1230 = vsub.f32 %v843, %v1179
      %v1231 = vsub.f32 %v846, %v1180
      %v1232 = vsub.f32 %v851, %v1181
      %v1233 = vsub.f32 %v854, %v1182
      %v1234 = vsub.f32 %v859, %v1183
      %v1235 = vsub.f32 %v862, %v1184
      %v1236 = vsub.f32 %v867, %v1185
      %v1237 = vsub.f32 %v870, %v1186
      %v1238 = vsub.f32 %v875, %v1187
      %v1239 = vsub.f32 %v878, %v1188
      %v1240 = vsub.f32 %v883, %v1189
      %v1241 = vsub.f32 %v886, %v1190
      %v1242 = vsub.f32 %v891, %v1191
      %v1243 = vsub.f32 %v894, %v1192
      %v1244 = vsub.f32 %v899, %v1193
      %v1245 = vsub.f32 %v902, %v1194
      %v1246 = vsub.f32 %v907, %v1195
      %v1247 = vsub.f32 %v910, %v1196
      %v1248 = vsub.f32 %v915, %v1197
      %v1249 = vsub.f32 %v918, %v1198
      %v1250 = vsub.f32 %v923, %v1199
      %v1251 = vsub.f32 %v926, %v1200
      %v1252 = vsub.f32 %v931, %v1201
      %v1253 = vsub.f32 %v934, %v1202
      %v1254 = vsub.f32 %v939, %v1203
      %v1255 = vsub.f32 %v942, %v1204
      %v1256 = vsub.f32 %v947, %v1205
      %v1257 = vsub.f32 %v950, %v1206
      %v1258 = vsub.f32 %v955, %v1207
      %v1259 = vsub.f32 %v958, %v1208
      %v1260 = vsub.f32 %v963, %v1209
      %v1261 = vsub.f32 %v966, %v1210
      %v1262 = vsub.f32 %v971, %v1211
      %v1263 = vsub.f32 %v974, %v1212
      %v1264 = vsub.f32 %v979, %v1213
      %v1265 = vsub.f32 %v982, %v1214
      %v1266 = vsub.f32 %v987, %v1215
      %v1267 = vsub.f32 %v990, %v1216
      %v1268 = vsub.f32 %v995, %v1217
      %v1269 = vsub.f32 %v998, %v1218
      %v1270 = vsub.f32 %v1003, %v1219
      %v1271 = vsub.f32 %v1006, %v1220
      %v1272 = vsub.f32 %v1011, %v1221
      %v1273 = vmul.f32 %v1222, %v1222
      %v1274 = vmul.f32 %v1223, %v1223
      %v1275 = vmul.f32 %v1224, %v1224
      %v1276 = vmul.f32 %v1225, %v1225
      %v1277 = vmul.f32 %v1226, %v1226
      %v1278 = vmul.f32 %v1227, %v1227
      %v1279 = vmul.f32 %v1228, %v1228
      %v1280 = vmul.f32 %v1229, %v1229
      %v1281 = vmul.f32 %v1230, %v1230
      %v1282 = vmul.f32 %v1231, %v1231
      %v1283 = vmul.f32 %v1232, %v1232
      %v1284 = vmul.f32 %v1233, %v1233
      %v1285 = vmul.f32 %v1234, %v1234
      %v1286 = vmul.f32 %v1235, %v1235
      %v1287 = vmul.f32 %v1236, %v1236
      %v1288 = vmul.f32 %v1237, %v1237
      %v1289 = vmul.f32 %v1238, %v1238
      %v1290 = vmul.f32 %v1239, %v1239
      %v1291 = vmul.f32 %v1240, %v1240
      %v1292 = vmul.f32 %v1241, %v1241
      %v1293 = vmul.f32 %v1242, %v1242
      %v1294 = vmul.f32 %v1243, %v1243
      %v1295 = vmul.f32 %v1244, %v1244
      %v1296 = vmul.f32 %v1245, %v1245
      %v1297 = vmul.f32 %v1246, %v1246
      %v1298 = vmul.f32 %v1247, %v1247
      %v1299 = vmul.f32 %v1248, %v1248
      %v1300 = vmul.f32 %v1249, %v1249
      %v1301 = vmul.f32 %v1250, %v1250
      %v1302 = vmul.f32 %v1251, %v1251
      %v1303 = vmul.f32 %v1252, %v1252
      %v1304 = vmul.f32 %v1253, %v1253
      %v1305 = vmul.f32 %v1254, %v1254
      %v1306 = vmul.f32 %v1255, %v1255
      %v1307 = vmul.f32 %v1256, %v1256
      %v1308 = vmul.f32 %v1257, %v1257
      %v1309 = vmul.f32 %v1258, %v1258
      %v1310 = vmul.f32 %v1259, %v1259
      %v1311 = vmul.f32 %v1260, %v1260
      %v1312 = vmul.f32 %v1261, %v1261
      %v1313 = vmul.f32 %v1262, %v1262
      %v1314 = vmul.f32 %v1263, %v1263
      %v1315 = vmul.f32 %v1264, %v1264
      %v1316 = vmul.f32 %v1265, %v1265
      %v1317 = vmul.f32 %v1266, %v1266
      %v1318 = vmul.f32 %v1267, %v1267
      %v1319 = vmul.f32 %v1268, %v1268
      %v1320 = vmul.f32 %v1269, %v1269
      %v1321 = vmul.f32 %v1270, %v1270
      %v1322 = vmul.f32 %v1271, %v1271
      %v1323 = vmul.f32 %v1272, %v1272
      %v1324 = vsel %vm1016, %v1273, 0.0
      %1325 = vadd.xlane.f32.xlu0 %v1324
      %v1326 = vpop.xlane.xlu0 %1325
      %v1327 = vsel %vm1016, %v1274, 0.0
      %1328 = vadd.xlane.f32.xlu0 %v1327
      %v1329 = vpop.xlane.xlu0 %1328
      %v1330 = vsel %vm1016, %v1275, 0.0
      %1331 = vadd.xlane.f32.xlu0 %v1330
      %v1332 = vpop.xlane.xlu0 %1331
      %v1333 = vsel %vm1016, %v1276, 0.0
      %1334 = vadd.xlane.f32.xlu0 %v1333
      %v1335 = vpop.xlane.xlu0 %1334
      %v1336 = vsel %vm1016, %v1277, 0.0
      %1337 = vadd.xlane.f32.xlu0 %v1336
      %v1338 = vpop.xlane.xlu0 %1337
      %v1339 = vsel %vm1016, %v1278, 0.0
      %1340 = vadd.xlane.f32.xlu0 %v1339
      %v1341 = vpop.xlane.xlu0 %1340
      %v1342 = vsel %vm1016, %v1279, 0.0
      %1343 = vadd.xlane.f32.xlu0 %v1342
      %v1344 = vpop.xlane.xlu0 %1343
      %v1345 = vsel %vm1016, %v1280, 0.0
      %1346 = vadd.xlane.f32.xlu0 %v1345
      %v1347 = vpop.xlane.xlu0 %1346
      %v1348 = vsel %vm1016, %v1281, 0.0
      %1349 = vadd.xlane.f32.xlu0 %v1348
      %v1350 = vpop.xlane.xlu0 %1349
      %v1351 = vsel %vm1016, %v1282, 0.0
      %1352 = vadd.xlane.f32.xlu0 %v1351
      %v1353 = vpop.xlane.xlu0 %1352
      %v1354 = vsel %vm1016, %v1283, 0.0
      %1355 = vadd.xlane.f32.xlu0 %v1354
      %v1356 = vpop.xlane.xlu0 %1355
      %v1357 = vsel %vm1016, %v1284, 0.0
      %1358 = vadd.xlane.f32.xlu0 %v1357
      %v1359 = vpop.xlane.xlu0 %1358
      %v1360 = vsel %vm1016, %v1285, 0.0
      %1361 = vadd.xlane.f32.xlu0 %v1360
      %v1362 = vpop.xlane.xlu0 %1361
      %v1363 = vsel %vm1016, %v1286, 0.0
      %1364 = vadd.xlane.f32.xlu0 %v1363
      %v1365 = vpop.xlane.xlu0 %1364
      %v1366 = vsel %vm1016, %v1287, 0.0
      %1367 = vadd.xlane.f32.xlu0 %v1366
      %v1368 = vpop.xlane.xlu0 %1367
      %v1369 = vsel %vm1016, %v1288, 0.0
      %1370 = vadd.xlane.f32.xlu0 %v1369
      %v1371 = vpop.xlane.xlu0 %1370
      %v1372 = vsel %vm1016, %v1289, 0.0
      %1373 = vadd.xlane.f32.xlu0 %v1372
      %v1374 = vpop.xlane.xlu0 %1373
      %v1375 = vsel %vm1016, %v1290, 0.0
      %1376 = vadd.xlane.f32.xlu0 %v1375
      %v1377 = vpop.xlane.xlu0 %1376
      %v1378 = vsel %vm1016, %v1291, 0.0
      %1379 = vadd.xlane.f32.xlu0 %v1378
      %v1380 = vpop.xlane.xlu0 %1379
      %v1381 = vsel %vm1016, %v1292, 0.0
      %1382 = vadd.xlane.f32.xlu0 %v1381
      %v1383 = vpop.xlane.xlu0 %1382
      %v1384 = vsel %vm1016, %v1293, 0.0
      %1385 = vadd.xlane.f32.xlu0 %v1384
      %v1386 = vpop.xlane.xlu0 %1385
      %v1387 = vsel %vm1016, %v1294, 0.0
      %1388 = vadd.xlane.f32.xlu0 %v1387
      %v1389 = vpop.xlane.xlu0 %1388
      %v1390 = vsel %vm1016, %v1295, 0.0
      %1391 = vadd.xlane.f32.xlu0 %v1390
      %v1392 = vpop.xlane.xlu0 %1391
      %v1393 = vsel %vm1016, %v1296, 0.0
      %1394 = vadd.xlane.f32.xlu0 %v1393
      %v1395 = vpop.xlane.xlu0 %1394
      %v1396 = vsel %vm1016, %v1297, 0.0
      %1397 = vadd.xlane.f32.xlu0 %v1396
      %v1398 = vpop.xlane.xlu0 %1397
      %v1399 = vsel %vm1016, %v1298, 0.0
      %1400 = vadd.xlane.f32.xlu0 %v1399
      %v1401 = vpop.xlane.xlu0 %1400
      %v1402 = vsel %vm1016, %v1299, 0.0
      %1403 = vadd.xlane.f32.xlu0 %v1402
      %v1404 = vpop.xlane.xlu0 %1403
      %v1405 = vsel %vm1016, %v1300, 0.0
      %1406 = vadd.xlane.f32.xlu0 %v1405
      %v1407 = vpop.xlane.xlu0 %1406
      %v1408 = vsel %vm1016, %v1301, 0.0
      %1409 = vadd.xlane.f32.xlu0 %v1408
      %v1410 = vpop.xlane.xlu0 %1409
      %v1411 = vsel %vm1016, %v1302, 0.0
      %1412 = vadd.xlane.f32.xlu0 %v1411
      %v1413 = vpop.xlane.xlu0 %1412
      %v1414 = vsel %vm1016, %v1303, 0.0
      %1415 = vadd.xlane.f32.xlu0 %v1414
      %v1416 = vpop.xlane.xlu0 %1415
      %v1417 = vsel %vm1016, %v1304, 0.0
      %1418 = vadd.xlane.f32.xlu0 %v1417
      %v1419 = vpop.xlane.xlu0 %1418
      %v1420 = vsel %vm1016, %v1305, 0.0
      %1421 = vadd.xlane.f32.xlu0 %v1420
      %v1422 = vpop.xlane.xlu0 %1421
      %v1423 = vsel %vm1016, %v1306, 0.0
      %1424 = vadd.xlane.f32.xlu0 %v1423
      %v1425 = vpop.xlane.xlu0 %1424
      %v1426 = vsel %vm1016, %v1307, 0.0
      %1427 = vadd.xlane.f32.xlu0 %v1426
      %v1428 = vpop.xlane.xlu0 %1427
      %v1429 = vsel %vm1016, %v1308, 0.0
      %1430 = vadd.xlane.f32.xlu0 %v1429
      %v1431 = vpop.xlane.xlu0 %1430
      %v1432 = vsel %vm1016, %v1309, 0.0
      %1433 = vadd.xlane.f32.xlu0 %v1432
      %v1434 = vpop.xlane.xlu0 %1433
      %v1435 = vsel %vm1016, %v1310, 0.0
      %1436 = vadd.xlane.f32.xlu0 %v1435
      %v1437 = vpop.xlane.xlu0 %1436
      %v1438 = vsel %vm1016, %v1311, 0.0
      %1439 = vadd.xlane.f32.xlu0 %v1438
      %v1440 = vpop.xlane.xlu0 %1439
      %v1441 = vsel %vm1016, %v1312, 0.0
      %1442 = vadd.xlane.f32.xlu0 %v1441
      %v1443 = vpop.xlane.xlu0 %1442
      %v1444 = vsel %vm1016, %v1313, 0.0
      %1445 = vadd.xlane.f32.xlu0 %v1444
      %v1446 = vpop.xlane.xlu0 %1445
      %v1447 = vsel %vm1016, %v1314, 0.0
      %1448 = vadd.xlane.f32.xlu0 %v1447
      %v1449 = vpop.xlane.xlu0 %1448
      %v1450 = vsel %vm1016, %v1315, 0.0
      %1451 = vadd.xlane.f32.xlu0 %v1450
      %v1452 = vpop.xlane.xlu0 %1451
      %v1453 = vsel %vm1016, %v1316, 0.0
      %1454 = vadd.xlane.f32.xlu0 %v1453
      %v1455 = vpop.xlane.xlu0 %1454
      %v1456 = vsel %vm1016, %v1317, 0.0
      %1457 = vadd.xlane.f32.xlu0 %v1456
      %v1458 = vpop.xlane.xlu0 %1457
      %v1459 = vsel %vm1016, %v1318, 0.0
      %1460 = vadd.xlane.f32.xlu0 %v1459
      %v1461 = vpop.xlane.xlu0 %1460
      %v1462 = vsel %vm1016, %v1319, 0.0
      %1463 = vadd.xlane.f32.xlu0 %v1462
      %v1464 = vpop.xlane.xlu0 %1463
      %v1465 = vsel %vm1016, %v1320, 0.0
      %1466 = vadd.xlane.f32.xlu0 %v1465
      %v1467 = vpop.xlane.xlu0 %1466
      %v1468 = vsel %vm1016, %v1321, 0.0
      %1469 = vadd.xlane.f32.xlu0 %v1468
      %v1470 = vpop.xlane.xlu0 %1469
      %v1471 = vsel %vm1016, %v1322, 0.0
      %1472 = vadd.xlane.f32.xlu0 %v1471
      %v1473 = vpop.xlane.xlu0 %1472
      %v1474 = vsel %vm1016, %v1323, 0.0
      %1475 = vadd.xlane.f32.xlu0 %v1474
      %v1476 = vpop.xlane.xlu0 %1475
      %v1477 = vmul.f32 %v1326, %v1170
      %v1478 = vmul.f32 %v1329, %v1170
      %v1479 = vmul.f32 %v1332, %v1170
      %v1480 = vmul.f32 %v1335, %v1170
      %v1481 = vmul.f32 %v1338, %v1170
      %v1482 = vmul.f32 %v1341, %v1170
      %v1483 = vmul.f32 %v1344, %v1170
      %v1484 = vmul.f32 %v1347, %v1170
      %v1485 = vmul.f32 %v1350, %v1170
      %v1486 = vmul.f32 %v1353, %v1170
      %v1487 = vmul.f32 %v1356, %v1170
      %v1488 = vmul.f32 %v1359, %v1170
      %v1489 = vmul.f32 %v1362, %v1170
      %v1490 = vmul.f32 %v1365, %v1170
      %v1491 = vmul.f32 %v1368, %v1170
      %v1492 = vmul.f32 %v1371, %v1170
      %v1493 = vmul.f32 %v1374, %v1170
      %v1494 = vmul.f32 %v1377, %v1170
      %v1495 = vmul.f32 %v1380, %v1170
      %v1496 = vmul.f32 %v1383, %v1170
      %v1497 = vmul.f32 %v1386, %v1170
      %v1498 = vmul.f32 %v1389, %v1170
      %v1499 = vmul.f32 %v1392, %v1170
      %v1500 = vmul.f32 %v1395, %v1170
      %v1501 = vmul.f32 %v1398, %v1170
      %v1502 = vmul.f32 %v1401, %v1170
      %v1503 = vmul.f32 %v1404, %v1170
      %v1504 = vmul.f32 %v1407, %v1170
      %v1505 = vmul.f32 %v1410, %v1170
      %v1506 = vmul.f32 %v1413, %v1170
      %v1507 = vmul.f32 %v1416, %v1170
      %v1508 = vmul.f32 %v1419, %v1170
      %v1509 = vmul.f32 %v1422, %v1170
      %v1510 = vmul.f32 %v1425, %v1170
      %v1511 = vmul.f32 %v1428, %v1170
      %v1512 = vmul.f32 %v1431, %v1170
      %v1513 = vmul.f32 %v1434, %v1170
      %v1514 = vmul.f32 %v1437, %v1170
      %v1515 = vmul.f32 %v1440, %v1170
      %v1516 = vmul.f32 %v1443, %v1170
      %v1517 = vmul.f32 %v1446, %v1170
      %v1518 = vmul.f32 %v1449, %v1170
      %v1519 = vmul.f32 %v1452, %v1170
      %v1520 = vmul.f32 %v1455, %v1170
      %v1521 = vmul.f32 %v1458, %v1170
      %v1522 = vmul.f32 %v1461, %v1170
      %v1523 = vmul.f32 %v1464, %v1170
      %v1524 = vmul.f32 %v1467, %v1170
      %v1525 = vmul.f32 %v1470, %v1170
      %v1526 = vmul.f32 %v1473, %v1170
      %v1527 = vmul.f32 %v1476, %v1170
      %v1528 = vadd.f32 %v1477, 1e-05
      %v1529 = vadd.f32 %v1478, 1e-05
      %v1530 = vadd.f32 %v1479, 1e-05
      %v1531 = vadd.f32 %v1480, 1e-05
      %v1532 = vadd.f32 %v1481, 1e-05
      %v1533 = vadd.f32 %v1482, 1e-05
      %v1534 = vadd.f32 %v1483, 1e-05
      %v1535 = vadd.f32 %v1484, 1e-05
      %v1536 = vadd.f32 %v1485, 1e-05
      %v1537 = vadd.f32 %v1486, 1e-05
      %v1538 = vadd.f32 %v1487, 1e-05
      %v1539 = vadd.f32 %v1488, 1e-05
      %v1540 = vadd.f32 %v1489, 1e-05
      %v1541 = vadd.f32 %v1490, 1e-05
      %v1542 = vadd.f32 %v1491, 1e-05
      %v1543 = vadd.f32 %v1492, 1e-05
      %v1544 = vadd.f32 %v1493, 1e-05
      %v1545 = vadd.f32 %v1494, 1e-05
      %v1546 = vadd.f32 %v1495, 1e-05
      %v1547 = vadd.f32 %v1496, 1e-05
      %v1548 = vadd.f32 %v1497, 1e-05
      %v1549 = vadd.f32 %v1498, 1e-05
      %v1550 = vadd.f32 %v1499, 1e-05
      %v1551 = vadd.f32 %v1500, 1e-05
      %v1552 = vadd.f32 %v1501, 1e-05
      %v1553 = vadd.f32 %v1502, 1e-05
      %v1554 = vadd.f32 %v1503, 1e-05
      %v1555 = vadd.f32 %v1504, 1e-05
      %v1556 = vadd.f32 %v1505, 1e-05
      %v1557 = vadd.f32 %v1506, 1e-05
      %v1558 = vadd.f32 %v1507, 1e-05
      %v1559 = vadd.f32 %v1508, 1e-05
      %v1560 = vadd.f32 %v1509, 1e-05
      %v1561 = vadd.f32 %v1510, 1e-05
      %v1562 = vadd.f32 %v1511, 1e-05
      %v1563 = vadd.f32 %v1512, 1e-05
      %v1564 = vadd.f32 %v1513, 1e-05
      %v1565 = vadd.f32 %v1514, 1e-05
      %v1566 = vadd.f32 %v1515, 1e-05
      %v1567 = vadd.f32 %v1516, 1e-05
      %v1568 = vadd.f32 %v1517, 1e-05
      %v1569 = vadd.f32 %v1518, 1e-05
      %v1570 = vadd.f32 %v1519, 1e-05
      %v1571 = vadd.f32 %v1520, 1e-05
      %v1572 = vadd.f32 %v1521, 1e-05
      %v1573 = vadd.f32 %v1522, 1e-05
      %v1574 = vadd.f32 %v1523, 1e-05
      %v1575 = vadd.f32 %v1524, 1e-05
      %v1576 = vadd.f32 %v1525, 1e-05
      %v1577 = vadd.f32 %v1526, 1e-05
      %v1578 = vadd.f32 %v1527, 1e-05
      %v1579 = vrsqrt.pop %v1528
      %v1580 = vrsqrt.pop %v1529
      %v1581 = vrsqrt.pop %v1530
      %v1582 = vrsqrt.pop %v1531
      %v1583 = vrsqrt.pop %v1532
      %v1584 = vrsqrt.pop %v1533
      %v1585 = vrsqrt.pop %v1534
      %v1586 = vrsqrt.pop %v1535
      %v1587 = vrsqrt.pop %v1536
      %v1588 = vrsqrt.pop %v1537
      %v1589 = vrsqrt.pop %v1538
      %v1590 = vrsqrt.pop %v1539
      %v1591 = vrsqrt.pop %v1540
      %v1592 = vrsqrt.pop %v1541
      %v1593 = vrsqrt.pop %v1542
      %v1594 = vrsqrt.pop %v1543
      %v1595 = vrsqrt.pop %v1544
      %v1596 = vrsqrt.pop %v1545
      %v1597 = vrsqrt.pop %v1546
      %v1598 = vrsqrt.pop %v1547
      %v1599 = vrsqrt.pop %v1548
      %v1600 = vrsqrt.pop %v1549
      %v1601 = vrsqrt.pop %v1550
      %v1602 = vrsqrt.pop %v1551
      %v1603 = vrsqrt.pop %v1552
      %v1604 = vrsqrt.pop %v1553
      %v1605 = vrsqrt.pop %v1554
      %v1606 = vrsqrt.pop %v1555
      %v1607 = vrsqrt.pop %v1556
      %v1608 = vrsqrt.pop %v1557
      %v1609 = vrsqrt.pop %v1558
      %v1610 = vrsqrt.pop %v1559
      %v1611 = vrsqrt.pop %v1560
      %v1612 = vrsqrt.pop %v1561
      %v1613 = vrsqrt.pop %v1562
      %v1614 = vrsqrt.pop %v1563
      %v1615 = vrsqrt.pop %v1564
      %v1616 = vrsqrt.pop %v1565
      %v1617 = vrsqrt.pop %v1566
      %v1618 = vrsqrt.pop %v1567
      %v1619 = vrsqrt.pop %v1568
      %v1620 = vrsqrt.pop %v1569
      %v1621 = vrsqrt.pop %v1570
      %v1622 = vrsqrt.pop %v1571
      %v1623 = vrsqrt.pop %v1572
      %v1624 = vrsqrt.pop %v1573
      %v1625 = vrsqrt.pop %v1574
      %v1626 = vrsqrt.pop %v1575
      %v1627 = vrsqrt.pop %v1576
      %v1628 = vrsqrt.pop %v1577
      %v1629 = vrsqrt.pop %v1578
      %v1630 = vmul.f32 %v1222, %v1579
      %v1631 = vmul.f32 %v1223, %v1580
      %v1632 = vmul.f32 %v1224, %v1581
      %v1633 = vmul.f32 %v1225, %v1582
      %v1634 = vmul.f32 %v1226, %v1583
      %v1635 = vmul.f32 %v1227, %v1584
      %v1636 = vmul.f32 %v1228, %v1585
      %v1637 = vmul.f32 %v1229, %v1586
      %v1638 = vmul.f32 %v1230, %v1587
      %v1639 = vmul.f32 %v1231, %v1588
      %v1640 = vmul.f32 %v1232, %v1589
      %v1641 = vmul.f32 %v1233, %v1590
      %v1642 = vmul.f32 %v1234, %v1591
      %v1643 = vmul.f32 %v1235, %v1592
      %v1644 = vmul.f32 %v1236, %v1593
      %v1645 = vmul.f32 %v1237, %v1594
      %v1646 = vmul.f32 %v1238, %v1595
      %v1647 = vmul.f32 %v1239, %v1596
      %v1648 = vmul.f32 %v1240, %v1597
      %v1649 = vmul.f32 %v1241, %v1598
      %v1650 = vmul.f32 %v1242, %v1599
      %v1651 = vmul.f32 %v1243, %v1600
      %v1652 = vmul.f32 %v1244, %v1601
      %v1653 = vmul.f32 %v1245, %v1602
      %v1654 = vmul.f32 %v1246, %v1603
      %v1655 = vmul.f32 %v1247, %v1604
      %v1656 = vmul.f32 %v1248, %v1605
      %v1657 = vmul.f32 %v1249, %v1606
      %v1658 = vmul.f32 %v1250, %v1607
      %v1659 = vmul.f32 %v1251, %v1608
      %v1660 = vmul.f32 %v1252, %v1609
      %v1661 = vmul.f32 %v1253, %v1610
      %v1662 = vmul.f32 %v1254, %v1611
      %v1663 = vmul.f32 %v1255, %v1612
      %v1664 = vmul.f32 %v1256, %v1613
      %v1665 = vmul.f32 %v1257, %v1614
      %v1666 = vmul.f32 %v1258, %v1615
      %v1667 = vmul.f32 %v1259, %v1616
      %v1668 = vmul.f32 %v1260, %v1617
      %v1669 = vmul.f32 %v1261, %v1618
      %v1670 = vmul.f32 %v1262, %v1619
      %v1671 = vmul.f32 %v1263, %v1620
      %v1672 = vmul.f32 %v1264, %v1621
      %v1673 = vmul.f32 %v1265, %v1622
      %v1674 = vmul.f32 %v1266, %v1623
      %v1675 = vmul.f32 %v1267, %v1624
      %v1676 = vmul.f32 %v1268, %v1625
      %v1677 = vmul.f32 %v1269, %v1626
      %v1678 = vmul.f32 %v1270, %v1627
      %v1679 = vmul.f32 %v1271, %v1628
      %v1680 = vmul.f32 %v1272, %v1629
      %v1681 = vlaneseq
      %v1682 = vshrl.u32 %v1681, 7
      %v1683 = vsub.s32 0, %v1682
      %v1684 = vrot.slane %v603, %v1683
      %v1685 = vmul.f32 %v1630, %v1684
      %v1686 = vmul.f32 %v1631, %v1684
      %v1687 = vmul.f32 %v1632, %v1684
      %v1688 = vmul.f32 %v1633, %v1684
      %v1689 = vmul.f32 %v1634, %v1684
      %v1690 = vmul.f32 %v1635, %v1684
      %v1691 = vmul.f32 %v1636, %v1684
      %v1692 = vmul.f32 %v1637, %v1684
      %v1693 = vmul.f32 %v1638, %v1684
      %v1694 = vmul.f32 %v1639, %v1684
      %v1695 = vmul.f32 %v1640, %v1684
      %v1696 = vmul.f32 %v1641, %v1684
      %v1697 = vmul.f32 %v1642, %v1684
      %v1698 = vmul.f32 %v1643, %v1684
      %v1699 = vmul.f32 %v1644, %v1684
      %v1700 = vmul.f32 %v1645, %v1684
      %v1701 = vmul.f32 %v1646, %v1684
      %v1702 = vmul.f32 %v1647, %v1684
      %v1703 = vmul.f32 %v1648, %v1684
      %v1704 = vmul.f32 %v1649, %v1684
      %v1705 = vmul.f32 %v1650, %v1684
      %v1706 = vmul.f32 %v1651, %v1684
      %v1707 = vmul.f32 %v1652, %v1684
      %v1708 = vmul.f32 %v1653, %v1684
      %v1709 = vmul.f32 %v1654, %v1684
      %v1710 = vmul.f32 %v1655, %v1684
      %v1711 = vmul.f32 %v1656, %v1684
      %v1712 = vmul.f32 %v1657, %v1684
      %v1713 = vmul.f32 %v1658, %v1684
      %v1714 = vmul.f32 %v1659, %v1684
      %v1715 = vmul.f32 %v1660, %v1684
      %v1716 = vmul.f32 %v1661, %v1684
      %v1717 = vmul.f32 %v1662, %v1684
      %v1718 = vmul.f32 %v1663, %v1684
      %v1719 = vmul.f32 %v1664, %v1684
      %v1720 = vmul.f32 %v1665, %v1684
      %v1721 = vmul.f32 %v1666, %v1684
      %v1722 = vmul.f32 %v1667, %v1684
      %v1723 = vmul.f32 %v1668, %v1684
      %v1724 = vmul.f32 %v1669, %v1684
      %v1725 = vmul.f32 %v1670, %v1684
      %v1726 = vmul.f32 %v1671, %v1684
      %v1727 = vmul.f32 %v1672, %v1684
      %v1728 = vmul.f32 %v1673, %v1684
      %v1729 = vmul.f32 %v1674, %v1684
      %v1730 = vmul.f32 %v1675, %v1684
      %v1731 = vmul.f32 %v1676, %v1684
      %v1732 = vmul.f32 %v1677, %v1684
      %v1733 = vmul.f32 %v1678, %v1684
      %v1734 = vmul.f32 %v1679, %v1684
      %v1735 = vmul.f32 %v1680, %v1684
      %v1736 = vlaneseq
      %v1737 = vshrl.u32 %v1736, 7
      %v1738 = vsub.s32 0, %v1737
      %v1739 = vrot.slane %v604, %v1738
      %v1740 = vadd.f32 %v1685, %v1739
      %v1741 = vadd.f32 %v1686, %v1739
      %v1742 = vadd.f32 %v1687, %v1739
      %v1743 = vadd.f32 %v1688, %v1739
      %v1744 = vadd.f32 %v1689, %v1739
      %v1745 = vadd.f32 %v1690, %v1739
      %v1746 = vadd.f32 %v1691, %v1739
      %v1747 = vadd.f32 %v1692, %v1739
      %v1748 = vadd.f32 %v1693, %v1739
      %v1749 = vadd.f32 %v1694, %v1739
      %v1750 = vadd.f32 %v1695, %v1739
      %v1751 = vadd.f32 %v1696, %v1739
      %v1752 = vadd.f32 %v1697, %v1739
      %v1753 = vadd.f32 %v1698, %v1739
      %v1754 = vadd.f32 %v1699, %v1739
      %v1755 = vadd.f32 %v1700, %v1739
      %v1756 = vadd.f32 %v1701, %v1739
      %v1757 = vadd.f32 %v1702, %v1739
      %v1758 = vadd.f32 %v1703, %v1739
      %v1759 = vadd.f32 %v1704, %v1739
      %v1760 = vadd.f32 %v1705, %v1739
      %v1761 = vadd.f32 %v1706, %v1739
      %v1762 = vadd.f32 %v1707, %v1739
      %v1763 = vadd.f32 %v1708, %v1739
      %v1764 = vadd.f32 %v1709, %v1739
      %v1765 = vadd.f32 %v1710, %v1739
      %v1766 = vadd.f32 %v1711, %v1739
      %v1767 = vadd.f32 %v1712, %v1739
      %v1768 = vadd.f32 %v1713, %v1739
      %v1769 = vadd.f32 %v1714, %v1739
      %v1770 = vadd.f32 %v1715, %v1739
      %v1771 = vadd.f32 %v1716, %v1739
      %v1772 = vadd.f32 %v1717, %v1739
      %v1773 = vadd.f32 %v1718, %v1739
      %v1774 = vadd.f32 %v1719, %v1739
      %v1775 = vadd.f32 %v1720, %v1739
      %v1776 = vadd.f32 %v1721, %v1739
      %v1777 = vadd.f32 %v1722, %v1739
      %v1778 = vadd.f32 %v1723, %v1739
      %v1779 = vadd.f32 %v1724, %v1739
      %v1780 = vadd.f32 %v1725, %v1739
      %v1781 = vadd.f32 %v1726, %v1739
      %v1782 = vadd.f32 %v1727, %v1739
      %v1783 = vadd.f32 %v1728, %v1739
      %v1784 = vadd.f32 %v1729, %v1739
      %v1785 = vadd.f32 %v1730, %v1739
      %v1786 = vadd.f32 %v1731, %v1739
      %v1787 = vadd.f32 %v1732, %v1739
      %v1788 = vadd.f32 %v1733, %v1739
      %v1789 = vadd.f32 %v1734, %v1739
      %v1790 = vadd.f32 %v1735, %v1739
      %v1791 = vmul.f32 %v1740, 0.5
      %v1792 = vmul.f32 %v1741, 0.5
      %v1793 = vmul.f32 %v1742, 0.5
      %v1794 = vmul.f32 %v1743, 0.5
      %v1795 = vmul.f32 %v1744, 0.5
      %v1796 = vmul.f32 %v1745, 0.5
      %v1797 = vmul.f32 %v1746, 0.5
      %v1798 = vmul.f32 %v1747, 0.5
      %v1799 = vmul.f32 %v1748, 0.5
      %v1800 = vmul.f32 %v1749, 0.5
      %v1801 = vmul.f32 %v1750, 0.5
      %v1802 = vmul.f32 %v1751, 0.5
      %v1803 = vmul.f32 %v1752, 0.5
      %v1804 = vmul.f32 %v1753, 0.5
      %v1805 = vmul.f32 %v1754, 0.5
      %v1806 = vmul.f32 %v1755, 0.5
      %v1807 = vmul.f32 %v1756, 0.5
      %v1808 = vmul.f32 %v1757, 0.5
      %v1809 = vmul.f32 %v1758, 0.5
      %v1810 = vmul.f32 %v1759, 0.5
      %v1811 = vmul.f32 %v1760, 0.5
      %v1812 = vmul.f32 %v1761, 0.5
      %v1813 = vmul.f32 %v1762, 0.5
      %v1814 = vmul.f32 %v1763, 0.5
      %v1815 = vmul.f32 %v1764, 0.5
      %v1816 = vmul.f32 %v1765, 0.5
      %v1817 = vmul.f32 %v1766, 0.5
      %v1818 = vmul.f32 %v1767, 0.5
      %v1819 = vmul.f32 %v1768, 0.5
      %v1820 = vmul.f32 %v1769, 0.5
      %v1821 = vmul.f32 %v1770, 0.5
      %v1822 = vmul.f32 %v1771, 0.5
      %v1823 = vmul.f32 %v1772, 0.5
      %v1824 = vmul.f32 %v1773, 0.5
      %v1825 = vmul.f32 %v1774, 0.5
      %v1826 = vmul.f32 %v1775, 0.5
      %v1827 = vmul.f32 %v1776, 0.5
      %v1828 = vmul.f32 %v1777, 0.5
      %v1829 = vmul.f32 %v1778, 0.5
      %v1830 = vmul.f32 %v1779, 0.5
      %v1831 = vmul.f32 %v1780, 0.5
      %v1832 = vmul.f32 %v1781, 0.5
      %v1833 = vmul.f32 %v1782, 0.5
      %v1834 = vmul.f32 %v1783, 0.5
      %v1835 = vmul.f32 %v1784, 0.5
      %v1836 = vmul.f32 %v1785, 0.5
      %v1837 = vmul.f32 %v1786, 0.5
      %v1838 = vmul.f32 %v1787, 0.5
      %v1839 = vmul.f32 %v1788, 0.5
      %v1840 = vmul.f32 %v1789, 0.5
      %v1841 = vmul.f32 %v1790, 0.5
      %v1842 = vmul.f32 %v1740, 0.044715
      %v1843 = vmul.f32 %v1741, 0.044715
      %v1844 = vmul.f32 %v1742, 0.044715
      %v1845 = vmul.f32 %v1743, 0.044715
      %v1846 = vmul.f32 %v1744, 0.044715
      %v1847 = vmul.f32 %v1745, 0.044715
      %v1848 = vmul.f32 %v1746, 0.044715
      %v1849 = vmul.f32 %v1747, 0.044715
      %v1850 = vmul.f32 %v1748, 0.044715
      %v1851 = vmul.f32 %v1749, 0.044715
      %v1852 = vmul.f32 %v1750, 0.044715
      %v1853 = vmul.f32 %v1751, 0.044715
      %v1854 = vmul.f32 %v1752, 0.044715
      %v1855 = vmul.f32 %v1753, 0.044715
      %v1856 = vmul.f32 %v1754, 0.044715
      %v1857 = vmul.f32 %v1755, 0.044715
      %v1858 = vmul.f32 %v1756, 0.044715
      %v1859 = vmul.f32 %v1757, 0.044715
      %v1860 = vmul.f32 %v1758, 0.044715
      %v1861 = vmul.f32 %v1759, 0.044715
      %v1862 = vmul.f32 %v1760, 0.044715
      %v1863 = vmul.f32 %v1761, 0.044715
      %v1864 = vmul.f32 %v1762, 0.044715
      %v1865 = vmul.f32 %v1763, 0.044715
      %v1866 = vmul.f32 %v1764, 0.044715
      %v1867 = vmul.f32 %v1765, 0.044715
      %v1868 = vmul.f32 %v1766, 0.044715
      %v1869 = vmul.f32 %v1767, 0.044715
      %v1870 = vmul.f32 %v1768, 0.044715
      %v1871 = vmul.f32 %v1769, 0.044715
      %v1872 = vmul.f32 %v1770, 0.044715
      %v1873 = vmul.f32 %v1771, 0.044715
      %v1874 = vmul.f32 %v1772, 0.044715
      %v1875 = vmul.f32 %v1773, 0.044715
      %v1876 = vmul.f32 %v1774, 0.044715
      %v1877 = vmul.f32 %v1775, 0.044715
      %v1878 = vmul.f32 %v1776, 0.044715
      %v1879 = vmul.f32 %v1777, 0.044715
      %v1880 = vmul.f32 %v1778, 0.044715
      %v1881 = vmul.f32 %v1779, 0.044715
      %v1882 = vmul.f32 %v1780, 0.044715
      %v1883 = vmul.f32 %v1781, 0.044715
      %v1884 = vmul.f32 %v1782, 0.044715
      %v1885 = vmul.f32 %v1783, 0.044715
      %v1886 = vmul.f32 %v1784, 0.044715
      %v1887 = vmul.f32 %v1785, 0.044715
      %v1888 = vmul.f32 %v1786, 0.044715
      %v1889 = vmul.f32 %v1787, 0.044715
      %v1890 = vmul.f32 %v1788, 0.044715
      %v1891 = vmul.f32 %v1789, 0.044715
      %v1892 = vmul.f32 %v1790, 0.044715
      %v1893 = vmul.f32 %v1842, %v1740
      %v1894 = vmul.f32 %v1843, %v1741
      %v1895 = vmul.f32 %v1844, %v1742
      %v1896 = vmul.f32 %v1845, %v1743
      %v1897 = vmul.f32 %v1846, %v1744
      %v1898 = vmul.f32 %v1847, %v1745
      %v1899 = vmul.f32 %v1848, %v1746
      %v1900 = vmul.f32 %v1849, %v1747
      %v1901 = vmul.f32 %v1850, %v1748
      %v1902 = vmul.f32 %v1851, %v1749
      %v1903 = vmul.f32 %v1852, %v1750
      %v1904 = vmul.f32 %v1853, %v1751
      %v1905 = vmul.f32 %v1854, %v1752
      %v1906 = vmul.f32 %v1855, %v1753
      %v1907 = vmul.f32 %v1856, %v1754
      %v1908 = vmul.f32 %v1857, %v1755
      %v1909 = vmul.f32 %v1858, %v1756
      %v1910 = vmul.f32 %v1859, %v1757
      %v1911 = vmul.f32 %v1860, %v1758
      %v1912 = vmul.f32 %v1861, %v1759
      %v1913 = vmul.f32 %v1862, %v1760
      %v1914 = vmul.f32 %v1863, %v1761
      %v1915 = vmul.f32 %v1864, %v1762
      %v1916 = vmul.f32 %v1865, %v1763
      %v1917 = vmul.f32 %v1866, %v1764
      %v1918 = vmul.f32 %v1867, %v1765
      %v1919 = vmul.f32 %v1868, %v1766
      %v1920 = vmul.f32 %v1869, %v1767
      %v1921 = vmul.f32 %v1870, %v1768
      %v1922 = vmul.f32 %v1871, %v1769
      %v1923 = vmul.f32 %v1872, %v1770
      %v1924 = vmul.f32 %v1873, %v1771
      %v1925 = vmul.f32 %v1874, %v1772
      %v1926 = vmul.f32 %v1875, %v1773
      %v1927 = vmul.f32 %v1876, %v1774
      %v1928 = vmul.f32 %v1877, %v1775
      %v1929 = vmul.f32 %v1878, %v1776
      %v1930 = vmul.f32 %v1879, %v1777
      %v1931 = vmul.f32 %v1880, %v1778
      %v1932 = vmul.f32 %v1881, %v1779
      %v1933 = vmul.f32 %v1882, %v1780
      %v1934 = vmul.f32 %v1883, %v1781
      %v1935 = vmul.f32 %v1884, %v1782
      %v1936 = vmul.f32 %v1885, %v1783
      %v1937 = vmul.f32 %v1886, %v1784
      %v1938 = vmul.f32 %v1887, %v1785
      %v1939 = vmul.f32 %v1888, %v1786
      %v1940 = vmul.f32 %v1889, %v1787
      %v1941 = vmul.f32 %v1890, %v1788
      %v1942 = vmul.f32 %v1891, %v1789
      %v1943 = vmul.f32 %v1892, %v1790
      %v1944 = vmul.f32 %v1893, %v1740
      %v1945 = vmul.f32 %v1894, %v1741
      %v1946 = vmul.f32 %v1895, %v1742
      %v1947 = vmul.f32 %v1896, %v1743
      %v1948 = vmul.f32 %v1897, %v1744
      %v1949 = vmul.f32 %v1898, %v1745
      %v1950 = vmul.f32 %v1899, %v1746
      %v1951 = vmul.f32 %v1900, %v1747
      %v1952 = vmul.f32 %v1901, %v1748
      %v1953 = vmul.f32 %v1902, %v1749
      %v1954 = vmul.f32 %v1903, %v1750
      %v1955 = vmul.f32 %v1904, %v1751
      %v1956 = vmul.f32 %v1905, %v1752
      %v1957 = vmul.f32 %v1906, %v1753
      %v1958 = vmul.f32 %v1907, %v1754
      %v1959 = vmul.f32 %v1908, %v1755
      %v1960 = vmul.f32 %v1909, %v1756
      %v1961 = vmul.f32 %v1910, %v1757
      %v1962 = vmul.f32 %v1911, %v1758
      %v1963 = vmul.f32 %v1912, %v1759
      %v1964 = vmul.f32 %v1913, %v1760
      %v1965 = vmul.f32 %v1914, %v1761
      %v1966 = vmul.f32 %v1915, %v1762
      %v1967 = vmul.f32 %v1916, %v1763
      %v1968 = vmul.f32 %v1917, %v1764
      %v1969 = vmul.f32 %v1918, %v1765
      %v1970 = vmul.f32 %v1919, %v1766
      %v1971 = vmul.f32 %v1920, %v1767
      %v1972 = vmul.f32 %v1921, %v1768
      %v1973 = vmul.f32 %v1922, %v1769
      %v1974 = vmul.f32 %v1923, %v1770
      %v1975 = vmul.f32 %v1924, %v1771
      %v1976 = vmul.f32 %v1925, %v1772
      %v1977 = vmul.f32 %v1926, %v1773
      %v1978 = vmul.f32 %v1927, %v1774
      %v1979 = vmul.f32 %v1928, %v1775
      %v1980 = vmul.f32 %v1929, %v1776
      %v1981 = vmul.f32 %v1930, %v1777
      %v1982 = vmul.f32 %v1931, %v1778
      %v1983 = vmul.f32 %v1932, %v1779
      %v1984 = vmul.f32 %v1933, %v1780
      %v1985 = vmul.f32 %v1934, %v1781
      %v1986 = vmul.f32 %v1935, %v1782
      %v1987 = vmul.f32 %v1936, %v1783
      %v1988 = vmul.f32 %v1937, %v1784
      %v1989 = vmul.f32 %v1938, %v1785
      %v1990 = vmul.f32 %v1939, %v1786
      %v1991 = vmul.f32 %v1940, %v1787
      %v1992 = vmul.f32 %v1941, %v1788
      %v1993 = vmul.f32 %v1942, %v1789
      %v1994 = vmul.f32 %v1943, %v1790
      %v1995 = vadd.f32 %v1740, %v1944
      %v1996 = vadd.f32 %v1741, %v1945
      %v1997 = vadd.f32 %v1742, %v1946
      %v1998 = vadd.f32 %v1743, %v1947
      %v1999 = vadd.f32 %v1744, %v1948
      %v2000 = vadd.f32 %v1745, %v1949
      %v2001 = vadd.f32 %v1746, %v1950
      %v2002 = vadd.f32 %v1747, %v1951
      %v2003 = vadd.f32 %v1748, %v1952
      %v2004 = vadd.f32 %v1749, %v1953
      %v2005 = vadd.f32 %v1750, %v1954
      %v2006 = vadd.f32 %v1751, %v1955
      %v2007 = vadd.f32 %v1752, %v1956
      %v2008 = vadd.f32 %v1753, %v1957
      %v2009 = vadd.f32 %v1754, %v1958
      %v2010 = vadd.f32 %v1755, %v1959
      %v2011 = vadd.f32 %v1756, %v1960
      %v2012 = vadd.f32 %v1757, %v1961
      %v2013 = vadd.f32 %v1758, %v1962
      %v2014 = vadd.f32 %v1759, %v1963
      %v2015 = vadd.f32 %v1760, %v1964
      %v2016 = vadd.f32 %v1761, %v1965
      %v2017 = vadd.f32 %v1762, %v1966
      %v2018 = vadd.f32 %v1763, %v1967
      %v2019 = vadd.f32 %v1764, %v1968
      %v2020 = vadd.f32 %v1765, %v1969
      %v2021 = vadd.f32 %v1766, %v1970
      %v2022 = vadd.f32 %v1767, %v1971
      %v2023 = vadd.f32 %v1768, %v1972
      %v2024 = vadd.f32 %v1769, %v1973
      %v2025 = vadd.f32 %v1770, %v1974
      %v2026 = vadd.f32 %v1771, %v1975
      %v2027 = vadd.f32 %v1772, %v1976
      %v2028 = vadd.f32 %v1773, %v1977
      %v2029 = vadd.f32 %v1774, %v1978
      %v2030 = vadd.f32 %v1775, %v1979
      %v2031 = vadd.f32 %v1776, %v1980
      %v2032 = vadd.f32 %v1777, %v1981
      %v2033 = vadd.f32 %v1778, %v1982
      %v2034 = vadd.f32 %v1779, %v1983
      %v2035 = vadd.f32 %v1780, %v1984
      %v2036 = vadd.f32 %v1781, %v1985
      %v2037 = vadd.f32 %v1782, %v1986
      %v2038 = vadd.f32 %v1783, %v1987
      %v2039 = vadd.f32 %v1784, %v1988
      %v2040 = vadd.f32 %v1785, %v1989
      %v2041 = vadd.f32 %v1786, %v1990
      %v2042 = vadd.f32 %v1787, %v1991
      %v2043 = vadd.f32 %v1788, %v1992
      %v2044 = vadd.f32 %v1789, %v1993
      %v2045 = vadd.f32 %v1790, %v1994
      %v2046 = vmul.f32 %v1995, 0.7978846
      %v2047 = vmul.f32 %v1996, 0.7978846
      %v2048 = vmul.f32 %v1997, 0.7978846
      %v2049 = vmul.f32 %v1998, 0.7978846
      %v2050 = vmul.f32 %v1999, 0.7978846
      %v2051 = vmul.f32 %v2000, 0.7978846
      %v2052 = vmul.f32 %v2001, 0.7978846
      %v2053 = vmul.f32 %v2002, 0.7978846
      %v2054 = vmul.f32 %v2003, 0.7978846
      %v2055 = vmul.f32 %v2004, 0.7978846
      %v2056 = vmul.f32 %v2005, 0.7978846
      %v2057 = vmul.f32 %v2006, 0.7978846
      %v2058 = vmul.f32 %v2007, 0.7978846
      %v2059 = vmul.f32 %v2008, 0.7978846
      %v2060 = vmul.f32 %v2009, 0.7978846
      %v2061 = vmul.f32 %v2010, 0.7978846
      %v2062 = vmul.f32 %v2011, 0.7978846
      %v2063 = vmul.f32 %v2012, 0.7978846
      %v2064 = vmul.f32 %v2013, 0.7978846
      %v2065 = vmul.f32 %v2014, 0.7978846
      %v2066 = vmul.f32 %v2015, 0.7978846
      %v2067 = vmul.f32 %v2016, 0.7978846
      %v2068 = vmul.f32 %v2017, 0.7978846
      %v2069 = vmul.f32 %v2018, 0.7978846
      %v2070 = vmul.f32 %v2019, 0.7978846
      %v2071 = vmul.f32 %v2020, 0.7978846
      %v2072 = vmul.f32 %v2021, 0.7978846
      %v2073 = vmul.f32 %v2022, 0.7978846
      %v2074 = vmul.f32 %v2023, 0.7978846
      %v2075 = vmul.f32 %v2024, 0.7978846
      %v2076 = vmul.f32 %v2025, 0.7978846
      %v2077 = vmul.f32 %v2026, 0.7978846
      %v2078 = vmul.f32 %v2027, 0.7978846
      %v2079 = vmul.f32 %v2028, 0.7978846
      %v2080 = vmul.f32 %v2029, 0.7978846
      %v2081 = vmul.f32 %v2030, 0.7978846
      %v2082 = vmul.f32 %v2031, 0.7978846
      %v2083 = vmul.f32 %v2032, 0.7978846
      %v2084 = vmul.f32 %v2033, 0.7978846
      %v2085 = vmul.f32 %v2034, 0.7978846
      %v2086 = vmul.f32 %v2035, 0.7978846
      %v2087 = vmul.f32 %v2036, 0.7978846
      %v2088 = vmul.f32 %v2037, 0.7978846
      %v2089 = vmul.f32 %v2038, 0.7978846
      %v2090 = vmul.f32 %v2039, 0.7978846
      %v2091 = vmul.f32 %v2040, 0.7978846
      %v2092 = vmul.f32 %v2041, 0.7978846
      %v2093 = vmul.f32 %v2042, 0.7978846
      %v2094 = vmul.f32 %v2043, 0.7978846
      %v2095 = vmul.f32 %v2044, 0.7978846
      %v2096 = vmul.f32 %v2045, 0.7978846
      %v2097 = vtanh.pop %v2046
      %v2098 = vtanh.pop %v2047
      %v2099 = vtanh.pop %v2048
      %v2100 = vtanh.pop %v2049
      %v2101 = vtanh.pop %v2050
      %v2102 = vtanh.pop %v2051
      %v2103 = vtanh.pop %v2052
      %v2104 = vtanh.pop %v2053
      %v2105 = vtanh.pop %v2054
      %v2106 = vtanh.pop %v2055
      %v2107 = vtanh.pop %v2056
      %v2108 = vtanh.pop %v2057
      %v2109 = vtanh.pop %v2058
      %v2110 = vtanh.pop %v2059
      %v2111 = vtanh.pop %v2060
      %v2112 = vtanh.pop %v2061
      %v2113 = vtanh.pop %v2062
      %v2114 = vtanh.pop %v2063
      %v2115 = vtanh.pop %v2064
      %v2116 = vtanh.pop %v2065
      %v2117 = vtanh.pop %v2066
      %v2118 = vtanh.pop %v2067
      %v2119 = vtanh.pop %v2068
      %v2120 = vtanh.pop %v2069
      %v2121 = vtanh.pop %v2070
      %v2122 = vtanh.pop %v2071
      %v2123 = vtanh.pop %v2072
      %v2124 = vtanh.pop %v2073
      %v2125 = vtanh.pop %v2074
      %v2126 = vtanh.pop %v2075
      %v2127 = vtanh.pop %v2076
      %v2128 = vtanh.pop %v2077
      %v2129 = vtanh.pop %v2078
      %v2130 = vtanh.pop %v2079
      %v2131 = vtanh.pop %v2080
      %v2132 = vtanh.pop %v2081
      %v2133 = vtanh.pop %v2082
      %v2134 = vtanh.pop %v2083
      %v2135 = vtanh.pop %v2084
      %v2136 = vtanh.pop %v2085
      %v2137 = vtanh.pop %v2086
      %v2138 = vtanh.pop %v2087
      %v2139 = vtanh.pop %v2088
      %v2140 = vtanh.pop %v2089
      %v2141 = vtanh.pop %v2090
      %v2142 = vtanh.pop %v2091
      %v2143 = vtanh.pop %v2092
      %v2144 = vtanh.pop %v2093
      %v2145 = vtanh.pop %v2094
      %v2146 = vtanh.pop %v2095
      %v2147 = vtanh.pop %v2096
      %v2148 = vadd.f32 %v2097, 1.0
      %v2149 = vadd.f32 %v2098, 1.0
      %v2150 = vadd.f32 %v2099, 1.0
      %v2151 = vadd.f32 %v2100, 1.0
      %v2152 = vadd.f32 %v2101, 1.0
      %v2153 = vadd.f32 %v2102, 1.0
      %v2154 = vadd.f32 %v2103, 1.0
      %v2155 = vadd.f32 %v2104, 1.0
      %v2156 = vadd.f32 %v2105, 1.0
      %v2157 = vadd.f32 %v2106, 1.0
      %v2158 = vadd.f32 %v2107, 1.0
      %v2159 = vadd.f32 %v2108, 1.0
      %v2160 = vadd.f32 %v2109, 1.0
      %v2161 = vadd.f32 %v2110, 1.0
      %v2162 = vadd.f32 %v2111, 1.0
      %v2163 = vadd.f32 %v2112, 1.0
      %v2164 = vadd.f32 %v2113, 1.0
      %v2165 = vadd.f32 %v2114, 1.0
      %v2166 = vadd.f32 %v2115, 1.0
      %v2167 = vadd.f32 %v2116, 1.0
      %v2168 = vadd.f32 %v2117, 1.0
      %v2169 = vadd.f32 %v2118, 1.0
      %v2170 = vadd.f32 %v2119, 1.0
      %v2171 = vadd.f32 %v2120, 1.0
      %v2172 = vadd.f32 %v2121, 1.0
      %v2173 = vadd.f32 %v2122, 1.0
      %v2174 = vadd.f32 %v2123, 1.0
      %v2175 = vadd.f32 %v2124, 1.0
      %v2176 = vadd.f32 %v2125, 1.0
      %v2177 = vadd.f32 %v2126, 1.0
      %v2178 = vadd.f32 %v2127, 1.0
      %v2179 = vadd.f32 %v2128, 1.0
      %v2180 = vadd.f32 %v2129, 1.0
      %v2181 = vadd.f32 %v2130, 1.0
      %v2182 = vadd.f32 %v2131, 1.0
      %v2183 = vadd.f32 %v2132, 1.0
      %v2184 = vadd.f32 %v2133, 1.0
      %v2185 = vadd.f32 %v2134, 1.0
      %v2186 = vadd.f32 %v2135, 1.0
      %v2187 = vadd.f32 %v2136, 1.0
      %v2188 = vadd.f32 %v2137, 1.0
      %v2189 = vadd.f32 %v2138, 1.0
      %v2190 = vadd.f32 %v2139, 1.0
      %v2191 = vadd.f32 %v2140, 1.0
      %v2192 = vadd.f32 %v2141, 1.0
      %v2193 = vadd.f32 %v2142, 1.0
      %v2194 = vadd.f32 %v2143, 1.0
      %v2195 = vadd.f32 %v2144, 1.0
      %v2196 = vadd.f32 %v2145, 1.0
      %v2197 = vadd.f32 %v2146, 1.0
      %v2198 = vadd.f32 %v2147, 1.0
      %v2199 = vmul.f32 %v1791, %v2148
      %v2200 = vmul.f32 %v1792, %v2149
      %v2201 = vmul.f32 %v1793, %v2150
      %v2202 = vmul.f32 %v1794, %v2151
      %v2203 = vmul.f32 %v1795, %v2152
      %v2204 = vmul.f32 %v1796, %v2153
      %v2205 = vmul.f32 %v1797, %v2154
      %v2206 = vmul.f32 %v1798, %v2155
      %v2207 = vmul.f32 %v1799, %v2156
      %v2208 = vmul.f32 %v1800, %v2157
      %v2209 = vmul.f32 %v1801, %v2158
      %v2210 = vmul.f32 %v1802, %v2159
      %v2211 = vmul.f32 %v1803, %v2160
      %v2212 = vmul.f32 %v1804, %v2161
      %v2213 = vmul.f32 %v1805, %v2162
      %v2214 = vmul.f32 %v1806, %v2163
      %v2215 = vmul.f32 %v1807, %v2164
      %v2216 = vmul.f32 %v1808, %v2165
      %v2217 = vmul.f32 %v1809, %v2166
      %v2218 = vmul.f32 %v1810, %v2167
      %v2219 = vmul.f32 %v1811, %v2168
      %v2220 = vmul.f32 %v1812, %v2169
      %v2221 = vmul.f32 %v1813, %v2170
      %v2222 = vmul.f32 %v1814, %v2171
      %v2223 = vmul.f32 %v1815, %v2172
      %v2224 = vmul.f32 %v1816, %v2173
      %v2225 = vmul.f32 %v1817, %v2174
      %v2226 = vmul.f32 %v1818, %v2175
      %v2227 = vmul.f32 %v1819, %v2176
      %v2228 = vmul.f32 %v1820, %v2177
      %v2229 = vmul.f32 %v1821, %v2178
      %v2230 = vmul.f32 %v1822, %v2179
      %v2231 = vmul.f32 %v1823, %v2180
      %v2232 = vmul.f32 %v1824, %v2181
      %v2233 = vmul.f32 %v1825, %v2182
      %v2234 = vmul.f32 %v1826, %v2183
      %v2235 = vmul.f32 %v1827, %v2184
      %v2236 = vmul.f32 %v1828, %v2185
      %v2237 = vmul.f32 %v1829, %v2186
      %v2238 = vmul.f32 %v1830, %v2187
      %v2239 = vmul.f32 %v1831, %v2188
      %v2240 = vmul.f32 %v1832, %v2189
      %v2241 = vmul.f32 %v1833, %v2190
      %v2242 = vmul.f32 %v1834, %v2191
      %v2243 = vmul.f32 %v1835, %v2192
      %v2244 = vmul.f32 %v1836, %v2193
      %v2245 = vmul.f32 %v1837, %v2194
      %v2246 = vmul.f32 %v1838, %v2195
      %v2247 = vmul.f32 %v1839, %v2196
      %v2248 = vmul.f32 %v1840, %v2197
      %v2249 = vmul.f32 %v1841, %v2198
      %2250 = vst.msk [vmem:[#allocation2] sm:$0xff] %vm1016, %v2199
      %2251 = vst.msk [vmem:[#allocation2 + $0x8] sm:$0xff] %vm1016, %v2200
      %2252 = vst.msk [vmem:[#allocation2 + $0x10] sm:$0xff] %vm1016, %v2201
      %2253 = vst.msk [vmem:[#allocation2 + $0x18] sm:$0xff] %vm1016, %v2202
      %2254 = vst.msk [vmem:[#allocation2 + $0x20] sm:$0xff] %vm1016, %v2203
      %2255 = vst.msk [vmem:[#allocation2 + $0x28] sm:$0xff] %vm1016, %v2204
      %2256 = vst.msk [vmem:[#allocation2 + $0x30] sm:$0xff] %vm1016, %v2205
      %2257 = vst.msk [vmem:[#allocation2 + $0x38] sm:$0xff] %vm1016, %v2206
      %2258 = vst.msk [vmem:[#allocation2 + $0x40] sm:$0xff] %vm1016, %v2207
      %2259 = vst.msk [vmem:[#allocation2 + $0x48] sm:$0xff] %vm1016, %v2208
      %2260 = vst.msk [vmem:[#allocation2 + $0x50] sm:$0xff] %vm1016, %v2209
      %2261 = vst.msk [vmem:[#allocation2 + $0x58] sm:$0xff] %vm1016, %v2210
      %2262 = vst.msk [vmem:[#allocation2 + $0x60] sm:$0xff] %vm1016, %v2211
      %2263 = vst.msk [vmem:[#allocation2 + $0x68] sm:$0xff] %vm1016, %v2212
      %2264 = vst.msk [vmem:[#allocation2 + $0x70] sm:$0xff] %vm1016, %v2213
      %2265 = vst.msk [vmem:[#allocation2 + $0x78] sm:$0xff] %vm1016, %v2214
      %2266 = vst.msk [vmem:[#allocation2 + $0x80] sm:$0xff] %vm1016, %v2215
      %2267 = vst.msk [vmem:[#allocation2 + $0x88] sm:$0xff] %vm1016, %v2216
      %2268 = vst.msk [vmem:[#allocation2 + $0x90] sm:$0xff] %vm1016, %v2217
      %2269 = vst.msk [vmem:[#allocation2 + $0x98] sm:$0xff] %vm1016, %v2218
      %2270 = vst.msk [vmem:[#allocation2 + $0xa0] sm:$0xff] %vm1016, %v2219
      %2271 = vst.msk [vmem:[#allocation2 + $0xa8] sm:$0xff] %vm1016, %v2220
      %2272 = vst.msk [vmem:[#allocation2 + $0xb0] sm:$0xff] %vm1016, %v2221
      %2273 = vst.msk [vmem:[#allocation2 + $0xb8] sm:$0xff] %vm1016, %v2222
      %2274 = vst.msk [vmem:[#allocation2 + $0xc0] sm:$0xff] %vm1016, %v2223
      %2275 = vst.msk [vmem:[#allocation2 + $0xc8] sm:$0xff] %vm1016, %v2224
      %2276 = vst.msk [vmem:[#allocation2 + $0xd0] sm:$0xff] %vm1016, %v2225
      %2277 = vst.msk [vmem:[#allocation2 + $0xd8] sm:$0xff] %vm1016, %v2226
      %2278 = vst.msk [vmem:[#allocation2 + $0xe0] sm:$0xff] %vm1016, %v2227
      %2279 = vst.msk [vmem:[#allocation2 + $0xe8] sm:$0xff] %vm1016, %v2228
      %2280 = vst.msk [vmem:[#allocation2 + $0xf0] sm:$0xff] %vm1016, %v2229
      %2281 = vst.msk [vmem:[#allocation2 + $0xf8] sm:$0xff] %vm1016, %v2230
      %2282 = vst.msk [vmem:[#allocation2 + $0x100] sm:$0xff] %vm1016, %v2231
      %2283 = vst.msk [vmem:[#allocation2 + $0x108] sm:$0xff] %vm1016, %v2232
      %2284 = vst.msk [vmem:[#allocation2 + $0x110] sm:$0xff] %vm1016, %v2233
      %2285 = vst.msk [vmem:[#allocation2 + $0x118] sm:$0xff] %vm1016, %v2234
      %2286 = vst.msk [vmem:[#allocation2 + $0x120] sm:$0xff] %vm1016, %v2235
      %2287 = vst.msk [vmem:[#allocation2 + $0x128] sm:$0xff] %vm1016, %v2236
      %2288 = vst.msk [vmem:[#allocation2 + $0x130] sm:$0xff] %vm1016, %v2237
      %2289 = vst.msk [vmem:[#allocation2 + $0x138] sm:$0xff] %vm1016, %v2238
      %2290 = vst.msk [vmem:[#allocation2 + $0x140] sm:$0xff] %vm1016, %v2239
      %2291 = vst.msk [vmem:[#allocation2 + $0x148] sm:$0xff] %vm1016, %v2240
      %2292 = vst.msk [vmem:[#allocation2 + $0x150] sm:$0xff] %vm1016, %v2241
      %2293 = vst.msk [vmem:[#allocation2 + $0x158] sm:$0xff] %vm1016, %v2242
      %2294 = vst.msk [vmem:[#allocation2 + $0x160] sm:$0xff] %vm1016, %v2243
      %2295 = vst.msk [vmem:[#allocation2 + $0x168] sm:$0xff] %vm1016, %v2244
      %2296 = vst.msk [vmem:[#allocation2 + $0x170] sm:$0xff] %vm1016, %v2245
      %2297 = vst.msk [vmem:[#allocation2 + $0x178] sm:$0xff] %vm1016, %v2246
      %2298 = vst.msk [vmem:[#allocation2 + $0x180] sm:$0xff] %vm1016, %v2247
      %2299 = vst.msk [vmem:[#allocation2 + $0x188] sm:$0xff] %vm1016, %v2248
      %2300 = vst.msk [vmem:[#allocation2 + $0x190] sm:$0xff] %vm1016, %v2249
      %v2301 = vld [vmem:[#allocation2] ss:$2 sm:$0xff]
      %s2302 = scalar_lea.vmem [#allocation2], 16
      %v2303 = vld [vmem:[%s2302] ss:$2 sm:$0xff]
      %s2304 = scalar_lea.vmem [#allocation2], 32
      %v2305 = vld [vmem:[%s2304] ss:$2 sm:$0xff]
      %s2306 = scalar_lea.vmem [#allocation2], 48
      %v2307 = vld [vmem:[%s2306] ss:$2 sm:$0xff]
      %s2308 = scalar_lea.vmem [#allocation2], 64
      %v2309 = vld [vmem:[%s2308] ss:$2 sm:$0xff]
      %s2310 = scalar_lea.vmem [#allocation2], 80
      %v2311 = vld [vmem:[%s2310] ss:$2 sm:$0xff]
      %s2312 = scalar_lea.vmem [#allocation2], 96
      %v2313 = vld [vmem:[%s2312] ss:$2 sm:$0xff]
      %s2314 = scalar_lea.vmem [#allocation2], 112
      %v2315 = vld [vmem:[%s2314] ss:$2 sm:$0xff]
      %s2316 = scalar_lea.vmem [#allocation2], 128
      %v2317 = vld [vmem:[%s2316] ss:$2 sm:$0xff]
      %s2318 = scalar_lea.vmem [#allocation2], 144
      %v2319 = vld [vmem:[%s2318] ss:$2 sm:$0xff]
      %s2320 = scalar_lea.vmem [#allocation2], 160
      %v2321 = vld [vmem:[%s2320] ss:$2 sm:$0xff]
      %s2322 = scalar_lea.vmem [#allocation2], 176
      %v2323 = vld [vmem:[%s2322] ss:$2 sm:$0xff]
      %s2324 = scalar_lea.vmem [#allocation2], 192
      %v2325 = vld [vmem:[%s2324] ss:$2 sm:$0xff]
      %s2326 = scalar_lea.vmem [#allocation2], 208
      %v2327 = vld [vmem:[%s2326] ss:$2 sm:$0xff]
      %s2328 = scalar_lea.vmem [#allocation2], 224
      %v2329 = vld [vmem:[%s2328] ss:$2 sm:$0xff]
      %s2330 = scalar_lea.vmem [#allocation2], 240
      %v2331 = vld [vmem:[%s2330] ss:$2 sm:$0xff]
      %s2332 = scalar_lea.vmem [#allocation2], 256
      %v2333 = vld [vmem:[%s2332] ss:$2 sm:$0xff]
      %s2334 = scalar_lea.vmem [#allocation2], 272
      %v2335 = vld [vmem:[%s2334] ss:$2 sm:$0xff]
      %s2336 = scalar_lea.vmem [#allocation2], 288
      %v2337 = vld [vmem:[%s2336] ss:$2 sm:$0xff]
      %s2338 = scalar_lea.vmem [#allocation2], 304
      %v2339 = vld [vmem:[%s2338] ss:$2 sm:$0xff]
      %s2340 = scalar_lea.vmem [#allocation2], 320
      %v2341 = vld [vmem:[%s2340] ss:$2 sm:$0xff]
      %s2342 = scalar_lea.vmem [#allocation2], 336
      %v2343 = vld [vmem:[%s2342] ss:$2 sm:$0xff]
      %s2344 = scalar_lea.vmem [#allocation2], 352
      %v2345 = vld [vmem:[%s2344] ss:$2 sm:$0xff]
      %s2346 = scalar_lea.vmem [#allocation2], 368
      %v2347 = vld [vmem:[%s2346] ss:$2 sm:$0xff]
      %s2348 = scalar_lea.vmem [#allocation2], 384
      %v2349 = vld [vmem:[%s2348] ss:$2 sm:$0xff]
      %s2350 = scalar_lea.vmem [#allocation2], 400
      %v2351 = vld [vmem:[%s2350] ss:$2 sm:$0x7]
      %s2352 = scalar_lea.vmem [#allocation2], 1
      %v2353 = vld [vmem:[%s2352] ss:$2 sm:$0xff]
      %s2354 = scalar_lea.vmem [#allocation2], 17
      %v2355 = vld [vmem:[%s2354] ss:$2 sm:$0xff]
      %s2356 = scalar_lea.vmem [#allocation2], 33
      %v2357 = vld [vmem:[%s2356] ss:$2 sm:$0xff]
      %s2358 = scalar_lea.vmem [#allocation2], 49
      %v2359 = vld [vmem:[%s2358] ss:$2 sm:$0xff]
      %s2360 = scalar_lea.vmem [#allocation2], 65
      %v2361 = vld [vmem:[%s2360] ss:$2 sm:$0xff]
      %s2362 = scalar_lea.vmem [#allocation2], 81
      %v2363 = vld [vmem:[%s2362] ss:$2 sm:$0xff]
      %s2364 = scalar_lea.vmem [#allocation2], 97
      %v2365 = vld [vmem:[%s2364] ss:$2 sm:$0xff]
      %s2366 = scalar_lea.vmem [#allocation2], 113
      %v2367 = vld [vmem:[%s2366] ss:$2 sm:$0xff]
      %s2368 = scalar_lea.vmem [#allocation2], 129
      %v2369 = vld [vmem:[%s2368] ss:$2 sm:$0xff]
      %s2370 = scalar_lea.vmem [#allocation2], 145
      %v2371 = vld [vmem:[%s2370] ss:$2 sm:$0xff]
      %s2372 = scalar_lea.vmem [#allocation2], 161
      %v2373 = vld [vmem:[%s2372] ss:$2 sm:$0xff]
      %s2374 = scalar_lea.vmem [#allocation2], 177
      %v2375 = vld [vmem:[%s2374] ss:$2 sm:$0xff]
      %s2376 = scalar_lea.vmem [#allocation2], 193
      %v2377 = vld [vmem:[%s2376] ss:$2 sm:$0xff]
      %s2378 = scalar_lea.vmem [#allocation2], 209
      %v2379 = vld [vmem:[%s2378] ss:$2 sm:$0xff]
      %s2380 = scalar_lea.vmem [#allocation2], 225
      %v2381 = vld [vmem:[%s2380] ss:$2 sm:$0xff]
      %s2382 = scalar_lea.vmem [#allocation2], 241
      %v2383 = vld [vmem:[%s2382] ss:$2 sm:$0xff]
      %s2384 = scalar_lea.vmem [#allocation2], 257
      %v2385 = vld [vmem:[%s2384] ss:$2 sm:$0xff]
      %s2386 = scalar_lea.vmem [#allocation2], 273
      %v2387 = vld [vmem:[%s2386] ss:$2 sm:$0xff]
      %s2388 = scalar_lea.vmem [#allocation2], 289
      %v2389 = vld [vmem:[%s2388] ss:$2 sm:$0xff]
      %s2390 = scalar_lea.vmem [#allocation2], 305
      %v2391 = vld [vmem:[%s2390] ss:$2 sm:$0xff]
      %s2392 = scalar_lea.vmem [#allocation2], 321
      %v2393 = vld [vmem:[%s2392] ss:$2 sm:$0xff]
      %s2394 = scalar_lea.vmem [#allocation2], 337
      %v2395 = vld [vmem:[%s2394] ss:$2 sm:$0xff]
      %s2396 = scalar_lea.vmem [#allocation2], 353
      %v2397 = vld [vmem:[%s2396] ss:$2 sm:$0xff]
      %s2398 = scalar_lea.vmem [#allocation2], 369
      %v2399 = vld [vmem:[%s2398] ss:$2 sm:$0xff]
      %s2400 = scalar_lea.vmem [#allocation2], 385
      %v2401 = vld [vmem:[%s2400] ss:$2 sm:$0xff]
      %s2402 = scalar_lea.vmem [#allocation2], 401
      %v2403 = vld [vmem:[%s2402] ss:$2 sm:$0x7]
      %s2404 = scalar_lea.vmem [#allocation2], 2
      %v2405 = vld [vmem:[%s2404] ss:$2 sm:$0xff]
      %s2406 = scalar_lea.vmem [#allocation2], 18
      %v2407 = vld [vmem:[%s2406] ss:$2 sm:$0xff]
      %s2408 = scalar_lea.vmem [#allocation2], 34
      %v2409 = vld [vmem:[%s2408] ss:$2 sm:$0xff]
      %s2410 = scalar_lea.vmem [#allocation2], 50
      %v2411 = vld [vmem:[%s2410] ss:$2 sm:$0xff]
      %s2412 = scalar_lea.vmem [#allocation2], 66
      %v2413 = vld [vmem:[%s2412] ss:$2 sm:$0xff]
      %s2414 = scalar_lea.vmem [#allocation2], 82
      %v2415 = vld [vmem:[%s2414] ss:$2 sm:$0xff]
      %s2416 = scalar_lea.vmem [#allocation2], 98
      %v2417 = vld [vmem:[%s2416] ss:$2 sm:$0xff]
      %s2418 = scalar_lea.vmem [#allocation2], 114
      %v2419 = vld [vmem:[%s2418] ss:$2 sm:$0xff]
      %s2420 = scalar_lea.vmem [#allocation2], 130
      %v2421 = vld [vmem:[%s2420] ss:$2 sm:$0xff]
      %s2422 = scalar_lea.vmem [#allocation2], 146
      %v2423 = vld [vmem:[%s2422] ss:$2 sm:$0xff]
      %s2424 = scalar_lea.vmem [#allocation2], 162
      %v2425 = vld [vmem:[%s2424] ss:$2 sm:$0xff]
      %s2426 = scalar_lea.vmem [#allocation2], 178
      %v2427 = vld [vmem:[%s2426] ss:$2 sm:$0xff]
      %s2428 = scalar_lea.vmem [#allocation2], 194
      %v2429 = vld [vmem:[%s2428] ss:$2 sm:$0xff]
      %s2430 = scalar_lea.vmem [#allocation2], 210
      %v2431 = vld [vmem:[%s2430] ss:$2 sm:$0xff]
      %s2432 = scalar_lea.vmem [#allocation2], 226
      %v2433 = vld [vmem:[%s2432] ss:$2 sm:$0xff]
      %s2434 = scalar_lea.vmem [#allocation2], 242
      %v2435 = vld [vmem:[%s2434] ss:$2 sm:$0xff]
      %s2436 = scalar_lea.vmem [#allocation2], 258
      %v2437 = vld [vmem:[%s2436] ss:$2 sm:$0xff]
      %s2438 = scalar_lea.vmem [#allocation2], 274
      %v2439 = vld [vmem:[%s2438] ss:$2 sm:$0xff]
      %s2440 = scalar_lea.vmem [#allocation2], 290
      %v2441 = vld [vmem:[%s2440] ss:$2 sm:$0xff]
      %s2442 = scalar_lea.vmem [#allocation2], 306
      %v2443 = vld [vmem:[%s2442] ss:$2 sm:$0xff]
      %s2444 = scalar_lea.vmem [#allocation2], 322
      %v2445 = vld [vmem:[%s2444] ss:$2 sm:$0xff]
      %s2446 = scalar_lea.vmem [#allocation2], 338
      %v2447 = vld [vmem:[%s2446] ss:$2 sm:$0xff]
      %s2448 = scalar_lea.vmem [#allocation2], 354
      %v2449 = vld [vmem:[%s2448] ss:$2 sm:$0xff]
      %s2450 = scalar_lea.vmem [#allocation2], 370
      %v2451 = vld [vmem:[%s2450] ss:$2 sm:$0xff]
      %s2452 = scalar_lea.vmem [#allocation2], 386
      %v2453 = vld [vmem:[%s2452] ss:$2 sm:$0xff]
      %s2454 = scalar_lea.vmem [#allocation2], 402
      %v2455 = vld [vmem:[%s2454] ss:$2 sm:$0x7]
      %2482 = vrot.lane.b32.xlu0 %v2353, 16
      %v2483 = vpop.permute.xlu0 %2482
      %2484 = vrot.lane.b32.xlu0 %v2355, 16
      %v2485 = vpop.permute.xlu0 %2484
      %2486 = vrot.lane.b32.xlu0 %v2357, 16
      %v2487 = vpop.permute.xlu0 %2486
      %2488 = vrot.lane.b32.xlu0 %v2359, 16
      %v2489 = vpop.permute.xlu0 %2488
      %2490 = vrot.lane.b32.xlu0 %v2361, 16
      %v2491 = vpop.permute.xlu0 %2490
      %2492 = vrot.lane.b32.xlu0 %v2363, 16
      %v2493 = vpop.permute.xlu0 %2492
      %2494 = vrot.lane.b32.xlu0 %v2365, 16
      %v2495 = vpop.permute.xlu0 %2494
      %2496 = vrot.lane.b32.xlu0 %v2367, 16
      %v2497 = vpop.permute.xlu0 %2496
      %2498 = vrot.lane.b32.xlu0 %v2369, 16
      %v2499 = vpop.permute.xlu0 %2498
      %2500 = vrot.lane.b32.xlu0 %v2371, 16
      %v2501 = vpop.permute.xlu0 %2500
      %2502 = vrot.lane.b32.xlu0 %v2373, 16
      %v2503 = vpop.permute.xlu0 %2502
      %2504 = vrot.lane.b32.xlu0 %v2375, 16
      %v2505 = vpop.permute.xlu0 %2504
      %2506 = vrot.lane.b32.xlu0 %v2377, 16
      %v2507 = vpop.permute.xlu0 %2506
      %2508 = vrot.lane.b32.xlu0 %v2379, 16
      %v2509 = vpop.permute.xlu0 %2508
      %2510 = vrot.lane.b32.xlu0 %v2381, 16
      %v2511 = vpop.permute.xlu0 %2510
      %2512 = vrot.lane.b32.xlu0 %v2383, 16
      %v2513 = vpop.permute.xlu0 %2512
      %2514 = vrot.lane.b32.xlu0 %v2385, 16
      %v2515 = vpop.permute.xlu0 %2514
      %2516 = vrot.lane.b32.xlu0 %v2387, 16
      %v2517 = vpop.permute.xlu0 %2516
      %2518 = vrot.lane.b32.xlu0 %v2389, 16
      %v2519 = vpop.permute.xlu0 %2518
      %2520 = vrot.lane.b32.xlu0 %v2391, 16
      %v2521 = vpop.permute.xlu0 %2520
      %2522 = vrot.lane.b32.xlu0 %v2393, 16
      %v2523 = vpop.permute.xlu0 %2522
      %2524 = vrot.lane.b32.xlu0 %v2395, 16
      %v2525 = vpop.permute.xlu0 %2524
      %2526 = vrot.lane.b32.xlu0 %v2397, 16
      %v2527 = vpop.permute.xlu0 %2526
      %2528 = vrot.lane.b32.xlu0 %v2399, 16
      %v2529 = vpop.permute.xlu0 %2528
      %2530 = vrot.lane.b32.xlu0 %v2401, 16
      %v2531 = vpop.permute.xlu0 %2530
      %2532 = vrot.lane.b32.xlu0 %v2403, 16
      %v2533 = vpop.permute.xlu0 %2532
      %2586 = vrot.lane.b32.xlu0 %v2405, 32
      %v2587 = vpop.permute.xlu0 %2586
      %2588 = vrot.lane.b32.xlu0 %v2407, 32
      %v2589 = vpop.permute.xlu0 %2588
      %2590 = vrot.lane.b32.xlu0 %v2409, 32
      %v2591 = vpop.permute.xlu0 %2590
      %2592 = vrot.lane.b32.xlu0 %v2411, 32
      %v2593 = vpop.permute.xlu0 %2592
      %2594 = vrot.lane.b32.xlu0 %v2413, 32
      %v2595 = vpop.permute.xlu0 %2594
      %2596 = vrot.lane.b32.xlu0 %v2415, 32
      %v2597 = vpop.permute.xlu0 %2596
      %2598 = vrot.lane.b32.xlu0 %v2417, 32
      %v2599 = vpop.permute.xlu0 %2598
      %2600 = vrot.lane.b32.xlu0 %v2419, 32
      %v2601 = vpop.permute.xlu0 %2600
      %2602 = vrot.lane.b32.xlu0 %v2421, 32
      %v2603 = vpop.permute.xlu0 %2602
      %2604 = vrot.lane.b32.xlu0 %v2423, 32
      %v2605 = vpop.permute.xlu0 %2604
      %2606 = vrot.lane.b32.xlu0 %v2425, 32
      %v2607 = vpop.permute.xlu0 %2606
      %2608 = vrot.lane.b32.xlu0 %v2427, 32
      %v2609 = vpop.permute.xlu0 %2608
      %2610 = vrot.lane.b32.xlu0 %v2429, 32
      %v2611 = vpop.permute.xlu0 %2610
      %2612 = vrot.lane.b32.xlu0 %v2431, 32
      %v2613 = vpop.permute.xlu0 %2612
      %2614 = vrot.lane.b32.xlu0 %v2433, 32
      %v2615 = vpop.permute.xlu0 %2614
      %2616 = vrot.lane.b32.xlu0 %v2435, 32
      %v2617 = vpop.permute.xlu0 %2616
      %2618 = vrot.lane.b32.xlu0 %v2437, 32
      %v2619 = vpop.permute.xlu0 %2618
      %2620 = vrot.lane.b32.xlu0 %v2439, 32
      %v2621 = vpop.permute.xlu0 %2620
      %2622 = vrot.lane.b32.xlu0 %v2441, 32
      %v2623 = vpop.permute.xlu0 %2622
      %2624 = vrot.lane.b32.xlu0 %v2443, 32
      %v2625 = vpop.permute.xlu0 %2624
      %2626 = vrot.lane.b32.xlu0 %v2445, 32
      %v2627 = vpop.permute.xlu0 %2626
      %2628 = vrot.lane.b32.xlu0 %v2447, 32
      %v2629 = vpop.permute.xlu0 %2628
      %2630 = vrot.lane.b32.xlu0 %v2449, 32
      %v2631 = vpop.permute.xlu0 %2630
      %2632 = vrot.lane.b32.xlu0 %v2451, 32
      %v2633 = vpop.permute.xlu0 %2632
      %2634 = vrot.lane.b32.xlu0 %v2453, 32
      %v2635 = vpop.permute.xlu0 %2634
      %2636 = vrot.lane.b32.xlu0 %v2455, 32
      %v2637 = vpop.permute.xlu0 %2636
      %v2664 = vsel %vm1016, %v2301, %v2483
      %v2665 = vsel %vm1016, %v2303, %v2485
      %v2666 = vsel %vm1016, %v2305, %v2487
      %v2667 = vsel %vm1016, %v2307, %v2489
      %v2668 = vsel %vm1016, %v2309, %v2491
      %v2669 = vsel %vm1016, %v2311, %v2493
      %v2670 = vsel %vm1016, %v2313, %v2495
      %v2671 = vsel %vm1016, %v2315, %v2497
      %v2672 = vsel %vm1016, %v2317, %v2499
      %v2673 = vsel %vm1016, %v2319, %v2501
      %v2674 = vsel %vm1016, %v2321, %v2503
      %v2675 = vsel %vm1016, %v2323, %v2505
      %v2676 = vsel %vm1016, %v2325, %v2507
      %v2677 = vsel %vm1016, %v2327, %v2509
      %v2678 = vsel %vm1016, %v2329, %v2511
      %v2679 = vsel %vm1016, %v2331, %v2513
      %v2680 = vsel %vm1016, %v2333, %v2515
      %v2681 = vsel %vm1016, %v2335, %v2517
      %v2682 = vsel %vm1016, %v2337, %v2519
      %v2683 = vsel %vm1016, %v2339, %v2521
      %v2684 = vsel %vm1016, %v2341, %v2523
      %v2685 = vsel %vm1016, %v2343, %v2525
      %v2686 = vsel %vm1016, %v2345, %v2527
      %v2687 = vsel %vm1016, %v2347, %v2529
      %v2688 = vsel %vm1016, %v2349, %v2531
      %v2689 = vsel %vm1016, %v2351, %v2533
      %vm2690 = vcmask 261120
      %v2691 = vsel %vm2690, %v2664, %v2587
      %v2692 = vsel %vm2690, %v2665, %v2589
      %v2693 = vsel %vm2690, %v2666, %v2591
      %v2694 = vsel %vm2690, %v2667, %v2593
      %v2695 = vsel %vm2690, %v2668, %v2595
      %v2696 = vsel %vm2690, %v2669, %v2597
      %v2697 = vsel %vm2690, %v2670, %v2599
      %v2698 = vsel %vm2690, %v2671, %v2601
      %v2699 = vsel %vm2690, %v2672, %v2603
      %v2700 = vsel %vm2690, %v2673, %v2605
      %v2701 = vsel %vm2690, %v2674, %v2607
      %v2702 = vsel %vm2690, %v2675, %v2609
      %v2703 = vsel %vm2690, %v2676, %v2611
      %v2704 = vsel %vm2690, %v2677, %v2613
      %v2705 = vsel %vm2690, %v2678, %v2615
      %v2706 = vsel %vm2690, %v2679, %v2617
      %v2707 = vsel %vm2690, %v2680, %v2619
      %v2708 = vsel %vm2690, %v2681, %v2621
      %v2709 = vsel %vm2690, %v2682, %v2623
      %v2710 = vsel %vm2690, %v2683, %v2625
      %v2711 = vsel %vm2690, %v2684, %v2627
      %v2712 = vsel %vm2690, %v2685, %v2629
      %v2713 = vsel %vm2690, %v2686, %v2631
      %v2714 = vsel %vm2690, %v2687, %v2633
      %v2715 = vsel %vm2690, %v2688, %v2635
      %v2716 = vsel %vm2690, %v2689, %v2637
      %s2717 = scalar_lea.vmem %s1, 24
      %v2718 = vld [vmem:[%s2717] sm:$0xf]
      %v2719 = vld [vmem:[%s2717 + $0x4] sm:$0xf]
      %v2720 = vld [vmem:[%s2717 + $0x8] sm:$0xf]
      %v2721 = vld [vmem:[%s2717 + $0xc] sm:$0xf]
      %v2722 = vld [vmem:[%s2717 + $0x10] sm:$0xf]
      %v2723 = vld [vmem:[%s2717 + $0x14] sm:$0xf]
      %v2724 = vpack.c.bf16 %v2692, %v2691
      %v2725 = vpack.c.bf16 %v2694, %v2693
      %v2726 = vpack.c.bf16 %v2696, %v2695
      %v2727 = vpack.c.bf16 %v2698, %v2697
      %v2728 = vpack.c.bf16 %v2700, %v2699
      %v2729 = vpack.c.bf16 %v2702, %v2701
      %v2730 = vpack.c.bf16 %v2704, %v2703
      %v2731 = vpack.c.bf16 %v2706, %v2705
      %v2732 = vpack.c.bf16 %v2708, %v2707
      %v2733 = vpack.c.bf16 %v2710, %v2709
      %v2734 = vpack.c.bf16 %v2712, %v2711
      %v2735 = vpack.c.bf16 %v2714, %v2713
      %v2736 = vpack.c.bf16 %v2716, %v2715
      %v2737 = vlaneseq
      %v2738 = vshrl.u32 %v2737, 7
      %v2739 = vsub.s32 1, %v2738
      %v2740 = vrot.slane %v602, %v2739
      %v2747 = vunpack.c.l.b16 %v2718
      %v2748 = vunpack.c.l.b16 %v2719
      %v2749 = vunpack.c.l.b16 %v2720
      %v2750 = vunpack.c.l.b16 %v2721
      %v2751 = vunpack.c.l.b16 %v2722
      %v2752 = vunpack.c.l.b16 %v2723
      %v2753 = vpack.c.b16 %v2748, %v2747
      %v2754 = vpack.c.b16 %v2750, %v2749
      %v2755 = vpack.c.b16 %v2752, %v2751
      %vm2759 = vcmask 392192
      %v2761 = vsel %vm2759, %v2724, 0
      %v2764 = vsel %vm2759, %v2725, 0
      %v2767 = vsel %vm2759, %v2726, 0
      %v2770 = vsel %vm2759, %v2727, 0
      %v2773 = vsel %vm2759, %v2728, 0
      %v2776 = vsel %vm2759, %v2729, 0
      %v2779 = vsel %vm2759, %v2730, 0
      %v2782 = vsel %vm2759, %v2731, 0
      %v2785 = vsel %vm2759, %v2732, 0
      %v2788 = vsel %vm2759, %v2733, 0
      %v2791 = vsel %vm2759, %v2734, 0
      %v2794 = vsel %vm2759, %v2735, 0
      %v2797 = vsel %vm2759, %v2736, 0
      %2799 = vmatprep.subr.bf16.mxu0 0
      %2800 = vmatpush1.bf16.msra.mxu0 %v2753
      %2801 = vmatprep.subr.bf16.mxu0 0
      %2802 = vmatpush1.bf16.msra.mxu0 %v2754
      %2803 = vmatprep.subr.bf16.mxu0 0
      %2804 = vmatpush1.bf16.msra.mxu0 %v2755
      %2805 = vmatprep.subr.bf16.mxu0 0
      %2806 = vmatpush1.bf16.msra.mxu0 0
      %2807 = vmatprep.subr.bf16.mxu0 0
      %2808 = vmatpush1.bf16.msra.mxu0 0
      %2809 = vmatprep.subr.bf16.mxu0 0
      %2810 = vmatpush1.bf16.msra.mxu0 0
      %2811 = vmatprep.subr.bf16.mxu0 0
      %2812 = vmatpush1.bf16.msra.mxu0 0
      %2813 = vmatprep.subr.bf16.mxu0 0
      %2814 = vmatpush1.bf16.msra.mxu0 0
      %2815 = vmatprep.subr.bf16.mxu0 0
      %2816 = vmatpush1.bf16.msra.mxu0 0
      %2817 = vmatprep.subr.bf16.mxu0 0
      %2818 = vmatpush1.bf16.msra.mxu0 0
      %2819 = vmatprep.subr.bf16.mxu0 0
      %2820 = vmatpush1.bf16.msra.mxu0 0
      %2821 = vmatprep.subr.bf16.mxu0 0
      %2822 = vmatpush1.bf16.msra.mxu0 0
      %2823 = vmatprep.subr.bf16.mxu0 0
      %2824 = vmatpush1.bf16.msra.mxu0 0
      %2825 = vmatprep.subr.bf16.mxu0 0
      %2826 = vmatpush1.bf16.msra.mxu0 0
      %2827 = vmatprep.subr.bf16.mxu0 0
      %2828 = vmatpush1.bf16.msra.mxu0 0
      %2829 = vmatprep.subr.bf16.mxu0 0
      %2830 = vmatpush1.bf16.msra.mxu0 0
      %2831 = vmatprep.mubr.bf16.mxu0 0
      %2832 = vmatmul.mubr.bf16.gmra.mrb[0].mxu0 %v2761
      %v2833 = vpop.f32.mrb[0].mxu0
      %v2834 = vadd.f32 %v2740, %v2833
      %v2835 = vpop.f32.mrb[0].mxu0
      %v2836 = vpop.f32.mrb[0].mxu0
      %v2837 = vadd.f32 %v2740, %v2836
      %v2838 = vpop.f32.mrb[0].mxu0
      %2839 = vmatprep.mubr.bf16.mxu0 0
      %2840 = vmatmul.mubr.bf16.gmra.mrb[0].mxu0 %v2764
      %v2841 = vpop.f32.mrb[0].mxu0
      %v2842 = vadd.f32 %v2740, %v2841
      %v2843 = vpop.f32.mrb[0].mxu0
      %v2844 = vpop.f32.mrb[0].mxu0
      %v2845 = vadd.f32 %v2740, %v2844
      %v2846 = vpop.f32.mrb[0].mxu0
      %2847 = vmatprep.mubr.bf16.mxu0 0
      %2848 = vmatmul.mubr.bf16.gmra.mrb[0].mxu0 %v2767
      %v2849 = vpop.f32.mrb[0].mxu0
      %v2850 = vadd.f32 %v2740, %v2849
      %v2851 = vpop.f32.mrb[0].mxu0
      %v2852 = vpop.f32.mrb[0].mxu0
      %v2853 = vadd.f32 %v2740, %v2852
      %v2854 = vpop.f32.mrb[0].mxu0
      %2855 = vmatprep.mubr.bf16.mxu0 0
      %2856 = vmatmul.mubr.bf16.gmra.mrb[0].mxu0 %v2770
      %v2857 = vpop.f32.mrb[0].mxu0
      %v2858 = vadd.f32 %v2740, %v2857
      %v2859 = vpop.f32.mrb[0].mxu0
      %v2860 = vpop.f32.mrb[0].mxu0
      %v2861 = vadd.f32 %v2740, %v2860
      %v2862 = vpop.f32.mrb[0].mxu0
      %2863 = vmatprep.mubr.bf16.mxu0 0
      %2864 = vmatmul.mubr.bf16.gmra.mrb[0].mxu0 %v2773
      %v2865 = vpop.f32.mrb[0].mxu0
      %v2866 = vadd.f32 %v2740, %v2865
      %v2867 = vpop.f32.mrb[0].mxu0
      %v2868 = vpop.f32.mrb[0].mxu0
      %v2869 = vadd.f32 %v2740, %v2868
      %v2870 = vpop.f32.mrb[0].mxu0
      %2871 = vmatprep.mubr.bf16.mxu0 0
      %2872 = vmatmul.mubr.bf16.gmra.mrb[0].mxu0 %v2776
      %v2873 = vpop.f32.mrb[0].mxu0
      %v2874 = vadd.f32 %v2740, %v2873
      %v2875 = vpop.f32.mrb[0].mxu0
      %v2876 = vpop.f32.mrb[0].mxu0
      %v2877 = vadd.f32 %v2740, %v2876
      %v2878 = vpop.f32.mrb[0].mxu0
      %2879 = vmatprep.mubr.bf16.mxu0 0
      %2880 = vmatmul.mubr.bf16.gmra.mrb[0].mxu0 %v2779
      %v2881 = vpop.f32.mrb[0].mxu0
      %v2882 = vadd.f32 %v2740, %v2881
      %v2883 = vpop.f32.mrb[0].mxu0
      %v2884 = vpop.f32.mrb[0].mxu0
      %v2885 = vadd.f32 %v2740, %v2884
      %v2886 = vpop.f32.mrb[0].mxu0
      %2887 = vmatprep.mubr.bf16.mxu0 0
      %2888 = vmatmul.mubr.bf16.gmra.mrb[0].mxu0 %v2782
      %v2889 = vpop.f32.mrb[0].mxu0
      %v2890 = vadd.f32 %v2740, %v2889
      %v2891 = vpop.f32.mrb[0].mxu0
      %v2892 = vpop.f32.mrb[0].mxu0
      %v2893 = vadd.f32 %v2740, %v2892
      %v2894 = vpop.f32.mrb[0].mxu0
      %2895 = vmatprep.mubr.bf16.mxu0 0
      %2896 = vmatmul.mubr.bf16.gmra.mrb[0].mxu0 %v2785
      %v2897 = vpop.f32.mrb[0].mxu0
      %v2898 = vadd.f32 %v2740, %v2897
      %v2899 = vpop.f32.mrb[0].mxu0
      %v2900 = vpop.f32.mrb[0].mxu0
      %v2901 = vadd.f32 %v2740, %v2900
      %v2902 = vpop.f32.mrb[0].mxu0
      %2903 = vmatprep.mubr.bf16.mxu0 0
      %2904 = vmatmul.mubr.bf16.gmra.mrb[0].mxu0 %v2788
      %v2905 = vpop.f32.mrb[0].mxu0
      %v2906 = vadd.f32 %v2740, %v2905
      %v2907 = vpop.f32.mrb[0].mxu0
      %v2908 = vpop.f32.mrb[0].mxu0
      %v2909 = vadd.f32 %v2740, %v2908
      %v2910 = vpop.f32.mrb[0].mxu0
      %2911 = vmatprep.mubr.bf16.mxu0 0
      %2912 = vmatmul.mubr.bf16.gmra.mrb[0].mxu0 %v2791
      %v2913 = vpop.f32.mrb[0].mxu0
      %v2914 = vadd.f32 %v2740, %v2913
      %v2915 = vpop.f32.mrb[0].mxu0
      %v2916 = vpop.f32.mrb[0].mxu0
      %v2917 = vadd.f32 %v2740, %v2916
      %v2918 = vpop.f32.mrb[0].mxu0
      %2919 = vmatprep.mubr.bf16.mxu0 0
      %2920 = vmatmul.mubr.bf16.gmra.mrb[0].mxu0 %v2794
      %v2921 = vpop.f32.mrb[0].mxu0
      %v2922 = vadd.f32 %v2740, %v2921
      %v2923 = vpop.f32.mrb[0].mxu0
      %v2924 = vpop.f32.mrb[0].mxu0
      %v2925 = vadd.f32 %v2740, %v2924
      %v2926 = vpop.f32.mrb[0].mxu0
      %2927 = vmatprep.mubr.bf16.mxu0 0
      %2928 = vmatmul.mubr.bf16.gmra.mrb[0].mxu0 %v2797
      %v2929 = vpop.f32.mrb[0].mxu0
      %v2930 = vadd.f32 %v2740, %v2929
      %v2931 = vpop.f32.mrb[0].mxu0
      %v2932 = vpop.f32.mrb[0].mxu0
      %v2933 = vadd.f32 %v2740, %v2932
      %v2934 = vpop.f32.mrb[0].mxu0
      %2935 = vdwg.mxu0
      %v2936 = vsel %vm1016, %v2834, 0.0
      %2937 = vadd.xlane.f32.xlu0 %v2936
      %v2938 = vpop.xlane.xlu0 %2937
      %v2939 = vsel %vm1016, %v2837, 0.0
      %2940 = vadd.xlane.f32.xlu0 %v2939
      %v2941 = vpop.xlane.xlu0 %2940
      %v2942 = vsel %vm1016, %v2842, 0.0
      %2943 = vadd.xlane.f32.xlu0 %v2942
      %v2944 = vpop.xlane.xlu0 %2943
      %v2945 = vsel %vm1016, %v2845, 0.0
      %2946 = vadd.xlane.f32.xlu0 %v2945
      %v2947 = vpop.xlane.xlu0 %2946
      %v2948 = vsel %vm1016, %v2850, 0.0
      %2949 = vadd.xlane.f32.xlu0 %v2948
      %v2950 = vpop.xlane.xlu0 %2949
      %v2951 = vsel %vm1016, %v2853, 0.0
      %2952 = vadd.xlane.f32.xlu0 %v2951
      %v2953 = vpop.xlane.xlu0 %2952
      %v2954 = vsel %vm1016, %v2858, 0.0
      %2955 = vadd.xlane.f32.xlu0 %v2954
      %v2956 = vpop.xlane.xlu0 %2955
      %v2957 = vsel %vm1016, %v2861, 0.0
      %2958 = vadd.xlane.f32.xlu0 %v2957
      %v2959 = vpop.xlane.xlu0 %2958
      %v2960 = vsel %vm1016, %v2866, 0.0
      %2961 = vadd.xlane.f32.xlu0 %v2960
      %v2962 = vpop.xlane.xlu0 %2961
      %v2963 = vsel %vm1016, %v2869, 0.0
      %2964 = vadd.xlane.f32.xlu0 %v2963
      %v2965 = vpop.xlane.xlu0 %2964
      %v2966 = vsel %vm1016, %v2874, 0.0
      %2967 = vadd.xlane.f32.xlu0 %v2966
      %v2968 = vpop.xlane.xlu0 %2967
      %v2969 = vsel %vm1016, %v2877, 0.0
      %2970 = vadd.xlane.f32.xlu0 %v2969
      %v2971 = vpop.xlane.xlu0 %2970
      %v2972 = vsel %vm1016, %v2882, 0.0
      %2973 = vadd.xlane.f32.xlu0 %v2972
      %v2974 = vpop.xlane.xlu0 %2973
      %v2975 = vsel %vm1016, %v2885, 0.0
      %2976 = vadd.xlane.f32.xlu0 %v2975
      %v2977 = vpop.xlane.xlu0 %2976
      %v2978 = vsel %vm1016, %v2890, 0.0
      %2979 = vadd.xlane.f32.xlu0 %v2978
      %v2980 = vpop.xlane.xlu0 %2979
      %v2981 = vsel %vm1016, %v2893, 0.0
      %2982 = vadd.xlane.f32.xlu0 %v2981
      %v2983 = vpop.xlane.xlu0 %2982
      %v2984 = vsel %vm1016, %v2898, 0.0
      %2985 = vadd.xlane.f32.xlu0 %v2984
      %v2986 = vpop.xlane.xlu0 %2985
      %v2987 = vsel %vm1016, %v2901, 0.0
      %2988 = vadd.xlane.f32.xlu0 %v2987
      %v2989 = vpop.xlane.xlu0 %2988
      %v2990 = vsel %vm1016, %v2906, 0.0
      %2991 = vadd.xlane.f32.xlu0 %v2990
      %v2992 = vpop.xlane.xlu0 %2991
      %v2993 = vsel %vm1016, %v2909, 0.0
      %2994 = vadd.xlane.f32.xlu0 %v2993
      %v2995 = vpop.xlane.xlu0 %2994
      %v2996 = vsel %vm1016, %v2914, 0.0
      %2997 = vadd.xlane.f32.xlu0 %v2996
      %v2998 = vpop.xlane.xlu0 %2997
      %v2999 = vsel %vm1016, %v2917, 0.0
      %3000 = vadd.xlane.f32.xlu0 %v2999
      %v3001 = vpop.xlane.xlu0 %3000
      %v3002 = vsel %vm1016, %v2922, 0.0
      %3003 = vadd.xlane.f32.xlu0 %v3002
      %v3004 = vpop.xlane.xlu0 %3003
      %v3005 = vsel %vm1016, %v2925, 0.0
      %3006 = vadd.xlane.f32.xlu0 %v3005
      %v3007 = vpop.xlane.xlu0 %3006
      %v3008 = vsel %vm1016, %v2930, 0.0
      %3009 = vadd.xlane.f32.xlu0 %v3008
      %v3010 = vpop.xlane.xlu0 %3009
      %vm3011 = vcmask 124928
      %v3012 = vsel %vm3011, %v2933, 0.0
      %3013 = vadd.xlane.f32.xlu0 %v3012
      %v3014 = vpop.xlane.xlu0 %3013
      %v3015 = vmul.f32 %v2938, %v1170
      %v3016 = vmul.f32 %v2941, %v1170
      %v3017 = vmul.f32 %v2944, %v1170
      %v3018 = vmul.f32 %v2947, %v1170
      %v3019 = vmul.f32 %v2950, %v1170
      %v3020 = vmul.f32 %v2953, %v1170
      %v3021 = vmul.f32 %v2956, %v1170
      %v3022 = vmul.f32 %v2959, %v1170
      %v3023 = vmul.f32 %v2962, %v1170
      %v3024 = vmul.f32 %v2965, %v1170
      %v3025 = vmul.f32 %v2968, %v1170
      %v3026 = vmul.f32 %v2971, %v1170
      %v3027 = vmul.f32 %v2974, %v1170
      %v3028 = vmul.f32 %v2977, %v1170
      %v3029 = vmul.f32 %v2980, %v1170
      %v3030 = vmul.f32 %v2983, %v1170
      %v3031 = vmul.f32 %v2986, %v1170
      %v3032 = vmul.f32 %v2989, %v1170
      %v3033 = vmul.f32 %v2992, %v1170
      %v3034 = vmul.f32 %v2995, %v1170
      %v3035 = vmul.f32 %v2998, %v1170
      %v3036 = vmul.f32 %v3001, %v1170
      %v3037 = vmul.f32 %v3004, %v1170
      %v3038 = vmul.f32 %v3007, %v1170
      %v3039 = vmul.f32 %v3010, %v1170
      %v3040 = vmul.f32 %v3014, %v1170
      %v3041 = vsub.f32 %v2834, %v3015
      %v3042 = vsub.f32 %v2837, %v3016
      %v3043 = vsub.f32 %v2842, %v3017
      %v3044 = vsub.f32 %v2845, %v3018
      %v3045 = vsub.f32 %v2850, %v3019
      %v3046 = vsub.f32 %v2853, %v3020
      %v3047 = vsub.f32 %v2858, %v3021
      %v3048 = vsub.f32 %v2861, %v3022
      %v3049 = vsub.f32 %v2866, %v3023
      %v3050 = vsub.f32 %v2869, %v3024
      %v3051 = vsub.f32 %v2874, %v3025
      %v3052 = vsub.f32 %v2877, %v3026
      %v3053 = vsub.f32 %v2882, %v3027
      %v3054 = vsub.f32 %v2885, %v3028
      %v3055 = vsub.f32 %v2890, %v3029
      %v3056 = vsub.f32 %v2893, %v3030
      %v3057 = vsub.f32 %v2898, %v3031
      %v3058 = vsub.f32 %v2901, %v3032
      %v3059 = vsub.f32 %v2906, %v3033
      %v3060 = vsub.f32 %v2909, %v3034
      %v3061 = vsub.f32 %v2914, %v3035
      %v3062 = vsub.f32 %v2917, %v3036
      %v3063 = vsub.f32 %v2922, %v3037
      %v3064 = vsub.f32 %v2925, %v3038
      %v3065 = vsub.f32 %v2930, %v3039
      %v3066 = vsub.f32 %v2933, %v3040
      %v3067 = vmul.f32 %v3041, %v3041
      %v3068 = vmul.f32 %v3042, %v3042
      %v3069 = vmul.f32 %v3043, %v3043
      %v3070 = vmul.f32 %v3044, %v3044
      %v3071 = vmul.f32 %v3045, %v3045
      %v3072 = vmul.f32 %v3046, %v3046
      %v3073 = vmul.f32 %v3047, %v3047
      %v3074 = vmul.f32 %v3048, %v3048
      %v3075 = vmul.f32 %v3049, %v3049
      %v3076 = vmul.f32 %v3050, %v3050
      %v3077 = vmul.f32 %v3051, %v3051
      %v3078 = vmul.f32 %v3052, %v3052
      %v3079 = vmul.f32 %v3053, %v3053
      %v3080 = vmul.f32 %v3054, %v3054
      %v3081 = vmul.f32 %v3055, %v3055
      %v3082 = vmul.f32 %v3056, %v3056
      %v3083 = vmul.f32 %v3057, %v3057
      %v3084 = vmul.f32 %v3058, %v3058
      %v3085 = vmul.f32 %v3059, %v3059
      %v3086 = vmul.f32 %v3060, %v3060
      %v3087 = vmul.f32 %v3061, %v3061
      %v3088 = vmul.f32 %v3062, %v3062
      %v3089 = vmul.f32 %v3063, %v3063
      %v3090 = vmul.f32 %v3064, %v3064
      %v3091 = vmul.f32 %v3065, %v3065
      %v3092 = vmul.f32 %v3066, %v3066
      %v3093 = vsel %vm1016, %v3067, 0.0
      %3094 = vadd.xlane.f32.xlu0 %v3093
      %v3095 = vpop.xlane.xlu0 %3094
      %v3096 = vsel %vm1016, %v3068, 0.0
      %3097 = vadd.xlane.f32.xlu0 %v3096
      %v3098 = vpop.xlane.xlu0 %3097
      %v3099 = vsel %vm1016, %v3069, 0.0
      %3100 = vadd.xlane.f32.xlu0 %v3099
      %v3101 = vpop.xlane.xlu0 %3100
      %v3102 = vsel %vm1016, %v3070, 0.0
      %3103 = vadd.xlane.f32.xlu0 %v3102
      %v3104 = vpop.xlane.xlu0 %3103
      %v3105 = vsel %vm1016, %v3071, 0.0
      %3106 = vadd.xlane.f32.xlu0 %v3105
      %v3107 = vpop.xlane.xlu0 %3106
      %v3108 = vsel %vm1016, %v3072, 0.0
      %3109 = vadd.xlane.f32.xlu0 %v3108
      %v3110 = vpop.xlane.xlu0 %3109
      %v3111 = vsel %vm1016, %v3073, 0.0
      %3112 = vadd.xlane.f32.xlu0 %v3111
      %v3113 = vpop.xlane.xlu0 %3112
      %v3114 = vsel %vm1016, %v3074, 0.0
      %3115 = vadd.xlane.f32.xlu0 %v3114
      %v3116 = vpop.xlane.xlu0 %3115
      %v3117 = vsel %vm1016, %v3075, 0.0
      %3118 = vadd.xlane.f32.xlu0 %v3117
      %v3119 = vpop.xlane.xlu0 %3118
      %v3120 = vsel %vm1016, %v3076, 0.0
      %3121 = vadd.xlane.f32.xlu0 %v3120
      %v3122 = vpop.xlane.xlu0 %3121
      %v3123 = vsel %vm1016, %v3077, 0.0
      %3124 = vadd.xlane.f32.xlu0 %v3123
      %v3125 = vpop.xlane.xlu0 %3124
      %v3126 = vsel %vm1016, %v3078, 0.0
      %3127 = vadd.xlane.f32.xlu0 %v3126
      %v3128 = vpop.xlane.xlu0 %3127
      %v3129 = vsel %vm1016, %v3079, 0.0
      %3130 = vadd.xlane.f32.xlu0 %v3129
      %v3131 = vpop.xlane.xlu0 %3130
      %v3132 = vsel %vm1016, %v3080, 0.0
      %3133 = vadd.xlane.f32.xlu0 %v3132
      %v3134 = vpop.xlane.xlu0 %3133
      %v3135 = vsel %vm1016, %v3081, 0.0
      %3136 = vadd.xlane.f32.xlu0 %v3135
      %v3137 = vpop.xlane.xlu0 %3136
      %v3138 = vsel %vm1016, %v3082, 0.0
      %3139 = vadd.xlane.f32.xlu0 %v3138
      %v3140 = vpop.xlane.xlu0 %3139
      %v3141 = vsel %vm1016, %v3083, 0.0
      %3142 = vadd.xlane.f32.xlu0 %v3141
      %v3143 = vpop.xlane.xlu0 %3142
      %v3144 = vsel %vm1016, %v3084, 0.0
      %3145 = vadd.xlane.f32.xlu0 %v3144
      %v3146 = vpop.xlane.xlu0 %3145
      %v3147 = vsel %vm1016, %v3085, 0.0
      %3148 = vadd.xlane.f32.xlu0 %v3147
      %v3149 = vpop.xlane.xlu0 %3148
      %v3150 = vsel %vm1016, %v3086, 0.0
      %3151 = vadd.xlane.f32.xlu0 %v3150
      %v3152 = vpop.xlane.xlu0 %3151
      %v3153 = vsel %vm1016, %v3087, 0.0
      %3154 = vadd.xlane.f32.xlu0 %v3153
      %v3155 = vpop.xlane.xlu0 %3154
      %v3156 = vsel %vm1016, %v3088, 0.0
      %3157 = vadd.xlane.f32.xlu0 %v3156
      %v3158 = vpop.xlane.xlu0 %3157
      %v3159 = vsel %vm1016, %v3089, 0.0
      %3160 = vadd.xlane.f32.xlu0 %v3159
      %v3161 = vpop.xlane.xlu0 %3160
      %v3162 = vsel %vm1016, %v3090, 0.0
      %3163 = vadd.xlane.f32.xlu0 %v3162
      %v3164 = vpop.xlane.xlu0 %3163
      %v3165 = vsel %vm1016, %v3091, 0.0
      %3166 = vadd.xlane.f32.xlu0 %v3165
      %v3167 = vpop.xlane.xlu0 %3166
      %v3168 = vsel %vm3011, %v3092, 0.0
      %3169 = vadd.xlane.f32.xlu0 %v3168
      %v3170 = vpop.xlane.xlu0 %3169
      %v3171 = vmul.f32 %v3095, %v1170
      %v3172 = vmul.f32 %v3098, %v1170
      %v3173 = vmul.f32 %v3101, %v1170
      %v3174 = vmul.f32 %v3104, %v1170
      %v3175 = vmul.f32 %v3107, %v1170
      %v3176 = vmul.f32 %v3110, %v1170
      %v3177 = vmul.f32 %v3113, %v1170
      %v3178 = vmul.f32 %v3116, %v1170
      %v3179 = vmul.f32 %v3119, %v1170
      %v3180 = vmul.f32 %v3122, %v1170
      %v3181 = vmul.f32 %v3125, %v1170
      %v3182 = vmul.f32 %v3128, %v1170
      %v3183 = vmul.f32 %v3131, %v1170
      %v3184 = vmul.f32 %v3134, %v1170
      %v3185 = vmul.f32 %v3137, %v1170
      %v3186 = vmul.f32 %v3140, %v1170
      %v3187 = vmul.f32 %v3143, %v1170
      %v3188 = vmul.f32 %v3146, %v1170
      %v3189 = vmul.f32 %v3149, %v1170
      %v3190 = vmul.f32 %v3152, %v1170
      %v3191 = vmul.f32 %v3155, %v1170
      %v3192 = vmul.f32 %v3158, %v1170
      %v3193 = vmul.f32 %v3161, %v1170
      %v3194 = vmul.f32 %v3164, %v1170
      %v3195 = vmul.f32 %v3167, %v1170
      %v3196 = vmul.f32 %v3170, %v1170
      %v3197 = vadd.f32 %v3171, 1e-05
      %v3198 = vadd.f32 %v3172, 1e-05
      %v3199 = vadd.f32 %v3173, 1e-05
      %v3200 = vadd.f32 %v3174, 1e-05
      %v3201 = vadd.f32 %v3175, 1e-05
      %v3202 = vadd.f32 %v3176, 1e-05
      %v3203 = vadd.f32 %v3177, 1e-05
      %v3204 = vadd.f32 %v3178, 1e-05
      %v3205 = vadd.f32 %v3179, 1e-05
      %v3206 = vadd.f32 %v3180, 1e-05
      %v3207 = vadd.f32 %v3181, 1e-05
      %v3208 = vadd.f32 %v3182, 1e-05
      %v3209 = vadd.f32 %v3183, 1e-05
      %v3210 = vadd.f32 %v3184, 1e-05
      %v3211 = vadd.f32 %v3185, 1e-05
      %v3212 = vadd.f32 %v3186, 1e-05
      %v3213 = vadd.f32 %v3187, 1e-05
      %v3214 = vadd.f32 %v3188, 1e-05
      %v3215 = vadd.f32 %v3189, 1e-05
      %v3216 = vadd.f32 %v3190, 1e-05
      %v3217 = vadd.f32 %v3191, 1e-05
      %v3218 = vadd.f32 %v3192, 1e-05
      %v3219 = vadd.f32 %v3193, 1e-05
      %v3220 = vadd.f32 %v3194, 1e-05
      %v3221 = vadd.f32 %v3195, 1e-05
      %v3222 = vadd.f32 %v3196, 1e-05
      %v3223 = vrsqrt.pop %v3197
      %v3224 = vrsqrt.pop %v3198
      %v3225 = vrsqrt.pop %v3199
      %v3226 = vrsqrt.pop %v3200
      %v3227 = vrsqrt.pop %v3201
      %v3228 = vrsqrt.pop %v3202
      %v3229 = vrsqrt.pop %v3203
      %v3230 = vrsqrt.pop %v3204
      %v3231 = vrsqrt.pop %v3205
      %v3232 = vrsqrt.pop %v3206
      %v3233 = vrsqrt.pop %v3207
      %v3234 = vrsqrt.pop %v3208
      %v3235 = vrsqrt.pop %v3209
      %v3236 = vrsqrt.pop %v3210
      %v3237 = vrsqrt.pop %v3211
      %v3238 = vrsqrt.pop %v3212
      %v3239 = vrsqrt.pop %v3213
      %v3240 = vrsqrt.pop %v3214
      %v3241 = vrsqrt.pop %v3215
      %v3242 = vrsqrt.pop %v3216
      %v3243 = vrsqrt.pop %v3217
      %v3244 = vrsqrt.pop %v3218
      %v3245 = vrsqrt.pop %v3219
      %v3246 = vrsqrt.pop %v3220
      %v3247 = vrsqrt.pop %v3221
      %v3248 = vrsqrt.pop %v3222
      %v3249 = vmul.f32 %v3041, %v3223
      %v3250 = vmul.f32 %v3042, %v3224
      %v3251 = vmul.f32 %v3043, %v3225
      %v3252 = vmul.f32 %v3044, %v3226
      %v3253 = vmul.f32 %v3045, %v3227
      %v3254 = vmul.f32 %v3046, %v3228
      %v3255 = vmul.f32 %v3047, %v3229
      %v3256 = vmul.f32 %v3048, %v3230
      %v3257 = vmul.f32 %v3049, %v3231
      %v3258 = vmul.f32 %v3050, %v3232
      %v3259 = vmul.f32 %v3051, %v3233
      %v3260 = vmul.f32 %v3052, %v3234
      %v3261 = vmul.f32 %v3053, %v3235
      %v3262 = vmul.f32 %v3054, %v3236
      %v3263 = vmul.f32 %v3055, %v3237
      %v3264 = vmul.f32 %v3056, %v3238
      %v3265 = vmul.f32 %v3057, %v3239
      %v3266 = vmul.f32 %v3058, %v3240
      %v3267 = vmul.f32 %v3059, %v3241
      %v3268 = vmul.f32 %v3060, %v3242
      %v3269 = vmul.f32 %v3061, %v3243
      %v3270 = vmul.f32 %v3062, %v3244
      %v3271 = vmul.f32 %v3063, %v3245
      %v3272 = vmul.f32 %v3064, %v3246
      %v3273 = vmul.f32 %v3065, %v3247
      %v3274 = vmul.f32 %v3066, %v3248
      %v3275 = vlaneseq
      %v3276 = vshrl.u32 %v3275, 7
      %v3277 = vsub.s32 1, %v3276
      %v3278 = vrot.slane %v603, %v3277
      %v3279 = vmul.f32 %v3249, %v3278
      %v3280 = vmul.f32 %v3250, %v3278
      %v3281 = vmul.f32 %v3251, %v3278
      %v3282 = vmul.f32 %v3252, %v3278
      %v3283 = vmul.f32 %v3253, %v3278
      %v3284 = vmul.f32 %v3254, %v3278
      %v3285 = vmul.f32 %v3255, %v3278
      %v3286 = vmul.f32 %v3256, %v3278
      %v3287 = vmul.f32 %v3257, %v3278
      %v3288 = vmul.f32 %v3258, %v3278
      %v3289 = vmul.f32 %v3259, %v3278
      %v3290 = vmul.f32 %v3260, %v3278
      %v3291 = vmul.f32 %v3261, %v3278
      %v3292 = vmul.f32 %v3262, %v3278
      %v3293 = vmul.f32 %v3263, %v3278
      %v3294 = vmul.f32 %v3264, %v3278
      %v3295 = vmul.f32 %v3265, %v3278
      %v3296 = vmul.f32 %v3266, %v3278
      %v3297 = vmul.f32 %v3267, %v3278
      %v3298 = vmul.f32 %v3268, %v3278
      %v3299 = vmul.f32 %v3269, %v3278
      %v3300 = vmul.f32 %v3270, %v3278
      %v3301 = vmul.f32 %v3271, %v3278
      %v3302 = vmul.f32 %v3272, %v3278
      %v3303 = vmul.f32 %v3273, %v3278
      %v3304 = vmul.f32 %v3274, %v3278
      %v3305 = vlaneseq
      %v3306 = vshrl.u32 %v3305, 7
      %v3307 = vsub.s32 1, %v3306
      %v3308 = vrot.slane %v604, %v3307
      %v3309 = vadd.f32 %v3279, %v3308
      %v3310 = vadd.f32 %v3280, %v3308
      %v3311 = vadd.f32 %v3281, %v3308
      %v3312 = vadd.f32 %v3282, %v3308
      %v3313 = vadd.f32 %v3283, %v3308
      %v3314 = vadd.f32 %v3284, %v3308
      %v3315 = vadd.f32 %v3285, %v3308
      %v3316 = vadd.f32 %v3286, %v3308
      %v3317 = vadd.f32 %v3287, %v3308
      %v3318 = vadd.f32 %v3288, %v3308
      %v3319 = vadd.f32 %v3289, %v3308
      %v3320 = vadd.f32 %v3290, %v3308
      %v3321 = vadd.f32 %v3291, %v3308
      %v3322 = vadd.f32 %v3292, %v3308
      %v3323 = vadd.f32 %v3293, %v3308
      %v3324 = vadd.f32 %v3294, %v3308
      %v3325 = vadd.f32 %v3295, %v3308
      %v3326 = vadd.f32 %v3296, %v3308
      %v3327 = vadd.f32 %v3297, %v3308
      %v3328 = vadd.f32 %v3298, %v3308
      %v3329 = vadd.f32 %v3299, %v3308
      %v3330 = vadd.f32 %v3300, %v3308
      %v3331 = vadd.f32 %v3301, %v3308
      %v3332 = vadd.f32 %v3302, %v3308
      %v3333 = vadd.f32 %v3303, %v3308
      %v3334 = vadd.f32 %v3304, %v3308
      %v3335 = vmul.f32 %v3309, 0.5
      %v3336 = vmul.f32 %v3310, 0.5
      %v3337 = vmul.f32 %v3311, 0.5
      %v3338 = vmul.f32 %v3312, 0.5
      %v3339 = vmul.f32 %v3313, 0.5
      %v3340 = vmul.f32 %v3314, 0.5
      %v3341 = vmul.f32 %v3315, 0.5
      %v3342 = vmul.f32 %v3316, 0.5
      %v3343 = vmul.f32 %v3317, 0.5
      %v3344 = vmul.f32 %v3318, 0.5
      %v3345 = vmul.f32 %v3319, 0.5
      %v3346 = vmul.f32 %v3320, 0.5
      %v3347 = vmul.f32 %v3321, 0.5
      %v3348 = vmul.f32 %v3322, 0.5
      %v3349 = vmul.f32 %v3323, 0.5
      %v3350 = vmul.f32 %v3324, 0.5
      %v3351 = vmul.f32 %v3325, 0.5
      %v3352 = vmul.f32 %v3326, 0.5
      %v3353 = vmul.f32 %v3327, 0.5
      %v3354 = vmul.f32 %v3328, 0.5
      %v3355 = vmul.f32 %v3329, 0.5
      %v3356 = vmul.f32 %v3330, 0.5
      %v3357 = vmul.f32 %v3331, 0.5
      %v3358 = vmul.f32 %v3332, 0.5
      %v3359 = vmul.f32 %v3333, 0.5
      %v3360 = vmul.f32 %v3334, 0.5
      %v3361 = vmul.f32 %v3309, 0.044715
      %v3362 = vmul.f32 %v3310, 0.044715
      %v3363 = vmul.f32 %v3311, 0.044715
      %v3364 = vmul.f32 %v3312, 0.044715
      %v3365 = vmul.f32 %v3313, 0.044715
      %v3366 = vmul.f32 %v3314, 0.044715
      %v3367 = vmul.f32 %v3315, 0.044715
      %v3368 = vmul.f32 %v3316, 0.044715
      %v3369 = vmul.f32 %v3317, 0.044715
      %v3370 = vmul.f32 %v3318, 0.044715
      %v3371 = vmul.f32 %v3319, 0.044715
      %v3372 = vmul.f32 %v3320, 0.044715
      %v3373 = vmul.f32 %v3321, 0.044715
      %v3374 = vmul.f32 %v3322, 0.044715
      %v3375 = vmul.f32 %v3323, 0.044715
      %v3376 = vmul.f32 %v3324, 0.044715
      %v3377 = vmul.f32 %v3325, 0.044715
      %v3378 = vmul.f32 %v3326, 0.044715
      %v3379 = vmul.f32 %v3327, 0.044715
      %v3380 = vmul.f32 %v3328, 0.044715
      %v3381 = vmul.f32 %v3329, 0.044715
      %v3382 = vmul.f32 %v3330, 0.044715
      %v3383 = vmul.f32 %v3331, 0.044715
      %v3384 = vmul.f32 %v3332, 0.044715
      %v3385 = vmul.f32 %v3333, 0.044715
      %v3386 = vmul.f32 %v3334, 0.044715
      %v3387 = vmul.f32 %v3361, %v3309
      %v3388 = vmul.f32 %v3362, %v3310
      %v3389 = vmul.f32 %v3363, %v3311
      %v3390 = vmul.f32 %v3364, %v3312
      %v3391 = vmul.f32 %v3365, %v3313
      %v3392 = vmul.f32 %v3366, %v3314
      %v3393 = vmul.f32 %v3367, %v3315
      %v3394 = vmul.f32 %v3368, %v3316
      %v3395 = vmul.f32 %v3369, %v3317
      %v3396 = vmul.f32 %v3370, %v3318
      %v3397 = vmul.f32 %v3371, %v3319
      %v3398 = vmul.f32 %v3372, %v3320
      %v3399 = vmul.f32 %v3373, %v3321
      %v3400 = vmul.f32 %v3374, %v3322
      %v3401 = vmul.f32 %v3375, %v3323
      %v3402 = vmul.f32 %v3376, %v3324
      %v3403 = vmul.f32 %v3377, %v3325
      %v3404 = vmul.f32 %v3378, %v3326
      %v3405 = vmul.f32 %v3379, %v3327
      %v3406 = vmul.f32 %v3380, %v3328
      %v3407 = vmul.f32 %v3381, %v3329
      %v3408 = vmul.f32 %v3382, %v3330
      %v3409 = vmul.f32 %v3383, %v3331
      %v3410 = vmul.f32 %v3384, %v3332
      %v3411 = vmul.f32 %v3385, %v3333
      %v3412 = vmul.f32 %v3386, %v3334
      %v3413 = vmul.f32 %v3387, %v3309
      %v3414 = vmul.f32 %v3388, %v3310
      %v3415 = vmul.f32 %v3389, %v3311
      %v3416 = vmul.f32 %v3390, %v3312
      %v3417 = vmul.f32 %v3391, %v3313
      %v3418 = vmul.f32 %v3392, %v3314
      %v3419 = vmul.f32 %v3393, %v3315
      %v3420 = vmul.f32 %v3394, %v3316
      %v3421 = vmul.f32 %v3395, %v3317
      %v3422 = vmul.f32 %v3396, %v3318
      %v3423 = vmul.f32 %v3397, %v3319
      %v3424 = vmul.f32 %v3398, %v3320
      %v3425 = vmul.f32 %v3399, %v3321
      %v3426 = vmul.f32 %v3400, %v3322
      %v3427 = vmul.f32 %v3401, %v3323
      %v3428 = vmul.f32 %v3402, %v3324
      %v3429 = vmul.f32 %v3403, %v3325
      %v3430 = vmul.f32 %v3404, %v3326
      %v3431 = vmul.f32 %v3405, %v3327
      %v3432 = vmul.f32 %v3406, %v3328
      %v3433 = vmul.f32 %v3407, %v3329
      %v3434 = vmul.f32 %v3408, %v3330
      %v3435 = vmul.f32 %v3409, %v3331
      %v3436 = vmul.f32 %v3410, %v3332
      %v3437 = vmul.f32 %v3411, %v3333
      %v3438 = vmul.f32 %v3412, %v3334
      %v3439 = vadd.f32 %v3309, %v3413
      %v3440 = vadd.f32 %v3310, %v3414
      %v3441 = vadd.f32 %v3311, %v3415
      %v3442 = vadd.f32 %v3312, %v3416
      %v3443 = vadd.f32 %v3313, %v3417
      %v3444 = vadd.f32 %v3314, %v3418
      %v3445 = vadd.f32 %v3315, %v3419
      %v3446 = vadd.f32 %v3316, %v3420
      %v3447 = vadd.f32 %v3317, %v3421
      %v3448 = vadd.f32 %v3318, %v3422
      %v3449 = vadd.f32 %v3319, %v3423
      %v3450 = vadd.f32 %v3320, %v3424
      %v3451 = vadd.f32 %v3321, %v3425
      %v3452 = vadd.f32 %v3322, %v3426
      %v3453 = vadd.f32 %v3323, %v3427
      %v3454 = vadd.f32 %v3324, %v3428
      %v3455 = vadd.f32 %v3325, %v3429
      %v3456 = vadd.f32 %v3326, %v3430
      %v3457 = vadd.f32 %v3327, %v3431
      %v3458 = vadd.f32 %v3328, %v3432
      %v3459 = vadd.f32 %v3329, %v3433
      %v3460 = vadd.f32 %v3330, %v3434
      %v3461 = vadd.f32 %v3331, %v3435
      %v3462 = vadd.f32 %v3332, %v3436
      %v3463 = vadd.f32 %v3333, %v3437
      %v3464 = vadd.f32 %v3334, %v3438
      %v3465 = vmul.f32 %v3439, 0.7978846
      %v3466 = vmul.f32 %v3440, 0.7978846
      %v3467 = vmul.f32 %v3441, 0.7978846
      %v3468 = vmul.f32 %v3442, 0.7978846
      %v3469 = vmul.f32 %v3443, 0.7978846
      %v3470 = vmul.f32 %v3444, 0.7978846
      %v3471 = vmul.f32 %v3445, 0.7978846
      %v3472 = vmul.f32 %v3446, 0.7978846
      %v3473 = vmul.f32 %v3447, 0.7978846
      %v3474 = vmul.f32 %v3448, 0.7978846
      %v3475 = vmul.f32 %v3449, 0.7978846
      %v3476 = vmul.f32 %v3450, 0.7978846
      %v3477 = vmul.f32 %v3451, 0.7978846
      %v3478 = vmul.f32 %v3452, 0.7978846
      %v3479 = vmul.f32 %v3453, 0.7978846
      %v3480 = vmul.f32 %v3454, 0.7978846
      %v3481 = vmul.f32 %v3455, 0.7978846
      %v3482 = vmul.f32 %v3456, 0.7978846
      %v3483 = vmul.f32 %v3457, 0.7978846
      %v3484 = vmul.f32 %v3458, 0.7978846
      %v3485 = vmul.f32 %v3459, 0.7978846
      %v3486 = vmul.f32 %v3460, 0.7978846
      %v3487 = vmul.f32 %v3461, 0.7978846
      %v3488 = vmul.f32 %v3462, 0.7978846
      %v3489 = vmul.f32 %v3463, 0.7978846
      %v3490 = vmul.f32 %v3464, 0.7978846
      %v3491 = vtanh.pop %v3465
      %v3492 = vtanh.pop %v3466
      %v3493 = vtanh.pop %v3467
      %v3494 = vtanh.pop %v3468
      %v3495 = vtanh.pop %v3469
      %v3496 = vtanh.pop %v3470
      %v3497 = vtanh.pop %v3471
      %v3498 = vtanh.pop %v3472
      %v3499 = vtanh.pop %v3473
      %v3500 = vtanh.pop %v3474
      %v3501 = vtanh.pop %v3475
      %v3502 = vtanh.pop %v3476
      %v3503 = vtanh.pop %v3477
      %v3504 = vtanh.pop %v3478
      %v3505 = vtanh.pop %v3479
      %v3506 = vtanh.pop %v3480
      %v3507 = vtanh.pop %v3481
      %v3508 = vtanh.pop %v3482
      %v3509 = vtanh.pop %v3483
      %v3510 = vtanh.pop %v3484
      %v3511 = vtanh.pop %v3485
      %v3512 = vtanh.pop %v3486
      %v3513 = vtanh.pop %v3487
      %v3514 = vtanh.pop %v3488
      %v3515 = vtanh.pop %v3489
      %v3516 = vtanh.pop %v3490
      %v3517 = vadd.f32 %v3491, 1.0
      %v3518 = vadd.f32 %v3492, 1.0
      %v3519 = vadd.f32 %v3493, 1.0
      %v3520 = vadd.f32 %v3494, 1.0
      %v3521 = vadd.f32 %v3495, 1.0
      %v3522 = vadd.f32 %v3496, 1.0
      %v3523 = vadd.f32 %v3497, 1.0
      %v3524 = vadd.f32 %v3498, 1.0
      %v3525 = vadd.f32 %v3499, 1.0
      %v3526 = vadd.f32 %v3500, 1.0
      %v3527 = vadd.f32 %v3501, 1.0
      %v3528 = vadd.f32 %v3502, 1.0
      %v3529 = vadd.f32 %v3503, 1.0
      %v3530 = vadd.f32 %v3504, 1.0
      %v3531 = vadd.f32 %v3505, 1.0
      %v3532 = vadd.f32 %v3506, 1.0
      %v3533 = vadd.f32 %v3507, 1.0
      %v3534 = vadd.f32 %v3508, 1.0
      %v3535 = vadd.f32 %v3509, 1.0
      %v3536 = vadd.f32 %v3510, 1.0
      %v3537 = vadd.f32 %v3511, 1.0
      %v3538 = vadd.f32 %v3512, 1.0
      %v3539 = vadd.f32 %v3513, 1.0
      %v3540 = vadd.f32 %v3514, 1.0
      %v3541 = vadd.f32 %v3515, 1.0
      %v3542 = vadd.f32 %v3516, 1.0
      %v3543 = vmul.f32 %v3335, %v3517
      %v3544 = vmul.f32 %v3336, %v3518
      %v3545 = vmul.f32 %v3337, %v3519
      %v3546 = vmul.f32 %v3338, %v3520
      %v3547 = vmul.f32 %v3339, %v3521
      %v3548 = vmul.f32 %v3340, %v3522
      %v3549 = vmul.f32 %v3341, %v3523
      %v3550 = vmul.f32 %v3342, %v3524
      %v3551 = vmul.f32 %v3343, %v3525
      %v3552 = vmul.f32 %v3344, %v3526
      %v3553 = vmul.f32 %v3345, %v3527
      %v3554 = vmul.f32 %v3346, %v3528
      %v3555 = vmul.f32 %v3347, %v3529
      %v3556 = vmul.f32 %v3348, %v3530
      %v3557 = vmul.f32 %v3349, %v3531
      %v3558 = vmul.f32 %v3350, %v3532
      %v3559 = vmul.f32 %v3351, %v3533
      %v3560 = vmul.f32 %v3352, %v3534
      %v3561 = vmul.f32 %v3353, %v3535
      %v3562 = vmul.f32 %v3354, %v3536
      %v3563 = vmul.f32 %v3355, %v3537
      %v3564 = vmul.f32 %v3356, %v3538
      %v3565 = vmul.f32 %v3357, %v3539
      %v3566 = vmul.f32 %v3358, %v3540
      %v3567 = vmul.f32 %v3359, %v3541
      %v3568 = vmul.f32 %v3360, %v3542
      %3569 = vst.msk [vmem:[#allocation2] sm:$0xff] %vm1016, %v3543
      %3570 = vst.msk [vmem:[#allocation2 + $0x8] sm:$0xff] %vm1016, %v3544
      %3571 = vst.msk [vmem:[#allocation2 + $0x10] sm:$0xff] %vm1016, %v3545
      %3572 = vst.msk [vmem:[#allocation2 + $0x18] sm:$0xff] %vm1016, %v3546
      %3573 = vst.msk [vmem:[#allocation2 + $0x20] sm:$0xff] %vm1016, %v3547
      %3574 = vst.msk [vmem:[#allocation2 + $0x28] sm:$0xff] %vm1016, %v3548
      %3575 = vst.msk [vmem:[#allocation2 + $0x30] sm:$0xff] %vm1016, %v3549
      %3576 = vst.msk [vmem:[#allocation2 + $0x38] sm:$0xff] %vm1016, %v3550
      %3577 = vst.msk [vmem:[#allocation2 + $0x40] sm:$0xff] %vm1016, %v3551
      %3578 = vst.msk [vmem:[#allocation2 + $0x48] sm:$0xff] %vm1016, %v3552
      %3579 = vst.msk [vmem:[#allocation2 + $0x50] sm:$0xff] %vm1016, %v3553
      %3580 = vst.msk [vmem:[#allocation2 + $0x58] sm:$0xff] %vm1016, %v3554
      %3581 = vst.msk [vmem:[#allocation2 + $0x60] sm:$0xff] %vm1016, %v3555
      %3582 = vst.msk [vmem:[#allocation2 + $0x68] sm:$0xff] %vm1016, %v3556
      %3583 = vst.msk [vmem:[#allocation2 + $0x70] sm:$0xff] %vm1016, %v3557
      %3584 = vst.msk [vmem:[#allocation2 + $0x78] sm:$0xff] %vm1016, %v3558
      %3585 = vst.msk [vmem:[#allocation2 + $0x80] sm:$0xff] %vm1016, %v3559
      %3586 = vst.msk [vmem:[#allocation2 + $0x88] sm:$0xff] %vm1016, %v3560
      %3587 = vst.msk [vmem:[#allocation2 + $0x90] sm:$0xff] %vm1016, %v3561
      %3588 = vst.msk [vmem:[#allocation2 + $0x98] sm:$0xff] %vm1016, %v3562
      %3589 = vst.msk [vmem:[#allocation2 + $0xa0] sm:$0xff] %vm1016, %v3563
      %3590 = vst.msk [vmem:[#allocation2 + $0xa8] sm:$0xff] %vm1016, %v3564
      %3591 = vst.msk [vmem:[#allocation2 + $0xb0] sm:$0xff] %vm1016, %v3565
      %3592 = vst.msk [vmem:[#allocation2 + $0xb8] sm:$0xff] %vm1016, %v3566
      %3593 = vst.msk [vmem:[#allocation2 + $0xc0] sm:$0xff] %vm1016, %v3567
      %3594 = vst.msk [vmem:[#allocation2 + $0xc8] sm:$0x7] %vm3011, %v3568
      %v3595 = vld [vmem:[#allocation2] ss:$2 sm:$0xff]
      %v3596 = vld [vmem:[%s2302] ss:$2 sm:$0xff]
      %v3597 = vld [vmem:[%s2304] ss:$2 sm:$0xff]
      %v3598 = vld [vmem:[%s2306] ss:$2 sm:$0xff]
      %v3599 = vld [vmem:[%s2308] ss:$2 sm:$0xff]
      %v3600 = vld [vmem:[%s2310] ss:$2 sm:$0xff]
      %v3601 = vld [vmem:[%s2312] ss:$2 sm:$0xff]
      %v3602 = vld [vmem:[%s2314] ss:$2 sm:$0xff]
      %v3603 = vld [vmem:[%s2316] ss:$2 sm:$0xff]
      %v3604 = vld [vmem:[%s2318] ss:$2 sm:$0xff]
      %v3605 = vld [vmem:[%s2320] ss:$2 sm:$0xff]
      %v3606 = vld [vmem:[%s2322] ss:$2 sm:$0xff]
      %v3607 = vld [vmem:[%s2324] ss:$2 sm:$0x1f]
      %v3608 = vld [vmem:[%s2352] ss:$2 sm:$0xff]
      %v3609 = vld [vmem:[%s2354] ss:$2 sm:$0xff]
      %v3610 = vld [vmem:[%s2356] ss:$2 sm:$0xff]
      %v3611 = vld [vmem:[%s2358] ss:$2 sm:$0xff]
      %v3612 = vld [vmem:[%s2360] ss:$2 sm:$0xff]
      %v3613 = vld [vmem:[%s2362] ss:$2 sm:$0xff]
      %v3614 = vld [vmem:[%s2364] ss:$2 sm:$0xff]
      %v3615 = vld [vmem:[%s2366] ss:$2 sm:$0xff]
      %v3616 = vld [vmem:[%s2368] ss:$2 sm:$0xff]
      %v3617 = vld [vmem:[%s2370] ss:$2 sm:$0xff]
      %v3618 = vld [vmem:[%s2372] ss:$2 sm:$0xff]
      %v3619 = vld [vmem:[%s2374] ss:$2 sm:$0xff]
      %v3620 = vld [vmem:[%s2376] ss:$2 sm:$0x1f]
      %v3621 = vld [vmem:[%s2404] ss:$2 sm:$0xff]
      %v3622 = vld [vmem:[%s2406] ss:$2 sm:$0xff]
      %v3623 = vld [vmem:[%s2408] ss:$2 sm:$0xff]
      %v3624 = vld [vmem:[%s2410] ss:$2 sm:$0xff]
      %v3625 = vld [vmem:[%s2412] ss:$2 sm:$0xff]
      %v3626 = vld [vmem:[%s2414] ss:$2 sm:$0xff]
      %v3627 = vld [vmem:[%s2416] ss:$2 sm:$0xff]
      %v3628 = vld [vmem:[%s2418] ss:$2 sm:$0xff]
      %v3629 = vld [vmem:[%s2420] ss:$2 sm:$0xff]
      %v3630 = vld [vmem:[%s2422] ss:$2 sm:$0xff]
      %v3631 = vld [vmem:[%s2424] ss:$2 sm:$0xff]
      %v3632 = vld [vmem:[%s2426] ss:$2 sm:$0xff]
      %v3633 = vld [vmem:[%s2428] ss:$2 sm:$0x1f]
      %3647 = vrot.lane.b32.xlu0 %v3608, 16
      %v3648 = vpop.permute.xlu0 %3647
      %3649 = vrot.lane.b32.xlu0 %v3609, 16
      %v3650 = vpop.permute.xlu0 %3649
      %3651 = vrot.lane.b32.xlu0 %v3610, 16
      %v3652 = vpop.permute.xlu0 %3651
      %3653 = vrot.lane.b32.xlu0 %v3611, 16
      %v3654 = vpop.permute.xlu0 %3653
      %3655 = vrot.lane.b32.xlu0 %v3612, 16
      %v3656 = vpop.permute.xlu0 %3655
      %3657 = vrot.lane.b32.xlu0 %v3613, 16
      %v3658 = vpop.permute.xlu0 %3657
      %3659 = vrot.lane.b32.xlu0 %v3614, 16
      %v3660 = vpop.permute.xlu0 %3659
      %3661 = vrot.lane.b32.xlu0 %v3615, 16
      %v3662 = vpop.permute.xlu0 %3661
      %3663 = vrot.lane.b32.xlu0 %v3616, 16
      %v3664 = vpop.permute.xlu0 %3663
      %3665 = vrot.lane.b32.xlu0 %v3617, 16
      %v3666 = vpop.permute.xlu0 %3665
      %3667 = vrot.lane.b32.xlu0 %v3618, 16
      %v3668 = vpop.permute.xlu0 %3667
      %3669 = vrot.lane.b32.xlu0 %v3619, 16
      %v3670 = vpop.permute.xlu0 %3669
      %3671 = vrot.lane.b32.xlu0 %v3620, 16
      %v3672 = vpop.permute.xlu0 %3671
      %3699 = vrot.lane.b32.xlu0 %v3621, 32
      %v3700 = vpop.permute.xlu0 %3699
      %3701 = vrot.lane.b32.xlu0 %v3622, 32
      %v3702 = vpop.permute.xlu0 %3701
      %3703 = vrot.lane.b32.xlu0 %v3623, 32
      %v3704 = vpop.permute.xlu0 %3703
      %3705 = vrot.lane.b32.xlu0 %v3624, 32
      %v3706 = vpop.permute.xlu0 %3705
      %3707 = vrot.lane.b32.xlu0 %v3625, 32
      %v3708 = vpop.permute.xlu0 %3707
      %3709 = vrot.lane.b32.xlu0 %v3626, 32
      %v3710 = vpop.permute.xlu0 %3709
      %3711 = vrot.lane.b32.xlu0 %v3627, 32
      %v3712 = vpop.permute.xlu0 %3711
      %3713 = vrot.lane.b32.xlu0 %v3628, 32
      %v3714 = vpop.permute.xlu0 %3713
      %3715 = vrot.lane.b32.xlu0 %v3629, 32
      %v3716 = vpop.permute.xlu0 %3715
      %3717 = vrot.lane.b32.xlu0 %v3630, 32
      %v3718 = vpop.permute.xlu0 %3717
      %3719 = vrot.lane.b32.xlu0 %v3631, 32
      %v3720 = vpop.permute.xlu0 %3719
      %3721 = vrot.lane.b32.xlu0 %v3632, 32
      %v3722 = vpop.permute.xlu0 %3721
      %3723 = vrot.lane.b32.xlu0 %v3633, 32
      %v3724 = vpop.permute.xlu0 %3723
      %v3738 = vsel %vm1016, %v3595, %v3648
      %v3739 = vsel %vm1016, %v3596, %v3650
      %v3740 = vsel %vm1016, %v3597, %v3652
      %v3741 = vsel %vm1016, %v3598, %v3654
      %v3742 = vsel %vm1016, %v3599, %v3656
      %v3743 = vsel %vm1016, %v3600, %v3658
      %v3744 = vsel %vm1016, %v3601, %v3660
      %v3745 = vsel %vm1016, %v3602, %v3662
      %v3746 = vsel %vm1016, %v3603, %v3664
      %v3747 = vsel %vm1016, %v3604, %v3666
      %v3748 = vsel %vm1016, %v3605, %v3668
      %v3749 = vsel %vm1016, %v3606, %v3670
      %v3750 = vsel %vm1016, %v3607, %v3672
      %v3751 = vsel %vm2690, %v3738, %v3700
      %v3752 = vsel %vm2690, %v3739, %v3702
      %v3753 = vsel %vm2690, %v3740, %v3704
      %v3754 = vsel %vm2690, %v3741, %v3706
      %v3755 = vsel %vm2690, %v3742, %v3708
      %v3756 = vsel %vm2690, %v3743, %v3710
      %v3757 = vsel %vm2690, %v3744, %v3712
      %v3758 = vsel %vm2690, %v3745, %v3714
      %v3759 = vsel %vm2690, %v3746, %v3716
      %v3760 = vsel %vm2690, %v3747, %v3718
      %v3761 = vsel %vm2690, %v3748, %v3720
      %v3762 = vsel %vm2690, %v3749, %v3722
      %v3763 = vsel %vm2690, %v3750, %v3724
      %s3764 = scalar_lea.vmem %s1, 48
      %v3765 = vld [vmem:[%s3764] sm:$0xf]
      %v3766 = vld [vmem:[%s3764 + $0x4] sm:$0xf]
      %v3767 = vld [vmem:[%s3764 + $0x8] sm:$0xf]
      %v3768 = vld [vmem:[%s3764 + $0xc] sm:$0xf]
      %v3769 = vld [vmem:[%s3764 + $0x10] sm:$0xf]
      %v3770 = vld [vmem:[%s3764 + $0x14] sm:$0xf]
      %v3771 = vpack.c.bf16 %v3752, %v3751
      %v3772 = vpack.c.bf16 %v3754, %v3753
      %v3773 = vpack.c.bf16 %v3756, %v3755
      %v3774 = vpack.c.bf16 %v3758, %v3757
      %v3775 = vpack.c.bf16 %v3760, %v3759
      %v3776 = vpack.c.bf16 %v3762, %v3761
      %v3777 = vpack.c.bf16 %v3763, %v3763
      %v3778 = vlaneseq
      %v3779 = vshrl.u32 %v3778, 7
      %v3780 = vsub.s32 2, %v3779
      %v3781 = vrot.slane %v602, %v3780
      %v3788 = vunpack.c.l.b16 %v3765
      %v3789 = vunpack.c.l.b16 %v3766
      %v3790 = vunpack.c.l.b16 %v3767
      %v3791 = vunpack.c.l.b16 %v3768
      %v3792 = vunpack.c.l.b16 %v3769
      %v3793 = vunpack.c.l.b16 %v3770
      %v3794 = vpack.c.b16 %v3789, %v3788
      %v3795 = vpack.c.b16 %v3791, %v3790
      %v3796 = vpack.c.b16 %v3793, %v3792
      %v3801 = vsel %vm2759, %v3771, 0
      %v3804 = vsel %vm2759, %v3772, 0
      %v3807 = vsel %vm2759, %v3773, 0
      %v3810 = vsel %vm2759, %v3774, 0
      %v3813 = vsel %vm2759, %v3775, 0
      %v3816 = vsel %vm2759, %v3776, 0
      %v3819 = vsel %vm2759, %v3777, 0
      %3821 = vmatprep.subr.bf16.mxu0 0
      %3822 = vmatpush1.bf16.msra.mxu0 %v3794
      %3823 = vmatprep.subr.bf16.mxu0 0
      %3824 = vmatpush1.bf16.msra.mxu0 %v3795
      %3825 = vmatprep.subr.bf16.mxu0 0
      %3826 = vmatpush1.bf16.msra.mxu0 %v3796
      %3827 = vmatprep.subr.bf16.mxu0 0
      %3828 = vmatpush1.bf16.msra.mxu0 0
      %3829 = vmatprep.subr.bf16.mxu0 0
      %3830 = vmatpush1.bf16.msra.mxu0 0
      %3831 = vmatprep.subr.bf16.mxu0 0
      %3832 = vmatpush1.bf16.msra.mxu0 0
      %3833 = vmatprep.subr.bf16.mxu0 0
      %3834 = vmatpush1.bf16.msra.mxu0 0
      %3835 = vmatprep.subr.bf16.mxu0 0
      %3836 = vmatpush1.bf16.msra.mxu0 0
      %3837 = vmatprep.subr.bf16.mxu0 0
      %3838 = vmatpush1.bf16.msra.mxu0 0
      %3839 = vmatprep.subr.bf16.mxu0 0
      %3840 = vmatpush1.bf16.msra.mxu0 0
      %3841 = vmatprep.subr.bf16.mxu0 0
      %3842 = vmatpush1.bf16.msra.mxu0 0
      %3843 = vmatprep.subr.bf16.mxu0 0
      %3844 = vmatpush1.bf16.msra.mxu0 0
      %3845 = vmatprep.subr.bf16.mxu0 0
      %3846 = vmatpush1.bf16.msra.mxu0 0
      %3847 = vmatprep.subr.bf16.mxu0 0
      %3848 = vmatpush1.bf16.msra.mxu0 0
      %3849 = vmatprep.subr.bf16.mxu0 0
      %3850 = vmatpush1.bf16.msra.mxu0 0
      %3851 = vmatprep.subr.bf16.mxu0 0
      %3852 = vmatpush1.bf16.msra.mxu0 0
      %3853 = vmatprep.mubr.bf16.mxu0 0
      %3854 = vmatmul.mubr.bf16.gmra.mrb[0].mxu0 %v3801
      %v3855 = vpop.f32.mrb[0].mxu0
      %v3856 = vadd.f32 %v3781, %v3855
      %v3857 = vpop.f32.mrb[0].mxu0
      %v3858 = vpop.f32.mrb[0].mxu0
      %v3859 = vadd.f32 %v3781, %v3858
      %v3860 = vpop.f32.mrb[0].mxu0
      %3861 = vmatprep.mubr.bf16.mxu0 0
      %3862 = vmatmul.mubr.bf16.gmra.mrb[0].mxu0 %v3804
      %v3863 = vpop.f32.mrb[0].mxu0
      %v3864 = vadd.f32 %v3781, %v3863
      %v3865 = vpop.f32.mrb[0].mxu0
      %v3866 = vpop.f32.mrb[0].mxu0
      %v3867 = vadd.f32 %v3781, %v3866
      %v3868 = vpop.f32.mrb[0].mxu0
      %3869 = vmatprep.mubr.bf16.mxu0 0
      %3870 = vmatmul.mubr.bf16.gmra.mrb[0].mxu0 %v3807
      %v3871 = vpop.f32.mrb[0].mxu0
      %v3872 = vadd.f32 %v3781, %v3871
      %v3873 = vpop.f32.mrb[0].mxu0
      %v3874 = vpop.f32.mrb[0].mxu0
      %v3875 = vadd.f32 %v3781, %v3874
      %v3876 = vpop.f32.mrb[0].mxu0
      %3877 = vmatprep.mubr.bf16.mxu0 0
      %3878 = vmatmul.mubr.bf16.gmra.mrb[0].mxu0 %v3810
      %v3879 = vpop.f32.mrb[0].mxu0
      %v3880 = vadd.f32 %v3781, %v3879
      %v3881 = vpop.f32.mrb[0].mxu0
      %v3882 = vpop.f32.mrb[0].mxu0
      %v3883 = vadd.f32 %v3781, %v3882
      %v3884 = vpop.f32.mrb[0].mxu0
      %3885 = vmatprep.mubr.bf16.mxu0 0
      %3886 = vmatmul.mubr.bf16.gmra.mrb[0].mxu0 %v3813
      %v3887 = vpop.f32.mrb[0].mxu0
      %v3888 = vadd.f32 %v3781, %v3887
      %v3889 = vpop.f32.mrb[0].mxu0
      %v3890 = vpop.f32.mrb[0].mxu0
      %v3891 = vadd.f32 %v3781, %v3890
      %v3892 = vpop.f32.mrb[0].mxu0
      %3893 = vmatprep.mubr.bf16.mxu0 0
      %3894 = vmatmul.mubr.bf16.gmra.mrb[0].mxu0 %v3816
      %v3895 = vpop.f32.mrb[0].mxu0
      %v3896 = vadd.f32 %v3781, %v3895
      %v3897 = vpop.f32.mrb[0].mxu0
      %v3898 = vpop.f32.mrb[0].mxu0
      %v3899 = vadd.f32 %v3781, %v3898
      %v3900 = vpop.f32.mrb[0].mxu0
      %3901 = vmatprep.mubr.bf16.mxu0 0
      %3902 = vmatmul.mubr.bf16.gmra.mrb[0].mxu0 %v3819
      %v3903 = vpop.f32.mrb[0].mxu0
      %v3904 = vadd.f32 %v3781, %v3903
      %v3905 = vpop.f32.mrb[0].mxu0
      %v3906 = vpop.f32.mrb[0].mxu0
      %v3907 = vpop.f32.mrb[0].mxu0
      %3908 = vdwg.mxu0
      %v3909 = vsel %vm1016, %v3856, 0.0
      %3910 = vadd.xlane.f32.xlu0 %v3909
      %v3911 = vpop.xlane.xlu0 %3910
      %v3912 = vsel %vm1016, %v3859, 0.0
      %3913 = vadd.xlane.f32.xlu0 %v3912
      %v3914 = vpop.xlane.xlu0 %3913
      %v3915 = vsel %vm1016, %v3864, 0.0
      %3916 = vadd.xlane.f32.xlu0 %v3915
      %v3917 = vpop.xlane.xlu0 %3916
      %v3918 = vsel %vm1016, %v3867, 0.0
      %3919 = vadd.xlane.f32.xlu0 %v3918
      %v3920 = vpop.xlane.xlu0 %3919
      %v3921 = vsel %vm1016, %v3872, 0.0
      %3922 = vadd.xlane.f32.xlu0 %v3921
      %v3923 = vpop.xlane.xlu0 %3922
      %v3924 = vsel %vm1016, %v3875, 0.0
      %3925 = vadd.xlane.f32.xlu0 %v3924
      %v3926 = vpop.xlane.xlu0 %3925
      %v3927 = vsel %vm1016, %v3880, 0.0
      %3928 = vadd.xlane.f32.xlu0 %v3927
      %v3929 = vpop.xlane.xlu0 %3928
      %v3930 = vsel %vm1016, %v3883, 0.0
      %3931 = vadd.xlane.f32.xlu0 %v3930
      %v3932 = vpop.xlane.xlu0 %3931
      %v3933 = vsel %vm1016, %v3888, 0.0
      %3934 = vadd.xlane.f32.xlu0 %v3933
      %v3935 = vpop.xlane.xlu0 %3934
      %v3936 = vsel %vm1016, %v3891, 0.0
      %3937 = vadd.xlane.f32.xlu0 %v3936
      %v3938 = vpop.xlane.xlu0 %3937
      %v3939 = vsel %vm1016, %v3896, 0.0
      %3940 = vadd.xlane.f32.xlu0 %v3939
      %v3941 = vpop.xlane.xlu0 %3940
      %v3942 = vsel %vm1016, %v3899, 0.0
      %3943 = vadd.xlane.f32.xlu0 %v3942
      %v3944 = vpop.xlane.xlu0 %3943
      %vm3945 = vcmask 126976
      %v3946 = vsel %vm3945, %v3904, 0.0
      %3947 = vadd.xlane.f32.xlu0 %v3946
      %v3948 = vpop.xlane.xlu0 %3947
      %v3949 = vmul.f32 %v3911, %v1170
      %v3950 = vmul.f32 %v3914, %v1170
      %v3951 = vmul.f32 %v3917, %v1170
      %v3952 = vmul.f32 %v3920, %v1170
      %v3953 = vmul.f32 %v3923, %v1170
      %v3954 = vmul.f32 %v3926, %v1170
      %v3955 = vmul.f32 %v3929, %v1170
      %v3956 = vmul.f32 %v3932, %v1170
      %v3957 = vmul.f32 %v3935, %v1170
      %v3958 = vmul.f32 %v3938, %v1170
      %v3959 = vmul.f32 %v3941, %v1170
      %v3960 = vmul.f32 %v3944, %v1170
      %v3961 = vmul.f32 %v3948, %v1170
      %v3962 = vsub.f32 %v3856, %v3949
      %v3963 = vsub.f32 %v3859, %v3950
      %v3964 = vsub.f32 %v3864, %v3951
      %v3965 = vsub.f32 %v3867, %v3952
      %v3966 = vsub.f32 %v3872, %v3953
      %v3967 = vsub.f32 %v3875, %v3954
      %v3968 = vsub.f32 %v3880, %v3955
      %v3969 = vsub.f32 %v3883, %v3956
      %v3970 = vsub.f32 %v3888, %v3957
      %v3971 = vsub.f32 %v3891, %v3958
      %v3972 = vsub.f32 %v3896, %v3959
      %v3973 = vsub.f32 %v3899, %v3960
      %v3974 = vsub.f32 %v3904, %v3961
      %v3975 = vmul.f32 %v3962, %v3962
      %v3976 = vmul.f32 %v3963, %v3963
      %v3977 = vmul.f32 %v3964, %v3964
      %v3978 = vmul.f32 %v3965, %v3965
      %v3979 = vmul.f32 %v3966, %v3966
      %v3980 = vmul.f32 %v3967, %v3967
      %v3981 = vmul.f32 %v3968, %v3968
      %v3982 = vmul.f32 %v3969, %v3969
      %v3983 = vmul.f32 %v3970, %v3970
      %v3984 = vmul.f32 %v3971, %v3971
      %v3985 = vmul.f32 %v3972, %v3972
      %v3986 = vmul.f32 %v3973, %v3973
      %v3987 = vmul.f32 %v3974, %v3974
      %v3988 = vsel %vm1016, %v3975, 0.0
      %3989 = vadd.xlane.f32.xlu0 %v3988
      %v3990 = vpop.xlane.xlu0 %3989
      %v3991 = vsel %vm1016, %v3976, 0.0
      %3992 = vadd.xlane.f32.xlu0 %v3991
      %v3993 = vpop.xlane.xlu0 %3992
      %v3994 = vsel %vm1016, %v3977, 0.0
      %3995 = vadd.xlane.f32.xlu0 %v3994
      %v3996 = vpop.xlane.xlu0 %3995
      %v3997 = vsel %vm1016, %v3978, 0.0
      %3998 = vadd.xlane.f32.xlu0 %v3997
      %v3999 = vpop.xlane.xlu0 %3998
      %v4000 = vsel %vm1016, %v3979, 0.0
      %4001 = vadd.xlane.f32.xlu0 %v4000
      %v4002 = vpop.xlane.xlu0 %4001
      %v4003 = vsel %vm1016, %v3980, 0.0
      %4004 = vadd.xlane.f32.xlu0 %v4003
      %v4005 = vpop.xlane.xlu0 %4004
      %v4006 = vsel %vm1016, %v3981, 0.0
      %4007 = vadd.xlane.f32.xlu0 %v4006
      %v4008 = vpop.xlane.xlu0 %4007
      %v4009 = vsel %vm1016, %v3982, 0.0
      %4010 = vadd.xlane.f32.xlu0 %v4009
      %v4011 = vpop.xlane.xlu0 %4010
      %v4012 = vsel %vm1016, %v3983, 0.0
      %4013 = vadd.xlane.f32.xlu0 %v4012
      %v4014 = vpop.xlane.xlu0 %4013
      %v4015 = vsel %vm1016, %v3984, 0.0
      %4016 = vadd.xlane.f32.xlu0 %v4015
      %v4017 = vpop.xlane.xlu0 %4016
      %v4018 = vsel %vm1016, %v3985, 0.0
      %4019 = vadd.xlane.f32.xlu0 %v4018
      %v4020 = vpop.xlane.xlu0 %4019
      %v4021 = vsel %vm1016, %v3986, 0.0
      %4022 = vadd.xlane.f32.xlu0 %v4021
      %v4023 = vpop.xlane.xlu0 %4022
      %v4024 = vsel %vm3945, %v3987, 0.0
      %4025 = vadd.xlane.f32.xlu0 %v4024
      %v4026 = vpop.xlane.xlu0 %4025
      %v4027 = vmul.f32 %v3990, %v1170
      %v4028 = vmul.f32 %v3993, %v1170
      %v4029 = vmul.f32 %v3996, %v1170
      %v4030 = vmul.f32 %v3999, %v1170
      %v4031 = vmul.f32 %v4002, %v1170
      %v4032 = vmul.f32 %v4005, %v1170
      %v4033 = vmul.f32 %v4008, %v1170
      %v4034 = vmul.f32 %v4011, %v1170
      %v4035 = vmul.f32 %v4014, %v1170
      %v4036 = vmul.f32 %v4017, %v1170
      %v4037 = vmul.f32 %v4020, %v1170
      %v4038 = vmul.f32 %v4023, %v1170
      %v4039 = vmul.f32 %v4026, %v1170
      %v4040 = vadd.f32 %v4027, 1e-05
      %v4041 = vadd.f32 %v4028, 1e-05
      %v4042 = vadd.f32 %v4029, 1e-05
      %v4043 = vadd.f32 %v4030, 1e-05
      %v4044 = vadd.f32 %v4031, 1e-05
      %v4045 = vadd.f32 %v4032, 1e-05
      %v4046 = vadd.f32 %v4033, 1e-05
      %v4047 = vadd.f32 %v4034, 1e-05
      %v4048 = vadd.f32 %v4035, 1e-05
      %v4049 = vadd.f32 %v4036, 1e-05
      %v4050 = vadd.f32 %v4037, 1e-05
      %v4051 = vadd.f32 %v4038, 1e-05
      %v4052 = vadd.f32 %v4039, 1e-05
      %v4053 = vrsqrt.pop %v4040
      %v4054 = vrsqrt.pop %v4041
      %v4055 = vrsqrt.pop %v4042
      %v4056 = vrsqrt.pop %v4043
      %v4057 = vrsqrt.pop %v4044
      %v4058 = vrsqrt.pop %v4045
      %v4059 = vrsqrt.pop %v4046
      %v4060 = vrsqrt.pop %v4047
      %v4061 = vrsqrt.pop %v4048
      %v4062 = vrsqrt.pop %v4049
      %v4063 = vrsqrt.pop %v4050
      %v4064 = vrsqrt.pop %v4051
      %v4065 = vrsqrt.pop %v4052
      %v4066 = vmul.f32 %v3962, %v4053
      %v4067 = vmul.f32 %v3963, %v4054
      %v4068 = vmul.f32 %v3964, %v4055
      %v4069 = vmul.f32 %v3965, %v4056
      %v4070 = vmul.f32 %v3966, %v4057
      %v4071 = vmul.f32 %v3967, %v4058
      %v4072 = vmul.f32 %v3968, %v4059
      %v4073 = vmul.f32 %v3969, %v4060
      %v4074 = vmul.f32 %v3970, %v4061
      %v4075 = vmul.f32 %v3971, %v4062
      %v4076 = vmul.f32 %v3972, %v4063
      %v4077 = vmul.f32 %v3973, %v4064
      %v4078 = vmul.f32 %v3974, %v4065
      %v4079 = vlaneseq
      %v4080 = vshrl.u32 %v4079, 7
      %v4081 = vsub.s32 2, %v4080
      %v4082 = vrot.slane %v603, %v4081
      %v4083 = vmul.f32 %v4066, %v4082
      %v4084 = vmul.f32 %v4067, %v4082
      %v4085 = vmul.f32 %v4068, %v4082
      %v4086 = vmul.f32 %v4069, %v4082
      %v4087 = vmul.f32 %v4070, %v4082
      %v4088 = vmul.f32 %v4071, %v4082
      %v4089 = vmul.f32 %v4072, %v4082
      %v4090 = vmul.f32 %v4073, %v4082
      %v4091 = vmul.f32 %v4074, %v4082
      %v4092 = vmul.f32 %v4075, %v4082
      %v4093 = vmul.f32 %v4076, %v4082
      %v4094 = vmul.f32 %v4077, %v4082
      %v4095 = vmul.f32 %v4078, %v4082
      %v4096 = vlaneseq
      %v4097 = vshrl.u32 %v4096, 7
      %v4098 = vsub.s32 2, %v4097
      %v4099 = vrot.slane %v604, %v4098
      %v4100 = vadd.f32 %v4083, %v4099
      %v4101 = vadd.f32 %v4084, %v4099
      %v4102 = vadd.f32 %v4085, %v4099
      %v4103 = vadd.f32 %v4086, %v4099
      %v4104 = vadd.f32 %v4087, %v4099
      %v4105 = vadd.f32 %v4088, %v4099
      %v4106 = vadd.f32 %v4089, %v4099
      %v4107 = vadd.f32 %v4090, %v4099
      %v4108 = vadd.f32 %v4091, %v4099
      %v4109 = vadd.f32 %v4092, %v4099
      %v4110 = vadd.f32 %v4093, %v4099
      %v4111 = vadd.f32 %v4094, %v4099
      %v4112 = vadd.f32 %v4095, %v4099
      %v4113 = vmul.f32 %v4100, 0.5
      %v4114 = vmul.f32 %v4101, 0.5
      %v4115 = vmul.f32 %v4102, 0.5
      %v4116 = vmul.f32 %v4103, 0.5
      %v4117 = vmul.f32 %v4104, 0.5
      %v4118 = vmul.f32 %v4105, 0.5
      %v4119 = vmul.f32 %v4106, 0.5
      %v4120 = vmul.f32 %v4107, 0.5
      %v4121 = vmul.f32 %v4108, 0.5
      %v4122 = vmul.f32 %v4109, 0.5
      %v4123 = vmul.f32 %v4110, 0.5
      %v4124 = vmul.f32 %v4111, 0.5
      %v4125 = vmul.f32 %v4112, 0.5
      %v4126 = vmul.f32 %v4100, 0.044715
      %v4127 = vmul.f32 %v4101, 0.044715
      %v4128 = vmul.f32 %v4102, 0.044715
      %v4129 = vmul.f32 %v4103, 0.044715
      %v4130 = vmul.f32 %v4104, 0.044715
      %v4131 = vmul.f32 %v4105, 0.044715
      %v4132 = vmul.f32 %v4106, 0.044715
      %v4133 = vmul.f32 %v4107, 0.044715
      %v4134 = vmul.f32 %v4108, 0.044715
      %v4135 = vmul.f32 %v4109, 0.044715
      %v4136 = vmul.f32 %v4110, 0.044715
      %v4137 = vmul.f32 %v4111, 0.044715
      %v4138 = vmul.f32 %v4112, 0.044715
      %v4139 = vmul.f32 %v4126, %v4100
      %v4140 = vmul.f32 %v4127, %v4101
      %v4141 = vmul.f32 %v4128, %v4102
      %v4142 = vmul.f32 %v4129, %v4103
      %v4143 = vmul.f32 %v4130, %v4104
      %v4144 = vmul.f32 %v4131, %v4105
      %v4145 = vmul.f32 %v4132, %v4106
      %v4146 = vmul.f32 %v4133, %v4107
      %v4147 = vmul.f32 %v4134, %v4108
      %v4148 = vmul.f32 %v4135, %v4109
      %v4149 = vmul.f32 %v4136, %v4110
      %v4150 = vmul.f32 %v4137, %v4111
      %v4151 = vmul.f32 %v4138, %v4112
      %v4152 = vmul.f32 %v4139, %v4100
      %v4153 = vmul.f32 %v4140, %v4101
      %v4154 = vmul.f32 %v4141, %v4102
      %v4155 = vmul.f32 %v4142, %v4103
      %v4156 = vmul.f32 %v4143, %v4104
      %v4157 = vmul.f32 %v4144, %v4105
      %v4158 = vmul.f32 %v4145, %v4106
      %v4159 = vmul.f32 %v4146, %v4107
      %v4160 = vmul.f32 %v4147, %v4108
      %v4161 = vmul.f32 %v4148, %v4109
      %v4162 = vmul.f32 %v4149, %v4110
      %v4163 = vmul.f32 %v4150, %v4111
      %v4164 = vmul.f32 %v4151, %v4112
      %v4165 = vadd.f32 %v4100, %v4152
      %v4166 = vadd.f32 %v4101, %v4153
      %v4167 = vadd.f32 %v4102, %v4154
      %v4168 = vadd.f32 %v4103, %v4155
      %v4169 = vadd.f32 %v4104, %v4156
      %v4170 = vadd.f32 %v4105, %v4157
      %v4171 = vadd.f32 %v4106, %v4158
      %v4172 = vadd.f32 %v4107, %v4159
      %v4173 = vadd.f32 %v4108, %v4160
      %v4174 = vadd.f32 %v4109, %v4161
      %v4175 = vadd.f32 %v4110, %v4162
      %v4176 = vadd.f32 %v4111, %v4163
      %v4177 = vadd.f32 %v4112, %v4164
      %v4178 = vmul.f32 %v4165, 0.7978846
      %v4179 = vmul.f32 %v4166, 0.7978846
      %v4180 = vmul.f32 %v4167, 0.7978846
      %v4181 = vmul.f32 %v4168, 0.7978846
      %v4182 = vmul.f32 %v4169, 0.7978846
      %v4183 = vmul.f32 %v4170, 0.7978846
      %v4184 = vmul.f32 %v4171, 0.7978846
      %v4185 = vmul.f32 %v4172, 0.7978846
      %v4186 = vmul.f32 %v4173, 0.7978846
      %v4187 = vmul.f32 %v4174, 0.7978846
      %v4188 = vmul.f32 %v4175, 0.7978846
      %v4189 = vmul.f32 %v4176, 0.7978846
      %v4190 = vmul.f32 %v4177, 0.7978846
      %v4191 = vtanh.pop %v4178
      %v4192 = vtanh.pop %v4179
      %v4193 = vtanh.pop %v4180
      %v4194 = vtanh.pop %v4181
      %v4195 = vtanh.pop %v4182
      %v4196 = vtanh.pop %v4183
      %v4197 = vtanh.pop %v4184
      %v4198 = vtanh.pop %v4185
      %v4199 = vtanh.pop %v4186
      %v4200 = vtanh.pop %v4187
      %v4201 = vtanh.pop %v4188
      %v4202 = vtanh.pop %v4189
      %v4203 = vtanh.pop %v4190
      %v4204 = vadd.f32 %v4191, 1.0
      %v4205 = vadd.f32 %v4192, 1.0
      %v4206 = vadd.f32 %v4193, 1.0
      %v4207 = vadd.f32 %v4194, 1.0
      %v4208 = vadd.f32 %v4195, 1.0
      %v4209 = vadd.f32 %v4196, 1.0
      %v4210 = vadd.f32 %v4197, 1.0
      %v4211 = vadd.f32 %v4198, 1.0
      %v4212 = vadd.f32 %v4199, 1.0
      %v4213 = vadd.f32 %v4200, 1.0
      %v4214 = vadd.f32 %v4201, 1.0
      %v4215 = vadd.f32 %v4202, 1.0
      %v4216 = vadd.f32 %v4203, 1.0
      %v4217 = vmul.f32 %v4113, %v4204
      %v4218 = vmul.f32 %v4114, %v4205
      %v4219 = vmul.f32 %v4115, %v4206
      %v4220 = vmul.f32 %v4116, %v4207
      %v4221 = vmul.f32 %v4117, %v4208
      %v4222 = vmul.f32 %v4118, %v4209
      %v4223 = vmul.f32 %v4119, %v4210
      %v4224 = vmul.f32 %v4120, %v4211
      %v4225 = vmul.f32 %v4121, %v4212
      %v4226 = vmul.f32 %v4122, %v4213
      %v4227 = vmul.f32 %v4123, %v4214
      %v4228 = vmul.f32 %v4124, %v4215
      %v4229 = vmul.f32 %v4125, %v4216
      %4230 = vst.msk [vmem:[#allocation2] sm:$0xff] %vm1016, %v4217
      %4231 = vst.msk [vmem:[#allocation2 + $0x8] sm:$0xff] %vm1016, %v4218
      %4232 = vst.msk [vmem:[#allocation2 + $0x10] sm:$0xff] %vm1016, %v4219
      %4233 = vst.msk [vmem:[#allocation2 + $0x18] sm:$0xff] %vm1016, %v4220
      %4234 = vst.msk [vmem:[#allocation2 + $0x20] sm:$0xff] %vm1016, %v4221
      %4235 = vst.msk [vmem:[#allocation2 + $0x28] sm:$0xff] %vm1016, %v4222
      %4236 = vst.msk [vmem:[#allocation2 + $0x30] sm:$0xff] %vm1016, %v4223
      %4237 = vst.msk [vmem:[#allocation2 + $0x38] sm:$0xff] %vm1016, %v4224
      %4238 = vst.msk [vmem:[#allocation2 + $0x40] sm:$0xff] %vm1016, %v4225
      %4239 = vst.msk [vmem:[#allocation2 + $0x48] sm:$0xff] %vm1016, %v4226
      %4240 = vst.msk [vmem:[#allocation2 + $0x50] sm:$0xff] %vm1016, %v4227
      %4241 = vst.msk [vmem:[#allocation2 + $0x58] sm:$0xff] %vm1016, %v4228
      %4242 = vst.msk [vmem:[#allocation2 + $0x60] sm:$0x1f] %vm3945, %v4229
      %v4243 = vld [vmem:[#allocation2] ss:$2 sm:$0xff]
      %v4244 = vld [vmem:[%s2302] ss:$2 sm:$0xff]
      %v4245 = vld [vmem:[%s2304] ss:$2 sm:$0xff]
      %v4246 = vld [vmem:[%s2306] ss:$2 sm:$0xff]
      %v4247 = vld [vmem:[%s2308] ss:$2 sm:$0xff]
      %v4248 = vld [vmem:[%s2310] ss:$2 sm:$0xff]
      %v4249 = vld [vmem:[%s2312] ss:$2 sm:$0x3]
      %v4250 = vld [vmem:[%s2352] ss:$2 sm:$0xff]
      %v4251 = vld [vmem:[%s2354] ss:$2 sm:$0xff]
      %v4252 = vld [vmem:[%s2356] ss:$2 sm:$0xff]
      %v4253 = vld [vmem:[%s2358] ss:$2 sm:$0xff]
      %v4254 = vld [vmem:[%s2360] ss:$2 sm:$0xff]
      %v4255 = vld [vmem:[%s2362] ss:$2 sm:$0xff]
      %v4256 = vld [vmem:[%s2364] ss:$2 sm:$0x3]
      %v4257 = vld [vmem:[%s2404] ss:$2 sm:$0xff]
      %v4258 = vld [vmem:[%s2406] ss:$2 sm:$0xff]
      %v4259 = vld [vmem:[%s2408] ss:$2 sm:$0xff]
      %v4260 = vld [vmem:[%s2410] ss:$2 sm:$0xff]
      %v4261 = vld [vmem:[%s2412] ss:$2 sm:$0xff]
      %v4262 = vld [vmem:[%s2414] ss:$2 sm:$0xff]
      %v4263 = vld [vmem:[%s2416] ss:$2 sm:$0x3]
      %4271 = vrot.lane.b32.xlu0 %v4250, 16
      %v4272 = vpop.permute.xlu0 %4271
      %4273 = vrot.lane.b32.xlu0 %v4251, 16
      %v4274 = vpop.permute.xlu0 %4273
      %4275 = vrot.lane.b32.xlu0 %v4252, 16
      %v4276 = vpop.permute.xlu0 %4275
      %4277 = vrot.lane.b32.xlu0 %v4253, 16
      %v4278 = vpop.permute.xlu0 %4277
      %4279 = vrot.lane.b32.xlu0 %v4254, 16
      %v4280 = vpop.permute.xlu0 %4279
      %4281 = vrot.lane.b32.xlu0 %v4255, 16
      %v4282 = vpop.permute.xlu0 %4281
      %4283 = vrot.lane.b32.xlu0 %v4256, 16
      %v4284 = vpop.permute.xlu0 %4283
      %4299 = vrot.lane.b32.xlu0 %v4257, 32
      %v4300 = vpop.permute.xlu0 %4299
      %4301 = vrot.lane.b32.xlu0 %v4258, 32
      %v4302 = vpop.permute.xlu0 %4301
      %4303 = vrot.lane.b32.xlu0 %v4259, 32
      %v4304 = vpop.permute.xlu0 %4303
      %4305 = vrot.lane.b32.xlu0 %v4260, 32
      %v4306 = vpop.permute.xlu0 %4305
      %4307 = vrot.lane.b32.xlu0 %v4261, 32
      %v4308 = vpop.permute.xlu0 %4307
      %4309 = vrot.lane.b32.xlu0 %v4262, 32
      %v4310 = vpop.permute.xlu0 %4309
      %4311 = vrot.lane.b32.xlu0 %v4263, 32
      %v4312 = vpop.permute.xlu0 %4311
      %v4320 = vsel %vm1016, %v4243, %v4272
      %v4321 = vsel %vm1016, %v4244, %v4274
      %v4322 = vsel %vm1016, %v4245, %v4276
      %v4323 = vsel %vm1016, %v4246, %v4278
      %v4324 = vsel %vm1016, %v4247, %v4280
      %v4325 = vsel %vm1016, %v4248, %v4282
      %v4326 = vsel %vm1016, %v4249, %v4284
      %v4327 = vsel %vm2690, %v4320, %v4300
      %v4328 = vsel %vm2690, %v4321, %v4302
      %v4329 = vsel %vm2690, %v4322, %v4304
      %v4330 = vsel %vm2690, %v4323, %v4306
      %v4331 = vsel %vm2690, %v4324, %v4308
      %v4332 = vsel %vm2690, %v4325, %v4310
      %v4333 = vsel %vm2690, %v4326, %v4312
      %s4334 = scalar_lea.vmem %s1, 72
      %v4335 = vld [vmem:[%s4334] sm:$0xf]
      %v4336 = vld [vmem:[%s4334 + $0x4] sm:$0xf]
      %v4337 = vld [vmem:[%s4334 + $0x8] sm:$0xf]
      %v4338 = vld [vmem:[%s4334 + $0xc] sm:$0xf]
      %v4339 = vld [vmem:[%s4334 + $0x10] sm:$0xf]
      %v4340 = vld [vmem:[%s4334 + $0x14] sm:$0xf]
      %v4341 = vpack.c.bf16 %v4328, %v4327
      %v4342 = vpack.c.bf16 %v4330, %v4329
      %v4343 = vpack.c.bf16 %v4332, %v4331
      %v4344 = vpack.c.bf16 %v4333, %v4333
      %v4345 = vlaneseq
      %v4346 = vshrl.u32 %v4345, 7
      %v4347 = vsub.s32 3, %v4346
      %v4348 = vrot.slane %v602, %v4347
      %v4355 = vunpack.c.l.b16 %v4335
      %v4356 = vunpack.c.l.b16 %v4336
      %v4357 = vunpack.c.l.b16 %v4337
      %v4358 = vunpack.c.l.b16 %v4338
      %v4359 = vunpack.c.l.b16 %v4339
      %v4360 = vunpack.c.l.b16 %v4340
      %v4361 = vpack.c.b16 %v4356, %v4355
      %v4362 = vpack.c.b16 %v4358, %v4357
      %v4363 = vpack.c.b16 %v4360, %v4359
      %v4368 = vsel %vm2759, %v4341, 0
      %v4371 = vsel %vm2759, %v4342, 0
      %v4374 = vsel %vm2759, %v4343, 0
      %v4377 = vsel %vm2759, %v4344, 0
      %4379 = vmatprep.subr.bf16.mxu0 0
      %4380 = vmatpush1.bf16.msra.mxu0 %v4361
      %4381 = vmatprep.subr.bf16.mxu0 0
      %4382 = vmatpush1.bf16.msra.mxu0 %v4362
      %4383 = vmatprep.subr.bf16.mxu0 0
      %4384 = vmatpush1.bf16.msra.mxu0 %v4363
      %4385 = vmatprep.subr.bf16.mxu0 0
      %4386 = vmatpush1.bf16.msra.mxu0 0
      %4387 = vmatprep.subr.bf16.mxu0 0
      %4388 = vmatpush1.bf16.msra.mxu0 0
      %4389 = vmatprep.subr.bf16.mxu0 0
      %4390 = vmatpush1.bf16.msra.mxu0 0
      %4391 = vmatprep.subr.bf16.mxu0 0
      %4392 = vmatpush1.bf16.msra.mxu0 0
      %4393 = vmatprep.subr.bf16.mxu0 0
      %4394 = vmatpush1.bf16.msra.mxu0 0
      %4395 = vmatprep.subr.bf16.mxu0 0
      %4396 = vmatpush1.bf16.msra.mxu0 0
      %4397 = vmatprep.subr.bf16.mxu0 0
      %4398 = vmatpush1.bf16.msra.mxu0 0
      %4399 = vmatprep.subr.bf16.mxu0 0
      %4400 = vmatpush1.bf16.msra.mxu0 0
      %4401 = vmatprep.subr.bf16.mxu0 0
      %4402 = vmatpush1.bf16.msra.mxu0 0
      %4403 = vmatprep.subr.bf16.mxu0 0
      %4404 = vmatpush1.bf16.msra.mxu0 0
      %4405 = vmatprep.subr.bf16.mxu0 0
      %4406 = vmatpush1.bf16.msra.mxu0 0
      %4407 = vmatprep.subr.bf16.mxu0 0
      %4408 = vmatpush1.bf16.msra.mxu0 0
      %4409 = vmatprep.subr.bf16.mxu0 0
      %4410 = vmatpush1.bf16.msra.mxu0 0
      %4411 = vmatprep.mubr.bf16.mxu0 0
      %4412 = vmatmul.mubr.bf16.gmra.mrb[0].mxu0 %v4368
      %v4413 = vpop.f32.mrb[0].mxu0
      %v4414 = vadd.f32 %v4348, %v4413
      %v4415 = vpop.f32.mrb[0].mxu0
      %v4416 = vpop.f32.mrb[0].mxu0
      %v4417 = vadd.f32 %v4348, %v4416
      %v4418 = vpop.f32.mrb[0].mxu0
      %4419 = vmatprep.mubr.bf16.mxu0 0
      %4420 = vmatmul.mubr.bf16.gmra.mrb[0].mxu0 %v4371
      %v4421 = vpop.f32.mrb[0].mxu0
      %v4422 = vadd.f32 %v4348, %v4421
      %v4423 = vpop.f32.mrb[0].mxu0
      %v4424 = vpop.f32.mrb[0].mxu0
      %v4425 = vadd.f32 %v4348, %v4424
      %v4426 = vpop.f32.mrb[0].mxu0
      %4427 = vmatprep.mubr.bf16.mxu0 0
      %4428 = vmatmul.mubr.bf16.gmra.mrb[0].mxu0 %v4374
      %v4429 = vpop.f32.mrb[0].mxu0
      %v4430 = vadd.f32 %v4348, %v4429
      %v4431 = vpop.f32.mrb[0].mxu0
      %v4432 = vpop.f32.mrb[0].mxu0
      %v4433 = vadd.f32 %v4348, %v4432
      %v4434 = vpop.f32.mrb[0].mxu0
      %4435 = vmatprep.mubr.bf16.mxu0 0
      %4436 = vmatmul.mubr.bf16.gmra.mrb[0].mxu0 %v4377
      %v4437 = vpop.f32.mrb[0].mxu0
      %v4438 = vadd.f32 %v4348, %v4437
      %v4439 = vpop.f32.mrb[0].mxu0
      %v4440 = vpop.f32.mrb[0].mxu0
      %v4441 = vpop.f32.mrb[0].mxu0
      %4442 = vdwg.mxu0
      %v4443 = vsel %vm1016, %v4414, 0.0
      %4444 = vadd.xlane.f32.xlu0 %v4443
      %v4445 = vpop.xlane.xlu0 %4444
      %v4446 = vsel %vm1016, %v4417, 0.0
      %4447 = vadd.xlane.f32.xlu0 %v4446
      %v4448 = vpop.xlane.xlu0 %4447
      %v4449 = vsel %vm1016, %v4422, 0.0
      %4450 = vadd.xlane.f32.xlu0 %v4449
      %v4451 = vpop.xlane.xlu0 %4450
      %v4452 = vsel %vm1016, %v4425, 0.0
      %4453 = vadd.xlane.f32.xlu0 %v4452
      %v4454 = vpop.xlane.xlu0 %4453
      %v4455 = vsel %vm1016, %v4430, 0.0
      %4456 = vadd.xlane.f32.xlu0 %v4455
      %v4457 = vpop.xlane.xlu0 %4456
      %v4458 = vsel %vm1016, %v4433, 0.0
      %4459 = vadd.xlane.f32.xlu0 %v4458
      %v4460 = vpop.xlane.xlu0 %4459
      %vm4461 = vcmask 123904
      %v4462 = vsel %vm4461, %v4438, 0.0
      %4463 = vadd.xlane.f32.xlu0 %v4462
      %v4464 = vpop.xlane.xlu0 %4463
      %v4465 = vmul.f32 %v4445, %v1170
      %v4466 = vmul.f32 %v4448, %v1170
      %v4467 = vmul.f32 %v4451, %v1170
      %v4468 = vmul.f32 %v4454, %v1170
      %v4469 = vmul.f32 %v4457, %v1170
      %v4470 = vmul.f32 %v4460, %v1170
      %v4471 = vmul.f32 %v4464, %v1170
      %v4472 = vsub.f32 %v4414, %v4465
      %v4473 = vsub.f32 %v4417, %v4466
      %v4474 = vsub.f32 %v4422, %v4467
      %v4475 = vsub.f32 %v4425, %v4468
      %v4476 = vsub.f32 %v4430, %v4469
      %v4477 = vsub.f32 %v4433, %v4470
      %v4478 = vsub.f32 %v4438, %v4471
      %v4479 = vmul.f32 %v4472, %v4472
      %v4480 = vmul.f32 %v4473, %v4473
      %v4481 = vmul.f32 %v4474, %v4474
      %v4482 = vmul.f32 %v4475, %v4475
      %v4483 = vmul.f32 %v4476, %v4476
      %v4484 = vmul.f32 %v4477, %v4477
      %v4485 = vmul.f32 %v4478, %v4478
      %v4486 = vsel %vm1016, %v4479, 0.0
      %4487 = vadd.xlane.f32.xlu0 %v4486
      %v4488 = vpop.xlane.xlu0 %4487
      %v4489 = vsel %vm1016, %v4480, 0.0
      %4490 = vadd.xlane.f32.xlu0 %v4489
      %v4491 = vpop.xlane.xlu0 %4490
      %v4492 = vsel %vm1016, %v4481, 0.0
      %4493 = vadd.xlane.f32.xlu0 %v4492
      %v4494 = vpop.xlane.xlu0 %4493
      %v4495 = vsel %vm1016, %v4482, 0.0
      %4496 = vadd.xlane.f32.xlu0 %v4495
      %v4497 = vpop.xlane.xlu0 %4496
      %v4498 = vsel %vm1016, %v4483, 0.0
      %4499 = vadd.xlane.f32.xlu0 %v4498
      %v4500 = vpop.xlane.xlu0 %4499
      %v4501 = vsel %vm1016, %v4484, 0.0
      %4502 = vadd.xlane.f32.xlu0 %v4501
      %v4503 = vpop.xlane.xlu0 %4502
      %v4504 = vsel %vm4461, %v4485, 0.0
      %4505 = vadd.xlane.f32.xlu0 %v4504
      %v4506 = vpop.xlane.xlu0 %4505
      %v4507 = vmul.f32 %v4488, %v1170
      %v4508 = vmul.f32 %v4491, %v1170
      %v4509 = vmul.f32 %v4494, %v1170
      %v4510 = vmul.f32 %v4497, %v1170
      %v4511 = vmul.f32 %v4500, %v1170
      %v4512 = vmul.f32 %v4503, %v1170
      %v4513 = vmul.f32 %v4506, %v1170
      %v4514 = vadd.f32 %v4507, 1e-05
      %v4515 = vadd.f32 %v4508, 1e-05
      %v4516 = vadd.f32 %v4509, 1e-05
      %v4517 = vadd.f32 %v4510, 1e-05
      %v4518 = vadd.f32 %v4511, 1e-05
      %v4519 = vadd.f32 %v4512, 1e-05
      %v4520 = vadd.f32 %v4513, 1e-05
      %v4521 = vrsqrt.pop %v4514
      %v4522 = vrsqrt.pop %v4515
      %v4523 = vrsqrt.pop %v4516
      %v4524 = vrsqrt.pop %v4517
      %v4525 = vrsqrt.pop %v4518
      %v4526 = vrsqrt.pop %v4519
      %v4527 = vrsqrt.pop %v4520
      %v4528 = vmul.f32 %v4472, %v4521
      %v4529 = vmul.f32 %v4473, %v4522
      %v4530 = vmul.f32 %v4474, %v4523
      %v4531 = vmul.f32 %v4475, %v4524
      %v4532 = vmul.f32 %v4476, %v4525
      %v4533 = vmul.f32 %v4477, %v4526
      %v4534 = vmul.f32 %v4478, %v4527
      %v4535 = vlaneseq
      %v4536 = vshrl.u32 %v4535, 7
      %v4537 = vsub.s32 3, %v4536
      %v4538 = vrot.slane %v603, %v4537
      %v4539 = vmul.f32 %v4528, %v4538
      %v4540 = vmul.f32 %v4529, %v4538
      %v4541 = vmul.f32 %v4530, %v4538
      %v4542 = vmul.f32 %v4531, %v4538
      %v4543 = vmul.f32 %v4532, %v4538
      %v4544 = vmul.f32 %v4533, %v4538
      %v4545 = vmul.f32 %v4534, %v4538
      %v4546 = vlaneseq
      %v4547 = vshrl.u32 %v4546, 7
      %v4548 = vsub.s32 3, %v4547
      %v4549 = vrot.slane %v604, %v4548
      %v4550 = vadd.f32 %v4539, %v4549
      %v4551 = vadd.f32 %v4540, %v4549
      %v4552 = vadd.f32 %v4541, %v4549
      %v4553 = vadd.f32 %v4542, %v4549
      %v4554 = vadd.f32 %v4543, %v4549
      %v4555 = vadd.f32 %v4544, %v4549
      %v4556 = vadd.f32 %v4545, %v4549
      %v4557 = vmul.f32 %v4550, 0.5
      %v4558 = vmul.f32 %v4551, 0.5
      %v4559 = vmul.f32 %v4552, 0.5
      %v4560 = vmul.f32 %v4553, 0.5
      %v4561 = vmul.f32 %v4554, 0.5
      %v4562 = vmul.f32 %v4555, 0.5
      %v4563 = vmul.f32 %v4556, 0.5
      %v4564 = vmul.f32 %v4550, 0.044715
      %v4565 = vmul.f32 %v4551, 0.044715
      %v4566 = vmul.f32 %v4552, 0.044715
      %v4567 = vmul.f32 %v4553, 0.044715
      %v4568 = vmul.f32 %v4554, 0.044715
      %v4569 = vmul.f32 %v4555, 0.044715
      %v4570 = vmul.f32 %v4556, 0.044715
      %v4571 = vmul.f32 %v4564, %v4550
      %v4572 = vmul.f32 %v4565, %v4551
      %v4573 = vmul.f32 %v4566, %v4552
      %v4574 = vmul.f32 %v4567, %v4553
      %v4575 = vmul.f32 %v4568, %v4554
      %v4576 = vmul.f32 %v4569, %v4555
      %v4577 = vmul.f32 %v4570, %v4556
      %v4578 = vmul.f32 %v4571, %v4550
      %v4579 = vmul.f32 %v4572, %v4551
      %v4580 = vmul.f32 %v4573, %v4552
      %v4581 = vmul.f32 %v4574, %v4553
      %v4582 = vmul.f32 %v4575, %v4554
      %v4583 = vmul.f32 %v4576, %v4555
      %v4584 = vmul.f32 %v4577, %v4556
      %v4585 = vadd.f32 %v4550, %v4578
      %v4586 = vadd.f32 %v4551, %v4579
      %v4587 = vadd.f32 %v4552, %v4580
      %v4588 = vadd.f32 %v4553, %v4581
      %v4589 = vadd.f32 %v4554, %v4582
      %v4590 = vadd.f32 %v4555, %v4583
      %v4591 = vadd.f32 %v4556, %v4584
      %v4592 = vmul.f32 %v4585, 0.7978846
      %v4593 = vmul.f32 %v4586, 0.7978846
      %v4594 = vmul.f32 %v4587, 0.7978846
      %v4595 = vmul.f32 %v4588, 0.7978846
      %v4596 = vmul.f32 %v4589, 0.7978846
      %v4597 = vmul.f32 %v4590, 0.7978846
      %v4598 = vmul.f32 %v4591, 0.7978846
      %v4599 = vtanh.pop %v4592
      %v4600 = vtanh.pop %v4593
      %v4601 = vtanh.pop %v4594
      %v4602 = vtanh.pop %v4595
      %v4603 = vtanh.pop %v4596
      %v4604 = vtanh.pop %v4597
      %v4605 = vtanh.pop %v4598
      %v4606 = vadd.f32 %v4599, 1.0
      %v4607 = vadd.f32 %v4600, 1.0
      %v4608 = vadd.f32 %v4601, 1.0
      %v4609 = vadd.f32 %v4602, 1.0
      %v4610 = vadd.f32 %v4603, 1.0
      %v4611 = vadd.f32 %v4604, 1.0
      %v4612 = vadd.f32 %v4605, 1.0
      %v4613 = vmul.f32 %v4557, %v4606
      %v4614 = vmul.f32 %v4558, %v4607
      %v4615 = vmul.f32 %v4559, %v4608
      %v4616 = vmul.f32 %v4560, %v4609
      %v4617 = vmul.f32 %v4561, %v4610
      %v4618 = vmul.f32 %v4562, %v4611
      %v4619 = vmul.f32 %v4563, %v4612
      %4620 = vst.msk [vmem:[#allocation2] sm:$0xff] %vm1016, %v4613
      %4621 = vst.msk [vmem:[#allocation2 + $0x8] sm:$0xff] %vm1016, %v4614
      %4622 = vst.msk [vmem:[#allocation2 + $0x10] sm:$0xff] %vm1016, %v4615
      %4623 = vst.msk [vmem:[#allocation2 + $0x18] sm:$0xff] %vm1016, %v4616
      %4624 = vst.msk [vmem:[#allocation2 + $0x20] sm:$0xff] %vm1016, %v4617
      %4625 = vst.msk [vmem:[#allocation2 + $0x28] sm:$0xff] %vm1016, %v4618
      %4626 = vst.msk [vmem:[#allocation2 + $0x30] sm:$0x3] %vm4461, %v4619
      %v4627 = vld [vmem:[#allocation2] ss:$2 sm:$0xff]
      %v4628 = vld [vmem:[%s2302] ss:$2 sm:$0xff]
      %v4629 = vld [vmem:[%s2304] ss:$2 sm:$0xff]
      %v4630 = vld [vmem:[%s2352] ss:$2 sm:$0xff]
      %v4631 = vld [vmem:[%s2354] ss:$2 sm:$0xff]
      %v4632 = vld [vmem:[%s2356] ss:$2 sm:$0xff]
      %v4633 = vld [vmem:[%s2404] ss:$2 sm:$0xff]
      %v4634 = vld [vmem:[%s2406] ss:$2 sm:$0xff]
      %v4635 = vld [vmem:[%s2408] ss:$2 sm:$0xff]
      %4639 = vrot.lane.b32.xlu0 %v4630, 16
      %v4640 = vpop.permute.xlu0 %4639
      %4641 = vrot.lane.b32.xlu0 %v4631, 16
      %v4642 = vpop.permute.xlu0 %4641
      %4643 = vrot.lane.b32.xlu0 %v4632, 16
      %v4644 = vpop.permute.xlu0 %4643
      %4651 = vrot.lane.b32.xlu0 %v4633, 32
      %v4652 = vpop.permute.xlu0 %4651
      %4653 = vrot.lane.b32.xlu0 %v4634, 32
      %v4654 = vpop.permute.xlu0 %4653
      %4655 = vrot.lane.b32.xlu0 %v4635, 32
      %v4656 = vpop.permute.xlu0 %4655
      %v4660 = vsel %vm1016, %v4627, %v4640
      %v4661 = vsel %vm1016, %v4628, %v4642
      %v4662 = vsel %vm1016, %v4629, %v4644
      %v4663 = vsel %vm2690, %v4660, %v4652
      %v4664 = vsel %vm2690, %v4661, %v4654
      %v4665 = vsel %vm2690, %v4662, %v4656
      %s4666 = scalar_lea.vmem %s1, 96
      %v4667 = vld [vmem:[%s4666] sm:$0xf]
      %v4668 = vld [vmem:[%s4666 + $0x4] sm:$0xf]
      %v4669 = vld [vmem:[%s4666 + $0x8] sm:$0xf]
      %v4670 = vld [vmem:[%s4666 + $0xc] sm:$0xf]
      %v4671 = vld [vmem:[%s4666 + $0x10] sm:$0xf]
      %v4672 = vld [vmem:[%s4666 + $0x14] sm:$0xf]
      %v4673 = vpack.c.bf16 %v4664, %v4663
      %v4674 = vpack.c.bf16 %v4665, %v4665
      %v4675 = vlaneseq
      %v4676 = vshrl.u32 %v4675, 7
      %v4677 = vsub.s32 4, %v4676
      %v4678 = vrot.slane %v602, %v4677
      %v4685 = vunpack.c.l.b16 %v4667
      %v4686 = vunpack.c.l.b16 %v4668
      %v4687 = vunpack.c.l.b16 %v4669
      %v4688 = vunpack.c.l.b16 %v4670
      %v4689 = vunpack.c.l.b16 %v4671
      %v4690 = vunpack.c.l.b16 %v4672
      %v4691 = vpack.c.b16 %v4686, %v4685
      %v4692 = vpack.c.b16 %v4688, %v4687
      %v4693 = vpack.c.b16 %v4690, %v4689
      %v4698 = vsel %vm2759, %v4673, 0
      %v4701 = vsel %vm2759, %v4674, 0
      %4703 = vmatprep.subr.bf16.mxu0 0
      %4704 = vmatpush1.bf16.msra.mxu0 %v4691
      %4705 = vmatprep.subr.bf16.mxu0 0
      %4706 = vmatpush1.bf16.msra.mxu0 %v4692
      %4707 = vmatprep.subr.bf16.mxu0 0
      %4708 = vmatpush1.bf16.msra.mxu0 %v4693
      %4709 = vmatprep.subr.bf16.mxu0 0
      %4710 = vmatpush1.bf16.msra.mxu0 0
      %4711 = vmatprep.subr.bf16.mxu0 0
      %4712 = vmatpush1.bf16.msra.mxu0 0
      %4713 = vmatprep.subr.bf16.mxu0 0
      %4714 = vmatpush1.bf16.msra.mxu0 0
      %4715 = vmatprep.subr.bf16.mxu0 0
      %4716 = vmatpush1.bf16.msra.mxu0 0
      %4717 = vmatprep.subr.bf16.mxu0 0
      %4718 = vmatpush1.bf16.msra.mxu0 0
      %4719 = vmatprep.subr.bf16.mxu0 0
      %4720 = vmatpush1.bf16.msra.mxu0 0
      %4721 = vmatprep.subr.bf16.mxu0 0
      %4722 = vmatpush1.bf16.msra.mxu0 0
      %4723 = vmatprep.subr.bf16.mxu0 0
      %4724 = vmatpush1.bf16.msra.mxu0 0
      %4725 = vmatprep.subr.bf16.mxu0 0
      %4726 = vmatpush1.bf16.msra.mxu0 0
      %4727 = vmatprep.subr.bf16.mxu0 0
      %4728 = vmatpush1.bf16.msra.mxu0 0
      %4729 = vmatprep.subr.bf16.mxu0 0
      %4730 = vmatpush1.bf16.msra.mxu0 0
      %4731 = vmatprep.subr.bf16.mxu0 0
      %4732 = vmatpush1.bf16.msra.mxu0 0
      %4733 = vmatprep.subr.bf16.mxu0 0
      %4734 = vmatpush1.bf16.msra.mxu0 0
      %4735 = vmatprep.mubr.bf16.mxu0 0
      %4736 = vmatmul.mubr.bf16.gmra.mrb[0].mxu0 %v4698
      %v4737 = vpop.f32.mrb[0].mxu0
      %v4738 = vadd.f32 %v4678, %v4737
      %v4739 = vpop.f32.mrb[0].mxu0
      %v4740 = vpop.f32.mrb[0].mxu0
      %v4741 = vadd.f32 %v4678, %v4740
      %v4742 = vpop.f32.mrb[0].mxu0
      %4743 = vmatprep.mubr.bf16.mxu0 0
      %4744 = vmatmul.mubr.bf16.gmra.mrb[0].mxu0 %v4701
      %v4745 = vpop.f32.mrb[0].mxu0
      %v4746 = vadd.f32 %v4678, %v4745
      %v4747 = vpop.f32.mrb[0].mxu0
      %v4748 = vpop.f32.mrb[0].mxu0
      %v4749 = vpop.f32.mrb[0].mxu0
      %4750 = vdwg.mxu0
      %v4751 = vsel %vm1016, %v4738, 0.0
      %4752 = vadd.xlane.f32.xlu0 %v4751
      %v4753 = vpop.xlane.xlu0 %4752
      %v4754 = vsel %vm1016, %v4741, 0.0
      %4755 = vadd.xlane.f32.xlu0 %v4754
      %v4756 = vpop.xlane.xlu0 %4755
      %v4757 = vsel %vm1016, %v4746, 0.0
      %4758 = vadd.xlane.f32.xlu0 %v4757
      %v4759 = vpop.xlane.xlu0 %4758
      %v4760 = vmul.f32 %v4753, %v1170
      %v4761 = vmul.f32 %v4756, %v1170
      %v4762 = vmul.f32 %v4759, %v1170
      %v4763 = vsub.f32 %v4738, %v4760
      %v4764 = vsub.f32 %v4741, %v4761
      %v4765 = vsub.f32 %v4746, %v4762
      %v4766 = vmul.f32 %v4763, %v4763
      %v4767 = vmul.f32 %v4764, %v4764
      %v4768 = vmul.f32 %v4765, %v4765
      %v4769 = vsel %vm1016, %v4766, 0.0
      %4770 = vadd.xlane.f32.xlu0 %v4769
      %v4771 = vpop.xlane.xlu0 %4770
      %v4772 = vsel %vm1016, %v4767, 0.0
      %4773 = vadd.xlane.f32.xlu0 %v4772
      %v4774 = vpop.xlane.xlu0 %4773
      %v4775 = vsel %vm1016, %v4768, 0.0
      %4776 = vadd.xlane.f32.xlu0 %v4775
      %v4777 = vpop.xlane.xlu0 %4776
      %v4778 = vmul.f32 %v4771, %v1170
      %v4779 = vmul.f32 %v4774, %v1170
      %v4780 = vmul.f32 %v4777, %v1170
      %v4781 = vadd.f32 %v4778, 1e-05
      %v4782 = vadd.f32 %v4779, 1e-05
      %v4783 = vadd.f32 %v4780, 1e-05
      %v4784 = vrsqrt.pop %v4781
      %v4785 = vrsqrt.pop %v4782
      %v4786 = vrsqrt.pop %v4783
      %v4787 = vmul.f32 %v4763, %v4784
      %v4788 = vmul.f32 %v4764, %v4785
      %v4789 = vmul.f32 %v4765, %v4786
      %v4790 = vlaneseq
      %v4791 = vshrl.u32 %v4790, 7
      %v4792 = vsub.s32 4, %v4791
      %v4793 = vrot.slane %v603, %v4792
      %v4794 = vmul.f32 %v4787, %v4793
      %v4795 = vmul.f32 %v4788, %v4793
      %v4796 = vmul.f32 %v4789, %v4793
      %v4797 = vlaneseq
      %v4798 = vshrl.u32 %v4797, 7
      %v4799 = vsub.s32 4, %v4798
      %v4800 = vrot.slane %v604, %v4799
      %v4801 = vadd.f32 %v4794, %v4800
      %v4802 = vadd.f32 %v4795, %v4800
      %v4803 = vadd.f32 %v4796, %v4800
      %v4804 = vmul.f32 %v4801, 0.5
      %v4805 = vmul.f32 %v4802, 0.5
      %v4806 = vmul.f32 %v4803, 0.5
      %v4807 = vmul.f32 %v4801, 0.044715
      %v4808 = vmul.f32 %v4802, 0.044715
      %v4809 = vmul.f32 %v4803, 0.044715
      %v4810 = vmul.f32 %v4807, %v4801
      %v4811 = vmul.f32 %v4808, %v4802
      %v4812 = vmul.f32 %v4809, %v4803
      %v4813 = vmul.f32 %v4810, %v4801
      %v4814 = vmul.f32 %v4811, %v4802
      %v4815 = vmul.f32 %v4812, %v4803
      %v4816 = vadd.f32 %v4801, %v4813
      %v4817 = vadd.f32 %v4802, %v4814
      %v4818 = vadd.f32 %v4803, %v4815
      %v4819 = vmul.f32 %v4816, 0.7978846
      %v4820 = vmul.f32 %v4817, 0.7978846
      %v4821 = vmul.f32 %v4818, 0.7978846
      %v4822 = vtanh.pop %v4819
      %v4823 = vtanh.pop %v4820
      %v4824 = vtanh.pop %v4821
      %v4825 = vadd.f32 %v4822, 1.0
      %v4826 = vadd.f32 %v4823, 1.0
      %v4827 = vadd.f32 %v4824, 1.0
      %v4828 = vmul.f32 %v4804, %v4825
      %v4829 = vmul.f32 %v4805, %v4826
      %v4830 = vmul.f32 %v4806, %v4827
      %4831 = vst.msk [vmem:[#allocation2] sm:$0xff] %vm1016, %v4828
      %4832 = vst.msk [vmem:[#allocation2 + $0x8] sm:$0xff] %vm1016, %v4829
      %4833 = vst.msk [vmem:[#allocation2 + $0x10] sm:$0xff] %vm1016, %v4830
      %v4834 = vld [vmem:[#allocation2] ss:$2 sm:$0xff]
      %v4835 = vld [vmem:[%s2302] ss:$2 sm:$0x7]
      %v4836 = vld [vmem:[%s2352] ss:$2 sm:$0xff]
      %v4837 = vld [vmem:[%s2354] ss:$2 sm:$0x7]
      %v4838 = vld [vmem:[%s2404] ss:$2 sm:$0xff]
      %v4839 = vld [vmem:[%s2406] ss:$2 sm:$0x7]
      %4842 = vrot.lane.b32.xlu0 %v4836, 16
      %v4843 = vpop.permute.xlu0 %4842
      %4844 = vrot.lane.b32.xlu0 %v4837, 16
      %v4845 = vpop.permute.xlu0 %4844
      %4850 = vrot.lane.b32.xlu0 %v4838, 32
      %v4851 = vpop.permute.xlu0 %4850
      %4852 = vrot.lane.b32.xlu0 %v4839, 32
      %v4853 = vpop.permute.xlu0 %4852
      %v4856 = vsel %vm1016, %v4834, %v4843
      %v4857 = vsel %vm1016, %v4835, %v4845
      %v4858 = vsel %vm2690, %v4856, %v4851
      %v4859 = vsel %vm2690, %v4857, %v4853
      %s4860 = scalar_lea.vmem %s1, 120
      %v4861 = vld [vmem:[%s4860] sm:$0xf]
      %v4862 = vld [vmem:[%s4860 + $0x4] sm:$0xf]
      %v4863 = vld [vmem:[%s4860 + $0x8] sm:$0xf]
      %v4864 = vld [vmem:[%s4860 + $0xc] sm:$0xf]
      %v4865 = vld [vmem:[%s4860 + $0x10] sm:$0xf]
      %v4866 = vld [vmem:[%s4860 + $0x14] sm:$0xf]
      %v4867 = vpack.c.bf16 %v4859, %v4858
      %v4868 = vlaneseq
      %v4869 = vshrl.u32 %v4868, 7
      %v4870 = vsub.s32 5, %v4869
      %v4871 = vrot.slane %v602, %v4870
      %v4878 = vunpack.c.l.b16 %v4861
      %v4879 = vunpack.c.l.b16 %v4862
      %v4880 = vunpack.c.l.b16 %v4863
      %v4881 = vunpack.c.l.b16 %v4864
      %v4882 = vunpack.c.l.b16 %v4865
      %v4883 = vunpack.c.l.b16 %v4866
      %v4884 = vpack.c.b16 %v4879, %v4878
      %v4885 = vpack.c.b16 %v4881, %v4880
      %v4886 = vpack.c.b16 %v4883, %v4882
      %v4891 = vsel %vm2759, %v4867, 0
      %4893 = vmatprep.subr.bf16.mxu0 0
      %4894 = vmatpush1.bf16.msra.mxu0 %v4884
      %4895 = vmatprep.subr.bf16.mxu0 0
      %4896 = vmatpush1.bf16.msra.mxu0 %v4885
      %4897 = vmatprep.subr.bf16.mxu0 0
      %4898 = vmatpush1.bf16.msra.mxu0 %v4886
      %4899 = vmatprep.subr.bf16.mxu0 0
      %4900 = vmatpush1.bf16.msra.mxu0 0
      %4901 = vmatprep.subr.bf16.mxu0 0
      %4902 = vmatpush1.bf16.msra.mxu0 0
      %4903 = vmatprep.subr.bf16.mxu0 0
      %4904 = vmatpush1.bf16.msra.mxu0 0
      %4905 = vmatprep.subr.bf16.mxu0 0
      %4906 = vmatpush1.bf16.msra.mxu0 0
      %4907 = vmatprep.subr.bf16.mxu0 0
      %4908 = vmatpush1.bf16.msra.mxu0 0
      %4909 = vmatprep.subr.bf16.mxu0 0
      %4910 = vmatpush1.bf16.msra.mxu0 0
      %4911 = vmatprep.subr.bf16.mxu0 0
      %4912 = vmatpush1.bf16.msra.mxu0 0
      %4913 = vmatprep.subr.bf16.mxu0 0
      %4914 = vmatpush1.bf16.msra.mxu0 0
      %4915 = vmatprep.subr.bf16.mxu0 0
      %4916 = vmatpush1.bf16.msra.mxu0 0
      %4917 = vmatprep.subr.bf16.mxu0 0
      %4918 = vmatpush1.bf16.msra.mxu0 0
      %4919 = vmatprep.subr.bf16.mxu0 0
      %4920 = vmatpush1.bf16.msra.mxu0 0
      %4921 = vmatprep.subr.bf16.mxu0 0
      %4922 = vmatpush1.bf16.msra.mxu0 0
      %4923 = vmatprep.subr.bf16.mxu0 0
      %4924 = vmatpush1.bf16.msra.mxu0 0
      %4925 = vmatprep.mubr.bf16.mxu0 0
      %4926 = vmatmul.mubr.bf16.gmra.mrb[0].mxu0 %v4891
      %v4927 = vpop.f32.mrb[0].mxu0
      %v4928 = vadd.f32 %v4871, %v4927
      %v4929 = vpop.f32.mrb[0].mxu0
      %v4930 = vpop.f32.mrb[0].mxu0
      %v4931 = vadd.f32 %v4871, %v4930
      %v4932 = vpop.f32.mrb[0].mxu0
      %4933 = vdwg.mxu0
      %v4934 = vsel %vm1016, %v4928, 0.0
      %4935 = vadd.xlane.f32.xlu0 %v4934
      %v4936 = vpop.xlane.xlu0 %4935
      %v4937 = vsel %vm3011, %v4931, 0.0
      %4938 = vadd.xlane.f32.xlu0 %v4937
      %v4939 = vpop.xlane.xlu0 %4938
      %v4940 = vmul.f32 %v4936, %v1170
      %v4941 = vmul.f32 %v4939, %v1170
      %v4942 = vsub.f32 %v4928, %v4940
      %v4943 = vsub.f32 %v4931, %v4941
      %v4944 = vmul.f32 %v4942, %v4942
      %v4945 = vmul.f32 %v4943, %v4943
      %v4946 = vsel %vm1016, %v4944, 0.0
      %4947 = vadd.xlane.f32.xlu0 %v4946
      %v4948 = vpop.xlane.xlu0 %4947
      %v4949 = vsel %vm3011, %v4945, 0.0
      %4950 = vadd.xlane.f32.xlu0 %v4949
      %v4951 = vpop.xlane.xlu0 %4950
      %v4952 = vmul.f32 %v4948, %v1170
      %v4953 = vmul.f32 %v4951, %v1170
      %v4954 = vadd.f32 %v4952, 1e-05
      %v4955 = vadd.f32 %v4953, 1e-05
      %v4956 = vrsqrt.pop %v4954
      %v4957 = vrsqrt.pop %v4955
      %v4958 = vmul.f32 %v4942, %v4956
      %v4959 = vmul.f32 %v4943, %v4957
      %v4960 = vlaneseq
      %v4961 = vshrl.u32 %v4960, 7
      %v4962 = vsub.s32 5, %v4961
      %v4963 = vrot.slane %v603, %v4962
      %v4964 = vmul.f32 %v4958, %v4963
      %v4965 = vmul.f32 %v4959, %v4963
      %v4966 = vlaneseq
      %v4967 = vshrl.u32 %v4966, 7
      %v4968 = vsub.s32 5, %v4967
      %v4969 = vrot.slane %v604, %v4968
      %v4970 = vadd.f32 %v4964, %v4969
      %v4971 = vadd.f32 %v4965, %v4969
      %v4972 = vmul.f32 %v4970, 0.5
      %v4973 = vmul.f32 %v4971, 0.5
      %v4974 = vmul.f32 %v4970, 0.044715
      %v4975 = vmul.f32 %v4971, 0.044715
      %v4976 = vmul.f32 %v4974, %v4970
      %v4977 = vmul.f32 %v4975, %v4971
      %v4978 = vmul.f32 %v4976, %v4970
      %v4979 = vmul.f32 %v4977, %v4971
      %v4980 = vadd.f32 %v4970, %v4978
      %v4981 = vadd.f32 %v4971, %v4979
      %v4982 = vmul.f32 %v4980, 0.7978846
      %v4983 = vmul.f32 %v4981, 0.7978846
      %v4984 = vtanh.pop %v4982
      %v4985 = vtanh.pop %v4983
      %v4986 = vadd.f32 %v4984, 1.0
      %v4987 = vadd.f32 %v4985, 1.0
      %v4988 = vmul.f32 %v4972, %v4986
      %v4989 = vmul.f32 %v4973, %v4987
      %4990 = vst.msk [vmem:[#allocation2] sm:$0xff] %vm1016, %v4988
      %4991 = vst.msk [vmem:[#allocation2 + $0x8] sm:$0x7] %vm3011, %v4989
      %v4992 = vld [vmem:[#allocation2] ss:$2 sm:$0x1f]
      %v4993 = vld [vmem:[%s2352] ss:$2 sm:$0x1f]
      %4995 = vrot.lane.b32.xlu0 %v4993, 16
      %v4996 = vpop.permute.xlu0 %4995
      %v4998 = vsel %vm1016, %v4992, %v4996
      %s4999 = scalar_lea.vmem %s1, 144
      %v5000 = vld [vmem:[%s4999] sm:$0xf]
      %v5001 = vld [vmem:[%s4999 + $0x4] sm:$0xf]
      %v5002 = vld [vmem:[%s4999 + $0x8] sm:$0xf]
      %v5003 = vld [vmem:[%s4999 + $0xc] sm:$0xf]
      %v5004 = vpack.c.bf16 %v4998, %v4998
      %v5005 = vlaneseq
      %v5006 = vshrl.u32 %v5005, 7
      %v5007 = vsub.s32 6, %v5006
      %v5008 = vrot.slane %v602, %v5007
      %v5013 = vunpack.c.l.b16 %v5000
      %v5014 = vunpack.c.l.b16 %v5001
      %v5015 = vunpack.c.l.b16 %v5002
      %v5016 = vunpack.c.l.b16 %v5003
      %v5017 = vpack.c.b16 %v5014, %v5013
      %v5018 = vpack.c.b16 %v5016, %v5015
      %v5022 = vsel %vm2690, %v5004, 0
      %5024 = vmatprep.subr.bf16.mxu0 0
      %5025 = vmatpush1.bf16.msra.mxu0 %v5017
      %5026 = vmatprep.subr.bf16.mxu0 0
      %5027 = vmatpush1.bf16.msra.mxu0 %v5018
      %5028 = vmatprep.subr.bf16.mxu0 0
      %5029 = vmatpush1.bf16.msra.mxu0 0
      %5030 = vmatprep.subr.bf16.mxu0 0
      %5031 = vmatpush1.bf16.msra.mxu0 0
      %5032 = vmatprep.subr.bf16.mxu0 0
      %5033 = vmatpush1.bf16.msra.mxu0 0
      %5034 = vmatprep.subr.bf16.mxu0 0
      %5035 = vmatpush1.bf16.msra.mxu0 0
      %5036 = vmatprep.subr.bf16.mxu0 0
      %5037 = vmatpush1.bf16.msra.mxu0 0
      %5038 = vmatprep.subr.bf16.mxu0 0
      %5039 = vmatpush1.bf16.msra.mxu0 0
      %5040 = vmatprep.subr.bf16.mxu0 0
      %5041 = vmatpush1.bf16.msra.mxu0 0
      %5042 = vmatprep.subr.bf16.mxu0 0
      %5043 = vmatpush1.bf16.msra.mxu0 0
      %5044 = vmatprep.subr.bf16.mxu0 0
      %5045 = vmatpush1.bf16.msra.mxu0 0
      %5046 = vmatprep.subr.bf16.mxu0 0
      %5047 = vmatpush1.bf16.msra.mxu0 0
      %5048 = vmatprep.subr.bf16.mxu0 0
      %5049 = vmatpush1.bf16.msra.mxu0 0
      %5050 = vmatprep.subr.bf16.mxu0 0
      %5051 = vmatpush1.bf16.msra.mxu0 0
      %5052 = vmatprep.subr.bf16.mxu0 0
      %5053 = vmatpush1.bf16.msra.mxu0 0
      %5054 = vmatprep.subr.bf16.mxu0 0
      %5055 = vmatpush1.bf16.msra.mxu0 0
      %5056 = vmatprep.mubr.bf16.mxu0 0
      %5057 = vmatmul.mubr.bf16.gmra.mrb[0].mxu0 %v5022
      %v5058 = vpop.f32.mrb[0].mxu0
      %v5059 = vadd.f32 %v5008, %v5058
      %v5060 = vpop.f32.mrb[0].mxu0
      %v5061 = vpop.f32.mrb[0].mxu0
      %v5062 = vpop.f32.mrb[0].mxu0
      %5063 = vdwg.mxu0
      %v5064 = vsel %vm3945, %v5059, 0.0
      %5065 = vadd.xlane.f32.xlu0 %v5064
      %v5066 = vpop.xlane.xlu0 %5065
      %v5067 = vmul.f32 %v5066, %v1170
      %v5068 = vsub.f32 %v5059, %v5067
      %v5069 = vmul.f32 %v5068, %v5068
      %v5070 = vsel %vm3945, %v5069, 0.0
      %5071 = vadd.xlane.f32.xlu0 %v5070
      %v5072 = vpop.xlane.xlu0 %5071
      %v5073 = vmul.f32 %v5072, %v1170
      %v5074 = vadd.f32 %v5073, 1e-05
      %v5075 = vrsqrt.pop %v5074
      %v5076 = vmul.f32 %v5068, %v5075
      %v5077 = vlaneseq
      %v5078 = vshrl.u32 %v5077, 7
      %v5079 = vsub.s32 6, %v5078
      %v5080 = vrot.slane %v603, %v5079
      %v5081 = vmul.f32 %v5076, %v5080
      %v5082 = vlaneseq
      %v5083 = vshrl.u32 %v5082, 7
      %v5084 = vsub.s32 6, %v5083
      %v5085 = vrot.slane %v604, %v5084
      %v5086 = vadd.f32 %v5081, %v5085
      %v5087 = vmul.f32 %v5086, 0.5
      %v5088 = vmul.f32 %v5086, 0.044715
      %v5089 = vmul.f32 %v5088, %v5086
      %v5090 = vmul.f32 %v5089, %v5086
      %v5091 = vadd.f32 %v5086, %v5090
      %v5092 = vmul.f32 %v5091, 0.7978846
      %v5093 = vtanh.pop %v5092
      %v5094 = vadd.f32 %v5093, 1.0
      %v5095 = vmul.f32 %v5087, %v5094
      %v5096 = vld [vmem:[%s5] sm:$0x3]
      %v5097 = vsel %vm3945, %v5095, 0.0
      %5098 = vadd.xlane.f32.xlu0 %v5097
      %v5099 = vpop.xlane.xlu0 %5098
      %v5100 = vmul.f32 %v5099, %v1170
      %v5101 = vsub.f32 %v5095, %v5100
      %v5102 = vmul.f32 %v5101, %v5101
      %v5103 = vsel %vm3945, %v5102, 0.0
      %5104 = vadd.xlane.f32.xlu0 %v5103
      %v5105 = vpop.xlane.xlu0 %5104
      %v5106 = vmul.f32 %v5105, %v1170
      %v5107 = vadd.f32 %v5106, 1e-05
      %v5108 = vrsqrt.pop %v5107
      %v5109 = vmul.f32 %v5101, %v5108
      %v5110 = vlaneseq
      %v5111 = vshrl.u32 %v5110, 7
      %v5112 = vsub.s32 0, %v5111
      %v5113 = vrot.slane %v5096, %v5112
      %v5114 = vmul.f32 %v5109, %v5113
      %v5115 = vlaneseq
      %v5116 = vshrl.u32 %v5115, 7
      %v5117 = vsub.s32 1, %v5116
      %v5118 = vrot.slane %v5096, %v5117
      %v5119 = vadd.f32 %v5114, %v5118
      %v5120 = vld [vmem:[%s6] sm:$0xf]
      %v5121 = vld [vmem:[%s6 + $0x4] sm:$0xf]
      %v5122 = vpack.c.bf16 %v5119, %v5119
      %v5123 = vld [vmem:[%s7] sm:$0x1]
      %v5125 = vlaneseq
      %v5126 = vshrl.u32 %v5125, 7
      %v5127 = vsub.s32 0, %v5126
      %v5128 = vrot.slane %v5123, %v5127
      %v5132 = vunpack.c.l.b16 %v5120
      %v5133 = vunpack.c.l.b16 %v5121
      %v5134 = vpack.c.b16 %v5133, %v5132
      %v5137 = vsel %vm1016, %v5122, 0
      %5139 = vmatprep.subr.bf16.mxu0 0
      %5140 = vmatpush1.bf16.msra.mxu0 %v5134
      %5141 = vmatprep.subr.bf16.mxu0 0
      %5142 = vmatpush1.bf16.msra.mxu0 0
      %5143 = vmatprep.subr.bf16.mxu0 0
      %5144 = vmatpush1.bf16.msra.mxu0 0
      %5145 = vmatprep.subr.bf16.mxu0 0
      %5146 = vmatpush1.bf16.msra.mxu0 0
      %5147 = vmatprep.subr.bf16.mxu0 0
      %5148 = vmatpush1.bf16.msra.mxu0 0
      %5149 = vmatprep.subr.bf16.mxu0 0
      %5150 = vmatpush1.bf16.msra.mxu0 0
      %5151 = vmatprep.subr.bf16.mxu0 0
      %5152 = vmatpush1.bf16.msra.mxu0 0
      %5153 = vmatprep.subr.bf16.mxu0 0
      %5154 = vmatpush1.bf16.msra.mxu0 0
      %5155 = vmatprep.subr.bf16.mxu0 0
      %5156 = vmatpush1.bf16.msra.mxu0 0
      %5157 = vmatprep.subr.bf16.mxu0 0
      %5158 = vmatpush1.bf16.msra.mxu0 0
      %5159 = vmatprep.subr.bf16.mxu0 0
      %5160 = vmatpush1.bf16.msra.mxu0 0
      %5161 = vmatprep.subr.bf16.mxu0 0
      %5162 = vmatpush1.bf16.msra.mxu0 0
      %5163 = vmatprep.subr.bf16.mxu0 0
      %5164 = vmatpush1.bf16.msra.mxu0 0
      %5165 = vmatprep.subr.bf16.mxu0 0
      %5166 = vmatpush1.bf16.msra.mxu0 0
      %5167 = vmatprep.subr.bf16.mxu0 0
      %5168 = vmatpush1.bf16.msra.mxu0 0
      %5169 = vmatprep.subr.bf16.mxu0 0
      %5170 = vmatpush1.bf16.msra.mxu0 0
      %5171 = vmatprep.mubr.bf16.mxu0 0
      %5172 = vmatmul.mubr.bf16.gmra.mrb[0].mxu0 %v5137
      %v5173 = vpop.f32.mrb[0].mxu0
      %v5174 = vadd.f32 %v5128, %v5173
      %v5175 = vpop.f32.mrb[0].mxu0
      %v5176 = vpop.f32.mrb[0].mxu0
      %v5177 = vpop.f32.mrb[0].mxu0
      %5178 = vdwg.mxu0
      %v5179 = vpack.c.bf16 %v5174, %v5174
      %v5181 = vshrl.u32 %v5179, 16
      %v5183 = vrot.slane %v5181, 7
      %v5184 = vshll.u32 %v5179, 16
      %v5186 = vor.u32 %v5183, %v5184
      %vm5188 = vcmask 1040384
      %vm5189 = vsmask.f32 256
      %vm5190 = vmand %vm5188, %vm5189
      %v5191 = vsel %vm5190, 0, %v5186
      %vm5192 = vcmask 1042432
      %v5195 = vsel %vm5192, %v5191, 0
      %v5196 = vshrl.u32 %v5195, 16
      %v5198 = vshll.u32 %v5195, 16
      %v5200 = vrot.slane %v5198, 1
      %v5201 = vor.u32 %v5196, %v5200
      %5202 = vrot.lane.b32.xlu0 %v5201, 32
      %v5203 = vpop.permute.xlu0 %5202
      %v5205 = vrot.slane %v5195, 1
      %5206 = vrot.lane.b32.xlu0 %v5205, 64
      %v5207 = vpop.permute.xlu0 %5206
      %v5209 = vsel %vm2690, %v5195, %v5203
      %vm5210 = vcmask 523264
      %v5212 = vsel %vm5210, %v5209, %v5207
      %v5213 = vld [vmem:[%s8] sm:$0xf]
      %v5214 = vld [vmem:[%s8 + $0x4] sm:$0xf]
      %v5215 = vld [vmem:[%s8 + $0x8] sm:$0xf]
      %v5216 = vld [vmem:[%s8 + $0xc] sm:$0xf]
      %v5217 = vld [vmem:[%s8 + $0x10] sm:$0xf]
      %v5218 = vld [vmem:[%s8 + $0x14] sm:$0xf]
      %v5219 = vld [vmem:[%s8 + $0x18] sm:$0xf]
      %v5220 = vld [vmem:[%s8 + $0x1c] sm:$0xf]
      %v5221 = vld [vmem:[%s8 + $0x20] sm:$0xf]
      %v5222 = vld [vmem:[%s8 + $0x24] sm:$0xf]
      %v5223 = vld [vmem:[%s8 + $0x28] sm:$0xf]
      %v5224 = vld [vmem:[%s8 + $0x2c] sm:$0xf]
      %v5225 = vld [vmem:[%s9] sm:$0x1]
      %v5227 = vlaneseq
      %v5228 = vshrl.u32 %v5227, 7
      %v5229 = vsub.s32 0, %v5228
      %v5230 = vrot.slane %v5225, %v5229
      %v5244 = vunpack.c.l.b16 %v5213
      %v5245 = vunpack.c.l.b16 %v5214
      %v5246 = vunpack.c.l.b16 %v5215
      %v5247 = vunpack.c.l.b16 %v5216
      %v5248 = vunpack.c.l.b16 %v5217
      %v5249 = vunpack.c.l.b16 %v5218
      %v5250 = vunpack.c.l.b16 %v5219
      %v5251 = vunpack.c.l.b16 %v5220
      %v5252 = vunpack.c.l.b16 %v5221
      %v5253 = vunpack.c.l.b16 %v5222
      %v5254 = vunpack.c.l.b16 %v5223
      %v5255 = vunpack.c.l.b16 %v5224
      %v5256 = vpack.c.b16 %v5245, %v5244
      %v5257 = vpack.c.b16 %v5247, %v5246
      %v5258 = vpack.c.b16 %v5249, %v5248
      %v5259 = vpack.c.b16 %v5251, %v5250
      %v5260 = vpack.c.b16 %v5253, %v5252
      %v5261 = vpack.c.b16 %v5255, %v5254
      %vm5268 = vcmask 785408
      %v5269 = vsel %vm5268, %v5212, 0
      %5271 = vmatprep.subr.bf16.mxu0 0
      %5272 = vmatpush1.bf16.msra.mxu0 %v5256
      %5273 = vmatprep.subr.bf16.mxu0 0
      %5274 = vmatpush1.bf16.msra.mxu0 %v5257
      %5275 = vmatprep.subr.bf16.mxu0 0
      %5276 = vmatpush1.bf16.msra.mxu0 %v5258
      %5277 = vmatprep.subr.bf16.mxu0 0
      %5278 = vmatpush1.bf16.msra.mxu0 %v5259
      %5279 = vmatprep.subr.bf16.mxu0 0
      %5280 = vmatpush1.bf16.msra.mxu0 %v5260
      %5281 = vmatprep.subr.bf16.mxu0 0
      %5282 = vmatpush1.bf16.msra.mxu0 %v5261
      %5283 = vmatprep.subr.bf16.mxu0 0
      %5284 = vmatpush1.bf16.msra.mxu0 0
      %5285 = vmatprep.subr.bf16.mxu0 0
      %5286 = vmatpush1.bf16.msra.mxu0 0
      %5287 = vmatprep.subr.bf16.mxu0 0
      %5288 = vmatpush1.bf16.msra.mxu0 0
      %5289 = vmatprep.subr.bf16.mxu0 0
      %5290 = vmatpush1.bf16.msra.mxu0 0
      %5291 = vmatprep.subr.bf16.mxu0 0
      %5292 = vmatpush1.bf16.msra.mxu0 0
      %5293 = vmatprep.subr.bf16.mxu0 0
      %5294 = vmatpush1.bf16.msra.mxu0 0
      %5295 = vmatprep.subr.bf16.mxu0 0
      %5296 = vmatpush1.bf16.msra.mxu0 0
      %5297 = vmatprep.subr.bf16.mxu0 0
      %5298 = vmatpush1.bf16.msra.mxu0 0
      %5299 = vmatprep.subr.bf16.mxu0 0
      %5300 = vmatpush1.bf16.msra.mxu0 0
      %5301 = vmatprep.subr.bf16.mxu0 0
      %5302 = vmatpush1.bf16.msra.mxu0 0
      %5303 = vmatprep.mubr.bf16.mxu0 0
      %5304 = vmatmul.mubr.bf16.gmra.mrb[0].mxu0 %v5269
      %v5305 = vpop.f32.mrb[0].mxu0
      %v5306 = vadd.f32 %v5230, %v5305
      %v5307 = vpop.f32.mrb[0].mxu0
      %v5308 = vpop.f32.mrb[0].mxu0
      %v5309 = vpop.f32.mrb[0].mxu0
      %5310 = vdwg.mxu0
      %v5311 = vmul.f32 %v5306, 0.5
      %v5312 = vmul.f32 %v5306, 0.044715
      %v5313 = vmul.f32 %v5312, %v5306
      %v5314 = vmul.f32 %v5313, %v5306
      %v5315 = vadd.f32 %v5306, %v5314
      %v5316 = vmul.f32 %v5315, 0.7978846
      %v5317 = vtanh.pop %v5316
      %v5318 = vadd.f32 %v5317, 1.0
      %v5319 = vmul.f32 %v5311, %v5318
      %v5320 = vadd.f32 %v5174, %v5319
      %v5321 = vld [vmem:[%s10] sm:$0x3]
      %vm5322 = vcmask 258048
      %v5323 = vsel %vm5322, %v5320, 0.0
      %5324 = vadd.xlane.f32.xlu0 %v5323
      %v5325 = vpop.xlane.xlu0 %5324
      %v5326 = vrcp.pop 32.0
      %v5327 = vmul.f32 %v5325, %v5326
      %v5328 = vsub.f32 %v5320, %v5327
      %v5329 = vmul.f32 %v5328, %v5328
      %v5330 = vsel %vm5322, %v5329, 0.0
      %5331 = vadd.xlane.f32.xlu0 %v5330
      %v5332 = vpop.xlane.xlu0 %5331
      %v5333 = vmul.f32 %v5332, %v5326
      %v5334 = vadd.f32 %v5333, 1e-05
      %v5335 = vrsqrt.pop %v5334
      %v5336 = vmul.f32 %v5328, %v5335
      %v5337 = vlaneseq
      %v5338 = vshrl.u32 %v5337, 7
      %v5339 = vsub.s32 0, %v5338
      %v5340 = vrot.slane %v5321, %v5339
      %v5341 = vmul.f32 %v5336, %v5340
      %v5342 = vlaneseq
      %v5343 = vshrl.u32 %v5342, 7
      %v5344 = vsub.s32 1, %v5343
      %v5345 = vrot.slane %v5321, %v5344
      %v5346 = vadd.f32 %v5341, %v5345
      %v5347 = vld [vmem:[%s11] sm:$0xff]
      %v5348 = vld [vmem:[%s11 + $0x8] sm:$0xff]
      %v5349 = vld [vmem:[%s11 + $0x10] sm:$0xf]
      %v5350 = vld [vmem:[%s12] sm:$0xf]
      %v5351 = vld [vmem:[%s13] sm:$0xf]
      %v5352 = vld [vmem:[%s13 + $0x4] sm:$0xf]
      %v5353 = vld [vmem:[%s13 + $0x8] sm:$0xf]
      %v5354 = vld [vmem:[%s13 + $0xc] sm:$0xf]
      %v5355 = vld [vmem:[%s13 + $0x10] sm:$0xf]
      %v5356 = vld [vmem:[%s13 + $0x14] sm:$0xf]
      %v5357 = vld [vmem:[%s13 + $0x18] sm:$0xf]
      %v5358 = vld [vmem:[%s13 + $0x1c] sm:$0xf]
      %v5359 = vld [vmem:[%s13 + $0x20] sm:$0xf]
      %v5360 = vld [vmem:[%s13 + $0x24] sm:$0xf]
      %v5361 = vld [vmem:[%s13 + $0x28] sm:$0xf]
      %v5362 = vld [vmem:[%s13 + $0x2c] sm:$0xf]
      %v5363 = vld [vmem:[%s13 + $0x30] sm:$0xf]
      %v5364 = vld [vmem:[%s13 + $0x34] sm:$0xf]
      %v5365 = vld [vmem:[%s13 + $0x38] sm:$0xf]
      %v5366 = vld [vmem:[%s13 + $0x3c] sm:$0xf]
      %v5367 = vld [vmem:[%s14] sm:$0xf]
      %v5368 = vsel %vm5322, %v5346, 0.0
      %5369 = vadd.xlane.f32.xlu0 %v5368
      %v5370 = vpop.xlane.xlu0 %5369
      %v5371 = vmul.f32 %v5370, %v5326
      %v5372 = vsub.f32 %v5346, %v5371
      %v5373 = vmul.f32 %v5372, %v5372
      %v5374 = vsel %vm5322, %v5373, 0.0
      %5375 = vadd.xlane.f32.xlu0 %v5374
      %v5376 = vpop.xlane.xlu0 %5375
      %v5377 = vmul.f32 %v5376, %v5326
      %v5378 = vadd.f32 %v5377, 1e-05
      %v5379 = vrsqrt.pop %v5378
      %v5380 = vmul.f32 %v5372, %v5379
      %v5381 = vlaneseq
      %v5382 = vshrl.u32 %v5381, 7
      %v5383 = vsub.s32 0, %v5382
      %v5384 = vrot.slane %v5350, %v5383
      %v5385 = vmul.f32 %v5380, %v5384
      %v5386 = vlaneseq
      %v5387 = vshrl.u32 %v5386, 7
      %v5388 = vsub.s32 1, %v5387
      %v5389 = vrot.slane %v5350, %v5388
      %v5390 = vadd.f32 %v5385, %v5389
      %v5391 = vpack.c.bf16 %v5390, %v5390
      %v5392 = vlaneseq
      %v5393 = vshrl.u32 %v5392, 7
      %v5394 = vsub.s32 0, %v5393
      %v5395 = vrot.slane %v5367, %v5394
      %v5400 = vunpack.c.l.b16 %v5351
      %v5401 = vunpack.c.l.b16 %v5352
      %v5402 = vunpack.c.l.b16 %v5353
      %v5403 = vunpack.c.l.b16 %v5354
      %v5404 = vpack.c.b16 %v5401, %v5400
      %v5405 = vpack.c.b16 %v5403, %v5402
      %v5409 = vsel %vm2690, %v5391, 0
      %5411 = vmatprep.subr.bf16.mxu0 0
      %5412 = vmatpush1.bf16.msra.mxu0 %v5404
      %5413 = vmatprep.subr.bf16.mxu0 0
      %5414 = vmatpush1.bf16.msra.mxu0 %v5405
      %5415 = vmatprep.subr.bf16.mxu0 0
      %5416 = vmatpush1.bf16.msra.mxu0 0
      %5417 = vmatprep.subr.bf16.mxu0 0
      %5418 = vmatpush1.bf16.msra.mxu0 0
      %5419 = vmatprep.subr.bf16.mxu0 0
      %5420 = vmatpush1.bf16.msra.mxu0 0
      %5421 = vmatprep.subr.bf16.mxu0 0
      %5422 = vmatpush1.bf16.msra.mxu0 0
      %5423 = vmatprep.subr.bf16.mxu0 0
      %5424 = vmatpush1.bf16.msra.mxu0 0
      %5425 = vmatprep.subr.bf16.mxu0 0
      %5426 = vmatpush1.bf16.msra.mxu0 0
      %5427 = vmatprep.subr.bf16.mxu0 0
      %5428 = vmatpush1.bf16.msra.mxu0 0
      %5429 = vmatprep.subr.bf16.mxu0 0
      %5430 = vmatpush1.bf16.msra.mxu0 0
      %5431 = vmatprep.subr.bf16.mxu0 0
      %5432 = vmatpush1.bf16.msra.mxu0 0
      %5433 = vmatprep.subr.bf16.mxu0 0
      %5434 = vmatpush1.bf16.msra.mxu0 0
      %5435 = vmatprep.subr.bf16.mxu0 0
      %5436 = vmatpush1.bf16.msra.mxu0 0
      %5437 = vmatprep.subr.bf16.mxu0 0
      %5438 = vmatpush1.bf16.msra.mxu0 0
      %5439 = vmatprep.subr.bf16.mxu0 0
      %5440 = vmatpush1.bf16.msra.mxu0 0
      %5441 = vmatprep.subr.bf16.mxu0 0
      %5442 = vmatpush1.bf16.msra.mxu0 0
      %5443 = vmatprep.mubr.bf16.mxu0 0
      %5444 = vmatmul.mubr.bf16.gmra.mrb[0].mxu0 %v5409
      %v5445 = vpop.f32.mrb[0].mxu0
      %v5446 = vadd.f32 %v5395, %v5445
      %v5447 = vpop.f32.mrb[0].mxu0
      %v5448 = vpop.f32.mrb[0].mxu0
      %v5449 = vpop.f32.mrb[0].mxu0
      %5450 = vdwg.mxu0
      %v5451 = vlaneseq
      %v5452 = vshrl.u32 %v5451, 7
      %v5453 = vsub.s32 1, %v5452
      %v5454 = vrot.slane %v5367, %v5453
      %v5459 = vunpack.c.l.b16 %v5355
      %v5460 = vunpack.c.l.b16 %v5356
      %v5461 = vunpack.c.l.b16 %v5357
      %v5462 = vunpack.c.l.b16 %v5358
      %v5463 = vpack.c.b16 %v5460, %v5459
      %v5464 = vpack.c.b16 %v5462, %v5461
      %5467 = vmatprep.subr.bf16.mxu0 0
      %5468 = vmatpush1.bf16.msra.mxu0 %v5463
      %5469 = vmatprep.subr.bf16.mxu0 0
      %5470 = vmatpush1.bf16.msra.mxu0 %v5464
      %5471 = vmatprep.subr.bf16.mxu0 0
      %5472 = vmatpush1.bf16.msra.mxu0 0
      %5473 = vmatprep.subr.bf16.mxu0 0
      %5474 = vmatpush1.bf16.msra.mxu0 0
      %5475 = vmatprep.subr.bf16.mxu0 0
      %5476 = vmatpush1.bf16.msra.mxu0 0
      %5477 = vmatprep.subr.bf16.mxu0 0
      %5478 = vmatpush1.bf16.msra.mxu0 0
      %5479 = vmatprep.subr.bf16.mxu0 0
      %5480 = vmatpush1.bf16.msra.mxu0 0
      %5481 = vmatprep.subr.bf16.mxu0 0
      %5482 = vmatpush1.bf16.msra.mxu0 0
      %5483 = vmatprep.subr.bf16.mxu0 0
      %5484 = vmatpush1.bf16.msra.mxu0 0
      %5485 = vmatprep.subr.bf16.mxu0 0
      %5486 = vmatpush1.bf16.msra.mxu0 0
      %5487 = vmatprep.subr.bf16.mxu0 0
      %5488 = vmatpush1.bf16.msra.mxu0 0
      %5489 = vmatprep.subr.bf16.mxu0 0
      %5490 = vmatpush1.bf16.msra.mxu0 0
      %5491 = vmatprep.subr.bf16.mxu0 0
      %5492 = vmatpush1.bf16.msra.mxu0 0
      %5493 = vmatprep.subr.bf16.mxu0 0
      %5494 = vmatpush1.bf16.msra.mxu0 0
      %5495 = vmatprep.subr.bf16.mxu0 0
      %5496 = vmatpush1.bf16.msra.mxu0 0
      %5497 = vmatprep.subr.bf16.mxu0 0
      %5498 = vmatpush1.bf16.msra.mxu0 0
      %5499 = vmatprep.mubr.bf16.mxu0 0
      %5500 = vmatmul.mubr.bf16.gmra.mrb[0].mxu0 %v5409
      %v5501 = vpop.f32.mrb[0].mxu0
      %v5502 = vadd.f32 %v5454, %v5501
      %v5503 = vpop.f32.mrb[0].mxu0
      %v5504 = vpop.f32.mrb[0].mxu0
      %v5505 = vpop.f32.mrb[0].mxu0
      %5506 = vdwg.mxu0
      %v5507 = vlaneseq
      %v5508 = vshrl.u32 %v5507, 7
      %v5509 = vsub.s32 2, %v5508
      %v5510 = vrot.slane %v5367, %v5509
      %v5515 = vunpack.c.l.b16 %v5359
      %v5516 = vunpack.c.l.b16 %v5360
      %v5517 = vunpack.c.l.b16 %v5361
      %v5518 = vunpack.c.l.b16 %v5362
      %v5519 = vpack.c.b16 %v5516, %v5515
      %v5520 = vpack.c.b16 %v5518, %v5517
      %5523 = vmatprep.subr.bf16.mxu0 0
      %5524 = vmatpush1.bf16.msra.mxu0 %v5519
      %5525 = vmatprep.subr.bf16.mxu0 0
      %5526 = vmatpush1.bf16.msra.mxu0 %v5520
      %5527 = vmatprep.subr.bf16.mxu0 0
      %5528 = vmatpush1.bf16.msra.mxu0 0
      %5529 = vmatprep.subr.bf16.mxu0 0
      %5530 = vmatpush1.bf16.msra.mxu0 0
      %5531 = vmatprep.subr.bf16.mxu0 0
      %5532 = vmatpush1.bf16.msra.mxu0 0
      %5533 = vmatprep.subr.bf16.mxu0 0
      %5534 = vmatpush1.bf16.msra.mxu0 0
      %5535 = vmatprep.subr.bf16.mxu0 0
      %5536 = vmatpush1.bf16.msra.mxu0 0
      %5537 = vmatprep.subr.bf16.mxu0 0
      %5538 = vmatpush1.bf16.msra.mxu0 0
      %5539 = vmatprep.subr.bf16.mxu0 0
      %5540 = vmatpush1.bf16.msra.mxu0 0
      %5541 = vmatprep.subr.bf16.mxu0 0
      %5542 = vmatpush1.bf16.msra.mxu0 0
      %5543 = vmatprep.subr.bf16.mxu0 0
      %5544 = vmatpush1.bf16.msra.mxu0 0
      %5545 = vmatprep.subr.bf16.mxu0 0
      %5546 = vmatpush1.bf16.msra.mxu0 0
      %5547 = vmatprep.subr.bf16.mxu0 0
      %5548 = vmatpush1.bf16.msra.mxu0 0
      %5549 = vmatprep.subr.bf16.mxu0 0
      %5550 = vmatpush1.bf16.msra.mxu0 0
      %5551 = vmatprep.subr.bf16.mxu0 0
      %5552 = vmatpush1.bf16.msra.mxu0 0
      %5553 = vmatprep.subr.bf16.mxu0 0
      %5554 = vmatpush1.bf16.msra.mxu0 0
      %5555 = vmatprep.mubr.bf16.mxu0 0
      %5556 = vmatmul.mubr.bf16.gmra.mrb[0].mxu0 %v5409
      %v5557 = vpop.f32.mrb[0].mxu0
      %v5558 = vadd.f32 %v5510, %v5557
      %v5559 = vpop.f32.mrb[0].mxu0
      %v5560 = vpop.f32.mrb[0].mxu0
      %v5561 = vpop.f32.mrb[0].mxu0
      %5562 = vdwg.mxu0
      %v5564 = vrot.slane %v5446, 3
      %v5566 = vrot.slane %v5446, 6
      %v5568 = vrot.slane %v5446, 1
      %v5570 = vsel %vm772, %v5446, %v5564
      %vm5571 = vcmask 1041408
      %v5572 = vsel %vm5571, %v5564, %v5566
      %vm5573 = vcmask 1046528
      %v5574 = vsel %vm5573, %v5572, %v5568
      %v5575 = vmul.f32 %v5570, %v5347
      %v5576 = vmul.f32 %v5574, %v5348
      %v5577 = vmul.f32 %v5568, %v5349
      %v5578 = vpack.c.bf16 %v5576, %v5575
      %v5579 = vpack.c.bf16 %v5577, %v5577
      %v5580 = vpack.c.bf16 %v5502, %v5502
      %v5582 = vsel %vm2690, %v5578, 0
      %v5585 = vsel %vm2690, %v5579, 0
      %v5588 = vsel %vm2690, %v5580, 0
      %5590 = vmatprep.subr.bf16.mxu0 0
      %5591 = vmatpush1.bf16.xpose.msra.mxu0 %v5588
      %5592 = vmatprep.subr.bf16.mxu0 0
      %5593 = vmatpush1.bf16.xpose.msra.mxu0 0
      %5594 = vmatprep.subr.bf16.mxu0 0
      %5595 = vmatpush1.bf16.xpose.msra.mxu0 0
      %5596 = vmatprep.subr.bf16.mxu0 0
      %5597 = vmatpush1.bf16.xpose.msra.mxu0 0
      %5598 = vmatprep.subr.bf16.mxu0 0
      %5599 = vmatpush1.bf16.xpose.msra.mxu0 0
      %5600 = vmatprep.subr.bf16.mxu0 0
      %5601 = vmatpush1.bf16.xpose.msra.mxu0 0
      %5602 = vmatprep.subr.bf16.mxu0 0
      %5603 = vmatpush1.bf16.xpose.msra.mxu0 0
      %5604 = vmatprep.subr.bf16.mxu0 0
      %5605 = vmatpush1.bf16.xpose.msra.mxu0 0
      %5606 = vmatprep.subr.bf16.mxu0 0
      %5607 = vmatpush1.bf16.xpose.msra.mxu0 0
      %5608 = vmatprep.subr.bf16.mxu0 0
      %5609 = vmatpush1.bf16.xpose.msra.mxu0 0
      %5610 = vmatprep.subr.bf16.mxu0 0
      %5611 = vmatpush1.bf16.xpose.msra.mxu0 0
      %5612 = vmatprep.subr.bf16.mxu0 0
      %5613 = vmatpush1.bf16.xpose.msra.mxu0 0
      %5614 = vmatprep.subr.bf16.mxu0 0
      %5615 = vmatpush1.bf16.xpose.msra.mxu0 0
      %5616 = vmatprep.subr.bf16.mxu0 0
      %5617 = vmatpush1.bf16.xpose.msra.mxu0 0
      %5618 = vmatprep.subr.bf16.mxu0 0
      %5619 = vmatpush1.bf16.xpose.msra.mxu0 0
      %5620 = vmatprep.subr.bf16.mxu0 0
      %5621 = vmatpush1.bf16.xpose.msra.mxu0 0
      %5622 = vmatprep.mubr.bf16.mxu0 0
      %5623 = vmatmul.mubr.bf16.gmra.mrb[0].mxu0 %v5582
      %v5624 = vpop.f32.mrb[0].mxu0
      %v5625 = vadd.f32 0.0, %v5624
      %v5626 = vpop.f32.mrb[0].mxu0
      %v5627 = vpop.f32.mrb[0].mxu0
      %v5628 = vadd.f32 0.0, %v5627
      %v5629 = vpop.f32.mrb[0].mxu0
      %5630 = vmatprep.mubr.bf16.mxu0 0
      %5631 = vmatmul.mubr.bf16.gmra.mrb[0].mxu0 %v5585
      %v5632 = vpop.f32.mrb[0].mxu0
      %v5633 = vadd.f32 0.0, %v5632
      %v5634 = vpop.f32.mrb[0].mxu0
      %v5635 = vpop.f32.mrb[0].mxu0
      %v5636 = vpop.f32.mrb[0].mxu0
      %5637 = vdwg.mxu0
      %v5638 = vmul.f32 %v5625, 0.35355338
      %v5639 = vmul.f32 %v5628, 0.35355338
      %v5640 = vmul.f32 %v5633, 0.35355338
      %vm5641 = vcmask 39936
      %v5642 = vsel %vm5641, %v5638, -inf
      %5643 = vmax.xlane.f32.xlu0 %v5642
      %v5644 = vpop.xlane.xlu0 %5643
      %v5645 = vsel %vm5641, %v5639, -inf
      %5646 = vmax.xlane.f32.xlu0 %v5645
      %v5647 = vpop.xlane.xlu0 %5646
      %vm5648 = vcmask 35840
      %v5649 = vsel %vm5648, %v5640, -inf
      %5650 = vmax.xlane.f32.xlu0 %v5649
      %v5651 = vpop.xlane.xlu0 %5650
      %v5652 = vsub.f32 %v5638, %v5644
      %v5653 = vsub.f32 %v5639, %v5647
      %v5654 = vsub.f32 %v5640, %v5651
      %v5655 = vmul.f32 %v5652, 1.442695
      %v5656 = vpow.pop %v5655
      %v5657 = vmul.f32 %v5653, 1.442695
      %v5658 = vpow.pop %v5657
      %v5659 = vmul.f32 %v5654, 1.442695
      %v5660 = vpow.pop %v5659
      %v5661 = vsel %vm5641, %v5656, 0.0
      %5662 = vadd.xlane.f32.xlu0 %v5661
      %v5663 = vpop.xlane.xlu0 %5662
      %v5664 = vsel %vm5641, %v5658, 0.0
      %5665 = vadd.xlane.f32.xlu0 %v5664
      %v5666 = vpop.xlane.xlu0 %5665
      %v5667 = vsel %vm5648, %v5660, 0.0
      %5668 = vadd.xlane.f32.xlu0 %v5667
      %v5669 = vpop.xlane.xlu0 %5668
      %v5670 = vrcp.pop %v5663
      %v5671 = vrcp.pop %v5666
      %v5672 = vrcp.pop %v5669
      %v5673 = vmul.f32 %v5656, %v5670
      %v5674 = vmul.f32 %v5658, %v5671
      %v5675 = vmul.f32 %v5660, %v5672
      %v5676 = vpack.c.bf16 %v5674, %v5673
      %v5677 = vpack.c.bf16 %v5675, %v5675
      %v5678 = vpack.c.bf16 %v5558, %v5558
      %v5680 = vsel %vm5641, %v5676, 0
      %v5683 = vsel %vm5641, %v5677, 0
      %v5685 = vsel %vm5571, 4294967295, 65535
      %v5686 = vsel %vm5192, %v5685, 0
      %v5688 = vand.u32 %v5678, %v5686
      %5690 = vmatprep.subr.bf16.mxu0 0
      %5691 = vmatpush1.bf16.msra.mxu0 %v5688
      %5692 = vmatprep.subr.bf16.mxu0 0
      %5693 = vmatpush1.bf16.msra.mxu0 0
      %5694 = vmatprep.subr.bf16.mxu0 0
      %5695 = vmatpush1.bf16.msra.mxu0 0
      %5696 = vmatprep.subr.bf16.mxu0 0
      %5697 = vmatpush1.bf16.msra.mxu0 0
      %5698 = vmatprep.subr.bf16.mxu0 0
      %5699 = vmatpush1.bf16.msra.mxu0 0
      %5700 = vmatprep.subr.bf16.mxu0 0
      %5701 = vmatpush1.bf16.msra.mxu0 0
      %5702 = vmatprep.subr.bf16.mxu0 0
      %5703 = vmatpush1.bf16.msra.mxu0 0
      %5704 = vmatprep.subr.bf16.mxu0 0
      %5705 = vmatpush1.bf16.msra.mxu0 0
      %5706 = vmatprep.subr.bf16.mxu0 0
      %5707 = vmatpush1.bf16.msra.mxu0 0
      %5708 = vmatprep.subr.bf16.mxu0 0
      %5709 = vmatpush1.bf16.msra.mxu0 0
      %5710 = vmatprep.subr.bf16.mxu0 0
      %5711 = vmatpush1.bf16.msra.mxu0 0
      %5712 = vmatprep.subr.bf16.mxu0 0
      %5713 = vmatpush1.bf16.msra.mxu0 0
      %5714 = vmatprep.subr.bf16.mxu0 0
      %5715 = vmatpush1.bf16.msra.mxu0 0
      %5716 = vmatprep.subr.bf16.mxu0 0
      %5717 = vmatpush1.bf16.msra.mxu0 0
      %5718 = vmatprep.subr.bf16.mxu0 0
      %5719 = vmatpush1.bf16.msra.mxu0 0
      %5720 = vmatprep.subr.bf16.mxu0 0
      %5721 = vmatpush1.bf16.msra.mxu0 0
      %5722 = vmatprep.mubr.bf16.mxu0 0
      %5723 = vmatmul.mubr.bf16.gmra.mrb[0].mxu0 %v5680
      %v5724 = vpop.f32.mrb[0].mxu0
      %v5725 = vadd.f32 0.0, %v5724
      %v5726 = vpop.f32.mrb[0].mxu0
      %v5727 = vpop.f32.mrb[0].mxu0
      %v5728 = vadd.f32 0.0, %v5727
      %v5729 = vpop.f32.mrb[0].mxu0
      %5730 = vmatprep.mubr.bf16.mxu0 0
      %5731 = vmatmul.mubr.bf16.gmra.mrb[0].mxu0 %v5683
      %v5732 = vpop.f32.mrb[0].mxu0
      %v5733 = vadd.f32 0.0, %v5732
      %v5734 = vpop.f32.mrb[0].mxu0
      %v5735 = vpop.f32.mrb[0].mxu0
      %v5736 = vpop.f32.mrb[0].mxu0
      %5737 = vdwg.mxu0
      %v5738 = vmul.f32 %v5725, %v5347
      %v5739 = vmul.f32 %v5728, %v5348
      %v5740 = vmul.f32 %v5733, %v5349
      %v5743 = vrot.slane %v5738, 5
      %v5744 = vrot.slane %v5739, 5
      %v5745 = vsel %vm5192, %v5743, %v5744
      %v5747 = vadd.f32 %v5738, %v5745
      %v5748 = vrot.slane %v5739, 2
      %v5750 = vadd.f32 %v5747, %v5748
      %vm5752 = vcmask 1040384
      %v5753 = vrot.slane %v5739, 7
      %v5754 = vrot.slane %v5740, 7
      %v5755 = vsel %vm5752, %v5753, %v5754
      %v5757 = vadd.f32 %v5750, %v5755
      %v5758 = vpack.c.bf16 %v5757, %v5757
      %v5763 = vunpack.c.l.b16 %v5363
      %v5764 = vunpack.c.l.b16 %v5364
      %v5765 = vunpack.c.l.b16 %v5365
      %v5766 = vunpack.c.l.b16 %v5366
      %v5767 = vpack.c.b16 %v5764, %v5763
      %v5768 = vpack.c.b16 %v5766, %v5765
      %v5772 = vsel %vm2690, %v5758, 0
      %5774 = vmatprep.subr.bf16.mxu0 0
      %5775 = vmatpush1.bf16.msra.mxu0 %v5767
      %5776 = vmatprep.subr.bf16.mxu0 0
      %5777 = vmatpush1.bf16.msra.mxu0 %v5768
      %5778 = vmatprep.subr.bf16.mxu0 0
      %5779 = vmatpush1.bf16.msra.mxu0 0
      %5780 = vmatprep.subr.bf16.mxu0 0
      %5781 = vmatpush1.bf16.msra.mxu0 0
      %5782 = vmatprep.subr.bf16.mxu0 0
      %5783 = vmatpush1.bf16.msra.mxu0 0
      %5784 = vmatprep.subr.bf16.mxu0 0
      %5785 = vmatpush1.bf16.msra.mxu0 0
      %5786 = vmatprep.subr.bf16.mxu0 0
      %5787 = vmatpush1.bf16.msra.mxu0 0
      %5788 = vmatprep.subr.bf16.mxu0 0
      %5789 = vmatpush1.bf16.msra.mxu0 0
      %5790 = vmatprep.subr.bf16.mxu0 0
      %5791 = vmatpush1.bf16.msra.mxu0 0
      %5792 = vmatprep.subr.bf16.mxu0 0
      %5793 = vmatpush1.bf16.msra.mxu0 0
      %5794 = vmatprep.subr.bf16.mxu0 0
      %5795 = vmatpush1.bf16.msra.mxu0 0
      %5796 = vmatprep.subr.bf16.mxu0 0
      %5797 = vmatpush1.bf16.msra.mxu0 0
      %5798 = vmatprep.subr.bf16.mxu0 0
      %5799 = vmatpush1.bf16.msra.mxu0 0
      %5800 = vmatprep.subr.bf16.mxu0 0
      %5801 = vmatpush1.bf16.msra.mxu0 0
      %5802 = vmatprep.subr.bf16.mxu0 0
      %5803 = vmatpush1.bf16.msra.mxu0 0
      %5804 = vmatprep.subr.bf16.mxu0 0
      %5805 = vmatpush1.bf16.msra.mxu0 0
      %5806 = vmatprep.mubr.bf16.mxu0 0
      %5807 = vmatmul.mubr.bf16.gmra.mrb[0].mxu0 %v5772
      %v5808 = vpop.f32.mrb[0].mxu0
      %v5809 = vadd.f32 0.0, %v5808
      %v5810 = vpop.f32.mrb[0].mxu0
      %v5811 = vpop.f32.mrb[0].mxu0
      %v5812 = vpop.f32.mrb[0].mxu0
      %5813 = vdwg.mxu0
      %v5814 = vadd.f32 %v5346, %v5809
      %v5815 = vlaneseq
      %v5816 = vshrl.u32 %v5815, 7
      %v5817 = vsub.s32 3, %v5816
      %v5818 = vrot.slane %v5367, %v5817
      %v5819 = vadd.f32 %v5814, %v5818
      %v5820 = vsel %vm5322, %v5819, 0.0
      %5821 = vadd.xlane.f32.xlu0 %v5820
      %v5822 = vpop.xlane.xlu0 %5821
      %v5823 = vmul.f32 %v5822, %v5326
      %v5824 = vsub.f32 %v5819, %v5823
      %v5825 = vmul.f32 %v5824, %v5824
      %v5826 = vsel %vm5322, %v5825, 0.0
      %5827 = vadd.xlane.f32.xlu0 %v5826
      %v5828 = vpop.xlane.xlu0 %5827
      %v5829 = vmul.f32 %v5828, %v5326
      %v5830 = vadd.f32 %v5829, 1e-05
      %v5831 = vrsqrt.pop %v5830
      %v5832 = vmul.f32 %v5824, %v5831
      %v5833 = vlaneseq
      %v5834 = vshrl.u32 %v5833, 7
      %v5835 = vsub.s32 2, %v5834
      %v5836 = vrot.slane %v5350, %v5835
      %v5837 = vmul.f32 %v5832, %v5836
      %v5838 = vlaneseq
      %v5839 = vshrl.u32 %v5838, 7
      %v5840 = vsub.s32 3, %v5839
      %v5841 = vrot.slane %v5350, %v5840
      %v5842 = vadd.f32 %v5837, %v5841
      %v5843 = vld [vmem:[%s15] sm:$0xf]
      %v5844 = vld [vmem:[%s15 + $0x4] sm:$0xf]
      %v5845 = vld [vmem:[%s15 + $0x8] sm:$0xf]
      %v5846 = vld [vmem:[%s15 + $0xc] sm:$0xf]
      %v5847 = vpack.c.bf16 %v5842, %v5842
      %v5848 = vld [vmem:[%s16] sm:$0x1]
      %v5850 = vlaneseq
      %v5851 = vshrl.u32 %v5850, 7
      %v5852 = vsub.s32 0, %v5851
      %v5853 = vrot.slane %v5848, %v5852
      %v5859 = vunpack.c.l.b16 %v5843
      %v5860 = vunpack.c.l.b16 %v5844
      %v5861 = vunpack.c.l.b16 %v5845
      %v5862 = vunpack.c.l.b16 %v5846
      %v5863 = vpack.c.b16 %v5860, %v5859
      %v5864 = vpack.c.b16 %v5862, %v5861
      %v5868 = vsel %vm2690, %v5847, 0
      %5870 = vmatprep.subr.bf16.mxu0 0
      %5871 = vmatpush1.bf16.msra.mxu0 %v5863
      %5872 = vmatprep.subr.bf16.mxu0 0
      %5873 = vmatpush1.bf16.msra.mxu0 %v5864
      %5874 = vmatprep.subr.bf16.mxu0 0
      %5875 = vmatpush1.bf16.msra.mxu0 0
      %5876 = vmatprep.subr.bf16.mxu0 0
      %5877 = vmatpush1.bf16.msra.mxu0 0
      %5878 = vmatprep.subr.bf16.mxu0 0
      %5879 = vmatpush1.bf16.msra.mxu0 0
      %5880 = vmatprep.subr.bf16.mxu0 0
      %5881 = vmatpush1.bf16.msra.mxu0 0
      %5882 = vmatprep.subr.bf16.mxu0 0
      %5883 = vmatpush1.bf16.msra.mxu0 0
      %5884 = vmatprep.subr.bf16.mxu0 0
      %5885 = vmatpush1.bf16.msra.mxu0 0
      %5886 = vmatprep.subr.bf16.mxu0 0
      %5887 = vmatpush1.bf16.msra.mxu0 0
      %5888 = vmatprep.subr.bf16.mxu0 0
      %5889 = vmatpush1.bf16.msra.mxu0 0
      %5890 = vmatprep.subr.bf16.mxu0 0
      %5891 = vmatpush1.bf16.msra.mxu0 0
      %5892 = vmatprep.subr.bf16.mxu0 0
      %5893 = vmatpush1.bf16.msra.mxu0 0
      %5894 = vmatprep.subr.bf16.mxu0 0
      %5895 = vmatpush1.bf16.msra.mxu0 0
      %5896 = vmatprep.subr.bf16.mxu0 0
      %5897 = vmatpush1.bf16.msra.mxu0 0
      %5898 = vmatprep.subr.bf16.mxu0 0
      %5899 = vmatpush1.bf16.msra.mxu0 0
      %5900 = vmatprep.subr.bf16.mxu0 0
      %5901 = vmatpush1.bf16.msra.mxu0 0
      %5902 = vmatprep.mubr.bf16.mxu0 0
      %5903 = vmatmul.mubr.bf16.gmra.mrb[0].mxu0 %v5868
      %v5904 = vpop.f32.mrb[0].mxu0
      %v5905 = vadd.f32 %v5853, %v5904
      %v5906 = vpop.f32.mrb[0].mxu0
      %v5907 = vpop.f32.mrb[0].mxu0
      %v5908 = vpop.f32.mrb[0].mxu0
      %5909 = vdwg.mxu0
      %v5910 = vmul.f32 %v5905, 0.5
      %v5911 = vmul.f32 %v5905, 0.044715
      %v5912 = vmul.f32 %v5911, %v5905
      %v5913 = vmul.f32 %v5912, %v5905
      %v5914 = vadd.f32 %v5905, %v5913
      %v5915 = vmul.f32 %v5914, 0.7978846
      %v5916 = vtanh.pop %v5915
      %v5917 = vadd.f32 %v5916, 1.0
      %v5918 = vmul.f32 %v5910, %v5917
      %v5919 = vld [vmem:[%s17] sm:$0xf]
      %v5920 = vld [vmem:[%s17 + $0x4] sm:$0xf]
      %v5921 = vld [vmem:[%s17 + $0x8] sm:$0xf]
      %v5922 = vld [vmem:[%s17 + $0xc] sm:$0xf]
      %v5923 = vld [vmem:[%s17 + $0x10] sm:$0xf]
      %v5924 = vld [vmem:[%s17 + $0x14] sm:$0xf]
      %v5925 = vld [vmem:[%s17 + $0x18] sm:$0xf]
      %v5926 = vld [vmem:[%s17 + $0x1c] sm:$0xf]
      %v5927 = vpack.c.bf16 %v5918, %v5918
      %v5936 = vunpack.c.l.b16 %v5919
      %v5937 = vunpack.c.l.b16 %v5920
      %v5938 = vunpack.c.l.b16 %v5921
      %v5939 = vunpack.c.l.b16 %v5922
      %v5940 = vunpack.c.l.b16 %v5923
      %v5941 = vunpack.c.l.b16 %v5924
      %v5942 = vunpack.c.l.b16 %v5925
      %v5943 = vunpack.c.l.b16 %v5926
      %v5944 = vpack.c.b16 %v5937, %v5936
      %v5945 = vpack.c.b16 %v5939, %v5938
      %v5946 = vpack.c.b16 %v5941, %v5940
      %v5947 = vpack.c.b16 %v5943, %v5942
      %v5953 = vsel %vm5210, %v5927, 0
      %5955 = vmatprep.subr.bf16.mxu0 0
      %5956 = vmatpush1.bf16.msra.mxu0 %v5944
      %5957 = vmatprep.subr.bf16.mxu0 0
      %5958 = vmatpush1.bf16.msra.mxu0 %v5945
      %5959 = vmatprep.subr.bf16.mxu0 0
      %5960 = vmatpush1.bf16.msra.mxu0 %v5946
      %5961 = vmatprep.subr.bf16.mxu0 0
      %5962 = vmatpush1.bf16.msra.mxu0 %v5947
      %5963 = vmatprep.subr.bf16.mxu0 0
      %5964 = vmatpush1.bf16.msra.mxu0 0
      %5965 = vmatprep.subr.bf16.mxu0 0
      %5966 = vmatpush1.bf16.msra.mxu0 0
      %5967 = vmatprep.subr.bf16.mxu0 0
      %5968 = vmatpush1.bf16.msra.mxu0 0
      %5969 = vmatprep.subr.bf16.mxu0 0
      %5970 = vmatpush1.bf16.msra.mxu0 0
      %5971 = vmatprep.subr.bf16.mxu0 0
      %5972 = vmatpush1.bf16.msra.mxu0 0
      %5973 = vmatprep.subr.bf16.mxu0 0
      %5974 = vmatpush1.bf16.msra.mxu0 0
      %5975 = vmatprep.subr.bf16.mxu0 0
      %5976 = vmatpush1.bf16.msra.mxu0 0
      %5977 = vmatprep.subr.bf16.mxu0 0
      %5978 = vmatpush1.bf16.msra.mxu0 0
      %5979 = vmatprep.subr.bf16.mxu0 0
      %5980 = vmatpush1.bf16.msra.mxu0 0
      %5981 = vmatprep.subr.bf16.mxu0 0
      %5982 = vmatpush1.bf16.msra.mxu0 0
      %5983 = vmatprep.subr.bf16.mxu0 0
      %5984 = vmatpush1.bf16.msra.mxu0 0
      %5985 = vmatprep.subr.bf16.mxu0 0
      %5986 = vmatpush1.bf16.msra.mxu0 0
      %5987 = vmatprep.mubr.bf16.mxu0 0
      %5988 = vmatmul.mubr.bf16.gmra.mrb[0].mxu0 %v5953
      %v5989 = vpop.f32.mrb[0].mxu0
      %v5990 = vadd.f32 0.0, %v5989
      %v5991 = vpop.f32.mrb[0].mxu0
      %v5992 = vpop.f32.mrb[0].mxu0
      %v5993 = vpop.f32.mrb[0].mxu0
      %5994 = vdwg.mxu0
      %v5995 = vadd.f32 %v5819, %v5990
      %v5996 = vld [vmem:[%s18] sm:$0x1]
      %v5998 = vlaneseq
      %v5999 = vshrl.u32 %v5998, 7
      %v6000 = vsub.s32 0, %v5999
      %v6001 = vrot.slane %v5996, %v6000
      %v6003 = vadd.f32 %v5995, %v6001
      %s6004 = scalar_lea.vmem %s12, 4
      %v6005 = vld [vmem:[%s6004] sm:$0xf]
      %s6006 = scalar_lea.vmem %s13, 64
      %v6007 = vld [vmem:[%s6006] sm:$0xf]
      %v6008 = vld [vmem:[%s6006 + $0x4] sm:$0xf]
      %v6009 = vld [vmem:[%s6006 + $0x8] sm:$0xf]
      %v6010 = vld [vmem:[%s6006 + $0xc] sm:$0xf]
      %v6011 = vld [vmem:[%s6006 + $0x10] sm:$0xf]
      %v6012 = vld [vmem:[%s6006 + $0x14] sm:$0xf]
      %v6013 = vld [vmem:[%s6006 + $0x18] sm:$0xf]
      %v6014 = vld [vmem:[%s6006 + $0x1c] sm:$0xf]
      %v6015 = vld [vmem:[%s6006 + $0x20] sm:$0xf]
      %v6016 = vld [vmem:[%s6006 + $0x24] sm:$0xf]
      %v6017 = vld [vmem:[%s6006 + $0x28] sm:$0xf]
      %v6018 = vld [vmem:[%s6006 + $0x2c] sm:$0xf]
      %v6019 = vld [vmem:[%s6006 + $0x30] sm:$0xf]
      %v6020 = vld [vmem:[%s6006 + $0x34] sm:$0xf]
      %v6021 = vld [vmem:[%s6006 + $0x38] sm:$0xf]
      %v6022 = vld [vmem:[%s6006 + $0x3c] sm:$0xf]
      %s6023 = scalar_lea.vmem %s14, 4
      %v6024 = vld [vmem:[%s6023] sm:$0xf]
      %v6025 = vsel %vm5322, %v6003, 0.0
      %6026 = vadd.xlane.f32.xlu0 %v6025
      %v6027 = vpop.xlane.xlu0 %6026
      %v6028 = vmul.f32 %v6027, %v5326
      %v6029 = vsub.f32 %v6003, %v6028
      %v6030 = vmul.f32 %v6029, %v6029
      %v6031 = vsel %vm5322, %v6030, 0.0
      %6032 = vadd.xlane.f32.xlu0 %v6031
      %v6033 = vpop.xlane.xlu0 %6032
      %v6034 = vmul.f32 %v6033, %v5326
      %v6035 = vadd.f32 %v6034, 1e-05
      %v6036 = vrsqrt.pop %v6035
      %v6037 = vmul.f32 %v6029, %v6036
      %v6038 = vlaneseq
      %v6039 = vshrl.u32 %v6038, 7
      %v6040 = vsub.s32 0, %v6039
      %v6041 = vrot.slane %v6005, %v6040
      %v6042 = vmul.f32 %v6037, %v6041
      %v6043 = vlaneseq
      %v6044 = vshrl.u32 %v6043, 7
      %v6045 = vsub.s32 1, %v6044
      %v6046 = vrot.slane %v6005, %v6045
      %v6047 = vadd.f32 %v6042, %v6046
      %v6048 = vpack.c.bf16 %v6047, %v6047
      %v6049 = vlaneseq
      %v6050 = vshrl.u32 %v6049, 7
      %v6051 = vsub.s32 0, %v6050
      %v6052 = vrot.slane %v6024, %v6051
      %v6057 = vunpack.c.l.b16 %v6007
      %v6058 = vunpack.c.l.b16 %v6008
      %v6059 = vunpack.c.l.b16 %v6009
      %v6060 = vunpack.c.l.b16 %v6010
      %v6061 = vpack.c.b16 %v6058, %v6057
      %v6062 = vpack.c.b16 %v6060, %v6059
      %v6066 = vsel %vm2690, %v6048, 0
      %6068 = vmatprep.subr.bf16.mxu0 0
      %6069 = vmatpush1.bf16.msra.mxu0 %v6061
      %6070 = vmatprep.subr.bf16.mxu0 0
      %6071 = vmatpush1.bf16.msra.mxu0 %v6062
      %6072 = vmatprep.subr.bf16.mxu0 0
      %6073 = vmatpush1.bf16.msra.mxu0 0
      %6074 = vmatprep.subr.bf16.mxu0 0
      %6075 = vmatpush1.bf16.msra.mxu0 0
      %6076 = vmatprep.subr.bf16.mxu0 0
      %6077 = vmatpush1.bf16.msra.mxu0 0
      %6078 = vmatprep.subr.bf16.mxu0 0
      %6079 = vmatpush1.bf16.msra.mxu0 0
      %6080 = vmatprep.subr.bf16.mxu0 0
      %6081 = vmatpush1.bf16.msra.mxu0 0
      %6082 = vmatprep.subr.bf16.mxu0 0
      %6083 = vmatpush1.bf16.msra.mxu0 0
      %6084 = vmatprep.subr.bf16.mxu0 0
      %6085 = vmatpush1.bf16.msra.mxu0 0
      %6086 = vmatprep.subr.bf16.mxu0 0
      %6087 = vmatpush1.bf16.msra.mxu0 0
      %6088 = vmatprep.subr.bf16.mxu0 0
      %6089 = vmatpush1.bf16.msra.mxu0 0
      %6090 = vmatprep.subr.bf16.mxu0 0
      %6091 = vmatpush1.bf16.msra.mxu0 0
      %6092 = vmatprep.subr.bf16.mxu0 0
      %6093 = vmatpush1.bf16.msra.mxu0 0
      %6094 = vmatprep.subr.bf16.mxu0 0
      %6095 = vmatpush1.bf16.msra.mxu0 0
      %6096 = vmatprep.subr.bf16.mxu0 0
      %6097 = vmatpush1.bf16.msra.mxu0 0
      %6098 = vmatprep.subr.bf16.mxu0 0
      %6099 = vmatpush1.bf16.msra.mxu0 0
      %6100 = vmatprep.mubr.bf16.mxu0 0
      %6101 = vmatmul.mubr.bf16.gmra.mrb[0].mxu0 %v6066
      %v6102 = vpop.f32.mrb[0].mxu0
      %v6103 = vadd.f32 %v6052, %v6102
      %v6104 = vpop.f32.mrb[0].mxu0
      %v6105 = vpop.f32.mrb[0].mxu0
      %v6106 = vpop.f32.mrb[0].mxu0
      %6107 = vdwg.mxu0
      %v6108 = vlaneseq
      %v6109 = vshrl.u32 %v6108, 7
      %v6110 = vsub.s32 1, %v6109
      %v6111 = vrot.slane %v6024, %v6110
      %v6116 = vunpack.c.l.b16 %v6011
      %v6117 = vunpack.c.l.b16 %v6012
      %v6118 = vunpack.c.l.b16 %v6013
      %v6119 = vunpack.c.l.b16 %v6014
      %v6120 = vpack.c.b16 %v6117, %v6116
      %v6121 = vpack.c.b16 %v6119, %v6118
      %6124 = vmatprep.subr.bf16.mxu0 0
      %6125 = vmatpush1.bf16.msra.mxu0 %v6120
      %6126 = vmatprep.subr.bf16.mxu0 0
      %6127 = vmatpush1.bf16.msra.mxu0 %v6121
      %6128 = vmatprep.subr.bf16.mxu0 0
      %6129 = vmatpush1.bf16.msra.mxu0 0
      %6130 = vmatprep.subr.bf16.mxu0 0
      %6131 = vmatpush1.bf16.msra.mxu0 0
      %6132 = vmatprep.subr.bf16.mxu0 0
      %6133 = vmatpush1.bf16.msra.mxu0 0
      %6134 = vmatprep.subr.bf16.mxu0 0
      %6135 = vmatpush1.bf16.msra.mxu0 0
      %6136 = vmatprep.subr.bf16.mxu0 0
      %6137 = vmatpush1.bf16.msra.mxu0 0
      %6138 = vmatprep.subr.bf16.mxu0 0
      %6139 = vmatpush1.bf16.msra.mxu0 0
      %6140 = vmatprep.subr.bf16.mxu0 0
      %6141 = vmatpush1.bf16.msra.mxu0 0
      %6142 = vmatprep.subr.bf16.mxu0 0
      %6143 = vmatpush1.bf16.msra.mxu0 0
      %6144 = vmatprep.subr.bf16.mxu0 0
      %6145 = vmatpush1.bf16.msra.mxu0 0
      %6146 = vmatprep.subr.bf16.mxu0 0
      %6147 = vmatpush1.bf16.msra.mxu0 0
      %6148 = vmatprep.subr.bf16.mxu0 0
      %6149 = vmatpush1.bf16.msra.mxu0 0
      %6150 = vmatprep.subr.bf16.mxu0 0
      %6151 = vmatpush1.bf16.msra.mxu0 0
      %6152 = vmatprep.subr.bf16.mxu0 0
      %6153 = vmatpush1.bf16.msra.mxu0 0
      %6154 = vmatprep.subr.bf16.mxu0 0
      %6155 = vmatpush1.bf16.msra.mxu0 0
      %6156 = vmatprep.mubr.bf16.mxu0 0
      %6157 = vmatmul.mubr.bf16.gmra.mrb[0].mxu0 %v6066
      %v6158 = vpop.f32.mrb[0].mxu0
      %v6159 = vadd.f32 %v6111, %v6158
      %v6160 = vpop.f32.mrb[0].mxu0
      %v6161 = vpop.f32.mrb[0].mxu0
      %v6162 = vpop.f32.mrb[0].mxu0
      %6163 = vdwg.mxu0
      %v6164 = vlaneseq
      %v6165 = vshrl.u32 %v6164, 7
      %v6166 = vsub.s32 2, %v6165
      %v6167 = vrot.slane %v6024, %v6166
      %v6172 = vunpack.c.l.b16 %v6015
      %v6173 = vunpack.c.l.b16 %v6016
      %v6174 = vunpack.c.l.b16 %v6017
      %v6175 = vunpack.c.l.b16 %v6018
      %v6176 = vpack.c.b16 %v6173, %v6172
      %v6177 = vpack.c.b16 %v6175, %v6174
      %6180 = vmatprep.subr.bf16.mxu0 0
      %6181 = vmatpush1.bf16.msra.mxu0 %v6176
      %6182 = vmatprep.subr.bf16.mxu0 0
      %6183 = vmatpush1.bf16.msra.mxu0 %v6177
      %6184 = vmatprep.subr.bf16.mxu0 0
      %6185 = vmatpush1.bf16.msra.mxu0 0
      %6186 = vmatprep.subr.bf16.mxu0 0
      %6187 = vmatpush1.bf16.msra.mxu0 0
      %6188 = vmatprep.subr.bf16.mxu0 0
      %6189 = vmatpush1.bf16.msra.mxu0 0
      %6190 = vmatprep.subr.bf16.mxu0 0
      %6191 = vmatpush1.bf16.msra.mxu0 0
      %6192 = vmatprep.subr.bf16.mxu0 0
      %6193 = vmatpush1.bf16.msra.mxu0 0
      %6194 = vmatprep.subr.bf16.mxu0 0
      %6195 = vmatpush1.bf16.msra.mxu0 0
      %6196 = vmatprep.subr.bf16.mxu0 0
      %6197 = vmatpush1.bf16.msra.mxu0 0
      %6198 = vmatprep.subr.bf16.mxu0 0
      %6199 = vmatpush1.bf16.msra.mxu0 0
      %6200 = vmatprep.subr.bf16.mxu0 0
      %6201 = vmatpush1.bf16.msra.mxu0 0
      %6202 = vmatprep.subr.bf16.mxu0 0
      %6203 = vmatpush1.bf16.msra.mxu0 0
      %6204 = vmatprep.subr.bf16.mxu0 0
      %6205 = vmatpush1.bf16.msra.mxu0 0
      %6206 = vmatprep.subr.bf16.mxu0 0
      %6207 = vmatpush1.bf16.msra.mxu0 0
      %6208 = vmatprep.subr.bf16.mxu0 0
      %6209 = vmatpush1.bf16.msra.mxu0 0
      %6210 = vmatprep.subr.bf16.mxu0 0
      %6211 = vmatpush1.bf16.msra.mxu0 0
      %6212 = vmatprep.mubr.bf16.mxu0 0
      %6213 = vmatmul.mubr.bf16.gmra.mrb[0].mxu0 %v6066
      %v6214 = vpop.f32.mrb[0].mxu0
      %v6215 = vadd.f32 %v6167, %v6214
      %v6216 = vpop.f32.mrb[0].mxu0
      %v6217 = vpop.f32.mrb[0].mxu0
      %v6218 = vpop.f32.mrb[0].mxu0
      %6219 = vdwg.mxu0
      %v6221 = vrot.slane %v6103, 3
      %v6223 = vrot.slane %v6103, 6
      %v6225 = vrot.slane %v6103, 1
      %v6227 = vsel %vm772, %v6103, %v6221
      %v6228 = vsel %vm5571, %v6221, %v6223
      %v6229 = vsel %vm5573, %v6228, %v6225
      %v6230 = vmul.f32 %v6227, %v5347
      %v6231 = vmul.f32 %v6229, %v5348
      %v6232 = vmul.f32 %v6225, %v5349
      %v6233 = vpack.c.bf16 %v6231, %v6230
      %v6234 = vpack.c.bf16 %v6232, %v6232
      %v6235 = vpack.c.bf16 %v6159, %v6159
      %v6237 = vsel %vm2690, %v6233, 0
      %v6240 = vsel %vm2690, %v6234, 0
      %v6243 = vsel %vm2690, %v6235, 0
      %6245 = vmatprep.subr.bf16.mxu0 0
      %6246 = vmatpush1.bf16.xpose.msra.mxu0 %v6243
      %6247 = vmatprep.subr.bf16.mxu0 0
      %6248 = vmatpush1.bf16.xpose.msra.mxu0 0
      %6249 = vmatprep.subr.bf16.mxu0 0
      %6250 = vmatpush1.bf16.xpose.msra.mxu0 0
      %6251 = vmatprep.subr.bf16.mxu0 0
      %6252 = vmatpush1.bf16.xpose.msra.mxu0 0
      %6253 = vmatprep.subr.bf16.mxu0 0
      %6254 = vmatpush1.bf16.xpose.msra.mxu0 0
      %6255 = vmatprep.subr.bf16.mxu0 0
      %6256 = vmatpush1.bf16.xpose.msra.mxu0 0
      %6257 = vmatprep.subr.bf16.mxu0 0
      %6258 = vmatpush1.bf16.xpose.msra.mxu0 0
      %6259 = vmatprep.subr.bf16.mxu0 0
      %6260 = vmatpush1.bf16.xpose.msra.mxu0 0
      %6261 = vmatprep.subr.bf16.mxu0 0
      %6262 = vmatpush1.bf16.xpose.msra.mxu0 0
      %6263 = vmatprep.subr.bf16.mxu0 0
      %6264 = vmatpush1.bf16.xpose.msra.mxu0 0
      %6265 = vmatprep.subr.bf16.mxu0 0
      %6266 = vmatpush1.bf16.xpose.msra.mxu0 0
      %6267 = vmatprep.subr.bf16.mxu0 0
      %6268 = vmatpush1.bf16.xpose.msra.mxu0 0
      %6269 = vmatprep.subr.bf16.mxu0 0
      %6270 = vmatpush1.bf16.xpose.msra.mxu0 0
      %6271 = vmatprep.subr.bf16.mxu0 0
      %6272 = vmatpush1.bf16.xpose.msra.mxu0 0
      %6273 = vmatprep.subr.bf16.mxu0 0
      %6274 = vmatpush1.bf16.xpose.msra.mxu0 0
      %6275 = vmatprep.subr.bf16.mxu0 0
      %6276 = vmatpush1.bf16.xpose.msra.mxu0 0
      %6277 = vmatprep.mubr.bf16.mxu0 0
      %6278 = vmatmul.mubr.bf16.gmra.mrb[0].mxu0 %v6237
      %v6279 = vpop.f32.mrb[0].mxu0
      %v6280 = vadd.f32 0.0, %v6279
      %v6281 = vpop.f32.mrb[0].mxu0
      %v6282 = vpop.f32.mrb[0].mxu0
      %v6283 = vadd.f32 0.0, %v6282
      %v6284 = vpop.f32.mrb[0].mxu0
      %6285 = vmatprep.mubr.bf16.mxu0 0
      %6286 = vmatmul.mubr.bf16.gmra.mrb[0].mxu0 %v6240
      %v6287 = vpop.f32.mrb[0].mxu0
      %v6288 = vadd.f32 0.0, %v6287
      %v6289 = vpop.f32.mrb[0].mxu0
      %v6290 = vpop.f32.mrb[0].mxu0
      %v6291 = vpop.f32.mrb[0].mxu0
      %6292 = vdwg.mxu0
      %v6293 = vmul.f32 %v6280, 0.35355338
      %v6294 = vmul.f32 %v6283, 0.35355338
      %v6295 = vmul.f32 %v6288, 0.35355338
      %v6296 = vsel %vm5641, %v6293, -inf
      %6297 = vmax.xlane.f32.xlu0 %v6296
      %v6298 = vpop.xlane.xlu0 %6297
      %v6299 = vsel %vm5641, %v6294, -inf
      %6300 = vmax.xlane.f32.xlu0 %v6299
      %v6301 = vpop.xlane.xlu0 %6300
      %v6302 = vsel %vm5648, %v6295, -inf
      %6303 = vmax.xlane.f32.xlu0 %v6302
      %v6304 = vpop.xlane.xlu0 %6303
      %v6305 = vsub.f32 %v6293, %v6298
      %v6306 = vsub.f32 %v6294, %v6301
      %v6307 = vsub.f32 %v6295, %v6304
      %v6308 = vmul.f32 %v6305, 1.442695
      %v6309 = vpow.pop %v6308
      %v6310 = vmul.f32 %v6306, 1.442695
      %v6311 = vpow.pop %v6310
      %v6312 = vmul.f32 %v6307, 1.442695
      %v6313 = vpow.pop %v6312
      %v6314 = vsel %vm5641, %v6309, 0.0
      %6315 = vadd.xlane.f32.xlu0 %v6314
      %v6316 = vpop.xlane.xlu0 %6315
      %v6317 = vsel %vm5641, %v6311, 0.0
      %6318 = vadd.xlane.f32.xlu0 %v6317
      %v6319 = vpop.xlane.xlu0 %6318
      %v6320 = vsel %vm5648, %v6313, 0.0
      %6321 = vadd.xlane.f32.xlu0 %v6320
      %v6322 = vpop.xlane.xlu0 %6321
      %v6323 = vrcp.pop %v6316
      %v6324 = vrcp.pop %v6319
      %v6325 = vrcp.pop %v6322
      %v6326 = vmul.f32 %v6309, %v6323
      %v6327 = vmul.f32 %v6311, %v6324
      %v6328 = vmul.f32 %v6313, %v6325
      %v6329 = vpack.c.bf16 %v6327, %v6326
      %v6330 = vpack.c.bf16 %v6328, %v6328
      %v6331 = vpack.c.bf16 %v6215, %v6215
      %v6333 = vsel %vm5641, %v6329, 0
      %v6336 = vsel %vm5641, %v6330, 0
      %v6339 = vand.u32 %v6331, %v5686
      %6341 = vmatprep.subr.bf16.mxu0 0
      %6342 = vmatpush1.bf16.msra.mxu0 %v6339
      %6343 = vmatprep.subr.bf16.mxu0 0
      %6344 = vmatpush1.bf16.msra.mxu0 0
      %6345 = vmatprep.subr.bf16.mxu0 0
      %6346 = vmatpush1.bf16.msra.mxu0 0
      %6347 = vmatprep.subr.bf16.mxu0 0
      %6348 = vmatpush1.bf16.msra.mxu0 0
      %6349 = vmatprep.subr.bf16.mxu0 0
      %6350 = vmatpush1.bf16.msra.mxu0 0
      %6351 = vmatprep.subr.bf16.mxu0 0
      %6352 = vmatpush1.bf16.msra.mxu0 0
      %6353 = vmatprep.subr.bf16.mxu0 0
      %6354 = vmatpush1.bf16.msra.mxu0 0
      %6355 = vmatprep.subr.bf16.mxu0 0
      %6356 = vmatpush1.bf16.msra.mxu0 0
      %6357 = vmatprep.subr.bf16.mxu0 0
      %6358 = vmatpush1.bf16.msra.mxu0 0
      %6359 = vmatprep.subr.bf16.mxu0 0
      %6360 = vmatpush1.bf16.msra.mxu0 0
      %6361 = vmatprep.subr.bf16.mxu0 0
      %6362 = vmatpush1.bf16.msra.mxu0 0
      %6363 = vmatprep.subr.bf16.mxu0 0
      %6364 = vmatpush1.bf16.msra.mxu0 0
      %6365 = vmatprep.subr.bf16.mxu0 0
      %6366 = vmatpush1.bf16.msra.mxu0 0
      %6367 = vmatprep.subr.bf16.mxu0 0
      %6368 = vmatpush1.bf16.msra.mxu0 0
      %6369 = vmatprep.subr.bf16.mxu0 0
      %6370 = vmatpush1.bf16.msra.mxu0 0
      %6371 = vmatprep.subr.bf16.mxu0 0
      %6372 = vmatpush1.bf16.msra.mxu0 0
      %6373 = vmatprep.mubr.bf16.mxu0 0
      %6374 = vmatmul.mubr.bf16.gmra.mrb[0].mxu0 %v6333
      %v6375 = vpop.f32.mrb[0].mxu0
      %v6376 = vadd.f32 0.0, %v6375
      %v6377 = vpop.f32.mrb[0].mxu0
      %v6378 = vpop.f32.mrb[0].mxu0
      %v6379 = vadd.f32 0.0, %v6378
      %v6380 = vpop.f32.mrb[0].mxu0
      %6381 = vmatprep.mubr.bf16.mxu0 0
      %6382 = vmatmul.mubr.bf16.gmra.mrb[0].mxu0 %v6336
      %v6383 = vpop.f32.mrb[0].mxu0
      %v6384 = vadd.f32 0.0, %v6383
      %v6385 = vpop.f32.mrb[0].mxu0
      %v6386 = vpop.f32.mrb[0].mxu0
      %v6387 = vpop.f32.mrb[0].mxu0
      %6388 = vdwg.mxu0
      %v6389 = vmul.f32 %v6376, %v5347
      %v6390 = vmul.f32 %v6379, %v5348
      %v6391 = vmul.f32 %v6384, %v5349
      %v6394 = vrot.slane %v6389, 5
      %v6395 = vrot.slane %v6390, 5
      %v6396 = vsel %vm5192, %v6394, %v6395
      %v6398 = vadd.f32 %v6389, %v6396
      %v6399 = vrot.slane %v6390, 2
      %v6401 = vadd.f32 %v6398, %v6399
      %v6403 = vrot.slane %v6390, 7
      %v6404 = vrot.slane %v6391, 7
      %v6405 = vsel %vm5752, %v6403, %v6404
      %v6407 = vadd.f32 %v6401, %v6405
      %v6408 = vpack.c.bf16 %v6407, %v6407
      %v6413 = vunpack.c.l.b16 %v6019
      %v6414 = vunpack.c.l.b16 %v6020
      %v6415 = vunpack.c.l.b16 %v6021
      %v6416 = vunpack.c.l.b16 %v6022
      %v6417 = vpack.c.b16 %v6414, %v6413
      %v6418 = vpack.c.b16 %v6416, %v6415
      %v6422 = vsel %vm2690, %v6408, 0
      %6424 = vmatprep.subr.bf16.mxu0 0
      %6425 = vmatpush1.bf16.msra.mxu0 %v6417
      %6426 = vmatprep.subr.bf16.mxu0 0
      %6427 = vmatpush1.bf16.msra.mxu0 %v6418
      %6428 = vmatprep.subr.bf16.mxu0 0
      %6429 = vmatpush1.bf16.msra.mxu0 0
      %6430 = vmatprep.subr.bf16.mxu0 0
      %6431 = vmatpush1.bf16.msra.mxu0 0
      %6432 = vmatprep.subr.bf16.mxu0 0
      %6433 = vmatpush1.bf16.msra.mxu0 0
      %6434 = vmatprep.subr.bf16.mxu0 0
      %6435 = vmatpush1.bf16.msra.mxu0 0
      %6436 = vmatprep.subr.bf16.mxu0 0
      %6437 = vmatpush1.bf16.msra.mxu0 0
      %6438 = vmatprep.subr.bf16.mxu0 0
      %6439 = vmatpush1.bf16.msra.mxu0 0
      %6440 = vmatprep.subr.bf16.mxu0 0
      %6441 = vmatpush1.bf16.msra.mxu0 0
      %6442 = vmatprep.subr.bf16.mxu0 0
      %6443 = vmatpush1.bf16.msra.mxu0 0
      %6444 = vmatprep.subr.bf16.mxu0 0
      %6445 = vmatpush1.bf16.msra.mxu0 0
      %6446 = vmatprep.subr.bf16.mxu0 0
      %6447 = vmatpush1.bf16.msra.mxu0 0
      %6448 = vmatprep.subr.bf16.mxu0 0
      %6449 = vmatpush1.bf16.msra.mxu0 0
      %6450 = vmatprep.subr.bf16.mxu0 0
      %6451 = vmatpush1.bf16.msra.mxu0 0
      %6452 = vmatprep.subr.bf16.mxu0 0
      %6453 = vmatpush1.bf16.msra.mxu0 0
      %6454 = vmatprep.subr.bf16.mxu0 0
      %6455 = vmatpush1.bf16.msra.mxu0 0
      %6456 = vmatprep.mubr.bf16.mxu0 0
      %6457 = vmatmul.mubr.bf16.gmra.mrb[0].mxu0 %v6422
      %v6458 = vpop.f32.mrb[0].mxu0
      %v6459 = vadd.f32 0.0, %v6458
      %v6460 = vpop.f32.mrb[0].mxu0
      %v6461 = vpop.f32.mrb[0].mxu0
      %v6462 = vpop.f32.mrb[0].mxu0
      %6463 = vdwg.mxu0
      %v6464 = vadd.f32 %v6003, %v6459
      %v6465 = vlaneseq
      %v6466 = vshrl.u32 %v6465, 7
      %v6467 = vsub.s32 3, %v6466
      %v6468 = vrot.slane %v6024, %v6467
      %v6469 = vadd.f32 %v6464, %v6468
      %v6470 = vsel %vm5322, %v6469, 0.0
      %6471 = vadd.xlane.f32.xlu0 %v6470
      %v6472 = vpop.xlane.xlu0 %6471
      %v6473 = vmul.f32 %v6472, %v5326
      %v6474 = vsub.f32 %v6469, %v6473
      %v6475 = vmul.f32 %v6474, %v6474
      %v6476 = vsel %vm5322, %v6475, 0.0
      %6477 = vadd.xlane.f32.xlu0 %v6476
      %v6478 = vpop.xlane.xlu0 %6477
      %v6479 = vmul.f32 %v6478, %v5326
      %v6480 = vadd.f32 %v6479, 1e-05
      %v6481 = vrsqrt.pop %v6480
      %v6482 = vmul.f32 %v6474, %v6481
      %v6483 = vlaneseq
      %v6484 = vshrl.u32 %v6483, 7
      %v6485 = vsub.s32 2, %v6484
      %v6486 = vrot.slane %v6005, %v6485
      %v6487 = vmul.f32 %v6482, %v6486
      %v6488 = vlaneseq
      %v6489 = vshrl.u32 %v6488, 7
      %v6490 = vsub.s32 3, %v6489
      %v6491 = vrot.slane %v6005, %v6490
      %v6492 = vadd.f32 %v6487, %v6491
      %s6493 = scalar_lea.vmem %s15, 16
      %v6494 = vld [vmem:[%s6493] sm:$0xf]
      %v6495 = vld [vmem:[%s6493 + $0x4] sm:$0xf]
      %v6496 = vld [vmem:[%s6493 + $0x8] sm:$0xf]
      %v6497 = vld [vmem:[%s6493 + $0xc] sm:$0xf]
      %v6498 = vpack.c.bf16 %v6492, %v6492
      %s6499 = scalar_lea.vmem %s16, 1
      %v6500 = vld [vmem:[%s6499] sm:$0x1]
      %v6502 = vlaneseq
      %v6503 = vshrl.u32 %v6502, 7
      %v6504 = vsub.s32 0, %v6503
      %v6505 = vrot.slane %v6500, %v6504
      %v6511 = vunpack.c.l.b16 %v6494
      %v6512 = vunpack.c.l.b16 %v6495
      %v6513 = vunpack.c.l.b16 %v6496
      %v6514 = vunpack.c.l.b16 %v6497
      %v6515 = vpack.c.b16 %v6512, %v6511
      %v6516 = vpack.c.b16 %v6514, %v6513
      %v6520 = vsel %vm2690, %v6498, 0
      %6522 = vmatprep.subr.bf16.mxu0 0
      %6523 = vmatpush1.bf16.msra.mxu0 %v6515
      %6524 = vmatprep.subr.bf16.mxu0 0
      %6525 = vmatpush1.bf16.msra.mxu0 %v6516
      %6526 = vmatprep.subr.bf16.mxu0 0
      %6527 = vmatpush1.bf16.msra.mxu0 0
      %6528 = vmatprep.subr.bf16.mxu0 0
      %6529 = vmatpush1.bf16.msra.mxu0 0
      %6530 = vmatprep.subr.bf16.mxu0 0
      %6531 = vmatpush1.bf16.msra.mxu0 0
      %6532 = vmatprep.subr.bf16.mxu0 0
      %6533 = vmatpush1.bf16.msra.mxu0 0
      %6534 = vmatprep.subr.bf16.mxu0 0
      %6535 = vmatpush1.bf16.msra.mxu0 0
      %6536 = vmatprep.subr.bf16.mxu0 0
      %6537 = vmatpush1.bf16.msra.mxu0 0
      %6538 = vmatprep.subr.bf16.mxu0 0
      %6539 = vmatpush1.bf16.msra.mxu0 0
      %6540 = vmatprep.subr.bf16.mxu0 0
      %6541 = vmatpush1.bf16.msra.mxu0 0
      %6542 = vmatprep.subr.bf16.mxu0 0
      %6543 = vmatpush1.bf16.msra.mxu0 0
      %6544 = vmatprep.subr.bf16.mxu0 0
      %6545 = vmatpush1.bf16.msra.mxu0 0
      %6546 = vmatprep.subr.bf16.mxu0 0
      %6547 = vmatpush1.bf16.msra.mxu0 0
      %6548 = vmatprep.subr.bf16.mxu0 0
      %6549 = vmatpush1.bf16.msra.mxu0 0
      %6550 = vmatprep.subr.bf16.mxu0 0
      %6551 = vmatpush1.bf16.msra.mxu0 0
      %6552 = vmatprep.subr.bf16.mxu0 0
      %6553 = vmatpush1.bf16.msra.mxu0 0
      %6554 = vmatprep.mubr.bf16.mxu0 0
      %6555 = vmatmul.mubr.bf16.gmra.mrb[0].mxu0 %v6520
      %v6556 = vpop.f32.mrb[0].mxu0
      %v6557 = vadd.f32 %v6505, %v6556
      %v6558 = vpop.f32.mrb[0].mxu0
      %v6559 = vpop.f32.mrb[0].mxu0
      %v6560 = vpop.f32.mrb[0].mxu0
      %6561 = vdwg.mxu0
      %v6562 = vmul.f32 %v6557, 0.5
      %v6563 = vmul.f32 %v6557, 0.044715
      %v6564 = vmul.f32 %v6563, %v6557
      %v6565 = vmul.f32 %v6564, %v6557
      %v6566 = vadd.f32 %v6557, %v6565
      %v6567 = vmul.f32 %v6566, 0.7978846
      %v6568 = vtanh.pop %v6567
      %v6569 = vadd.f32 %v6568, 1.0
      %v6570 = vmul.f32 %v6562, %v6569
      %s6571 = scalar_lea.vmem %s17, 32
      %v6572 = vld [vmem:[%s6571] sm:$0xf]
      %v6573 = vld [vmem:[%s6571 + $0x4] sm:$0xf]
      %v6574 = vld [vmem:[%s6571 + $0x8] sm:$0xf]
      %v6575 = vld [vmem:[%s6571 + $0xc] sm:$0xf]
      %v6576 = vld [vmem:[%s6571 + $0x10] sm:$0xf]
      %v6577 = vld [vmem:[%s6571 + $0x14] sm:$0xf]
      %v6578 = vld [vmem:[%s6571 + $0x18] sm:$0xf]
      %v6579 = vld [vmem:[%s6571 + $0x1c] sm:$0xf]
      %v6580 = vpack.c.bf16 %v6570, %v6570
      %v6589 = vunpack.c.l.b16 %v6572
      %v6590 = vunpack.c.l.b16 %v6573
      %v6591 = vunpack.c.l.b16 %v6574
      %v6592 = vunpack.c.l.b16 %v6575
      %v6593 = vunpack.c.l.b16 %v6576
      %v6594 = vunpack.c.l.b16 %v6577
      %v6595 = vunpack.c.l.b16 %v6578
      %v6596 = vunpack.c.l.b16 %v6579
      %v6597 = vpack.c.b16 %v6590, %v6589
      %v6598 = vpack.c.b16 %v6592, %v6591
      %v6599 = vpack.c.b16 %v6594, %v6593
      %v6600 = vpack.c.b16 %v6596, %v6595
      %v6606 = vsel %vm5210, %v6580, 0
      %6608 = vmatprep.subr.bf16.mxu0 0
      %6609 = vmatpush1.bf16.msra.mxu0 %v6597
      %6610 = vmatprep.subr.bf16.mxu0 0
      %6611 = vmatpush1.bf16.msra.mxu0 %v6598
      %6612 = vmatprep.subr.bf16.mxu0 0
      %6613 = vmatpush1.bf16.msra.mxu0 %v6599
      %6614 = vmatprep.subr.bf16.mxu0 0
      %6615 = vmatpush1.bf16.msra.mxu0 %v6600
      %6616 = vmatprep.subr.bf16.mxu0 0
      %6617 = vmatpush1.bf16.msra.mxu0 0
      %6618 = vmatprep.subr.bf16.mxu0 0
      %6619 = vmatpush1.bf16.msra.mxu0 0
      %6620 = vmatprep.subr.bf16.mxu0 0
      %6621 = vmatpush1.bf16.msra.mxu0 0
      %6622 = vmatprep.subr.bf16.mxu0 0
      %6623 = vmatpush1.bf16.msra.mxu0 0
      %6624 = vmatprep.subr.bf16.mxu0 0
      %6625 = vmatpush1.bf16.msra.mxu0 0
      %6626 = vmatprep.subr.bf16.mxu0 0
      %6627 = vmatpush1.bf16.msra.mxu0 0
      %6628 = vmatprep.subr.bf16.mxu0 0
      %6629 = vmatpush1.bf16.msra.mxu0 0
      %6630 = vmatprep.subr.bf16.mxu0 0
      %6631 = vmatpush1.bf16.msra.mxu0 0
      %6632 = vmatprep.subr.bf16.mxu0 0
      %6633 = vmatpush1.bf16.msra.mxu0 0
      %6634 = vmatprep.subr.bf16.mxu0 0
      %6635 = vmatpush1.bf16.msra.mxu0 0
      %6636 = vmatprep.subr.bf16.mxu0 0
      %6637 = vmatpush1.bf16.msra.mxu0 0
      %6638 = vmatprep.subr.bf16.mxu0 0
      %6639 = vmatpush1.bf16.msra.mxu0 0
      %6640 = vmatprep.mubr.bf16.mxu0 0
      %6641 = vmatmul.mubr.bf16.gmra.mrb[0].mxu0 %v6606
      %v6642 = vpop.f32.mrb[0].mxu0
      %v6643 = vadd.f32 0.0, %v6642
      %v6644 = vpop.f32.mrb[0].mxu0
      %v6645 = vpop.f32.mrb[0].mxu0
      %v6646 = vpop.f32.mrb[0].mxu0
      %6647 = vdwg.mxu0
      %v6648 = vadd.f32 %v6469, %v6643
      %s6649 = scalar_lea.vmem %s18, 1
      %v6650 = vld [vmem:[%s6649] sm:$0x1]
      %v6652 = vlaneseq
      %v6653 = vshrl.u32 %v6652, 7
      %v6654 = vsub.s32 0, %v6653
      %v6655 = vrot.slane %v6650, %v6654
      %v6657 = vadd.f32 %v6648, %v6655
      %6659 = vrot.lane.b32.xlu0 %v6657, 32
      %v6660 = vpop.permute.xlu0 %6659
      %v6662 = vsel %vm2690, %v6003, %v6660
      %v6663 = vsel %vm5210, %v6662, 0.0
      %6664 = vst [vmem:[%s600] sm:$0x1f] %v6663
      %p6665 = scmp.lt.s32.totalorder %s30, 1
      %s6666 = scalar_select %p6665, %s30, 1
      %s6667 = smul.addr %s6666, 8
      %s6668 = scalar_lea.vmem %s19, %s6667
      // Predicated region
      $region97: #{classifier_forward.1} parent=95 // pred_check
        %p6669 = pneg %p452
      $region98: #{classifier_forward.1} parent=95 // pred_check_branch
        %6671 = sbr.rel (%p6669) target = $region100
      $region99: #{classifier_forward.1} parent=95 // pred_region
        _
      $region100: #{classifier_forward.1} parent=95 // pred_fallthru
        _
    $region96: #{classifier_forward.1} parent=5 // pred_fallthru
      _
    %p6672 = scmp.le.s32.totalorder 2, %s25
    // Predicated region
    $region101: #{classifier_forward.1} parent=5 // pred_check
      %p6673 = pneg %p6672
    $region102: #{classifier_forward.1} parent=5 // pred_check_branch
      %6675 = sbr.rel (%p6673) target = $region104
    $region103: #{classifier_forward.1} parent=5 // pred_region
      %s6676 = ssub.s32 %s25, 2
      // Predicated region
      $region105: #{classifier_forward.1} parent=103 // pred_check
        %p6677 = pneg %p458
      $region106: #{classifier_forward.1} parent=103 // pred_check_branch
        %6679 = sbr.rel (%p6677) target = $region108
      $region107: #{classifier_forward.1} parent=103 // pred_region
        %p6680 = scmp.lt.s32.totalorder %s31, 1
        %s6681 = scalar_select %p6680, %s31, 1
        %s6682 = smul.addr %s6681, 8
        %s6683 = scalar_lea.vmem %s19, %s6682
      $region108: #{classifier_forward.1} parent=103 // pred_fallthru
        _
    $region104: #{classifier_forward.1} parent=5 // pred_fallthru
      _
  $region6: #{classifier_forward.1} parent=0 // loop_footer
    %s29 = sadd.s32 1, %s25
  $region7: #{classifier_forward.1} parent=0 // loop_footer_branch
    %24 = sbr.rel target = $region3
  $region8: #{classifier_forward.1} parent=0 // loop_exit
    _

</llo_original>
